<compile_context>
chip_gen: v6e
topology: v6e:2x2x1
jax: 0.10.0
libtpu: 0.0.40
codegen_flags: <defaults>
</compile_context>

<pallas_src>
import functools

import jax
import jax.numpy as jnp
import numpy as np
from jax import lax
from jax.experimental import pallas as pl
from jax.experimental.pallas import tpu as pltpu

MID = 32          # hidden channel count inside the module
GROUPS = 16       # GroupNorm groups
GN_EPS = 1e-5

# (kh, kw) enumeration order shared by the mask builder, weight packing and kernel.
_J_ORDER = tuple((kh, kw) for kh in range(3) for kw in range(3))   # center = index 4


# ---------------------------------------------------------------------------
# Fused kernel: B samples per grid step, channel-major (C on sublanes,
# flattened spatial M = D*H*W on lanes).
# ---------------------------------------------------------------------------
def _fused_kernel(x_ref, masks_ref, w1_ref, b1_ref, w2_ref, b2_ref,
                  gmat_ref, gamma_ref, beta_ref, w3_ref, b3_ref,
                  o_ref, pads_ref, *, D, H, W, PAD, B):
    C = MID
    HW = H * W
    M = D * HW

    # Parameter / constant loads hoisted out of the per-sample loop.
    masks = masks_ref[...]            # (8, M) h/w-boundary masks (source side)
    w1 = w1_ref[...]                  # (C, Cin)
    b1 = b1_ref[...]                  # (C, 1)
    w2 = w2_ref[...]                  # (27, C, C)  per-tap (out, in)
    b2 = b2_ref[...]                  # (C, 1)
    gmat = gmat_ref[...]              # (C, C) group membership
    gamma = gamma_ref[...]            # (C, 1)
    beta = beta_ref[...]              # (C, 1)
    w3 = w3_ref[...]                  # (Cout, C)
    b3 = b3_ref[...]                  # (Cout, 1)

    # Zero only the halo pads of the 9 pre-masked buffers.  Done EVERY grid step
    # (cheap: 2*PAD columns) instead of under program_id==0, so correctness holds
    # when the "parallel" grid axis is split across TensorCores (megacore / v7x).
    pads_ref[:, :, :PAD] = jnp.zeros((9, C, PAD), jnp.float32)
    pads_ref[:, :, PAD + M:] = jnp.zeros((9, C, PAD), jnp.float32)

    inv_n = 1.0 / float(M * (C // GROUPS))

    for s in range(B):
        # ---- 1x1 conv + ReLU:  (C, Cin) @ (Cin, M) -> (C, M) -----------------
        x = x_ref[s]                                                  # (Cin, M)
        h1 = jnp.maximum(
            jnp.dot(w1, x, preferred_element_type=jnp.float32) + b1, 0.0)

        # ---- write the 9 (dh,dw) pre-masked copies of h1 (8 mask multiplies) --
        r = 0
        for j, (kh, kw) in enumerate(_J_ORDER):
            if kh == 1 and kw == 1:
                pads_ref[j, :, PAD:PAD + M] = h1                      # center: unmasked
            else:
                pads_ref[j, :, PAD:PAD + M] = h1 * masks[r:r + 1, :]
                r += 1

        # ---- 3x3x3 conv (padding=1): 27 accumulating K=C matmuls, no im2col slab
        # d-overflow of the shifted reads lands in the zero halo; h/w wrap-around
        # reads land on rows/columns zeroed by the source-side masks.
        h2 = None
        t = 0
        for kd in range(3):
            dd = kd - 1
            for j, (kh, kw) in enumerate(_J_ORDER):
                dh, dw = kh - 1, kw - 1
                start = PAD + dd * HW + dh * W + dw                   # static offset
                piece = pads_ref[j, :, start:start + M]               # (C, M)
                contrib = jnp.dot(w2[t], piece,
                                  preferred_element_type=jnp.float32)
                h2 = contrib if h2 is None else h2 + contrib
                t += 1
        h2 = h2 + b2                                                  # (C, M)

        # ---- GroupNorm(16, C) + ReLU: single-pass stats, fused normalize ------
        csum = jnp.sum(h2, axis=1, keepdims=True)                     # (C, 1)
        csq = jnp.sum(h2 * h2, axis=1, keepdims=True)                 # (C, 1)
        mean = jnp.dot(gmat, csum, preferred_element_type=jnp.float32) * inv_n
        ex2 = jnp.dot(gmat, csq, preferred_element_type=jnp.float32) * inv_n
        var = jnp.maximum(ex2 - mean * mean, 0.0)
        scale = lax.rsqrt(var + GN_EPS) * gamma                       # (C, 1)
        shift = beta - mean * scale                                   # (C, 1)
        xr = jnp.maximum(h2 * scale + shift, 0.0)                     # (C, M)

        # ---- final 1x1 conv + ReLU, channel-major output (NCDHW, lane-dense) --
        y = jnp.dot(w3, xr, preferred_element_type=jnp.float32)       # (Cout, M)
        o_ref[s] = jnp.maximum(y + b3, 0.0)


# ---------------------------------------------------------------------------
# Host-side helpers
# ---------------------------------------------------------------------------
@functools.lru_cache(maxsize=None)
def _build_edge_masks(D, H, W):
    """Source-side h/w boundary masks for the 8 (dh,dw) != (0,0) tap groups.

    Buffer for (dh,dw) zeroes plane row h=0 (if dh=+1), h=H-1 (if dh=-1),
    column w=0 (if dw=+1), w=W-1 (if dw=-1); d-overflow is covered by the halo pad.
    """
    h = np.arange(H)[:, None]
    w = np.arange(W)[None, :]
    rows = []
    for kh in range(3):
        for kw in range(3):
            dh, dw = kh - 1, kw - 1
            if dh == 0 and dw == 0:
                continue
            ok = np.ones((H, W), dtype=bool)
            if dh == +1:
                ok &= (h != 0)
            if dh == -1:
                ok &= (h != H - 1)
            if dw == +1:
                ok &= (w != 0)
            if dw == -1:
                ok &= (w != W - 1)
            rows.append(np.tile(ok.astype(np.float32).reshape(-1), D))   # (M,)
    return jnp.asarray(np.stack(rows))                                   # (8, M)


def _pick_samples_per_step(N):
    if N <= 2:
        return 1                      # keep grid length >= 2 so both v7x TCs get work
    for b in (8, 4, 2):
        if N % b == 0 and N // b >= 2:
            return b
    return 1


def _vmem_capacity_bytes():
    try:
        info = pltpu.get_tpu_info()
        for attr in ("vmem_capacity_bytes", "vmem_bytes", "vmem_size_bytes"):
            v = getattr(info, attr, None)
            if v:
                return int(v)
    except Exception:
        pass
    return 64 * 1024 * 1024           # conservative (v7x physical per-core VMEM)


def conv3d_gn_relu_by1x1_forward(x_ncdhw, params, samples_per_step=None):
    N, Cin, D, H, W = x_ncdhw.shape
    HW = H * W
    M = D * HW
    # Halo pad >= largest |tap offset| (HW + W + 1), rounded to a lane tile so the
    # middle region of the scratch stays lane-aligned.
    PAD = ((HW + W + 1 + 127) // 128) * 128
    Cout = params["w3"].shape[1]

    B = samples_per_step or _pick_samples_per_step(N)
    assert N % B == 0, "samples_per_step must divide the batch"
    grid_len = N // B

    # NCDHW consumed directly: per-sample (Cin, D*H*W) is a free reshape.
    x3 = x_ncdhw.reshape(N, Cin, M)
    if x3.dtype != jnp.float32:
        x3 = x3.astype(jnp.float32)

    # Channel-major parameter packing (tiny, host/XLA side).
    w1_cm = params["w1"].T                                          # (32, Cin)
    w2 = params["w2"]                                               # (3,3,3,In,Out) DHWIO
    w2_t = jnp.stack([w2[kd, kh, kw].T                              # (Out, In) per tap
                      for kd in range(3) for (kh, kw) in _J_ORDER], axis=0)   # (27,32,32)
    w3_cm = params["w3"].T                                          # (Cout, 32)
    b1 = params["b1"].reshape(MID, 1)
    b2 = params["b2"].reshape(MID, 1)
    b3 = params["b3"].reshape(Cout, 1)
    gamma = params["gamma"].reshape(MID, 1)
    beta = params["beta"].reshape(MID, 1)
    gidx = jnp.arange(MID) // (MID // GROUPS)
    gmat = (gidx[:, None] == gidx[None, :]).astype(jnp.float32)     # (32, 32) membership
    masks = _build_edge_masks(D, H, W)                              # (8, M), cached

    # Explicit scoped-VMEM limit only when the estimate could exceed the smallest
    # default (16 MiB on v5e); otherwise leave the compiler default untouched.
    est_bytes = 4 * (9 * MID * (M + 2 * PAD)        # pre-masked padded h1 buffers
                     + 2 * B * (Cin + Cout) * M     # double-buffered in/out blocks
                     + 2 * 8 * M                    # masks
                     + 27 * MID * MID               # per-tap weights
                     + 8 * MID * M)                 # h1 / h2 / xr / accumulator headroom
    compiler_kwargs = {"dimension_semantics": ("parallel",)}
    if 2 * est_bytes > 16 * 1024 * 1024:
        cap = _vmem_capacity_bytes()
        compiler_kwargs["vmem_limit_bytes"] = int(
            min(max(2 * est_bytes, 32 * 1024 * 1024), 0.75 * cap))
    # TODO(synk): tile D (with a 1-slab halo) once 2*est_bytes approaches the limit.

    kernel = functools.partial(_fused_kernel, D=D, H=H, W=W, PAD=PAD, B=B)
    out3 = pl.pallas_call(
        kernel,
        out_shape=jax.ShapeDtypeStruct((N, Cout, M), jnp.float32),
        grid_spec=pltpu.PrefetchScalarGridSpec(
            num_scalar_prefetch=0,
            grid=(grid_len,),
            in_specs=[
                pl.BlockSpec((B, Cin, M), lambda g: (g, 0, 0)),      # x
                pl.BlockSpec((8, M), lambda g: (0, 0)),              # masks (dense 2D)
                pl.BlockSpec((MID, Cin), lambda g: (0, 0)),          # w1
                pl.BlockSpec((MID, 1), lambda g: (0, 0)),            # b1
                pl.BlockSpec((27, MID, MID), lambda g: (0, 0, 0)),   # w2 (per tap)
                pl.BlockSpec((MID, 1), lambda g: (0, 0)),            # b2
                pl.BlockSpec((MID, MID), lambda g: (0, 0)),          # gmat
                pl.BlockSpec((MID, 1), lambda g: (0, 0)),            # gamma
                pl.BlockSpec((MID, 1), lambda g: (0, 0)),            # beta
                pl.BlockSpec((Cout, MID), lambda g: (0, 0)),         # w3
                pl.BlockSpec((Cout, 1), lambda g: (0, 0)),           # b3
            ],
            out_specs=pl.BlockSpec((B, Cout, M), lambda g: (g, 0, 0)),
            scratch_shapes=[pltpu.VMEM((9, MID, M + 2 * PAD), jnp.float32)],
        ),
        compiler_params=pltpu.CompilerParams(**compiler_kwargs),
    )(x3, masks, w1_cm, b1, w2_t, b2, gmat, gamma, beta, w3_cm, b3)

    return out3.reshape(N, Cout, D, H, W)     # already NCDHW, free reshape


# ---------------------------------------------------------------------------
# Parameters / reference
# ---------------------------------------------------------------------------
def init_params(key, in_channel, out_channel):
    k1, k2, k3, k4, k5, k6 = jax.random.split(key, 6)
    w1 = jax.random.normal(k1, (in_channel, MID), jnp.float32) * 0.2
    b1 = jax.random.normal(k2, (MID,), jnp.float32) * 0.1
    w2 = jax.random.normal(k3, (3, 3, 3, MID, MID), jnp.float32) * 0.05   # DHWIO
    b2 = jax.random.normal(k4, (MID,), jnp.float32) * 0.1
    gamma = jnp.ones((MID,), jnp.float32)       # GroupNorm affine defaults
    beta = jnp.zeros((MID,), jnp.float32)
    w3 = jax.random.normal(k5, (MID, out_channel), jnp.float32) * 0.2
    b3 = jax.random.normal(k6, (out_channel,), jnp.float32) * 0.1
    return dict(w1=w1, b1=b1, w2=w2, b2=b2, gamma=gamma, beta=beta, w3=w3, b3=b3)


def reference_forward(x_ncdhw, params):
    x = jnp.transpose(x_ncdhw, (0, 2, 3, 4, 1)).astype(jnp.float32)   # NDHWC
    h1 = jnp.maximum(jnp.einsum("ndhwc,co->ndhwo", x, params["w1"]) + params["b1"], 0.0)
    h2 = lax.conv_general_dilated(
        h1, params["w2"], window_strides=(1, 1, 1), padding="SAME",
        dimension_numbers=("NDHWC", "DHWIO", "NDHWC")) + params["b2"]
    N, D, H, W, C = h2.shape
    hg = h2.reshape(N, D, H, W, GROUPS, C // GROUPS)
    mean = hg.mean(axis=(1, 2, 3, 5), keepdims=True)
    var = ((hg - mean) ** 2).mean(axis=(1, 2, 3, 5), keepdims=True)
    hn = ((hg - mean) / jnp.sqrt(var + GN_EPS)).reshape(N, D, H, W, C)
    hn = hn * params["gamma"] + params["beta"]
    h3 = jnp.maximum(hn, 0.0)
    out = jnp.maximum(jnp.einsum("ndhwc,co->ndhwo", h3, params["w3"]) + params["b3"], 0.0)
    return jnp.transpose(out, (0, 4, 1, 2, 3))


if __name__ == "__main__":
    key = jax.random.PRNGKey(0)
    kx, kp = jax.random.split(key)

    in_channel, out_channel = 4, 16
    N, D, H, W = 2, 8, 8, 8

    x = jax.random.normal(kx, (N, in_channel, D, H, W), jnp.float32)
    params = init_params(kp, in_channel, out_channel)

    out = jax.block_until_ready(conv3d_gn_relu_by1x1_forward(x, params))
    assert out.shape == (N, out_channel, D, H, W)

    ref = reference_forward(x, params)
    np.testing.assert_allclose(np.asarray(out), np.asarray(ref), rtol=2e-3, atol=2e-3)

    print("KERNEL_OK")
</pallas_src>

<mosaic_0001>
module attributes {stable_mosaic.version = 11 : i64} {
  func.func @_fused_kernel(%arg0: i32, %arg1: memref<1x4x512xf32, #tpu.memory_space<vmem>>, %arg2: memref<8x512xf32, #tpu.memory_space<vmem>>, %arg3: memref<32x4xf32, #tpu.memory_space<vmem>>, %arg4: memref<32x1xf32, #tpu.memory_space<vmem>>, %arg5: memref<27x32x32xf32, #tpu.memory_space<vmem>>, %arg6: memref<32x1xf32, #tpu.memory_space<vmem>>, %arg7: memref<32x32xf32, #tpu.memory_space<vmem>>, %arg8: memref<32x1xf32, #tpu.memory_space<vmem>>, %arg9: memref<32x1xf32, #tpu.memory_space<vmem>>, %arg10: memref<16x32xf32, #tpu.memory_space<vmem>>, %arg11: memref<16x1xf32, #tpu.memory_space<vmem>>, %arg12: memref<1x16x512xf32, #tpu.memory_space<vmem>>, %arg13: memref<9x32x768xf32, #tpu.memory_space<vmem>>) attributes {dimension_semantics = [#tpu.dimension_semantics<parallel>], iteration_bounds = array<i64: 2>, scalar_prefetch = 0 : i64, scratch_operands = 1 : i64, tpu.core_type = #tpu.core_type<tc>, window_params = [{transform_indices = @transform_0, window_bounds = array<i64: 1, 4, 512>}, {pipeline_mode = #tpu.pipeline_mode<synchronous>, transform_indices = @transform_1, window_bounds = array<i64: 8, 512>}, {pipeline_mode = #tpu.pipeline_mode<synchronous>, transform_indices = @transform_2, window_bounds = array<i64: 32, 4>}, {pipeline_mode = #tpu.pipeline_mode<synchronous>, transform_indices = @transform_3, window_bounds = array<i64: 32, 1>}, {pipeline_mode = #tpu.pipeline_mode<synchronous>, transform_indices = @transform_4, window_bounds = array<i64: 27, 32, 32>}, {pipeline_mode = #tpu.pipeline_mode<synchronous>, transform_indices = @transform_5, window_bounds = array<i64: 32, 1>}, {pipeline_mode = #tpu.pipeline_mode<synchronous>, transform_indices = @transform_6, window_bounds = array<i64: 32, 32>}, {pipeline_mode = #tpu.pipeline_mode<synchronous>, transform_indices = @transform_7, window_bounds = array<i64: 32, 1>}, {pipeline_mode = #tpu.pipeline_mode<synchronous>, transform_indices = @transform_8, window_bounds = array<i64: 32, 1>}, {pipeline_mode = #tpu.pipeline_mode<synchronous>, transform_indices = @transform_9, window_bounds = array<i64: 16, 32>}, {pipeline_mode = #tpu.pipeline_mode<synchronous>, transform_indices = @transform_10, window_bounds = array<i64: 16, 1>}, {transform_indices = @transform_11, window_bounds = array<i64: 1, 16, 512>}]} {
    %c0 = arith.constant 0 : index
    %c0_0 = arith.constant 0 : index
    %0 = vector.load %arg2[%c0, %c0_0] : memref<8x512xf32, #tpu.memory_space<vmem>>, vector<8x512xf32>
    %c0_1 = arith.constant 0 : index
    %c0_2 = arith.constant 0 : index
    %1 = vector.load %arg3[%c0_1, %c0_2] : memref<32x4xf32, #tpu.memory_space<vmem>>, vector<32x4xf32>
    %c0_3 = arith.constant 0 : index
    %c0_4 = arith.constant 0 : index
    %2 = vector.load %arg4[%c0_3, %c0_4] : memref<32x1xf32, #tpu.memory_space<vmem>>, vector<32x1xf32>
    %c0_5 = arith.constant 0 : index
    %c0_6 = arith.constant 0 : index
    %c0_7 = arith.constant 0 : index
    %3 = vector.load %arg5[%c0_5, %c0_6, %c0_7] : memref<27x32x32xf32, #tpu.memory_space<vmem>>, vector<27x32x32xf32>
    %c0_8 = arith.constant 0 : index
    %c0_9 = arith.constant 0 : index
    %4 = vector.load %arg6[%c0_8, %c0_9] : memref<32x1xf32, #tpu.memory_space<vmem>>, vector<32x1xf32>
    %c0_10 = arith.constant 0 : index
    %c0_11 = arith.constant 0 : index
    %5 = vector.load %arg7[%c0_10, %c0_11] : memref<32x32xf32, #tpu.memory_space<vmem>>, vector<32x32xf32>
    %c0_12 = arith.constant 0 : index
    %c0_13 = arith.constant 0 : index
    %6 = vector.load %arg8[%c0_12, %c0_13] : memref<32x1xf32, #tpu.memory_space<vmem>>, vector<32x1xf32>
    %c0_14 = arith.constant 0 : index
    %c0_15 = arith.constant 0 : index
    %7 = vector.load %arg9[%c0_14, %c0_15] : memref<32x1xf32, #tpu.memory_space<vmem>>, vector<32x1xf32>
    %c0_16 = arith.constant 0 : index
    %c0_17 = arith.constant 0 : index
    %8 = vector.load %arg10[%c0_16, %c0_17] : memref<16x32xf32, #tpu.memory_space<vmem>>, vector<16x32xf32>
    %c0_18 = arith.constant 0 : index
    %c0_19 = arith.constant 0 : index
    %9 = vector.load %arg11[%c0_18, %c0_19] : memref<16x1xf32, #tpu.memory_space<vmem>>, vector<16x1xf32>
    %cst = arith.constant 0.000000e+00 : f32
    %10 = vector.broadcast %cst : f32 to vector<9x32x128xf32>
    %c0_20 = arith.constant 0 : index
    %c0_21 = arith.constant 0 : index
    %c0_22 = arith.constant 0 : index
    %11 = vector.load %arg13[%c0_20, %c0_21, %c0_22] : memref<9x32x768xf32, #tpu.memory_space<vmem>>, vector<9x32x128xf32>
    tpu.vector_store %arg13[%c0_20, %c0_21, %c0_22], %10 {strides = array<i32>} : memref<9x32x768xf32, #tpu.memory_space<vmem>>, vector<9x32x128xf32>,
    %cst_23 = arith.constant 0.000000e+00 : f32
    %12 = vector.broadcast %cst_23 : f32 to vector<9x32x128xf32>
    %c0_24 = arith.constant 0 : index
    %c0_25 = arith.constant 0 : index
    %c640 = arith.constant 640 : index
    %13 = vector.load %arg13[%c0_24, %c0_25, %c640] : memref<9x32x768xf32, #tpu.memory_space<vmem>>, vector<9x32x128xf32>
    tpu.vector_store %arg13[%c0_24, %c0_25, %c640], %12 {strides = array<i32>} : memref<9x32x768xf32, #tpu.memory_space<vmem>>, vector<9x32x128xf32>,
    %c0_26 = arith.constant 0 : index
    %c0_27 = arith.constant 0 : index
    %c0_28 = arith.constant 0 : index
    %14 = vector.load %arg1[%c0_26, %c0_27, %c0_28] : memref<1x4x512xf32, #tpu.memory_space<vmem>>, vector<1x4x512xf32>
    %15 = vector.shape_cast %14 : vector<1x4x512xf32> to vector<4x512xf32>
    %cst_29 = arith.constant dense<0.000000e+00> : vector<32x512xf32>
    %16 = tpu.matmul %1, %15, %cst_29 {dimension_numbers = #tpu.dot_dimension_numbers<[1], [0], [0], [1], [0, 0, 1, 1], [], []>} : vector<32x4xf32>, vector<4x512xf32>, vector<32x512xf32> -> vector<32x512xf32>
    %17 = vector.broadcast %2 : vector<32x1xf32> to vector<32x512xf32>
    %18 = arith.addf %16, %17 : vector<32x512xf32>
    %cst_30 = arith.constant 0.000000e+00 : f32
    %19 = vector.broadcast %cst_30 : f32 to vector<32x512xf32>
    %20 = arith.maximumf %18, %19 : vector<32x512xf32>
    %21 = vector.extract_strided_slice %0 {offsets = [0, 0], sizes = [1, 512], strides = [1, 1]} : vector<8x512xf32> to vector<1x512xf32>
    %22 = vector.broadcast %21 : vector<1x512xf32> to vector<32x512xf32>
    %23 = arith.mulf %20, %22 : vector<32x512xf32>
    %c0_31 = arith.constant 0 : index
    %c0_32 = arith.constant 0 : index
    %c128 = arith.constant 128 : index
    %24 = vector.load %arg13[%c0_31, %c0_32, %c128] : memref<9x32x768xf32, #tpu.memory_space<vmem>>, vector<1x32x512xf32>
    %25 = vector.shape_cast %24 : vector<1x32x512xf32> to vector<32x512xf32>
    %26 = vector.shape_cast %23 : vector<32x512xf32> to vector<1x32x512xf32>
    tpu.vector_store %arg13[%c0_31, %c0_32, %c128], %26 {strides = array<i32>} : memref<9x32x768xf32, #tpu.memory_space<vmem>>, vector<1x32x512xf32>,
    %27 = vector.extract_strided_slice %0 {offsets = [1, 0], sizes = [1, 512], strides = [1, 1]} : vector<8x512xf32> to vector<1x512xf32>
    %28 = vector.broadcast %27 : vector<1x512xf32> to vector<32x512xf32>
    %29 = arith.mulf %20, %28 : vector<32x512xf32>
    %c1 = arith.constant 1 : index
    %c0_33 = arith.constant 0 : index
    %c128_34 = arith.constant 128 : index
    %30 = vector.load %arg13[%c1, %c0_33, %c128_34] : memref<9x32x768xf32, #tpu.memory_space<vmem>>, vector<1x32x512xf32>
    %31 = vector.shape_cast %30 : vector<1x32x512xf32> to vector<32x512xf32>
    %32 = vector.shape_cast %29 : vector<32x512xf32> to vector<1x32x512xf32>
    tpu.vector_store %arg13[%c1, %c0_33, %c128_34], %32 {strides = array<i32>} : memref<9x32x768xf32, #tpu.memory_space<vmem>>, vector<1x32x512xf32>,
    %33 = vector.extract_strided_slice %0 {offsets = [2, 0], sizes = [1, 512], strides = [1, 1]} : vector<8x512xf32> to vector<1x512xf32>
    %34 = vector.broadcast %33 : vector<1x512xf32> to vector<32x512xf32>
    %35 = arith.mulf %20, %34 : vector<32x512xf32>
    %c2 = arith.constant 2 : index
    %c0_35 = arith.constant 0 : index
    %c128_36 = arith.constant 128 : index
    %36 = vector.load %arg13[%c2, %c0_35, %c128_36] : memref<9x32x768xf32, #tpu.memory_space<vmem>>, vector<1x32x512xf32>
    %37 = vector.shape_cast %36 : vector<1x32x512xf32> to vector<32x512xf32>
    %38 = vector.shape_cast %35 : vector<32x512xf32> to vector<1x32x512xf32>
    tpu.vector_store %arg13[%c2, %c0_35, %c128_36], %38 {strides = array<i32>} : memref<9x32x768xf32, #tpu.memory_space<vmem>>, vector<1x32x512xf32>,
    %39 = vector.extract_strided_slice %0 {offsets = [3, 0], sizes = [1, 512], strides = [1, 1]} : vector<8x512xf32> to vector<1x512xf32>
    %40 = vector.broadcast %39 : vector<1x512xf32> to vector<32x512xf32>
    %41 = arith.mulf %20, %40 : vector<32x512xf32>
    %c3 = arith.constant 3 : index
    %c0_37 = arith.constant 0 : index
    %c128_38 = arith.constant 128 : index
    %42 = vector.load %arg13[%c3, %c0_37, %c128_38] : memref<9x32x768xf32, #tpu.memory_space<vmem>>, vector<1x32x512xf32>
    %43 = vector.shape_cast %42 : vector<1x32x512xf32> to vector<32x512xf32>
    %44 = vector.shape_cast %41 : vector<32x512xf32> to vector<1x32x512xf32>
    tpu.vector_store %arg13[%c3, %c0_37, %c128_38], %44 {strides = array<i32>} : memref<9x32x768xf32, #tpu.memory_space<vmem>>, vector<1x32x512xf32>,
    %c4 = arith.constant 4 : index
    %c0_39 = arith.constant 0 : index
    %c128_40 = arith.constant 128 : index
    %45 = vector.load %arg13[%c4, %c0_39, %c128_40] : memref<9x32x768xf32, #tpu.memory_space<vmem>>, vector<1x32x512xf32>
    %46 = vector.shape_cast %45 : vector<1x32x512xf32> to vector<32x512xf32>
    %47 = vector.shape_cast %20 : vector<32x512xf32> to vector<1x32x512xf32>
    tpu.vector_store %arg13[%c4, %c0_39, %c128_40], %47 {strides = array<i32>} : memref<9x32x768xf32, #tpu.memory_space<vmem>>, vector<1x32x512xf32>,
    %48 = vector.extract_strided_slice %0 {offsets = [4, 0], sizes = [1, 512], strides = [1, 1]} : vector<8x512xf32> to vector<1x512xf32>
    %49 = vector.broadcast %48 : vector<1x512xf32> to vector<32x512xf32>
    %50 = arith.mulf %20, %49 : vector<32x512xf32>
    %c5 = arith.constant 5 : index
    %c0_41 = arith.constant 0 : index
    %c128_42 = arith.constant 128 : index
    %51 = vector.load %arg13[%c5, %c0_41, %c128_42] : memref<9x32x768xf32, #tpu.memory_space<vmem>>, vector<1x32x512xf32>
    %52 = vector.shape_cast %51 : vector<1x32x512xf32> to vector<32x512xf32>
    %53 = vector.shape_cast %50 : vector<32x512xf32> to vector<1x32x512xf32>
    tpu.vector_store %arg13[%c5, %c0_41, %c128_42], %53 {strides = array<i32>} : memref<9x32x768xf32, #tpu.memory_space<vmem>>, vector<1x32x512xf32>,
    %54 = vector.extract_strided_slice %0 {offsets = [5, 0], sizes = [1, 512], strides = [1, 1]} : vector<8x512xf32> to vector<1x512xf32>
    %55 = vector.broadcast %54 : vector<1x512xf32> to vector<32x512xf32>
    %56 = arith.mulf %20, %55 : vector<32x512xf32>
    %c6 = arith.constant 6 : index
    %c0_43 = arith.constant 0 : index
    %c128_44 = arith.constant 128 : index
    %57 = vector.load %arg13[%c6, %c0_43, %c128_44] : memref<9x32x768xf32, #tpu.memory_space<vmem>>, vector<1x32x512xf32>
    %58 = vector.shape_cast %57 : vector<1x32x512xf32> to vector<32x512xf32>
    %59 = vector.shape_cast %56 : vector<32x512xf32> to vector<1x32x512xf32>
    tpu.vector_store %arg13[%c6, %c0_43, %c128_44], %59 {strides = array<i32>} : memref<9x32x768xf32, #tpu.memory_space<vmem>>, vector<1x32x512xf32>,
    %60 = vector.extract_strided_slice %0 {offsets = [6, 0], sizes = [1, 512], strides = [1, 1]} : vector<8x512xf32> to vector<1x512xf32>
    %61 = vector.broadcast %60 : vector<1x512xf32> to vector<32x512xf32>
    %62 = arith.mulf %20, %61 : vector<32x512xf32>
    %c7 = arith.constant 7 : index
    %c0_45 = arith.constant 0 : index
    %c128_46 = arith.constant 128 : index
    %63 = vector.load %arg13[%c7, %c0_45, %c128_46] : memref<9x32x768xf32, #tpu.memory_space<vmem>>, vector<1x32x512xf32>
    %64 = vector.shape_cast %63 : vector<1x32x512xf32> to vector<32x512xf32>
    %65 = vector.shape_cast %62 : vector<32x512xf32> to vector<1x32x512xf32>
    tpu.vector_store %arg13[%c7, %c0_45, %c128_46], %65 {strides = array<i32>} : memref<9x32x768xf32, #tpu.memory_space<vmem>>, vector<1x32x512xf32>,
    %66 = vector.extract_strided_slice %0 {offsets = [7, 0], sizes = [1, 512], strides = [1, 1]} : vector<8x512xf32> to vector<1x512xf32>
    %67 = vector.broadcast %66 : vector<1x512xf32> to vector<32x512xf32>
    %68 = arith.mulf %20, %67 : vector<32x512xf32>
    %c8 = arith.constant 8 : index
    %c0_47 = arith.constant 0 : index
    %c128_48 = arith.constant 128 : index
    %69 = vector.load %arg13[%c8, %c0_47, %c128_48] : memref<9x32x768xf32, #tpu.memory_space<vmem>>, vector<1x32x512xf32>
    %70 = vector.shape_cast %69 : vector<1x32x512xf32> to vector<32x512xf32>
    %71 = vector.shape_cast %68 : vector<32x512xf32> to vector<1x32x512xf32>
    tpu.vector_store %arg13[%c8, %c0_47, %c128_48], %71 {strides = array<i32>} : memref<9x32x768xf32, #tpu.memory_space<vmem>>, vector<1x32x512xf32>,
    %c0_49 = arith.constant 0 : index
    %c0_50 = arith.constant 0 : index
    %c55 = arith.constant 55 : index
    %72 = vector.load %arg13[%c0_49, %c0_50, %c55] : memref<9x32x768xf32, #tpu.memory_space<vmem>>, vector<1x32x512xf32>
    %73 = vector.shape_cast %72 : vector<1x32x512xf32> to vector<32x512xf32>
    %74 = vector.extract_strided_slice %3 {offsets = [0, 0, 0], sizes = [1, 32, 32], strides = [1, 1, 1]} : vector<27x32x32xf32> to vector<1x32x32xf32>
    %75 = vector.shape_cast %74 : vector<1x32x32xf32> to vector<32x32xf32>
    %cst_51 = arith.constant dense<0.000000e+00> : vector<32x512xf32>
    %76 = tpu.matmul %75, %73, %cst_51 {dimension_numbers = #tpu.dot_dimension_numbers<[1], [0], [0], [1], [0, 0, 1, 1], [], []>} : vector<32x32xf32>, vector<32x512xf32>, vector<32x512xf32> -> vector<32x512xf32>
    %c1_52 = arith.constant 1 : index
    %c0_53 = arith.constant 0 : index
    %c56 = arith.constant 56 : index
    %77 = vector.load %arg13[%c1_52, %c0_53, %c56] : memref<9x32x768xf32, #tpu.memory_space<vmem>>, vector<1x32x512xf32>
    %78 = vector.shape_cast %77 : vector<1x32x512xf32> to vector<32x512xf32>
    %79 = vector.extract_strided_slice %3 {offsets = [1, 0, 0], sizes = [1, 32, 32], strides = [1, 1, 1]} : vector<27x32x32xf32> to vector<1x32x32xf32>
    %80 = vector.shape_cast %79 : vector<1x32x32xf32> to vector<32x32xf32>
    %cst_54 = arith.constant dense<0.000000e+00> : vector<32x512xf32>
    %81 = tpu.matmul %80, %78, %cst_54 {dimension_numbers = #tpu.dot_dimension_numbers<[1], [0], [0], [1], [0, 0, 1, 1], [], []>} : vector<32x32xf32>, vector<32x512xf32>, vector<32x512xf32> -> vector<32x512xf32>
    %82 = arith.addf %76, %81 : vector<32x512xf32>
    %c2_55 = arith.constant 2 : index
    %c0_56 = arith.constant 0 : index
    %c57 = arith.constant 57 : index
    %83 = vector.load %arg13[%c2_55, %c0_56, %c57] : memref<9x32x768xf32, #tpu.memory_space<vmem>>, vector<1x32x512xf32>
    %84 = vector.shape_cast %83 : vector<1x32x512xf32> to vector<32x512xf32>
    %85 = vector.extract_strided_slice %3 {offsets = [2, 0, 0], sizes = [1, 32, 32], strides = [1, 1, 1]} : vector<27x32x32xf32> to vector<1x32x32xf32>
    %86 = vector.shape_cast %85 : vector<1x32x32xf32> to vector<32x32xf32>
    %cst_57 = arith.constant dense<0.000000e+00> : vector<32x512xf32>
    %87 = tpu.matmul %86, %84, %cst_57 {dimension_numbers = #tpu.dot_dimension_numbers<[1], [0], [0], [1], [0, 0, 1, 1], [], []>} : vector<32x32xf32>, vector<32x512xf32>, vector<32x512xf32> -> vector<32x512xf32>
    %88 = arith.addf %82, %87 : vector<32x512xf32>
    %c3_58 = arith.constant 3 : index
    %c0_59 = arith.constant 0 : index
    %c63 = arith.constant 63 : index
    %89 = vector.load %arg13[%c3_58, %c0_59, %c63] : memref<9x32x768xf32, #tpu.memory_space<vmem>>, vector<1x32x512xf32>
    %90 = vector.shape_cast %89 : vector<1x32x512xf32> to vector<32x512xf32>
    %91 = vector.extract_strided_slice %3 {offsets = [3, 0, 0], sizes = [1, 32, 32], strides = [1, 1, 1]} : vector<27x32x32xf32> to vector<1x32x32xf32>
    %92 = vector.shape_cast %91 : vector<1x32x32xf32> to vector<32x32xf32>
    %cst_60 = arith.constant dense<0.000000e+00> : vector<32x512xf32>
    %93 = tpu.matmul %92, %90, %cst_60 {dimension_numbers = #tpu.dot_dimension_numbers<[1], [0], [0], [1], [0, 0, 1, 1], [], []>} : vector<32x32xf32>, vector<32x512xf32>, vector<32x512xf32> -> vector<32x512xf32>
    %94 = arith.addf %88, %93 : vector<32x512xf32>
    %c4_61 = arith.constant 4 : index
    %c0_62 = arith.constant 0 : index
    %c64 = arith.constant 64 : index
    %95 = vector.load %arg13[%c4_61, %c0_62, %c64] : memref<9x32x768xf32, #tpu.memory_space<vmem>>, vector<1x32x512xf32>
    %96 = vector.shape_cast %95 : vector<1x32x512xf32> to vector<32x512xf32>
    %97 = vector.extract_strided_slice %3 {offsets = [4, 0, 0], sizes = [1, 32, 32], strides = [1, 1, 1]} : vector<27x32x32xf32> to vector<1x32x32xf32>
    %98 = vector.shape_cast %97 : vector<1x32x32xf32> to vector<32x32xf32>
    %cst_63 = arith.constant dense<0.000000e+00> : vector<32x512xf32>
    %99 = tpu.matmul %98, %96, %cst_63 {dimension_numbers = #tpu.dot_dimension_numbers<[1], [0], [0], [1], [0, 0, 1, 1], [], []>} : vector<32x32xf32>, vector<32x512xf32>, vector<32x512xf32> -> vector<32x512xf32>
    %100 = arith.addf %94, %99 : vector<32x512xf32>
    %c5_64 = arith.constant 5 : index
    %c0_65 = arith.constant 0 : index
    %c65 = arith.constant 65 : index
    %101 = vector.load %arg13[%c5_64, %c0_65, %c65] : memref<9x32x768xf32, #tpu.memory_space<vmem>>, vector<1x32x512xf32>
    %102 = vector.shape_cast %101 : vector<1x32x512xf32> to vector<32x512xf32>
    %103 = vector.extract_strided_slice %3 {offsets = [5, 0, 0], sizes = [1, 32, 32], strides = [1, 1, 1]} : vector<27x32x32xf32> to vector<1x32x32xf32>
    %104 = vector.shape_cast %103 : vector<1x32x32xf32> to vector<32x32xf32>
    %cst_66 = arith.constant dense<0.000000e+00> : vector<32x512xf32>
    %105 = tpu.matmul %104, %102, %cst_66 {dimension_numbers = #tpu.dot_dimension_numbers<[1], [0], [0], [1], [0, 0, 1, 1], [], []>} : vector<32x32xf32>, vector<32x512xf32>, vector<32x512xf32> -> vector<32x512xf32>
    %106 = arith.addf %100, %105 : vector<32x512xf32>
    %c6_67 = arith.constant 6 : index
    %c0_68 = arith.constant 0 : index
    %c71 = arith.constant 71 : index
    %107 = vector.load %arg13[%c6_67, %c0_68, %c71] : memref<9x32x768xf32, #tpu.memory_space<vmem>>, vector<1x32x512xf32>
    %108 = vector.shape_cast %107 : vector<1x32x512xf32> to vector<32x512xf32>
    %109 = vector.extract_strided_slice %3 {offsets = [6, 0, 0], sizes = [1, 32, 32], strides = [1, 1, 1]} : vector<27x32x32xf32> to vector<1x32x32xf32>
    %110 = vector.shape_cast %109 : vector<1x32x32xf32> to vector<32x32xf32>
    %cst_69 = arith.constant dense<0.000000e+00> : vector<32x512xf32>
    %111 = tpu.matmul %110, %108, %cst_69 {dimension_numbers = #tpu.dot_dimension_numbers<[1], [0], [0], [1], [0, 0, 1, 1], [], []>} : vector<32x32xf32>, vector<32x512xf32>, vector<32x512xf32> -> vector<32x512xf32>
    %112 = arith.addf %106, %111 : vector<32x512xf32>
    %c7_70 = arith.constant 7 : index
    %c0_71 = arith.constant 0 : index
    %c72 = arith.constant 72 : index
    %113 = vector.load %arg13[%c7_70, %c0_71, %c72] : memref<9x32x768xf32, #tpu.memory_space<vmem>>, vector<1x32x512xf32>
    %114 = vector.shape_cast %113 : vector<1x32x512xf32> to vector<32x512xf32>
    %115 = vector.extract_strided_slice %3 {offsets = [7, 0, 0], sizes = [1, 32, 32], strides = [1, 1, 1]} : vector<27x32x32xf32> to vector<1x32x32xf32>
    %116 = vector.shape_cast %115 : vector<1x32x32xf32> to vector<32x32xf32>
    %cst_72 = arith.constant dense<0.000000e+00> : vector<32x512xf32>
    %117 = tpu.matmul %116, %114, %cst_72 {dimension_numbers = #tpu.dot_dimension_numbers<[1], [0], [0], [1], [0, 0, 1, 1], [], []>} : vector<32x32xf32>, vector<32x512xf32>, vector<32x512xf32> -> vector<32x512xf32>
    %118 = arith.addf %112, %117 : vector<32x512xf32>
    %c8_73 = arith.constant 8 : index
    %c0_74 = arith.constant 0 : index
    %c73 = arith.constant 73 : index
    %119 = vector.load %arg13[%c8_73, %c0_74, %c73] : memref<9x32x768xf32, #tpu.memory_space<vmem>>, vector<1x32x512xf32>
    %120 = vector.shape_cast %119 : vector<1x32x512xf32> to vector<32x512xf32>
    %121 = vector.extract_strided_slice %3 {offsets = [8, 0, 0], sizes = [1, 32, 32], strides = [1, 1, 1]} : vector<27x32x32xf32> to vector<1x32x32xf32>
    %122 = vector.shape_cast %121 : vector<1x32x32xf32> to vector<32x32xf32>
    %cst_75 = arith.constant dense<0.000000e+00> : vector<32x512xf32>
    %123 = tpu.matmul %122, %120, %cst_75 {dimension_numbers = #tpu.dot_dimension_numbers<[1], [0], [0], [1], [0, 0, 1, 1], [], []>} : vector<32x32xf32>, vector<32x512xf32>, vector<32x512xf32> -> vector<32x512xf32>
    %124 = arith.addf %118, %123 : vector<32x512xf32>
    %c0_76 = arith.constant 0 : index
    %c0_77 = arith.constant 0 : index
    %c119 = arith.constant 119 : index
    %125 = vector.load %arg13[%c0_76, %c0_77, %c119] : memref<9x32x768xf32, #tpu.memory_space<vmem>>, vector<1x32x512xf32>
    %126 = vector.shape_cast %125 : vector<1x32x512xf32> to vector<32x512xf32>
    %127 = vector.extract_strided_slice %3 {offsets = [9, 0, 0], sizes = [1, 32, 32], strides = [1, 1, 1]} : vector<27x32x32xf32> to vector<1x32x32xf32>
    %128 = vector.shape_cast %127 : vector<1x32x32xf32> to vector<32x32xf32>
    %cst_78 = arith.constant dense<0.000000e+00> : vector<32x512xf32>
    %129 = tpu.matmul %128, %126, %cst_78 {dimension_numbers = #tpu.dot_dimension_numbers<[1], [0], [0], [1], [0, 0, 1, 1], [], []>} : vector<32x32xf32>, vector<32x512xf32>, vector<32x512xf32> -> vector<32x512xf32>
    %130 = arith.addf %124, %129 : vector<32x512xf32>
    %c1_79 = arith.constant 1 : index
    %c0_80 = arith.constant 0 : index
    %c120 = arith.constant 120 : index
    %131 = vector.load %arg13[%c1_79, %c0_80, %c120] : memref<9x32x768xf32, #tpu.memory_space<vmem>>, vector<1x32x512xf32>
    %132 = vector.shape_cast %131 : vector<1x32x512xf32> to vector<32x512xf32>
    %133 = vector.extract_strided_slice %3 {offsets = [10, 0, 0], sizes = [1, 32, 32], strides = [1, 1, 1]} : vector<27x32x32xf32> to vector<1x32x32xf32>
    %134 = vector.shape_cast %133 : vector<1x32x32xf32> to vector<32x32xf32>
    %cst_81 = arith.constant dense<0.000000e+00> : vector<32x512xf32>
    %135 = tpu.matmul %134, %132, %cst_81 {dimension_numbers = #tpu.dot_dimension_numbers<[1], [0], [0], [1], [0, 0, 1, 1], [], []>} : vector<32x32xf32>, vector<32x512xf32>, vector<32x512xf32> -> vector<32x512xf32>
    %136 = arith.addf %130, %135 : vector<32x512xf32>
    %c2_82 = arith.constant 2 : index
    %c0_83 = arith.constant 0 : index
    %c121 = arith.constant 121 : index
    %137 = vector.load %arg13[%c2_82, %c0_83, %c121] : memref<9x32x768xf32, #tpu.memory_space<vmem>>, vector<1x32x512xf32>
    %138 = vector.shape_cast %137 : vector<1x32x512xf32> to vector<32x512xf32>
    %139 = vector.extract_strided_slice %3 {offsets = [11, 0, 0], sizes = [1, 32, 32], strides = [1, 1, 1]} : vector<27x32x32xf32> to vector<1x32x32xf32>
    %140 = vector.shape_cast %139 : vector<1x32x32xf32> to vector<32x32xf32>
    %cst_84 = arith.constant dense<0.000000e+00> : vector<32x512xf32>
    %141 = tpu.matmul %140, %138, %cst_84 {dimension_numbers = #tpu.dot_dimension_numbers<[1], [0], [0], [1], [0, 0, 1, 1], [], []>} : vector<32x32xf32>, vector<32x512xf32>, vector<32x512xf32> -> vector<32x512xf32>
    %142 = arith.addf %136, %141 : vector<32x512xf32>
    %c3_85 = arith.constant 3 : index
    %c0_86 = arith.constant 0 : index
    %c127 = arith.constant 127 : index
    %143 = vector.load %arg13[%c3_85, %c0_86, %c127] : memref<9x32x768xf32, #tpu.memory_space<vmem>>, vector<1x32x512xf32>
    %144 = vector.shape_cast %143 : vector<1x32x512xf32> to vector<32x512xf32>
    %145 = vector.extract_strided_slice %3 {offsets = [12, 0, 0], sizes = [1, 32, 32], strides = [1, 1, 1]} : vector<27x32x32xf32> to vector<1x32x32xf32>
    %146 = vector.shape_cast %145 : vector<1x32x32xf32> to vector<32x32xf32>
    %cst_87 = arith.constant dense<0.000000e+00> : vector<32x512xf32>
    %147 = tpu.matmul %146, %144, %cst_87 {dimension_numbers = #tpu.dot_dimension_numbers<[1], [0], [0], [1], [0, 0, 1, 1], [], []>} : vector<32x32xf32>, vector<32x512xf32>, vector<32x512xf32> -> vector<32x512xf32>
    %148 = arith.addf %142, %147 : vector<32x512xf32>
    %c4_88 = arith.constant 4 : index
    %c0_89 = arith.constant 0 : index
    %c128_90 = arith.constant 128 : index
    %149 = vector.load %arg13[%c4_88, %c0_89, %c128_90] : memref<9x32x768xf32, #tpu.memory_space<vmem>>, vector<1x32x512xf32>
    %150 = vector.shape_cast %149 : vector<1x32x512xf32> to vector<32x512xf32>
    %151 = vector.extract_strided_slice %3 {offsets = [13, 0, 0], sizes = [1, 32, 32], strides = [1, 1, 1]} : vector<27x32x32xf32> to vector<1x32x32xf32>
    %152 = vector.shape_cast %151 : vector<1x32x32xf32> to vector<32x32xf32>
    %cst_91 = arith.constant dense<0.000000e+00> : vector<32x512xf32>
    %153 = tpu.matmul %152, %150, %cst_91 {dimension_numbers = #tpu.dot_dimension_numbers<[1], [0], [0], [1], [0, 0, 1, 1], [], []>} : vector<32x32xf32>, vector<32x512xf32>, vector<32x512xf32> -> vector<32x512xf32>
    %154 = arith.addf %148, %153 : vector<32x512xf32>
    %c5_92 = arith.constant 5 : index
    %c0_93 = arith.constant 0 : index
    %c129 = arith.constant 129 : index
    %155 = vector.load %arg13[%c5_92, %c0_93, %c129] : memref<9x32x768xf32, #tpu.memory_space<vmem>>, vector<1x32x512xf32>
    %156 = vector.shape_cast %155 : vector<1x32x512xf32> to vector<32x512xf32>
    %157 = vector.extract_strided_slice %3 {offsets = [14, 0, 0], sizes = [1, 32, 32], strides = [1, 1, 1]} : vector<27x32x32xf32> to vector<1x32x32xf32>
    %158 = vector.shape_cast %157 : vector<1x32x32xf32> to vector<32x32xf32>
    %cst_94 = arith.constant dense<0.000000e+00> : vector<32x512xf32>
    %159 = tpu.matmul %158, %156, %cst_94 {dimension_numbers = #tpu.dot_dimension_numbers<[1], [0], [0], [1], [0, 0, 1, 1], [], []>} : vector<32x32xf32>, vector<32x512xf32>, vector<32x512xf32> -> vector<32x512xf32>
    %160 = arith.addf %154, %159 : vector<32x512xf32>
    %c6_95 = arith.constant 6 : index
    %c0_96 = arith.constant 0 : index
    %c135 = arith.constant 135 : index
    %161 = vector.load %arg13[%c6_95, %c0_96, %c135] : memref<9x32x768xf32, #tpu.memory_space<vmem>>, vector<1x32x512xf32>
    %162 = vector.shape_cast %161 : vector<1x32x512xf32> to vector<32x512xf32>
    %163 = vector.extract_strided_slice %3 {offsets = [15, 0, 0], sizes = [1, 32, 32], strides = [1, 1, 1]} : vector<27x32x32xf32> to vector<1x32x32xf32>
    %164 = vector.shape_cast %163 : vector<1x32x32xf32> to vector<32x32xf32>
    %cst_97 = arith.constant dense<0.000000e+00> : vector<32x512xf32>
    %165 = tpu.matmul %164, %162, %cst_97 {dimension_numbers = #tpu.dot_dimension_numbers<[1], [0], [0], [1], [0, 0, 1, 1], [], []>} : vector<32x32xf32>, vector<32x512xf32>, vector<32x512xf32> -> vector<32x512xf32>
    %166 = arith.addf %160, %165 : vector<32x512xf32>
    %c7_98 = arith.constant 7 : index
    %c0_99 = arith.constant 0 : index
    %c136 = arith.constant 136 : index
    %167 = vector.load %arg13[%c7_98, %c0_99, %c136] : memref<9x32x768xf32, #tpu.memory_space<vmem>>, vector<1x32x512xf32>
    %168 = vector.shape_cast %167 : vector<1x32x512xf32> to vector<32x512xf32>
    %169 = vector.extract_strided_slice %3 {offsets = [16, 0, 0], sizes = [1, 32, 32], strides = [1, 1, 1]} : vector<27x32x32xf32> to vector<1x32x32xf32>
    %170 = vector.shape_cast %169 : vector<1x32x32xf32> to vector<32x32xf32>
    %cst_100 = arith.constant dense<0.000000e+00> : vector<32x512xf32>
    %171 = tpu.matmul %170, %168, %cst_100 {dimension_numbers = #tpu.dot_dimension_numbers<[1], [0], [0], [1], [0, 0, 1, 1], [], []>} : vector<32x32xf32>, vector<32x512xf32>, vector<32x512xf32> -> vector<32x512xf32>
    %172 = arith.addf %166, %171 : vector<32x512xf32>
    %c8_101 = arith.constant 8 : index
    %c0_102 = arith.constant 0 : index
    %c137 = arith.constant 137 : index
    %173 = vector.load %arg13[%c8_101, %c0_102, %c137] : memref<9x32x768xf32, #tpu.memory_space<vmem>>, vector<1x32x512xf32>
    %174 = vector.shape_cast %173 : vector<1x32x512xf32> to vector<32x512xf32>
    %175 = vector.extract_strided_slice %3 {offsets = [17, 0, 0], sizes = [1, 32, 32], strides = [1, 1, 1]} : vector<27x32x32xf32> to vector<1x32x32xf32>
    %176 = vector.shape_cast %175 : vector<1x32x32xf32> to vector<32x32xf32>
    %cst_103 = arith.constant dense<0.000000e+00> : vector<32x512xf32>
    %177 = tpu.matmul %176, %174, %cst_103 {dimension_numbers = #tpu.dot_dimension_numbers<[1], [0], [0], [1], [0, 0, 1, 1], [], []>} : vector<32x32xf32>, vector<32x512xf32>, vector<32x512xf32> -> vector<32x512xf32>
    %178 = arith.addf %172, %177 : vector<32x512xf32>
    %c0_104 = arith.constant 0 : index
    %c0_105 = arith.constant 0 : index
    %c183 = arith.constant 183 : index
    %179 = vector.load %arg13[%c0_104, %c0_105, %c183] : memref<9x32x768xf32, #tpu.memory_space<vmem>>, vector<1x32x512xf32>
    %180 = vector.shape_cast %179 : vector<1x32x512xf32> to vector<32x512xf32>
    %181 = vector.extract_strided_slice %3 {offsets = [18, 0, 0], sizes = [1, 32, 32], strides = [1, 1, 1]} : vector<27x32x32xf32> to vector<1x32x32xf32>
    %182 = vector.shape_cast %181 : vector<1x32x32xf32> to vector<32x32xf32>
    %cst_106 = arith.constant dense<0.000000e+00> : vector<32x512xf32>
    %183 = tpu.matmul %182, %180, %cst_106 {dimension_numbers = #tpu.dot_dimension_numbers<[1], [0], [0], [1], [0, 0, 1, 1], [], []>} : vector<32x32xf32>, vector<32x512xf32>, vector<32x512xf32> -> vector<32x512xf32>
    %184 = arith.addf %178, %183 : vector<32x512xf32>
    %c1_107 = arith.constant 1 : index
    %c0_108 = arith.constant 0 : index
    %c184 = arith.constant 184 : index
    %185 = vector.load %arg13[%c1_107, %c0_108, %c184] : memref<9x32x768xf32, #tpu.memory_space<vmem>>, vector<1x32x512xf32>
    %186 = vector.shape_cast %185 : vector<1x32x512xf32> to vector<32x512xf32>
    %187 = vector.extract_strided_slice %3 {offsets = [19, 0, 0], sizes = [1, 32, 32], strides = [1, 1, 1]} : vector<27x32x32xf32> to vector<1x32x32xf32>
    %188 = vector.shape_cast %187 : vector<1x32x32xf32> to vector<32x32xf32>
    %cst_109 = arith.constant dense<0.000000e+00> : vector<32x512xf32>
    %189 = tpu.matmul %188, %186, %cst_109 {dimension_numbers = #tpu.dot_dimension_numbers<[1], [0], [0], [1], [0, 0, 1, 1], [], []>} : vector<32x32xf32>, vector<32x512xf32>, vector<32x512xf32> -> vector<32x512xf32>
    %190 = arith.addf %184, %189 : vector<32x512xf32>
    %c2_110 = arith.constant 2 : index
    %c0_111 = arith.constant 0 : index
    %c185 = arith.constant 185 : index
    %191 = vector.load %arg13[%c2_110, %c0_111, %c185] : memref<9x32x768xf32, #tpu.memory_space<vmem>>, vector<1x32x512xf32>
    %192 = vector.shape_cast %191 : vector<1x32x512xf32> to vector<32x512xf32>
    %193 = vector.extract_strided_slice %3 {offsets = [20, 0, 0], sizes = [1, 32, 32], strides = [1, 1, 1]} : vector<27x32x32xf32> to vector<1x32x32xf32>
    %194 = vector.shape_cast %193 : vector<1x32x32xf32> to vector<32x32xf32>
    %cst_112 = arith.constant dense<0.000000e+00> : vector<32x512xf32>
    %195 = tpu.matmul %194, %192, %cst_112 {dimension_numbers = #tpu.dot_dimension_numbers<[1], [0], [0], [1], [0, 0, 1, 1], [], []>} : vector<32x32xf32>, vector<32x512xf32>, vector<32x512xf32> -> vector<32x512xf32>
    %196 = arith.addf %190, %195 : vector<32x512xf32>
    %c3_113 = arith.constant 3 : index
    %c0_114 = arith.constant 0 : index
    %c191 = arith.constant 191 : index
    %197 = vector.load %arg13[%c3_113, %c0_114, %c191] : memref<9x32x768xf32, #tpu.memory_space<vmem>>, vector<1x32x512xf32>
    %198 = vector.shape_cast %197 : vector<1x32x512xf32> to vector<32x512xf32>
    %199 = vector.extract_strided_slice %3 {offsets = [21, 0, 0], sizes = [1, 32, 32], strides = [1, 1, 1]} : vector<27x32x32xf32> to vector<1x32x32xf32>
    %200 = vector.shape_cast %199 : vector<1x32x32xf32> to vector<32x32xf32>
    %cst_115 = arith.constant dense<0.000000e+00> : vector<32x512xf32>
    %201 = tpu.matmul %200, %198, %cst_115 {dimension_numbers = #tpu.dot_dimension_numbers<[1], [0], [0], [1], [0, 0, 1, 1], [], []>} : vector<32x32xf32>, vector<32x512xf32>, vector<32x512xf32> -> vector<32x512xf32>
    %202 = arith.addf %196, %201 : vector<32x512xf32>
    %c4_116 = arith.constant 4 : index
    %c0_117 = arith.constant 0 : index
    %c192 = arith.constant 192 : index
    %203 = vector.load %arg13[%c4_116, %c0_117, %c192] : memref<9x32x768xf32, #tpu.memory_space<vmem>>, vector<1x32x512xf32>
    %204 = vector.shape_cast %203 : vector<1x32x512xf32> to vector<32x512xf32>
    %205 = vector.extract_strided_slice %3 {offsets = [22, 0, 0], sizes = [1, 32, 32], strides = [1, 1, 1]} : vector<27x32x32xf32> to vector<1x32x32xf32>
    %206 = vector.shape_cast %205 : vector<1x32x32xf32> to vector<32x32xf32>
    %cst_118 = arith.constant dense<0.000000e+00> : vector<32x512xf32>
    %207 = tpu.matmul %206, %204, %cst_118 {dimension_numbers = #tpu.dot_dimension_numbers<[1], [0], [0], [1], [0, 0, 1, 1], [], []>} : vector<32x32xf32>, vector<32x512xf32>, vector<32x512xf32> -> vector<32x512xf32>
    %208 = arith.addf %202, %207 : vector<32x512xf32>
    %c5_119 = arith.constant 5 : index
    %c0_120 = arith.constant 0 : index
    %c193 = arith.constant 193 : index
    %209 = vector.load %arg13[%c5_119, %c0_120, %c193] : memref<9x32x768xf32, #tpu.memory_space<vmem>>, vector<1x32x512xf32>
    %210 = vector.shape_cast %209 : vector<1x32x512xf32> to vector<32x512xf32>
    %211 = vector.extract_strided_slice %3 {offsets = [23, 0, 0], sizes = [1, 32, 32], strides = [1, 1, 1]} : vector<27x32x32xf32> to vector<1x32x32xf32>
    %212 = vector.shape_cast %211 : vector<1x32x32xf32> to vector<32x32xf32>
    %cst_121 = arith.constant dense<0.000000e+00> : vector<32x512xf32>
    %213 = tpu.matmul %212, %210, %cst_121 {dimension_numbers = #tpu.dot_dimension_numbers<[1], [0], [0], [1], [0, 0, 1, 1], [], []>} : vector<32x32xf32>, vector<32x512xf32>, vector<32x512xf32> -> vector<32x512xf32>
    %214 = arith.addf %208, %213 : vector<32x512xf32>
    %c6_122 = arith.constant 6 : index
    %c0_123 = arith.constant 0 : index
    %c199 = arith.constant 199 : index
    %215 = vector.load %arg13[%c6_122, %c0_123, %c199] : memref<9x32x768xf32, #tpu.memory_space<vmem>>, vector<1x32x512xf32>
    %216 = vector.shape_cast %215 : vector<1x32x512xf32> to vector<32x512xf32>
    %217 = vector.extract_strided_slice %3 {offsets = [24, 0, 0], sizes = [1, 32, 32], strides = [1, 1, 1]} : vector<27x32x32xf32> to vector<1x32x32xf32>
    %218 = vector.shape_cast %217 : vector<1x32x32xf32> to vector<32x32xf32>
    %cst_124 = arith.constant dense<0.000000e+00> : vector<32x512xf32>
    %219 = tpu.matmul %218, %216, %cst_124 {dimension_numbers = #tpu.dot_dimension_numbers<[1], [0], [0], [1], [0, 0, 1, 1], [], []>} : vector<32x32xf32>, vector<32x512xf32>, vector<32x512xf32> -> vector<32x512xf32>
    %220 = arith.addf %214, %219 : vector<32x512xf32>
    %c7_125 = arith.constant 7 : index
    %c0_126 = arith.constant 0 : index
    %c200 = arith.constant 200 : index
    %221 = vector.load %arg13[%c7_125, %c0_126, %c200] : memref<9x32x768xf32, #tpu.memory_space<vmem>>, vector<1x32x512xf32>
    %222 = vector.shape_cast %221 : vector<1x32x512xf32> to vector<32x512xf32>
    %223 = vector.extract_strided_slice %3 {offsets = [25, 0, 0], sizes = [1, 32, 32], strides = [1, 1, 1]} : vector<27x32x32xf32> to vector<1x32x32xf32>
    %224 = vector.shape_cast %223 : vector<1x32x32xf32> to vector<32x32xf32>
    %cst_127 = arith.constant dense<0.000000e+00> : vector<32x512xf32>
    %225 = tpu.matmul %224, %222, %cst_127 {dimension_numbers = #tpu.dot_dimension_numbers<[1], [0], [0], [1], [0, 0, 1, 1], [], []>} : vector<32x32xf32>, vector<32x512xf32>, vector<32x512xf32> -> vector<32x512xf32>
    %226 = arith.addf %220, %225 : vector<32x512xf32>
    %c8_128 = arith.constant 8 : index
    %c0_129 = arith.constant 0 : index
    %c201 = arith.constant 201 : index
    %227 = vector.load %arg13[%c8_128, %c0_129, %c201] : memref<9x32x768xf32, #tpu.memory_space<vmem>>, vector<1x32x512xf32>
    %228 = vector.shape_cast %227 : vector<1x32x512xf32> to vector<32x512xf32>
    %229 = vector.extract_strided_slice %3 {offsets = [26, 0, 0], sizes = [1, 32, 32], strides = [1, 1, 1]} : vector<27x32x32xf32> to vector<1x32x32xf32>
    %230 = vector.shape_cast %229 : vector<1x32x32xf32> to vector<32x32xf32>
    %cst_130 = arith.constant dense<0.000000e+00> : vector<32x512xf32>
    %231 = tpu.matmul %230, %228, %cst_130 {dimension_numbers = #tpu.dot_dimension_numbers<[1], [0], [0], [1], [0, 0, 1, 1], [], []>} : vector<32x32xf32>, vector<32x512xf32>, vector<32x512xf32> -> vector<32x512xf32>
    %232 = arith.addf %226, %231 : vector<32x512xf32>
    %233 = vector.broadcast %4 : vector<32x1xf32> to vector<32x512xf32>
    %234 = arith.addf %232, %233 : vector<32x512xf32>
    %cst_131 = arith.constant dense<0.000000e+00> : vector<32xf32>
    %235 = vector.multi_reduction <add>, %234, %cst_131 [1] : vector<32x512xf32> to vector<32xf32>
    %236 = vector.shape_cast %235 : vector<32xf32> to vector<32x1xf32>
    %237 = arith.mulf %234, %234 : vector<32x512xf32>
    %cst_132 = arith.constant dense<0.000000e+00> : vector<32xf32>
    %238 = vector.multi_reduction <add>, %237, %cst_132 [1] : vector<32x512xf32> to vector<32xf32>
    %239 = vector.shape_cast %238 : vector<32xf32> to vector<32x1xf32>
    %cst_133 = arith.constant dense<0.000000e+00> : vector<32x1xf32>
    %240 = tpu.matmul %5, %236, %cst_133 {dimension_numbers = #tpu.dot_dimension_numbers<[1], [0], [0], [1], [0, 0, 1, 1], [], []>} : vector<32x32xf32>, vector<32x1xf32>, vector<32x1xf32> -> vector<32x1xf32>
    %cst_134 = arith.constant 9.765625E-4 : f32
    %241 = vector.broadcast %cst_134 : f32 to vector<32x1xf32>
    %242 = arith.mulf %240, %241 : vector<32x1xf32>
    %cst_135 = arith.constant dense<0.000000e+00> : vector<32x1xf32>
    %243 = tpu.matmul %5, %239, %cst_135 {dimension_numbers = #tpu.dot_dimension_numbers<[1], [0], [0], [1], [0, 0, 1, 1], [], []>} : vector<32x32xf32>, vector<32x1xf32>, vector<32x1xf32> -> vector<32x1xf32>
    %cst_136 = arith.constant 9.765625E-4 : f32
    %244 = vector.broadcast %cst_136 : f32 to vector<32x1xf32>
    %245 = arith.mulf %243, %244 : vector<32x1xf32>
    %246 = arith.mulf %242, %242 : vector<32x1xf32>
    %247 = arith.subf %245, %246 : vector<32x1xf32>
    %cst_137 = arith.constant 0.000000e+00 : f32
    %248 = vector.broadcast %cst_137 : f32 to vector<32x1xf32>
    %249 = arith.maximumf %247, %248 : vector<32x1xf32>
    %cst_138 = arith.constant 9.99999974E-6 : f32
    %250 = vector.broadcast %cst_138 : f32 to vector<32x1xf32>
    %251 = arith.addf %249, %250 : vector<32x1xf32>
    %252 = math.rsqrt %251 : vector<32x1xf32>
    %253 = arith.mulf %252, %6 : vector<32x1xf32>
    %254 = arith.mulf %242, %253 : vector<32x1xf32>
    %255 = arith.subf %7, %254 : vector<32x1xf32>
    %256 = vector.broadcast %253 : vector<32x1xf32> to vector<32x512xf32>
    %257 = arith.mulf %234, %256 : vector<32x512xf32>
    %258 = vector.broadcast %255 : vector<32x1xf32> to vector<32x512xf32>
    %259 = arith.addf %257, %258 : vector<32x512xf32>
    %cst_139 = arith.constant 0.000000e+00 : f32
    %260 = vector.broadcast %cst_139 : f32 to vector<32x512xf32>
    %261 = arith.maximumf %259, %260 : vector<32x512xf32>
    %cst_140 = arith.constant dense<0.000000e+00> : vector<16x512xf32>
    %262 = tpu.matmul %8, %261, %cst_140 {dimension_numbers = #tpu.dot_dimension_numbers<[1], [0], [0], [1], [0, 0, 1, 1], [], []>} : vector<16x32xf32>, vector<32x512xf32>, vector<16x512xf32> -> vector<16x512xf32>
    %263 = vector.broadcast %9 : vector<16x1xf32> to vector<16x512xf32>
    %264 = arith.addf %262, %263 : vector<16x512xf32>
    %cst_141 = arith.constant 0.000000e+00 : f32
    %265 = vector.broadcast %cst_141 : f32 to vector<16x512xf32>
    %266 = arith.maximumf %264, %265 : vector<16x512xf32>
    %c0_142 = arith.constant 0 : index
    %c0_143 = arith.constant 0 : index
    %c0_144 = arith.constant 0 : index
    %267 = vector.load %arg12[%c0_142, %c0_143, %c0_144] : memref<1x16x512xf32, #tpu.memory_space<vmem>>, vector<1x16x512xf32>
    %268 = vector.shape_cast %267 : vector<1x16x512xf32> to vector<16x512xf32>
    %269 = vector.shape_cast %266 : vector<16x512xf32> to vector<1x16x512xf32>
    tpu.vector_store %arg12[%c0_142, %c0_143, %c0_144], %269 {strides = array<i32>} : memref<1x16x512xf32, #tpu.memory_space<vmem>>, vector<1x16x512xf32>,
    return
  }
  func.func @transform_0(%arg0: i32) -> (i32, i32, i32) {
    %c0_i32 = arith.constant 0 : i32
    %c0_i32_0 = arith.constant 0 : i32
    %c0_i32_1 = arith.constant 0 : i32
    return %arg0, %c0_i32, %c0_i32_0 : i32, i32, i32
  }
  func.func @transform_1(%arg0: i32) -> (i32, i32) {
    %c0_i32 = arith.constant 0 : i32
    %c0_i32_0 = arith.constant 0 : i32
    %c0_i32_1 = arith.constant 0 : i32
    return %c0_i32, %c0_i32_0 : i32, i32
  }
  func.func @transform_2(%arg0: i32) -> (i32, i32) {
    %c0_i32 = arith.constant 0 : i32
    %c0_i32_0 = arith.constant 0 : i32
    %c0_i32_1 = arith.constant 0 : i32
    return %c0_i32, %c0_i32_0 : i32, i32
  }
  func.func @transform_3(%arg0: i32) -> (i32, i32) {
    %c0_i32 = arith.constant 0 : i32
    %c0_i32_0 = arith.constant 0 : i32
    %c0_i32_1 = arith.constant 0 : i32
    return %c0_i32, %c0_i32_0 : i32, i32
  }
  func.func @transform_4(%arg0: i32) -> (i32, i32, i32) {
    %c0_i32 = arith.constant 0 : i32
    %c0_i32_0 = arith.constant 0 : i32
    %c0_i32_1 = arith.constant 0 : i32
    %c0_i32_2 = arith.constant 0 : i32
    return %c0_i32, %c0_i32_0, %c0_i32_1 : i32, i32, i32
  }
  func.func @transform_5(%arg0: i32) -> (i32, i32) {
    %c0_i32 = arith.constant 0 : i32
    %c0_i32_0 = arith.constant 0 : i32
    %c0_i32_1 = arith.constant 0 : i32
    return %c0_i32, %c0_i32_0 : i32, i32
  }
  func.func @transform_6(%arg0: i32) -> (i32, i32) {
    %c0_i32 = arith.constant 0 : i32
    %c0_i32_0 = arith.constant 0 : i32
    %c0_i32_1 = arith.constant 0 : i32
    return %c0_i32, %c0_i32_0 : i32, i32
  }
  func.func @transform_7(%arg0: i32) -> (i32, i32) {
    %c0_i32 = arith.constant 0 : i32
    %c0_i32_0 = arith.constant 0 : i32
    %c0_i32_1 = arith.constant 0 : i32
    return %c0_i32, %c0_i32_0 : i32, i32
  }
  func.func @transform_8(%arg0: i32) -> (i32, i32) {
    %c0_i32 = arith.constant 0 : i32
    %c0_i32_0 = arith.constant 0 : i32
    %c0_i32_1 = arith.constant 0 : i32
    return %c0_i32, %c0_i32_0 : i32, i32
  }
  func.func @transform_9(%arg0: i32) -> (i32, i32) {
    %c0_i32 = arith.constant 0 : i32
    %c0_i32_0 = arith.constant 0 : i32
    %c0_i32_1 = arith.constant 0 : i32
    return %c0_i32, %c0_i32_0 : i32, i32
  }
  func.func @transform_10(%arg0: i32) -> (i32, i32) {
    %c0_i32 = arith.constant 0 : i32
    %c0_i32_0 = arith.constant 0 : i32
    %c0_i32_1 = arith.constant 0 : i32
    return %c0_i32, %c0_i32_0 : i32, i32
  }
  func.func @transform_11(%arg0: i32) -> (i32, i32, i32) {
    %c0_i32 = arith.constant 0 : i32
    %c0_i32_0 = arith.constant 0 : i32
    %c0_i32_1 = arith.constant 0 : i32
    return %arg0, %c0_i32, %c0_i32_0 : i32, i32, i32
  }
}

</mosaic_0001>

<llo_original>
// kernel: tpu_custom_call.1
$region0: #{tpu_custom_call.1}
  #allocation0 [shape = 'u32[]', space=smem, size = 0x4, offset = 0x4, fixed_abs, tag = 'smem constant byte address 0x4 - core index']
  #allocation1 [shape = 'u32[144,128]{1,0:T(1,128)}', space=vmem, size = 0x12000, scoped, tag = 'internal scratch']
  #allocation2 [shape = 'f32[9,32,768]{2,1,0:T(8,128)}', space=vmem, size = 0xd8000, scoped, tag = 'scratch operand']
  %s0 = inlined_call_operand.vmem [shape: f32[2,4,512], index: 0, kind: input, shape index: {}]
  %s1 = inlined_call_operand.vmem [shape: f32[8,512], index: 1, kind: input, shape index: {}]
  %s2 = inlined_call_operand.vmem [shape: f32[32,4], index: 2, kind: input, shape index: {}]
  %s3 = inlined_call_operand.vmem [shape: f32[32,1], index: 3, kind: input, shape index: {}]
  %s4 = inlined_call_operand.hbm [shape: f32[27,32,32], index: 4, kind: input, shape index: {}]
  %s5 = inlined_call_operand.vmem [shape: f32[32,1], index: 5, kind: input, shape index: {}]
  %s6 = inlined_call_operand.vmem [shape: f32[32,32], index: 6, kind: input, shape index: {}]
  %s7 = inlined_call_operand.vmem [shape: f32[32,1], index: 7, kind: input, shape index: {}]
  %s8 = inlined_call_operand.vmem [shape: f32[32,1], index: 8, kind: input, shape index: {}]
  %s9 = inlined_call_operand.vmem [shape: f32[16,32], index: 9, kind: input, shape index: {}]
  %s10 = inlined_call_operand.vmem [shape: f32[16,1], index: 10, kind: input, shape index: {}]
  %s11 = inlined_call_operand.hbm [shape: f32[2,16,512], index: 11, kind: output, shape index: {}]
  %s12 = sld [smem:[#allocation0]]
  $region81: #{tpu_custom_call.1} parent=0
    _
  %s14 = ssub.s32 1, %s12
  %s15 = scalar_select 0, %s14, %s12
  $region1: #{tpu_custom_call.1} parent=0
    #allocation3 [shape = 'u8[442368]{0}', space=vmem, size = 0x6c000, scoped, tag = 'input window, operand 4, single buffered']
    #allocation4 [shape = 's32[2]{0}', space=sflag, size = 0x8, scoped, tag = 'scoped memory for tpu_custom_call.1']
    #allocation5 [shape = 's32[2]{0}', space=sflag, size = 0x8, scoped, tag = 'scoped memory for tpu_custom_call.1']
    #allocation6 [shape = 'u8[65536]{0}', space=vmem, size = 0x10000, scoped, tag = 'output window, operand 0']
    %16 = vsyncpa [#allocation4], 0
    %17 = vsyncpa [#allocation5], 0
    %s18 = scalar_lea.sflag [#allocation5], 1
    %19 = vsyncpa %s18, 0
    loop: start=0, step=1, limit=4
    $region2: #{tpu_custom_call.1} parent=1 // loop_pre_header
      _
    $region3: #{tpu_custom_call.1} parent=1 // loop_header
      %s21 = sphi 0, %s25
      %p22 = scmp.ge.s32.totalorder %s21, 4
      %s31 = sphi 0, %s33
      %s34 = sphi 0, %s31
      %s35 = sphi 0, %s34
      %s51 = sphi 0, %s35
      %s55 = sphi 0, %s55
      %s57 = sphi 0, %s55
      %s58 = sphi 0, %s57
      %s72 = sphi 0, %s58
      %s76 = sphi 0, %s76
      %s78 = sphi 0, %s76
      %s79 = sphi 0, %s78
      %s93 = sphi 0, %s79
      %s97 = sphi 0, %s97
      %s99 = sphi 0, %s97
      %s100 = sphi 0, %s99
      %s114 = sphi 0, %s100
      %s118 = sphi 0, %s118
      %s120 = sphi 0, %s118
      %s121 = sphi 0, %s120
      %s135 = sphi 0, %s121
      %s139 = sphi 0, %s139
      %s141 = sphi 0, %s139
      %s142 = sphi 0, %s141
      %s156 = sphi 0, %s142
      %s160 = sphi 0, %s160
      %s162 = sphi 0, %s160
      %s163 = sphi 0, %s162
      %s177 = sphi 0, %s163
      %s181 = sphi 0, %s181
      %s183 = sphi 0, %s181
      %s184 = sphi 0, %s183
      %s198 = sphi 0, %s184
      %s202 = sphi 0, %s202
      %s204 = sphi 0, %s202
      %s205 = sphi 0, %s204
      %s219 = sphi 0, %s205
      %s223 = sphi 0, %s223
      %s225 = sphi 0, %s223
      %s226 = sphi 0, %s225
      %s240 = sphi 0, %s226
      %s244 = sphi 0, %s244
      %s246 = sphi 0, %s244
      %s247 = sphi 0, %s246
      %s261 = sphi 0, %s247
      %s267 = sphi 0, %s269
      %s270 = sphi 0, %s267
      %s271 = sphi 0, %s270
      %s287 = sphi 0, %s271
    $region4: #{tpu_custom_call.1} parent=1 // loop_header_branch
      %24 = sbr.rel (%p22) target = $region8
    $region5: #{tpu_custom_call.1} parent=1 // loop_body
      %s26 = ssub.s32 %s21, 1
      %s27 = ssub.s32 %s21, 2
      %s28 = sadd.s32 %s21, 1
      %s29 = ssub.s32 %s21, %s28
      %p30 = scmp.eq.s32.totalorder %s29, 0
      %s32 = sadd.s32 %s31, 1
      %s33 = scalar_select %p30, %s31, %s32
      %p36 = pneg %p30
      %p37 = scmp.eq.s32.totalorder %s21, 1
      %p38 = por %p36, %p37
      %p39 = scmp.ne.s32.totalorder %s31, %s34
      %p40 = scmp.eq.s32.totalorder %s21, 0
      %p41 = por %p39, %p40
      %p42 = scmp.ne.s32.totalorder %s31, %s34
      %p43 = scmp.eq.s32.totalorder %s26, 1
      %p44 = por %p42, %p43
      %p45 = scmp.ne.s32.totalorder %s34, %s35
      %p46 = scmp.eq.s32.totalorder %s26, 0
      %p47 = por %p45, %p46
      %p48 = scmp.ne.s32.totalorder %s34, %s35
      %p49 = scmp.eq.s32.totalorder %s27, 1
      %p50 = por %p48, %p49
      %p52 = scmp.ne.s32.totalorder %s35, %s51
      %p53 = scmp.eq.s32.totalorder %s27, 0
      %p54 = por %p52, %p53
      %s56 = sadd.s32 %s55, 1
      %p59 = scmp.eq.s32.totalorder %s21, 1
      %p60 = scmp.ne.s32.totalorder %s55, %s57
      %p61 = scmp.eq.s32.totalorder %s21, 0
      %p62 = por %p60, %p61
      %p63 = scmp.ne.s32.totalorder %s55, %s57
      %p64 = scmp.eq.s32.totalorder %s26, 1
      %p65 = por %p63, %p64
      %p66 = scmp.ne.s32.totalorder %s57, %s58
      %p67 = scmp.eq.s32.totalorder %s26, 0
      %p68 = por %p66, %p67
      %p69 = scmp.ne.s32.totalorder %s57, %s58
      %p70 = scmp.eq.s32.totalorder %s27, 1
      %p71 = por %p69, %p70
      %p73 = scmp.ne.s32.totalorder %s58, %s72
      %p74 = scmp.eq.s32.totalorder %s27, 0
      %p75 = por %p73, %p74
      %s77 = sadd.s32 %s76, 1
      %p80 = scmp.eq.s32.totalorder %s21, 1
      %p81 = scmp.ne.s32.totalorder %s76, %s78
      %p82 = scmp.eq.s32.totalorder %s21, 0
      %p83 = por %p81, %p82
      %p84 = scmp.ne.s32.totalorder %s76, %s78
      %p85 = scmp.eq.s32.totalorder %s26, 1
      %p86 = por %p84, %p85
      %p87 = scmp.ne.s32.totalorder %s78, %s79
      %p88 = scmp.eq.s32.totalorder %s26, 0
      %p89 = por %p87, %p88
      %p90 = scmp.ne.s32.totalorder %s78, %s79
      %p91 = scmp.eq.s32.totalorder %s27, 1
      %p92 = por %p90, %p91
      %p94 = scmp.ne.s32.totalorder %s79, %s93
      %p95 = scmp.eq.s32.totalorder %s27, 0
      %p96 = por %p94, %p95
      %s98 = sadd.s32 %s97, 1
      %p101 = scmp.eq.s32.totalorder %s21, 1
      %p102 = scmp.ne.s32.totalorder %s97, %s99
      %p103 = scmp.eq.s32.totalorder %s21, 0
      %p104 = por %p102, %p103
      %p105 = scmp.ne.s32.totalorder %s97, %s99
      %p106 = scmp.eq.s32.totalorder %s26, 1
      %p107 = por %p105, %p106
      %p108 = scmp.ne.s32.totalorder %s99, %s100
      %p109 = scmp.eq.s32.totalorder %s26, 0
      %p110 = por %p108, %p109
      %p111 = scmp.ne.s32.totalorder %s99, %s100
      %p112 = scmp.eq.s32.totalorder %s27, 1
      %p113 = por %p111, %p112
      %p115 = scmp.ne.s32.totalorder %s100, %s114
      %p116 = scmp.eq.s32.totalorder %s27, 0
      %p117 = por %p115, %p116
      %s119 = sadd.s32 %s118, 1
      %p122 = scmp.eq.s32.totalorder %s21, 1
      %p123 = scmp.ne.s32.totalorder %s118, %s120
      %p124 = scmp.eq.s32.totalorder %s21, 0
      %p125 = por %p123, %p124
      %p126 = scmp.ne.s32.totalorder %s118, %s120
      %p127 = scmp.eq.s32.totalorder %s26, 1
      %p128 = por %p126, %p127
      %p129 = scmp.ne.s32.totalorder %s120, %s121
      %p130 = scmp.eq.s32.totalorder %s26, 0
      %p131 = por %p129, %p130
      %p132 = scmp.ne.s32.totalorder %s120, %s121
      %p133 = scmp.eq.s32.totalorder %s27, 1
      %p134 = por %p132, %p133
      %p136 = scmp.ne.s32.totalorder %s121, %s135
      %p137 = scmp.eq.s32.totalorder %s27, 0
      %p138 = por %p136, %p137
      %s140 = sadd.s32 %s139, 1
      %p143 = scmp.eq.s32.totalorder %s21, 1
      %p144 = scmp.ne.s32.totalorder %s139, %s141
      %p145 = scmp.eq.s32.totalorder %s21, 0
      %p146 = por %p144, %p145
      %p147 = scmp.ne.s32.totalorder %s139, %s141
      %p148 = scmp.eq.s32.totalorder %s26, 1
      %p149 = por %p147, %p148
      %p150 = scmp.ne.s32.totalorder %s141, %s142
      %p151 = scmp.eq.s32.totalorder %s26, 0
      %p152 = por %p150, %p151
      %p153 = scmp.ne.s32.totalorder %s141, %s142
      %p154 = scmp.eq.s32.totalorder %s27, 1
      %p155 = por %p153, %p154
      %p157 = scmp.ne.s32.totalorder %s142, %s156
      %p158 = scmp.eq.s32.totalorder %s27, 0
      %p159 = por %p157, %p158
      %s161 = sadd.s32 %s160, 1
      %p164 = scmp.eq.s32.totalorder %s21, 1
      %p165 = scmp.ne.s32.totalorder %s160, %s162
      %p166 = scmp.eq.s32.totalorder %s21, 0
      %p167 = por %p165, %p166
      %p168 = scmp.ne.s32.totalorder %s160, %s162
      %p169 = scmp.eq.s32.totalorder %s26, 1
      %p170 = por %p168, %p169
      %p171 = scmp.ne.s32.totalorder %s162, %s163
      %p172 = scmp.eq.s32.totalorder %s26, 0
      %p173 = por %p171, %p172
      %p174 = scmp.ne.s32.totalorder %s162, %s163
      %p175 = scmp.eq.s32.totalorder %s27, 1
      %p176 = por %p174, %p175
      %p178 = scmp.ne.s32.totalorder %s163, %s177
      %p179 = scmp.eq.s32.totalorder %s27, 0
      %p180 = por %p178, %p179
      %s182 = sadd.s32 %s181, 1
      %p185 = scmp.eq.s32.totalorder %s21, 1
      %p186 = scmp.ne.s32.totalorder %s181, %s183
      %p187 = scmp.eq.s32.totalorder %s21, 0
      %p188 = por %p186, %p187
      %p189 = scmp.ne.s32.totalorder %s181, %s183
      %p190 = scmp.eq.s32.totalorder %s26, 1
      %p191 = por %p189, %p190
      %p192 = scmp.ne.s32.totalorder %s183, %s184
      %p193 = scmp.eq.s32.totalorder %s26, 0
      %p194 = por %p192, %p193
      %p195 = scmp.ne.s32.totalorder %s183, %s184
      %p196 = scmp.eq.s32.totalorder %s27, 1
      %p197 = por %p195, %p196
      %p199 = scmp.ne.s32.totalorder %s184, %s198
      %p200 = scmp.eq.s32.totalorder %s27, 0
      %p201 = por %p199, %p200
      %s203 = sadd.s32 %s202, 1
      %p206 = scmp.eq.s32.totalorder %s21, 1
      %p207 = scmp.ne.s32.totalorder %s202, %s204
      %p208 = scmp.eq.s32.totalorder %s21, 0
      %p209 = por %p207, %p208
      %p210 = scmp.ne.s32.totalorder %s202, %s204
      %p211 = scmp.eq.s32.totalorder %s26, 1
      %p212 = por %p210, %p211
      %p213 = scmp.ne.s32.totalorder %s204, %s205
      %p214 = scmp.eq.s32.totalorder %s26, 0
      %p215 = por %p213, %p214
      %p216 = scmp.ne.s32.totalorder %s204, %s205
      %p217 = scmp.eq.s32.totalorder %s27, 1
      %p218 = por %p216, %p217
      %p220 = scmp.ne.s32.totalorder %s205, %s219
      %p221 = scmp.eq.s32.totalorder %s27, 0
      %p222 = por %p220, %p221
      %s224 = sadd.s32 %s223, 1
      %p227 = scmp.eq.s32.totalorder %s21, 1
      %p228 = scmp.ne.s32.totalorder %s223, %s225
      %p229 = scmp.eq.s32.totalorder %s21, 0
      %p230 = por %p228, %p229
      %p231 = scmp.ne.s32.totalorder %s223, %s225
      %p232 = scmp.eq.s32.totalorder %s26, 1
      %p233 = por %p231, %p232
      %p234 = scmp.ne.s32.totalorder %s225, %s226
      %p235 = scmp.eq.s32.totalorder %s26, 0
      %p236 = por %p234, %p235
      %p237 = scmp.ne.s32.totalorder %s225, %s226
      %p238 = scmp.eq.s32.totalorder %s27, 1
      %p239 = por %p237, %p238
      %p241 = scmp.ne.s32.totalorder %s226, %s240
      %p242 = scmp.eq.s32.totalorder %s27, 0
      %p243 = por %p241, %p242
      %s245 = sadd.s32 %s244, 1
      %p248 = scmp.eq.s32.totalorder %s21, 1
      %p249 = scmp.ne.s32.totalorder %s244, %s246
      %p250 = scmp.eq.s32.totalorder %s21, 0
      %p251 = por %p249, %p250
      %p252 = scmp.ne.s32.totalorder %s244, %s246
      %p253 = scmp.eq.s32.totalorder %s26, 1
      %p254 = por %p252, %p253
      %p255 = scmp.ne.s32.totalorder %s246, %s247
      %p256 = scmp.eq.s32.totalorder %s26, 0
      %p257 = por %p255, %p256
      %p258 = scmp.ne.s32.totalorder %s246, %s247
      %p259 = scmp.eq.s32.totalorder %s27, 1
      %p260 = por %p258, %p259
      %p262 = scmp.ne.s32.totalorder %s247, %s261
      %p263 = scmp.eq.s32.totalorder %s27, 0
      %p264 = por %p262, %p263
      %s265 = ssub.s32 %s21, %s28
      %p266 = scmp.eq.s32.totalorder %s265, 0
      %s268 = sadd.s32 %s267, 1
      %s269 = scalar_select %p266, %s267, %s268
      %p272 = pneg %p266
      %p273 = scmp.eq.s32.totalorder %s21, 1
      %p274 = por %p272, %p273
      %p275 = scmp.ne.s32.totalorder %s267, %s270
      %p276 = scmp.eq.s32.totalorder %s21, 0
      %p277 = por %p275, %p276
      %p278 = scmp.ne.s32.totalorder %s267, %s270
      %p279 = scmp.eq.s32.totalorder %s26, 1
      %p280 = por %p278, %p279
      %p281 = scmp.ne.s32.totalorder %s270, %s271
      %p282 = scmp.eq.s32.totalorder %s26, 0
      %p283 = por %p281, %p282
      %p284 = scmp.ne.s32.totalorder %s270, %s271
      %p285 = scmp.eq.s32.totalorder %s27, 1
      %p286 = por %p284, %p285
      %p288 = scmp.ne.s32.totalorder %s271, %s287
      %p289 = scmp.eq.s32.totalorder %s27, 0
      %p290 = por %p288, %p289
      %p291 = scmp.le.s32.totalorder 1, %s21
      %p292 = scmp.lt.s32.totalorder %s21, 3
      %p293 = pnand %p291, %p292
      %p294 = pneg %p293
      // Predicated region
      $region9: #{tpu_custom_call.1} parent=5 // pred_check
        _
      $region10: #{tpu_custom_call.1} parent=5 // pred_check_branch
        %296 = sbr.rel (%p293) target = $region12
      $region11: #{tpu_custom_call.1} parent=5 // pred_region
        %s297 = ssub.s32 %s21, 1
        // Predicated region
        $region13: #{tpu_custom_call.1} parent=11 // pred_check
          %p298 = pneg %p68
        $region14: #{tpu_custom_call.1} parent=11 // pred_check_branch
          %300 = sbr.rel (%p298) target = $region16
        $region15: #{tpu_custom_call.1} parent=11 // pred_region
          _
        $region16: #{tpu_custom_call.1} parent=11 // pred_fallthru
          _
        // Predicated region
        $region17: #{tpu_custom_call.1} parent=11 // pred_check
          %p301 = pneg %p89
        $region18: #{tpu_custom_call.1} parent=11 // pred_check_branch
          %303 = sbr.rel (%p301) target = $region20
        $region19: #{tpu_custom_call.1} parent=11 // pred_region
          _
        $region20: #{tpu_custom_call.1} parent=11 // pred_fallthru
          _
        // Predicated region
        $region21: #{tpu_custom_call.1} parent=11 // pred_check
          %p304 = pneg %p110
        $region22: #{tpu_custom_call.1} parent=11 // pred_check_branch
          %306 = sbr.rel (%p304) target = $region24
        $region23: #{tpu_custom_call.1} parent=11 // pred_region
          _
        $region24: #{tpu_custom_call.1} parent=11 // pred_fallthru
          _
        // Predicated region
        $region25: #{tpu_custom_call.1} parent=11 // pred_check
          %p307 = pneg %p131
        $region26: #{tpu_custom_call.1} parent=11 // pred_check_branch
          %309 = sbr.rel (%p307) target = $region28
        $region27: #{tpu_custom_call.1} parent=11 // pred_region
          %s311 = ssub.s32 13824, 13824
          %312 = vsyncadd [#allocation4], %s311
          %s313 = sshll.u32 [#allocation3], 4
          %s314 = int_to_ptr.vmem [resolvable:$true] %s313
          %319 = dma.hbm_to_vmem [thread:$0]  %s4, 13824, %s314, [#allocation4], 128, 128, 8
        $region28: #{tpu_custom_call.1} parent=11 // pred_fallthru
          _
        // Predicated region
        $region29: #{tpu_custom_call.1} parent=11 // pred_check
          %p320 = pneg %p152
        $region30: #{tpu_custom_call.1} parent=11 // pred_check_branch
          %322 = sbr.rel (%p320) target = $region32
        $region31: #{tpu_custom_call.1} parent=11 // pred_region
          _
        $region32: #{tpu_custom_call.1} parent=11 // pred_fallthru
          _
        // Predicated region
        $region33: #{tpu_custom_call.1} parent=11 // pred_check
          %p323 = pneg %p173
        $region34: #{tpu_custom_call.1} parent=11 // pred_check_branch
          %325 = sbr.rel (%p323) target = $region36
        $region35: #{tpu_custom_call.1} parent=11 // pred_region
          _
        $region36: #{tpu_custom_call.1} parent=11 // pred_fallthru
          _
        // Predicated region
        $region37: #{tpu_custom_call.1} parent=11 // pred_check
          %p326 = pneg %p194
        $region38: #{tpu_custom_call.1} parent=11 // pred_check_branch
          %328 = sbr.rel (%p326) target = $region40
        $region39: #{tpu_custom_call.1} parent=11 // pred_region
          _
        $region40: #{tpu_custom_call.1} parent=11 // pred_fallthru
          _
        // Predicated region
        $region41: #{tpu_custom_call.1} parent=11 // pred_check
          %p329 = pneg %p215
        $region42: #{tpu_custom_call.1} parent=11 // pred_check_branch
          %331 = sbr.rel (%p329) target = $region44
        $region43: #{tpu_custom_call.1} parent=11 // pred_region
          _
        $region44: #{tpu_custom_call.1} parent=11 // pred_fallthru
          _
        // Predicated region
        $region45: #{tpu_custom_call.1} parent=11 // pred_check
          %p332 = pneg %p236
        $region46: #{tpu_custom_call.1} parent=11 // pred_check_branch
          %334 = sbr.rel (%p332) target = $region48
        $region47: #{tpu_custom_call.1} parent=11 // pred_region
          _
        $region48: #{tpu_custom_call.1} parent=11 // pred_fallthru
          _
        // Predicated region
        $region49: #{tpu_custom_call.1} parent=11 // pred_check
          %p335 = pneg %p257
        $region50: #{tpu_custom_call.1} parent=11 // pred_check_branch
          %337 = sbr.rel (%p335) target = $region52
        $region51: #{tpu_custom_call.1} parent=11 // pred_region
          _
        $region52: #{tpu_custom_call.1} parent=11 // pred_fallthru
          _
      $region12: #{tpu_custom_call.1} parent=5 // pred_fallthru
        _
      %p338 = scmp.lt.s32.totalorder %s21, 2
      // Predicated region
      $region53: #{tpu_custom_call.1} parent=5 // pred_check
        %p339 = pneg %p338
      $region54: #{tpu_custom_call.1} parent=5 // pred_check_branch
        %341 = sbr.rel (%p339) target = $region56
      $region55: #{tpu_custom_call.1} parent=5 // pred_region
        // Predicated region
        $region57: #{tpu_custom_call.1} parent=55 // pred_check
          %p342 = pneg %p41
        $region58: #{tpu_custom_call.1} parent=55 // pred_check_branch
          %344 = sbr.rel (%p342) target = $region60
        $region59: #{tpu_custom_call.1} parent=55 // pred_region
          %p345 = scmp.lt.s32.totalorder %s21, 1
          %s346 = scalar_select %p345, %s21, 1
          %s347 = smul.addr %s346, 4
          %s348 = smul.addr %s347, 4
          %s349 = scalar_lea.vmem %s0, %s348
        $region60: #{tpu_custom_call.1} parent=55 // pred_fallthru
          _
      $region56: #{tpu_custom_call.1} parent=5 // pred_fallthru
        _
      %p350 = scmp.le.s32.totalorder 1, %s21
      %p351 = scmp.lt.s32.totalorder %s21, 3
      %p352 = pnand %p350, %p351
      %p353 = pneg %p352
      // Predicated region
      $region61: #{tpu_custom_call.1} parent=5 // pred_check
        _
      $region62: #{tpu_custom_call.1} parent=5 // pred_check_branch
        %355 = sbr.rel (%p352) target = $region64
      $region63: #{tpu_custom_call.1} parent=5 // pred_region
        %s356 = ssub.s32 %s21, 1
        // Predicated region
        $region65: #{tpu_custom_call.1} parent=63 // pred_check
          %p357 = pneg %p131
        $region66: #{tpu_custom_call.1} parent=63 // pred_check_branch
          %359 = sbr.rel (%p357) target = $region68
        $region67: #{tpu_custom_call.1} parent=63 // pred_region
          %360 = dma.done [#allocation4], 13824
        $region68: #{tpu_custom_call.1} parent=63 // pred_fallthru
          _
        %p361 = scmp.lt.s32.totalorder %s26, 1
        %s362 = scalar_select %p361, %s26, 1
        %s363 = smul.addr %s362, 4
        %s364 = smul.addr %s363, 4
        %s365 = scalar_lea.vmem %s0, %s364
        %p366 = pneg %p47
        %p367 = pneg %p44
        %p368 = pneg %p68
        %p369 = pneg %p65
        %p370 = pneg %p89
        %p371 = pneg %p86
        %p372 = pneg %p110
        %p373 = pneg %p107
        %p374 = pneg %p131
        %p375 = pneg %p128
        %p376 = pneg %p152
        %p377 = pneg %p149
        %p378 = pneg %p173
        %p379 = pneg %p170
        %p380 = pneg %p194
        %p381 = pneg %p191
        %p382 = pneg %p215
        %p383 = pneg %p212
        %p384 = pneg %p236
        %p385 = pneg %p233
        %p386 = pneg %p257
        %p387 = pneg %p254
        %p388 = pneg %p283
        %p389 = pneg %p280
        %s390 = sand.u32 %s270, 1
        %s391 = scalar_lea.sflag [#allocation5], %s390
        %s392 = sand.u32 %s270, 1
        %s393 = smul.addr %s392, 64
        %s394 = scalar_lea.vmem [#allocation6], %s393
        %p395 = scmp.lt.s32.totalorder %s26, 1
        %s396 = scalar_select %p395, %s26, 1
        %s397 = smul.addr %s396, 4
        %s398 = smul.addr %s397, 4
        %s399 = scalar_lea.vmem %s0, %s398
        %v400 = vld [vmem:[%s1] sm:$0xff]
        %v401 = vld [vmem:[%s1 + $0x8] sm:$0xff]
        %v402 = vld [vmem:[%s1 + $0x10] sm:$0xff]
        %v403 = vld [vmem:[%s1 + $0x18] sm:$0xff]
        %v404 = vld [vmem:[%s2] sm:$0xff]
        %v405 = vld [vmem:[%s2 + $0x8] sm:$0xff]
        %v406 = vld [vmem:[%s2 + $0x10] sm:$0xff]
        %v407 = vld [vmem:[%s2 + $0x18] sm:$0xff]
        %v408 = vld [vmem:[%s3] sm:$0xff]
        %v409 = vld [vmem:[%s3 + $0x8] sm:$0xff]
        %v410 = vld [vmem:[%s3 + $0x10] sm:$0xff]
        %v411 = vld [vmem:[%s3 + $0x18] sm:$0xff]
        %v412 = vld [vmem:[#allocation3] sm:$0xff]
        %v413 = vld [vmem:[#allocation3 + $0x8] sm:$0xff]
        %v414 = vld [vmem:[#allocation3 + $0x10] sm:$0xff]
        %v415 = vld [vmem:[#allocation3 + $0x18] sm:$0xff]
        %v416 = vld [vmem:[#allocation3 + $0x20] sm:$0xff]
        %v417 = vld [vmem:[#allocation3 + $0x28] sm:$0xff]
        %v418 = vld [vmem:[#allocation3 + $0x30] sm:$0xff]
        %v419 = vld [vmem:[#allocation3 + $0x38] sm:$0xff]
        %v420 = vld [vmem:[#allocation3 + $0x40] sm:$0xff]
        %v421 = vld [vmem:[#allocation3 + $0x48] sm:$0xff]
        %v422 = vld [vmem:[#allocation3 + $0x50] sm:$0xff]
        %v423 = vld [vmem:[#allocation3 + $0x58] sm:$0xff]
        %v424 = vld [vmem:[#allocation3 + $0x60] sm:$0xff]
        %v425 = vld [vmem:[#allocation3 + $0x68] sm:$0xff]
        %v426 = vld [vmem:[#allocation3 + $0x70] sm:$0xff]
        %v427 = vld [vmem:[#allocation3 + $0x78] sm:$0xff]
        %v428 = vld [vmem:[#allocation3 + $0x80] sm:$0xff]
        %v429 = vld [vmem:[#allocation3 + $0x88] sm:$0xff]
        %v430 = vld [vmem:[#allocation3 + $0x90] sm:$0xff]
        %v431 = vld [vmem:[#allocation3 + $0x98] sm:$0xff]
        %v432 = vld [vmem:[#allocation3 + $0xa0] sm:$0xff]
        %v433 = vld [vmem:[#allocation3 + $0xa8] sm:$0xff]
        %v434 = vld [vmem:[#allocation3 + $0xb0] sm:$0xff]
        %v435 = vld [vmem:[#allocation3 + $0xb8] sm:$0xff]
        %v436 = vld [vmem:[#allocation3 + $0xc0] sm:$0xff]
        %v437 = vld [vmem:[#allocation3 + $0xc8] sm:$0xff]
        %v438 = vld [vmem:[#allocation3 + $0xd0] sm:$0xff]
        %v439 = vld [vmem:[#allocation3 + $0xd8] sm:$0xff]
        %v440 = vld [vmem:[#allocation3 + $0xe0] sm:$0xff]
        %v441 = vld [vmem:[#allocation3 + $0xe8] sm:$0xff]
        %v442 = vld [vmem:[#allocation3 + $0xf0] sm:$0xff]
        %v443 = vld [vmem:[#allocation3 + $0xf8] sm:$0xff]
        %v444 = vld [vmem:[#allocation3 + $0x100] sm:$0xff]
        %v445 = vld [vmem:[#allocation3 + $0x108] sm:$0xff]
        %v446 = vld [vmem:[#allocation3 + $0x110] sm:$0xff]
        %v447 = vld [vmem:[#allocation3 + $0x118] sm:$0xff]
        %v448 = vld [vmem:[#allocation3 + $0x120] sm:$0xff]
        %v449 = vld [vmem:[#allocation3 + $0x128] sm:$0xff]
        %v450 = vld [vmem:[#allocation3 + $0x130] sm:$0xff]
        %v451 = vld [vmem:[#allocation3 + $0x138] sm:$0xff]
        %v452 = vld [vmem:[#allocation3 + $0x140] sm:$0xff]
        %v453 = vld [vmem:[#allocation3 + $0x148] sm:$0xff]
        %v454 = vld [vmem:[#allocation3 + $0x150] sm:$0xff]
        %v455 = vld [vmem:[#allocation3 + $0x158] sm:$0xff]
        %v456 = vld [vmem:[#allocation3 + $0x160] sm:$0xff]
        %v457 = vld [vmem:[#allocation3 + $0x168] sm:$0xff]
        %v458 = vld [vmem:[#allocation3 + $0x170] sm:$0xff]
        %v459 = vld [vmem:[#allocation3 + $0x178] sm:$0xff]
        %v460 = vld [vmem:[#allocation3 + $0x180] sm:$0xff]
        %v461 = vld [vmem:[#allocation3 + $0x188] sm:$0xff]
        %v462 = vld [vmem:[#allocation3 + $0x190] sm:$0xff]
        %v463 = vld [vmem:[#allocation3 + $0x198] sm:$0xff]
        %v464 = vld [vmem:[#allocation3 + $0x1a0] sm:$0xff]
        %v465 = vld [vmem:[#allocation3 + $0x1a8] sm:$0xff]
        %v466 = vld [vmem:[#allocation3 + $0x1b0] sm:$0xff]
        %v467 = vld [vmem:[#allocation3 + $0x1b8] sm:$0xff]
        %v468 = vld [vmem:[#allocation3 + $0x1c0] sm:$0xff]
        %v469 = vld [vmem:[#allocation3 + $0x1c8] sm:$0xff]
        %v470 = vld [vmem:[#allocation3 + $0x1d0] sm:$0xff]
        %v471 = vld [vmem:[#allocation3 + $0x1d8] sm:$0xff]
        %v472 = vld [vmem:[#allocation3 + $0x1e0] sm:$0xff]
        %v473 = vld [vmem:[#allocation3 + $0x1e8] sm:$0xff]
        %v474 = vld [vmem:[#allocation3 + $0x1f0] sm:$0xff]
        %v475 = vld [vmem:[#allocation3 + $0x1f8] sm:$0xff]
        %v476 = vld [vmem:[#allocation3 + $0x200] sm:$0xff]
        %v477 = vld [vmem:[#allocation3 + $0x208] sm:$0xff]
        %v478 = vld [vmem:[#allocation3 + $0x210] sm:$0xff]
        %v479 = vld [vmem:[#allocation3 + $0x218] sm:$0xff]
        %v480 = vld [vmem:[#allocation3 + $0x220] sm:$0xff]
        %v481 = vld [vmem:[#allocation3 + $0x228] sm:$0xff]
        %v482 = vld [vmem:[#allocation3 + $0x230] sm:$0xff]
        %v483 = vld [vmem:[#allocation3 + $0x238] sm:$0xff]
        %v484 = vld [vmem:[#allocation3 + $0x240] sm:$0xff]
        %v485 = vld [vmem:[#allocation3 + $0x248] sm:$0xff]
        %v486 = vld [vmem:[#allocation3 + $0x250] sm:$0xff]
        %v487 = vld [vmem:[#allocation3 + $0x258] sm:$0xff]
        %v488 = vld [vmem:[#allocation3 + $0x260] sm:$0xff]
        %v489 = vld [vmem:[#allocation3 + $0x268] sm:$0xff]
        %v490 = vld [vmem:[#allocation3 + $0x270] sm:$0xff]
        %v491 = vld [vmem:[#allocation3 + $0x278] sm:$0xff]
        %v492 = vld [vmem:[#allocation3 + $0x280] sm:$0xff]
        %v493 = vld [vmem:[#allocation3 + $0x288] sm:$0xff]
        %v494 = vld [vmem:[#allocation3 + $0x290] sm:$0xff]
        %v495 = vld [vmem:[#allocation3 + $0x298] sm:$0xff]
        %v496 = vld [vmem:[#allocation3 + $0x2a0] sm:$0xff]
        %v497 = vld [vmem:[#allocation3 + $0x2a8] sm:$0xff]
        %v498 = vld [vmem:[#allocation3 + $0x2b0] sm:$0xff]
        %v499 = vld [vmem:[#allocation3 + $0x2b8] sm:$0xff]
        %v500 = vld [vmem:[#allocation3 + $0x2c0] sm:$0xff]
        %v501 = vld [vmem:[#allocation3 + $0x2c8] sm:$0xff]
        %v502 = vld [vmem:[#allocation3 + $0x2d0] sm:$0xff]
        %v503 = vld [vmem:[#allocation3 + $0x2d8] sm:$0xff]
        %v504 = vld [vmem:[#allocation3 + $0x2e0] sm:$0xff]
        %v505 = vld [vmem:[#allocation3 + $0x2e8] sm:$0xff]
        %v506 = vld [vmem:[#allocation3 + $0x2f0] sm:$0xff]
        %v507 = vld [vmem:[#allocation3 + $0x2f8] sm:$0xff]
        %v508 = vld [vmem:[#allocation3 + $0x300] sm:$0xff]
        %v509 = vld [vmem:[#allocation3 + $0x308] sm:$0xff]
        %v510 = vld [vmem:[#allocation3 + $0x310] sm:$0xff]
        %v511 = vld [vmem:[#allocation3 + $0x318] sm:$0xff]
        %v512 = vld [vmem:[#allocation3 + $0x320] sm:$0xff]
        %v513 = vld [vmem:[#allocation3 + $0x328] sm:$0xff]
        %v514 = vld [vmem:[#allocation3 + $0x330] sm:$0xff]
        %v515 = vld [vmem:[#allocation3 + $0x338] sm:$0xff]
        %v516 = vld [vmem:[#allocation3 + $0x340] sm:$0xff]
        %v517 = vld [vmem:[#allocation3 + $0x348] sm:$0xff]
        %v518 = vld [vmem:[#allocation3 + $0x350] sm:$0xff]
        %v519 = vld [vmem:[#allocation3 + $0x358] sm:$0xff]
        %v520 = vld [vmem:[%s5] sm:$0xff]
        %v521 = vld [vmem:[%s5 + $0x8] sm:$0xff]
        %v522 = vld [vmem:[%s5 + $0x10] sm:$0xff]
        %v523 = vld [vmem:[%s5 + $0x18] sm:$0xff]
        %v524 = vld [vmem:[%s6] sm:$0xff]
        %v525 = vld [vmem:[%s6 + $0x8] sm:$0xff]
        %v526 = vld [vmem:[%s6 + $0x10] sm:$0xff]
        %v527 = vld [vmem:[%s6 + $0x18] sm:$0xff]
        %v528 = vld [vmem:[%s7] sm:$0xff]
        %v529 = vld [vmem:[%s7 + $0x8] sm:$0xff]
        %v530 = vld [vmem:[%s7 + $0x10] sm:$0xff]
        %v531 = vld [vmem:[%s7 + $0x18] sm:$0xff]
        %v532 = vld [vmem:[%s8] sm:$0xff]
        %v533 = vld [vmem:[%s8 + $0x8] sm:$0xff]
        %v534 = vld [vmem:[%s8 + $0x10] sm:$0xff]
        %v535 = vld [vmem:[%s8 + $0x18] sm:$0xff]
        %v536 = vld [vmem:[%s9] sm:$0xff]
        %v537 = vld [vmem:[%s9 + $0x8] sm:$0xff]
        %v538 = vld [vmem:[%s10] sm:$0xff]
        %v539 = vld [vmem:[%s10 + $0x8] sm:$0xff]
        %540 = vst [vmem:[#allocation2] sm:$0xff] 0.0
        %541 = vst [vmem:[#allocation2 + $0x30] sm:$0xff] 0.0
        %542 = vst [vmem:[#allocation2 + $0x60] sm:$0xff] 0.0
        %543 = vst [vmem:[#allocation2 + $0x90] sm:$0xff] 0.0
        %544 = vst [vmem:[#allocation2 + $0xc0] sm:$0xff] 0.0
        %545 = vst [vmem:[#allocation2 + $0xf0] sm:$0xff] 0.0
        %546 = vst [vmem:[#allocation2 + $0x120] sm:$0xff] 0.0
        %547 = vst [vmem:[#allocation2 + $0x150] sm:$0xff] 0.0
        %548 = vst [vmem:[#allocation2 + $0x180] sm:$0xff] 0.0
        %549 = vst [vmem:[#allocation2 + $0x1b0] sm:$0xff] 0.0
        %550 = vst [vmem:[#allocation2 + $0x1e0] sm:$0xff] 0.0
        %551 = vst [vmem:[#allocation2 + $0x210] sm:$0xff] 0.0
        %552 = vst [vmem:[#allocation2 + $0x240] sm:$0xff] 0.0
        %553 = vst [vmem:[#allocation2 + $0x270] sm:$0xff] 0.0
        %554 = vst [vmem:[#allocation2 + $0x2a0] sm:$0xff] 0.0
        %555 = vst [vmem:[#allocation2 + $0x2d0] sm:$0xff] 0.0
        %556 = vst [vmem:[#allocation2 + $0x300] sm:$0xff] 0.0
        %557 = vst [vmem:[#allocation2 + $0x330] sm:$0xff] 0.0
        %558 = vst [vmem:[#allocation2 + $0x360] sm:$0xff] 0.0
        %559 = vst [vmem:[#allocation2 + $0x390] sm:$0xff] 0.0
        %560 = vst [vmem:[#allocation2 + $0x3c0] sm:$0xff] 0.0
        %561 = vst [vmem:[#allocation2 + $0x3f0] sm:$0xff] 0.0
        %562 = vst [vmem:[#allocation2 + $0x420] sm:$0xff] 0.0
        %563 = vst [vmem:[#allocation2 + $0x450] sm:$0xff] 0.0
        %564 = vst [vmem:[#allocation2 + $0x480] sm:$0xff] 0.0
        %565 = vst [vmem:[#allocation2 + $0x4b0] sm:$0xff] 0.0
        %566 = vst [vmem:[#allocation2 + $0x4e0] sm:$0xff] 0.0
        %567 = vst [vmem:[#allocation2 + $0x510] sm:$0xff] 0.0
        %568 = vst [vmem:[#allocation2 + $0x540] sm:$0xff] 0.0
        %569 = vst [vmem:[#allocation2 + $0x570] sm:$0xff] 0.0
        %570 = vst [vmem:[#allocation2 + $0x5a0] sm:$0xff] 0.0
        %571 = vst [vmem:[#allocation2 + $0x5d0] sm:$0xff] 0.0
        %572 = vst [vmem:[#allocation2 + $0x600] sm:$0xff] 0.0
        %573 = vst [vmem:[#allocation2 + $0x630] sm:$0xff] 0.0
        %574 = vst [vmem:[#allocation2 + $0x660] sm:$0xff] 0.0
        %575 = vst [vmem:[#allocation2 + $0x690] sm:$0xff] 0.0
        %576 = vst [vmem:[#allocation2 + $0x28] sm:$0xff] 0.0
        %577 = vst [vmem:[#allocation2 + $0x58] sm:$0xff] 0.0
        %578 = vst [vmem:[#allocation2 + $0x88] sm:$0xff] 0.0
        %579 = vst [vmem:[#allocation2 + $0xb8] sm:$0xff] 0.0
        %580 = vst [vmem:[#allocation2 + $0xe8] sm:$0xff] 0.0
        %581 = vst [vmem:[#allocation2 + $0x118] sm:$0xff] 0.0
        %582 = vst [vmem:[#allocation2 + $0x148] sm:$0xff] 0.0
        %583 = vst [vmem:[#allocation2 + $0x178] sm:$0xff] 0.0
        %584 = vst [vmem:[#allocation2 + $0x1a8] sm:$0xff] 0.0
        %585 = vst [vmem:[#allocation2 + $0x1d8] sm:$0xff] 0.0
        %586 = vst [vmem:[#allocation2 + $0x208] sm:$0xff] 0.0
        %587 = vst [vmem:[#allocation2 + $0x238] sm:$0xff] 0.0
        %588 = vst [vmem:[#allocation2 + $0x268] sm:$0xff] 0.0
        %589 = vst [vmem:[#allocation2 + $0x298] sm:$0xff] 0.0
        %590 = vst [vmem:[#allocation2 + $0x2c8] sm:$0xff] 0.0
        %591 = vst [vmem:[#allocation2 + $0x2f8] sm:$0xff] 0.0
        %592 = vst [vmem:[#allocation2 + $0x328] sm:$0xff] 0.0
        %593 = vst [vmem:[#allocation2 + $0x358] sm:$0xff] 0.0
        %594 = vst [vmem:[#allocation2 + $0x388] sm:$0xff] 0.0
        %595 = vst [vmem:[#allocation2 + $0x3b8] sm:$0xff] 0.0
        %596 = vst [vmem:[#allocation2 + $0x3e8] sm:$0xff] 0.0
        %597 = vst [vmem:[#allocation2 + $0x418] sm:$0xff] 0.0
        %598 = vst [vmem:[#allocation2 + $0x448] sm:$0xff] 0.0
        %599 = vst [vmem:[#allocation2 + $0x478] sm:$0xff] 0.0
        %600 = vst [vmem:[#allocation2 + $0x4a8] sm:$0xff] 0.0
        %601 = vst [vmem:[#allocation2 + $0x4d8] sm:$0xff] 0.0
        %602 = vst [vmem:[#allocation2 + $0x508] sm:$0xff] 0.0
        %603 = vst [vmem:[#allocation2 + $0x538] sm:$0xff] 0.0
        %604 = vst [vmem:[#allocation2 + $0x568] sm:$0xff] 0.0
        %605 = vst [vmem:[#allocation2 + $0x598] sm:$0xff] 0.0
        %606 = vst [vmem:[#allocation2 + $0x5c8] sm:$0xff] 0.0
        %607 = vst [vmem:[#allocation2 + $0x5f8] sm:$0xff] 0.0
        %608 = vst [vmem:[#allocation2 + $0x628] sm:$0xff] 0.0
        %609 = vst [vmem:[#allocation2 + $0x658] sm:$0xff] 0.0
        %610 = vst [vmem:[#allocation2 + $0x688] sm:$0xff] 0.0
        %611 = vst [vmem:[#allocation2 + $0x6b8] sm:$0xff] 0.0
        %v612 = vld [vmem:[%s399] sm:$0xff]
        %v613 = vld [vmem:[%s399 + $0x8] sm:$0xff]
        %615 = vset.pattern.permute.xlu0 0
        %616 = vperm.xlu0 %615, %v408
        %v617 = vpop.permute.xlu0 %616
        %620 = vset.pattern.permute.xlu0 0
        %621 = vperm.xlu0 %620, %v409
        %v622 = vpop.permute.xlu0 %621
        %625 = vset.pattern.permute.xlu0 0
        %626 = vperm.xlu0 %625, %v410
        %v627 = vpop.permute.xlu0 %626
        %630 = vset.pattern.permute.xlu0 0
        %631 = vperm.xlu0 %630, %v411
        %v632 = vpop.permute.xlu0 %631
        %v636 = vcombine.high %v612, %v612
        %v637 = vcombine.high %v613, %v613
        %vm638 = vcmask 31744
        %v640 = vsel %vm638, %v404, 0
        %v643 = vsel %vm638, %v405, 0
        %v646 = vsel %vm638, %v406, 0
        %v649 = vsel %vm638, %v407, 0
        %vm651 = vcmask 1043456
        %v652 = vsel %vm651, %v612, 0
        %v654 = vsel %vm651, %v636, 0
        %v656 = vsel %vm651, %v613, 0
        %v658 = vsel %vm651, %v637, 0
        %660 = vmatprep.subr.mxu0 0.0
        %661 = vmatpush1.msra.mxu0 0.0
        %662 = vmatprep.subr.mxu0 0.0
        %663 = vmatpush1.msra.mxu0 0.0
        %664 = vmatprep.subr.mxu0 0.0
        %665 = vmatpush1.msra.mxu0 0.0
        %666 = vmatprep.subr.mxu0 0.0
        %667 = vmatpush1.msra.mxu0 0.0
        %668 = vmatprep.subr.mxu0 0.0
        %669 = vmatpush1.msra.mxu0 0.0
        %670 = vmatprep.subr.mxu0 0.0
        %671 = vmatpush1.msra.mxu0 0.0
        %672 = vmatprep.subr.mxu0 0.0
        %673 = vmatpush1.msra.mxu0 0.0
        %674 = vmatprep.subr.mxu0 0.0
        %675 = vmatpush1.msra.mxu0 0.0
        %676 = vmatprep.subr.mxu0 0.0
        %677 = vmatpush1.msra.mxu0 0.0
        %678 = vmatprep.subr.mxu0 0.0
        %679 = vmatpush1.msra.mxu0 0.0
        %680 = vmatprep.subr.mxu0 0.0
        %681 = vmatpush1.msra.mxu0 0.0
        %682 = vmatprep.subr.mxu0 0.0
        %683 = vmatpush1.msra.mxu0 0.0
        %684 = vmatprep.subr.mxu0 0.0
        %685 = vmatpush1.msra.mxu0 0.0
        %686 = vmatprep.subr.mxu0 0.0
        %687 = vmatpush1.msra.mxu0 0.0
        %688 = vmatprep.subr.mxu0 0.0
        %689 = vmatpush1.msra.mxu0 0.0
        %690 = vmatprep.subr.mxu0 %v654
        %691 = vmatpush1.msra.mxu0 %v652
        %692 = vmatprep.subr.mxu0 0.0
        %693 = vmatpush2.msra.mxu0 0.0
        %694 = vmatprep.subr.mxu0 0.0
        %695 = vmatpush2.msra.mxu0 0.0
        %696 = vmatprep.subr.mxu0 0.0
        %697 = vmatpush2.msra.mxu0 0.0
        %698 = vmatprep.subr.mxu0 0.0
        %699 = vmatpush2.msra.mxu0 0.0
        %700 = vmatprep.subr.mxu0 0.0
        %701 = vmatpush2.msra.mxu0 0.0
        %702 = vmatprep.subr.mxu0 0.0
        %703 = vmatpush2.msra.mxu0 0.0
        %704 = vmatprep.subr.mxu0 0.0
        %705 = vmatpush2.msra.mxu0 0.0
        %706 = vmatprep.subr.mxu0 0.0
        %707 = vmatpush2.msra.mxu0 0.0
        %708 = vmatprep.subr.mxu0 0.0
        %709 = vmatpush2.msra.mxu0 0.0
        %710 = vmatprep.subr.mxu0 0.0
        %711 = vmatpush2.msra.mxu0 0.0
        %712 = vmatprep.subr.mxu0 0.0
        %713 = vmatpush2.msra.mxu0 0.0
        %714 = vmatprep.subr.mxu0 0.0
        %715 = vmatpush2.msra.mxu0 0.0
        %716 = vmatprep.subr.mxu0 0.0
        %717 = vmatpush2.msra.mxu0 0.0
        %718 = vmatprep.subr.mxu0 0.0
        %719 = vmatpush2.msra.mxu0 0.0
        %720 = vmatprep.subr.mxu0 0.0
        %721 = vmatpush2.msra.mxu0 0.0
        %722 = vmatprep.subr.mxu0 0.0
        %723 = vmatpush2.msra.mxu0 0.0
        %724 = vmatprep.mubr.f32.mxu0 0.0
        %725 = vmatmul.mubr.f32.gmra.mxu0 %v640
        %v726 = vpop.f32.mrf.mxu0
        %v727 = vadd.f32 %v617, %v726
        %v728 = vpop.f32.mrf.mxu0
        %v729 = vadd.f32 %v617, %v728
        %730 = vmatprep.mubr.f32.mxu0 0.0
        %731 = vmatmul.mubr.f32.gmra.mxu0 %v643
        %v732 = vpop.f32.mrf.mxu0
        %v733 = vadd.f32 %v622, %v732
        %v734 = vpop.f32.mrf.mxu0
        %v735 = vadd.f32 %v622, %v734
        %736 = vmatprep.mubr.f32.mxu0 0.0
        %737 = vmatmul.mubr.f32.gmra.mxu0 %v646
        %v738 = vpop.f32.mrf.mxu0
        %v739 = vadd.f32 %v627, %v738
        %v740 = vpop.f32.mrf.mxu0
        %v741 = vadd.f32 %v627, %v740
        %742 = vmatprep.mubr.f32.mxu0 0.0
        %743 = vmatmul.mubr.f32.gmra.mxu0 %v649
        %v744 = vpop.f32.mrf.mxu0
        %v745 = vadd.f32 %v632, %v744
        %v746 = vpop.f32.mrf.mxu0
        %v747 = vadd.f32 %v632, %v746
        %748 = vdwg.mxu0
        %749 = vmatprep.subr.mxu0 0.0
        %750 = vmatpush1.msra.mxu0 0.0
        %751 = vmatprep.subr.mxu0 0.0
        %752 = vmatpush1.msra.mxu0 0.0
        %753 = vmatprep.subr.mxu0 0.0
        %754 = vmatpush1.msra.mxu0 0.0
        %755 = vmatprep.subr.mxu0 0.0
        %756 = vmatpush1.msra.mxu0 0.0
        %757 = vmatprep.subr.mxu0 0.0
        %758 = vmatpush1.msra.mxu0 0.0
        %759 = vmatprep.subr.mxu0 0.0
        %760 = vmatpush1.msra.mxu0 0.0
        %761 = vmatprep.subr.mxu0 0.0
        %762 = vmatpush1.msra.mxu0 0.0
        %763 = vmatprep.subr.mxu0 0.0
        %764 = vmatpush1.msra.mxu0 0.0
        %765 = vmatprep.subr.mxu0 0.0
        %766 = vmatpush1.msra.mxu0 0.0
        %767 = vmatprep.subr.mxu0 0.0
        %768 = vmatpush1.msra.mxu0 0.0
        %769 = vmatprep.subr.mxu0 0.0
        %770 = vmatpush1.msra.mxu0 0.0
        %771 = vmatprep.subr.mxu0 0.0
        %772 = vmatpush1.msra.mxu0 0.0
        %773 = vmatprep.subr.mxu0 0.0
        %774 = vmatpush1.msra.mxu0 0.0
        %775 = vmatprep.subr.mxu0 0.0
        %776 = vmatpush1.msra.mxu0 0.0
        %777 = vmatprep.subr.mxu0 0.0
        %778 = vmatpush1.msra.mxu0 0.0
        %779 = vmatprep.subr.mxu0 %v658
        %780 = vmatpush1.msra.mxu0 %v656
        %781 = vmatprep.subr.mxu0 0.0
        %782 = vmatpush2.msra.mxu0 0.0
        %783 = vmatprep.subr.mxu0 0.0
        %784 = vmatpush2.msra.mxu0 0.0
        %785 = vmatprep.subr.mxu0 0.0
        %786 = vmatpush2.msra.mxu0 0.0
        %787 = vmatprep.subr.mxu0 0.0
        %788 = vmatpush2.msra.mxu0 0.0
        %789 = vmatprep.subr.mxu0 0.0
        %790 = vmatpush2.msra.mxu0 0.0
        %791 = vmatprep.subr.mxu0 0.0
        %792 = vmatpush2.msra.mxu0 0.0
        %793 = vmatprep.subr.mxu0 0.0
        %794 = vmatpush2.msra.mxu0 0.0
        %795 = vmatprep.subr.mxu0 0.0
        %796 = vmatpush2.msra.mxu0 0.0
        %797 = vmatprep.subr.mxu0 0.0
        %798 = vmatpush2.msra.mxu0 0.0
        %799 = vmatprep.subr.mxu0 0.0
        %800 = vmatpush2.msra.mxu0 0.0
        %801 = vmatprep.subr.mxu0 0.0
        %802 = vmatpush2.msra.mxu0 0.0
        %803 = vmatprep.subr.mxu0 0.0
        %804 = vmatpush2.msra.mxu0 0.0
        %805 = vmatprep.subr.mxu0 0.0
        %806 = vmatpush2.msra.mxu0 0.0
        %807 = vmatprep.subr.mxu0 0.0
        %808 = vmatpush2.msra.mxu0 0.0
        %809 = vmatprep.subr.mxu0 0.0
        %810 = vmatpush2.msra.mxu0 0.0
        %811 = vmatprep.subr.mxu0 0.0
        %812 = vmatpush2.msra.mxu0 0.0
        %813 = vmatprep.mubr.f32.mxu0 0.0
        %814 = vmatmul.mubr.f32.gmra.mxu0 %v640
        %v815 = vpop.f32.mrf.mxu0
        %v816 = vadd.f32 %v617, %v815
        %v817 = vpop.f32.mrf.mxu0
        %v818 = vadd.f32 %v617, %v817
        %819 = vmatprep.mubr.f32.mxu0 0.0
        %820 = vmatmul.mubr.f32.gmra.mxu0 %v643
        %v821 = vpop.f32.mrf.mxu0
        %v822 = vadd.f32 %v622, %v821
        %v823 = vpop.f32.mrf.mxu0
        %v824 = vadd.f32 %v622, %v823
        %825 = vmatprep.mubr.f32.mxu0 0.0
        %826 = vmatmul.mubr.f32.gmra.mxu0 %v646
        %v827 = vpop.f32.mrf.mxu0
        %v828 = vadd.f32 %v627, %v827
        %v829 = vpop.f32.mrf.mxu0
        %v830 = vadd.f32 %v627, %v829
        %831 = vmatprep.mubr.f32.mxu0 0.0
        %832 = vmatmul.mubr.f32.gmra.mxu0 %v649
        %v833 = vpop.f32.mrf.mxu0
        %v834 = vadd.f32 %v632, %v833
        %v835 = vpop.f32.mrf.mxu0
        %v836 = vadd.f32 %v632, %v835
        %837 = vdwg.mxu0
        %v838 = vmax.f32 %v727, 0.0
        %v839 = vmax.f32 %v729, 0.0
        %v840 = vmax.f32 %v816, 0.0
        %v841 = vmax.f32 %v818, 0.0
        %v842 = vmax.f32 %v733, 0.0
        %v843 = vmax.f32 %v735, 0.0
        %v844 = vmax.f32 %v822, 0.0
        %v845 = vmax.f32 %v824, 0.0
        %v846 = vmax.f32 %v739, 0.0
        %v847 = vmax.f32 %v741, 0.0
        %v848 = vmax.f32 %v828, 0.0
        %v849 = vmax.f32 %v830, 0.0
        %v850 = vmax.f32 %v745, 0.0
        %v851 = vmax.f32 %v747, 0.0
        %v852 = vmax.f32 %v834, 0.0
        %v853 = vmax.f32 %v836, 0.0
        %v854 = vlaneseq
        %v855 = vshrl.u32 %v854, 7
        %v856 = vsub.s32 0, %v855
        %v857 = vrot.slane %v400, %v856
        %v858 = vlaneseq
        %v859 = vshrl.u32 %v858, 7
        %v860 = vsub.s32 0, %v859
        %v861 = vrot.slane %v401, %v860
        %v862 = vlaneseq
        %v863 = vshrl.u32 %v862, 7
        %v864 = vsub.s32 0, %v863
        %v865 = vrot.slane %v402, %v864
        %v866 = vlaneseq
        %v867 = vshrl.u32 %v866, 7
        %v868 = vsub.s32 0, %v867
        %v869 = vrot.slane %v403, %v868
        %v870 = vmul.f32 %v838, %v857
        %v871 = vmul.f32 %v839, %v861
        %v872 = vmul.f32 %v840, %v865
        %v873 = vmul.f32 %v841, %v869
        %v874 = vmul.f32 %v842, %v857
        %v875 = vmul.f32 %v843, %v861
        %v876 = vmul.f32 %v844, %v865
        %v877 = vmul.f32 %v845, %v869
        %v878 = vmul.f32 %v846, %v857
        %v879 = vmul.f32 %v847, %v861
        %v880 = vmul.f32 %v848, %v865
        %v881 = vmul.f32 %v849, %v869
        %v882 = vmul.f32 %v850, %v857
        %v883 = vmul.f32 %v851, %v861
        %v884 = vmul.f32 %v852, %v865
        %v885 = vmul.f32 %v853, %v869
        %886 = vst [vmem:[#allocation2 + $0x8] sm:$0xff] %v870
        %887 = vst [vmem:[#allocation2 + $0x10] sm:$0xff] %v871
        %888 = vst [vmem:[#allocation2 + $0x18] sm:$0xff] %v872
        %889 = vst [vmem:[#allocation2 + $0x20] sm:$0xff] %v873
        %890 = vst [vmem:[#allocation2 + $0x38] sm:$0xff] %v874
        %891 = vst [vmem:[#allocation2 + $0x40] sm:$0xff] %v875
        %892 = vst [vmem:[#allocation2 + $0x48] sm:$0xff] %v876
        %893 = vst [vmem:[#allocation2 + $0x50] sm:$0xff] %v877
        %894 = vst [vmem:[#allocation2 + $0x68] sm:$0xff] %v878
        %895 = vst [vmem:[#allocation2 + $0x70] sm:$0xff] %v879
        %896 = vst [vmem:[#allocation2 + $0x78] sm:$0xff] %v880
        %897 = vst [vmem:[#allocation2 + $0x80] sm:$0xff] %v881
        %898 = vst [vmem:[#allocation2 + $0x98] sm:$0xff] %v882
        %899 = vst [vmem:[#allocation2 + $0xa0] sm:$0xff] %v883
        %900 = vst [vmem:[#allocation2 + $0xa8] sm:$0xff] %v884
        %901 = vst [vmem:[#allocation2 + $0xb0] sm:$0xff] %v885
        %v902 = vlaneseq
        %v903 = vshrl.u32 %v902, 7
        %v904 = vsub.s32 1, %v903
        %v905 = vrot.slane %v400, %v904
        %v906 = vlaneseq
        %v907 = vshrl.u32 %v906, 7
        %v908 = vsub.s32 1, %v907
        %v909 = vrot.slane %v401, %v908
        %v910 = vlaneseq
        %v911 = vshrl.u32 %v910, 7
        %v912 = vsub.s32 1, %v911
        %v913 = vrot.slane %v402, %v912
        %v914 = vlaneseq
        %v915 = vshrl.u32 %v914, 7
        %v916 = vsub.s32 1, %v915
        %v917 = vrot.slane %v403, %v916
        %v918 = vmul.f32 %v838, %v905
        %v919 = vmul.f32 %v839, %v909
        %v920 = vmul.f32 %v840, %v913
        %v921 = vmul.f32 %v841, %v917
        %v922 = vmul.f32 %v842, %v905
        %v923 = vmul.f32 %v843, %v909
        %v924 = vmul.f32 %v844, %v913
        %v925 = vmul.f32 %v845, %v917
        %v926 = vmul.f32 %v846, %v905
        %v927 = vmul.f32 %v847, %v909
        %v928 = vmul.f32 %v848, %v913
        %v929 = vmul.f32 %v849, %v917
        %v930 = vmul.f32 %v850, %v905
        %v931 = vmul.f32 %v851, %v909
        %v932 = vmul.f32 %v852, %v913
        %v933 = vmul.f32 %v853, %v917
        %s934 = scalar_lea.vmem [#allocation2], 192
        %935 = vst [vmem:[%s934 + $0x8] sm:$0xff] %v918
        %936 = vst [vmem:[%s934 + $0x10] sm:$0xff] %v919
        %937 = vst [vmem:[%s934 + $0x18] sm:$0xff] %v920
        %938 = vst [vmem:[%s934 + $0x20] sm:$0xff] %v921
        %939 = vst [vmem:[%s934 + $0x38] sm:$0xff] %v922
        %940 = vst [vmem:[%s934 + $0x40] sm:$0xff] %v923
        %941 = vst [vmem:[%s934 + $0x48] sm:$0xff] %v924
        %942 = vst [vmem:[%s934 + $0x50] sm:$0xff] %v925
        %943 = vst [vmem:[%s934 + $0x68] sm:$0xff] %v926
        %944 = vst [vmem:[%s934 + $0x70] sm:$0xff] %v927
        %945 = vst [vmem:[%s934 + $0x78] sm:$0xff] %v928
        %946 = vst [vmem:[%s934 + $0x80] sm:$0xff] %v929
        %947 = vst [vmem:[%s934 + $0x98] sm:$0xff] %v930
        %948 = vst [vmem:[%s934 + $0xa0] sm:$0xff] %v931
        %949 = vst [vmem:[%s934 + $0xa8] sm:$0xff] %v932
        %950 = vst [vmem:[%s934 + $0xb0] sm:$0xff] %v933
        %v951 = vlaneseq
        %v952 = vshrl.u32 %v951, 7
        %v953 = vsub.s32 2, %v952
        %v954 = vrot.slane %v400, %v953
        %v955 = vlaneseq
        %v956 = vshrl.u32 %v955, 7
        %v957 = vsub.s32 2, %v956
        %v958 = vrot.slane %v401, %v957
        %v959 = vlaneseq
        %v960 = vshrl.u32 %v959, 7
        %v961 = vsub.s32 2, %v960
        %v962 = vrot.slane %v402, %v961
        %v963 = vlaneseq
        %v964 = vshrl.u32 %v963, 7
        %v965 = vsub.s32 2, %v964
        %v966 = vrot.slane %v403, %v965
        %v967 = vmul.f32 %v838, %v954
        %v968 = vmul.f32 %v839, %v958
        %v969 = vmul.f32 %v840, %v962
        %v970 = vmul.f32 %v841, %v966
        %v971 = vmul.f32 %v842, %v954
        %v972 = vmul.f32 %v843, %v958
        %v973 = vmul.f32 %v844, %v962
        %v974 = vmul.f32 %v845, %v966
        %v975 = vmul.f32 %v846, %v954
        %v976 = vmul.f32 %v847, %v958
        %v977 = vmul.f32 %v848, %v962
        %v978 = vmul.f32 %v849, %v966
        %v979 = vmul.f32 %v850, %v954
        %v980 = vmul.f32 %v851, %v958
        %v981 = vmul.f32 %v852, %v962
        %v982 = vmul.f32 %v853, %v966
        %s983 = scalar_lea.vmem [#allocation2], 384
        %984 = vst [vmem:[%s983 + $0x8] sm:$0xff] %v967
        %985 = vst [vmem:[%s983 + $0x10] sm:$0xff] %v968
        %986 = vst [vmem:[%s983 + $0x18] sm:$0xff] %v969
        %987 = vst [vmem:[%s983 + $0x20] sm:$0xff] %v970
        %988 = vst [vmem:[%s983 + $0x38] sm:$0xff] %v971
        %989 = vst [vmem:[%s983 + $0x40] sm:$0xff] %v972
        %990 = vst [vmem:[%s983 + $0x48] sm:$0xff] %v973
        %991 = vst [vmem:[%s983 + $0x50] sm:$0xff] %v974
        %992 = vst [vmem:[%s983 + $0x68] sm:$0xff] %v975
        %993 = vst [vmem:[%s983 + $0x70] sm:$0xff] %v976
        %994 = vst [vmem:[%s983 + $0x78] sm:$0xff] %v977
        %995 = vst [vmem:[%s983 + $0x80] sm:$0xff] %v978
        %996 = vst [vmem:[%s983 + $0x98] sm:$0xff] %v979
        %997 = vst [vmem:[%s983 + $0xa0] sm:$0xff] %v980
        %998 = vst [vmem:[%s983 + $0xa8] sm:$0xff] %v981
        %999 = vst [vmem:[%s983 + $0xb0] sm:$0xff] %v982
        %v1000 = vlaneseq
        %v1001 = vshrl.u32 %v1000, 7
        %v1002 = vsub.s32 3, %v1001
        %v1003 = vrot.slane %v400, %v1002
        %v1004 = vlaneseq
        %v1005 = vshrl.u32 %v1004, 7
        %v1006 = vsub.s32 3, %v1005
        %v1007 = vrot.slane %v401, %v1006
        %v1008 = vlaneseq
        %v1009 = vshrl.u32 %v1008, 7
        %v1010 = vsub.s32 3, %v1009
        %v1011 = vrot.slane %v402, %v1010
        %v1012 = vlaneseq
        %v1013 = vshrl.u32 %v1012, 7
        %v1014 = vsub.s32 3, %v1013
        %v1015 = vrot.slane %v403, %v1014
        %v1016 = vmul.f32 %v838, %v1003
        %v1017 = vmul.f32 %v839, %v1007
        %v1018 = vmul.f32 %v840, %v1011
        %v1019 = vmul.f32 %v841, %v1015
        %v1020 = vmul.f32 %v842, %v1003
        %v1021 = vmul.f32 %v843, %v1007
        %v1022 = vmul.f32 %v844, %v1011
        %v1023 = vmul.f32 %v845, %v1015
        %v1024 = vmul.f32 %v846, %v1003
        %v1025 = vmul.f32 %v847, %v1007
        %v1026 = vmul.f32 %v848, %v1011
        %v1027 = vmul.f32 %v849, %v1015
        %v1028 = vmul.f32 %v850, %v1003
        %v1029 = vmul.f32 %v851, %v1007
        %v1030 = vmul.f32 %v852, %v1011
        %v1031 = vmul.f32 %v853, %v1015
        %s1032 = scalar_lea.vmem [#allocation2], 576
        %1033 = vst [vmem:[%s1032 + $0x8] sm:$0xff] %v1016
        %1034 = vst [vmem:[%s1032 + $0x10] sm:$0xff] %v1017
        %1035 = vst [vmem:[%s1032 + $0x18] sm:$0xff] %v1018
        %1036 = vst [vmem:[%s1032 + $0x20] sm:$0xff] %v1019
        %1037 = vst [vmem:[%s1032 + $0x38] sm:$0xff] %v1020
        %1038 = vst [vmem:[%s1032 + $0x40] sm:$0xff] %v1021
        %1039 = vst [vmem:[%s1032 + $0x48] sm:$0xff] %v1022
        %1040 = vst [vmem:[%s1032 + $0x50] sm:$0xff] %v1023
        %1041 = vst [vmem:[%s1032 + $0x68] sm:$0xff] %v1024
        %1042 = vst [vmem:[%s1032 + $0x70] sm:$0xff] %v1025
        %1043 = vst [vmem:[%s1032 + $0x78] sm:$0xff] %v1026
        %1044 = vst [vmem:[%s1032 + $0x80] sm:$0xff] %v1027
        %1045 = vst [vmem:[%s1032 + $0x98] sm:$0xff] %v1028
        %1046 = vst [vmem:[%s1032 + $0xa0] sm:$0xff] %v1029
        %1047 = vst [vmem:[%s1032 + $0xa8] sm:$0xff] %v1030
        %1048 = vst [vmem:[%s1032 + $0xb0] sm:$0xff] %v1031
        %s1049 = scalar_lea.vmem [#allocation2], 768
        %1050 = vst [vmem:[%s1049 + $0x8] sm:$0xff] %v838
        %1051 = vst [vmem:[%s1049 + $0x10] sm:$0xff] %v839
        %1052 = vst [vmem:[%s1049 + $0x18] sm:$0xff] %v840
        %1053 = vst [vmem:[%s1049 + $0x20] sm:$0xff] %v841
        %1054 = vst [vmem:[%s1049 + $0x38] sm:$0xff] %v842
        %1055 = vst [vmem:[%s1049 + $0x40] sm:$0xff] %v843
        %1056 = vst [vmem:[%s1049 + $0x48] sm:$0xff] %v844
        %1057 = vst [vmem:[%s1049 + $0x50] sm:$0xff] %v845
        %1058 = vst [vmem:[%s1049 + $0x68] sm:$0xff] %v846
        %1059 = vst [vmem:[%s1049 + $0x70] sm:$0xff] %v847
        %1060 = vst [vmem:[%s1049 + $0x78] sm:$0xff] %v848
        %1061 = vst [vmem:[%s1049 + $0x80] sm:$0xff] %v849
        %1062 = vst [vmem:[%s1049 + $0x98] sm:$0xff] %v850
        %1063 = vst [vmem:[%s1049 + $0xa0] sm:$0xff] %v851
        %1064 = vst [vmem:[%s1049 + $0xa8] sm:$0xff] %v852
        %1065 = vst [vmem:[%s1049 + $0xb0] sm:$0xff] %v853
        %v1066 = vlaneseq
        %v1067 = vshrl.u32 %v1066, 7
        %v1068 = vsub.s32 4, %v1067
        %v1069 = vrot.slane %v400, %v1068
        %v1070 = vlaneseq
        %v1071 = vshrl.u32 %v1070, 7
        %v1072 = vsub.s32 4, %v1071
        %v1073 = vrot.slane %v401, %v1072
        %v1074 = vlaneseq
        %v1075 = vshrl.u32 %v1074, 7
        %v1076 = vsub.s32 4, %v1075
        %v1077 = vrot.slane %v402, %v1076
        %v1078 = vlaneseq
        %v1079 = vshrl.u32 %v1078, 7
        %v1080 = vsub.s32 4, %v1079
        %v1081 = vrot.slane %v403, %v1080
        %v1082 = vmul.f32 %v838, %v1069
        %v1083 = vmul.f32 %v839, %v1073
        %v1084 = vmul.f32 %v840, %v1077
        %v1085 = vmul.f32 %v841, %v1081
        %v1086 = vmul.f32 %v842, %v1069
        %v1087 = vmul.f32 %v843, %v1073
        %v1088 = vmul.f32 %v844, %v1077
        %v1089 = vmul.f32 %v845, %v1081
        %v1090 = vmul.f32 %v846, %v1069
        %v1091 = vmul.f32 %v847, %v1073
        %v1092 = vmul.f32 %v848, %v1077
        %v1093 = vmul.f32 %v849, %v1081
        %v1094 = vmul.f32 %v850, %v1069
        %v1095 = vmul.f32 %v851, %v1073
        %v1096 = vmul.f32 %v852, %v1077
        %v1097 = vmul.f32 %v853, %v1081
        %s1098 = scalar_lea.vmem [#allocation2], 960
        %1099 = vst [vmem:[%s1098 + $0x8] sm:$0xff] %v1082
        %1100 = vst [vmem:[%s1098 + $0x10] sm:$0xff] %v1083
        %1101 = vst [vmem:[%s1098 + $0x18] sm:$0xff] %v1084
        %1102 = vst [vmem:[%s1098 + $0x20] sm:$0xff] %v1085
        %1103 = vst [vmem:[%s1098 + $0x38] sm:$0xff] %v1086
        %1104 = vst [vmem:[%s1098 + $0x40] sm:$0xff] %v1087
        %1105 = vst [vmem:[%s1098 + $0x48] sm:$0xff] %v1088
        %1106 = vst [vmem:[%s1098 + $0x50] sm:$0xff] %v1089
        %1107 = vst [vmem:[%s1098 + $0x68] sm:$0xff] %v1090
        %1108 = vst [vmem:[%s1098 + $0x70] sm:$0xff] %v1091
        %1109 = vst [vmem:[%s1098 + $0x78] sm:$0xff] %v1092
        %1110 = vst [vmem:[%s1098 + $0x80] sm:$0xff] %v1093
        %1111 = vst [vmem:[%s1098 + $0x98] sm:$0xff] %v1094
        %1112 = vst [vmem:[%s1098 + $0xa0] sm:$0xff] %v1095
        %1113 = vst [vmem:[%s1098 + $0xa8] sm:$0xff] %v1096
        %1114 = vst [vmem:[%s1098 + $0xb0] sm:$0xff] %v1097
        %v1115 = vlaneseq
        %v1116 = vshrl.u32 %v1115, 7
        %v1117 = vsub.s32 5, %v1116
        %v1118 = vrot.slane %v400, %v1117
        %v1119 = vlaneseq
        %v1120 = vshrl.u32 %v1119, 7
        %v1121 = vsub.s32 5, %v1120
        %v1122 = vrot.slane %v401, %v1121
        %v1123 = vlaneseq
        %v1124 = vshrl.u32 %v1123, 7
        %v1125 = vsub.s32 5, %v1124
        %v1126 = vrot.slane %v402, %v1125
        %v1127 = vlaneseq
        %v1128 = vshrl.u32 %v1127, 7
        %v1129 = vsub.s32 5, %v1128
        %v1130 = vrot.slane %v403, %v1129
        %v1131 = vmul.f32 %v838, %v1118
        %v1132 = vmul.f32 %v839, %v1122
        %v1133 = vmul.f32 %v840, %v1126
        %v1134 = vmul.f32 %v841, %v1130
        %v1135 = vmul.f32 %v842, %v1118
        %v1136 = vmul.f32 %v843, %v1122
        %v1137 = vmul.f32 %v844, %v1126
        %v1138 = vmul.f32 %v845, %v1130
        %v1139 = vmul.f32 %v846, %v1118
        %v1140 = vmul.f32 %v847, %v1122
        %v1141 = vmul.f32 %v848, %v1126
        %v1142 = vmul.f32 %v849, %v1130
        %v1143 = vmul.f32 %v850, %v1118
        %v1144 = vmul.f32 %v851, %v1122
        %v1145 = vmul.f32 %v852, %v1126
        %v1146 = vmul.f32 %v853, %v1130
        %s1147 = scalar_lea.vmem [#allocation2], 1152
        %1148 = vst [vmem:[%s1147 + $0x8] sm:$0xff] %v1131
        %1149 = vst [vmem:[%s1147 + $0x10] sm:$0xff] %v1132
        %1150 = vst [vmem:[%s1147 + $0x18] sm:$0xff] %v1133
        %1151 = vst [vmem:[%s1147 + $0x20] sm:$0xff] %v1134
        %1152 = vst [vmem:[%s1147 + $0x38] sm:$0xff] %v1135
        %1153 = vst [vmem:[%s1147 + $0x40] sm:$0xff] %v1136
        %1154 = vst [vmem:[%s1147 + $0x48] sm:$0xff] %v1137
        %1155 = vst [vmem:[%s1147 + $0x50] sm:$0xff] %v1138
        %1156 = vst [vmem:[%s1147 + $0x68] sm:$0xff] %v1139
        %1157 = vst [vmem:[%s1147 + $0x70] sm:$0xff] %v1140
        %1158 = vst [vmem:[%s1147 + $0x78] sm:$0xff] %v1141
        %1159 = vst [vmem:[%s1147 + $0x80] sm:$0xff] %v1142
        %1160 = vst [vmem:[%s1147 + $0x98] sm:$0xff] %v1143
        %1161 = vst [vmem:[%s1147 + $0xa0] sm:$0xff] %v1144
        %1162 = vst [vmem:[%s1147 + $0xa8] sm:$0xff] %v1145
        %1163 = vst [vmem:[%s1147 + $0xb0] sm:$0xff] %v1146
        %v1164 = vlaneseq
        %v1165 = vshrl.u32 %v1164, 7
        %v1166 = vsub.s32 6, %v1165
        %v1167 = vrot.slane %v400, %v1166
        %v1168 = vlaneseq
        %v1169 = vshrl.u32 %v1168, 7
        %v1170 = vsub.s32 6, %v1169
        %v1171 = vrot.slane %v401, %v1170
        %v1172 = vlaneseq
        %v1173 = vshrl.u32 %v1172, 7
        %v1174 = vsub.s32 6, %v1173
        %v1175 = vrot.slane %v402, %v1174
        %v1176 = vlaneseq
        %v1177 = vshrl.u32 %v1176, 7
        %v1178 = vsub.s32 6, %v1177
        %v1179 = vrot.slane %v403, %v1178
        %v1180 = vmul.f32 %v838, %v1167
        %v1181 = vmul.f32 %v839, %v1171
        %v1182 = vmul.f32 %v840, %v1175
        %v1183 = vmul.f32 %v841, %v1179
        %v1184 = vmul.f32 %v842, %v1167
        %v1185 = vmul.f32 %v843, %v1171
        %v1186 = vmul.f32 %v844, %v1175
        %v1187 = vmul.f32 %v845, %v1179
        %v1188 = vmul.f32 %v846, %v1167
        %v1189 = vmul.f32 %v847, %v1171
        %v1190 = vmul.f32 %v848, %v1175
        %v1191 = vmul.f32 %v849, %v1179
        %v1192 = vmul.f32 %v850, %v1167
        %v1193 = vmul.f32 %v851, %v1171
        %v1194 = vmul.f32 %v852, %v1175
        %v1195 = vmul.f32 %v853, %v1179
        %s1196 = scalar_lea.vmem [#allocation2], 1344
        %1197 = vst [vmem:[%s1196 + $0x8] sm:$0xff] %v1180
        %1198 = vst [vmem:[%s1196 + $0x10] sm:$0xff] %v1181
        %1199 = vst [vmem:[%s1196 + $0x18] sm:$0xff] %v1182
        %1200 = vst [vmem:[%s1196 + $0x20] sm:$0xff] %v1183
        %1201 = vst [vmem:[%s1196 + $0x38] sm:$0xff] %v1184
        %1202 = vst [vmem:[%s1196 + $0x40] sm:$0xff] %v1185
        %1203 = vst [vmem:[%s1196 + $0x48] sm:$0xff] %v1186
        %1204 = vst [vmem:[%s1196 + $0x50] sm:$0xff] %v1187
        %1205 = vst [vmem:[%s1196 + $0x68] sm:$0xff] %v1188
        %1206 = vst [vmem:[%s1196 + $0x70] sm:$0xff] %v1189
        %1207 = vst [vmem:[%s1196 + $0x78] sm:$0xff] %v1190
        %1208 = vst [vmem:[%s1196 + $0x80] sm:$0xff] %v1191
        %1209 = vst [vmem:[%s1196 + $0x98] sm:$0xff] %v1192
        %1210 = vst [vmem:[%s1196 + $0xa0] sm:$0xff] %v1193
        %1211 = vst [vmem:[%s1196 + $0xa8] sm:$0xff] %v1194
        %1212 = vst [vmem:[%s1196 + $0xb0] sm:$0xff] %v1195
        %v1213 = vlaneseq
        %v1214 = vshrl.u32 %v1213, 7
        %v1215 = vsub.s32 7, %v1214
        %v1216 = vrot.slane %v400, %v1215
        %v1217 = vlaneseq
        %v1218 = vshrl.u32 %v1217, 7
        %v1219 = vsub.s32 7, %v1218
        %v1220 = vrot.slane %v401, %v1219
        %v1221 = vlaneseq
        %v1222 = vshrl.u32 %v1221, 7
        %v1223 = vsub.s32 7, %v1222
        %v1224 = vrot.slane %v402, %v1223
        %v1225 = vlaneseq
        %v1226 = vshrl.u32 %v1225, 7
        %v1227 = vsub.s32 7, %v1226
        %v1228 = vrot.slane %v403, %v1227
        %v1229 = vmul.f32 %v838, %v1216
        %v1230 = vmul.f32 %v839, %v1220
        %v1231 = vmul.f32 %v840, %v1224
        %v1232 = vmul.f32 %v841, %v1228
        %v1233 = vmul.f32 %v842, %v1216
        %v1234 = vmul.f32 %v843, %v1220
        %v1235 = vmul.f32 %v844, %v1224
        %v1236 = vmul.f32 %v845, %v1228
        %v1237 = vmul.f32 %v846, %v1216
        %v1238 = vmul.f32 %v847, %v1220
        %v1239 = vmul.f32 %v848, %v1224
        %v1240 = vmul.f32 %v849, %v1228
        %v1241 = vmul.f32 %v850, %v1216
        %v1242 = vmul.f32 %v851, %v1220
        %v1243 = vmul.f32 %v852, %v1224
        %v1244 = vmul.f32 %v853, %v1228
        %s1245 = scalar_lea.vmem [#allocation2], 1536
        %1246 = vst [vmem:[%s1245 + $0x8] sm:$0xff] %v1229
        %1247 = vst [vmem:[%s1245 + $0x10] sm:$0xff] %v1230
        %1248 = vst [vmem:[%s1245 + $0x18] sm:$0xff] %v1231
        %1249 = vst [vmem:[%s1245 + $0x20] sm:$0xff] %v1232
        %1250 = vst [vmem:[%s1245 + $0x38] sm:$0xff] %v1233
        %1251 = vst [vmem:[%s1245 + $0x40] sm:$0xff] %v1234
        %1252 = vst [vmem:[%s1245 + $0x48] sm:$0xff] %v1235
        %1253 = vst [vmem:[%s1245 + $0x50] sm:$0xff] %v1236
        %1254 = vst [vmem:[%s1245 + $0x68] sm:$0xff] %v1237
        %1255 = vst [vmem:[%s1245 + $0x70] sm:$0xff] %v1238
        %1256 = vst [vmem:[%s1245 + $0x78] sm:$0xff] %v1239
        %1257 = vst [vmem:[%s1245 + $0x80] sm:$0xff] %v1240
        %1258 = vst [vmem:[%s1245 + $0x98] sm:$0xff] %v1241
        %1259 = vst [vmem:[%s1245 + $0xa0] sm:$0xff] %v1242
        %1260 = vst [vmem:[%s1245 + $0xa8] sm:$0xff] %v1243
        %1261 = vst [vmem:[%s1245 + $0xb0] sm:$0xff] %v1244
        %v1262 = vld [vmem:[#allocation2] sm:$0xff]
        %v1263 = vld [vmem:[#allocation2 + $0x8] sm:$0xff]
        %v1264 = vld [vmem:[#allocation2 + $0x10] sm:$0xff]
        %v1265 = vld [vmem:[#allocation2 + $0x18] sm:$0xff]
        %v1266 = vld [vmem:[#allocation2 + $0x20] sm:$0xff]
        %v1267 = vld [vmem:[#allocation2 + $0x30] sm:$0xff]
        %v1268 = vld [vmem:[#allocation2 + $0x38] sm:$0xff]
        %v1269 = vld [vmem:[#allocation2 + $0x40] sm:$0xff]
        %v1270 = vld [vmem:[#allocation2 + $0x48] sm:$0xff]
        %v1271 = vld [vmem:[#allocation2 + $0x50] sm:$0xff]
        %v1272 = vld [vmem:[#allocation2 + $0x60] sm:$0xff]
        %v1273 = vld [vmem:[#allocation2 + $0x68] sm:$0xff]
        %v1274 = vld [vmem:[#allocation2 + $0x70] sm:$0xff]
        %v1275 = vld [vmem:[#allocation2 + $0x78] sm:$0xff]
        %v1276 = vld [vmem:[#allocation2 + $0x80] sm:$0xff]
        %v1277 = vld [vmem:[#allocation2 + $0x90] sm:$0xff]
        %v1278 = vld [vmem:[#allocation2 + $0x98] sm:$0xff]
        %v1279 = vld [vmem:[#allocation2 + $0xa0] sm:$0xff]
        %v1280 = vld [vmem:[#allocation2 + $0xa8] sm:$0xff]
        %v1281 = vld [vmem:[#allocation2 + $0xb0] sm:$0xff]
        %v1282 = vld [vmem:[%s934] sm:$0xff]
        %v1283 = vld [vmem:[%s934 + $0x8] sm:$0xff]
        %v1284 = vld [vmem:[%s934 + $0x10] sm:$0xff]
        %v1285 = vld [vmem:[%s934 + $0x18] sm:$0xff]
        %v1286 = vld [vmem:[%s934 + $0x20] sm:$0xff]
        %v1287 = vld [vmem:[%s934 + $0x30] sm:$0xff]
        %v1288 = vld [vmem:[%s934 + $0x38] sm:$0xff]
        %v1289 = vld [vmem:[%s934 + $0x40] sm:$0xff]
        %v1290 = vld [vmem:[%s934 + $0x48] sm:$0xff]
        %v1291 = vld [vmem:[%s934 + $0x50] sm:$0xff]
        %v1292 = vld [vmem:[%s934 + $0x60] sm:$0xff]
        %v1293 = vld [vmem:[%s934 + $0x68] sm:$0xff]
        %v1294 = vld [vmem:[%s934 + $0x70] sm:$0xff]
        %v1295 = vld [vmem:[%s934 + $0x78] sm:$0xff]
        %v1296 = vld [vmem:[%s934 + $0x80] sm:$0xff]
        %v1297 = vld [vmem:[%s934 + $0x90] sm:$0xff]
        %v1298 = vld [vmem:[%s934 + $0x98] sm:$0xff]
        %v1299 = vld [vmem:[%s934 + $0xa0] sm:$0xff]
        %v1300 = vld [vmem:[%s934 + $0xa8] sm:$0xff]
        %v1301 = vld [vmem:[%s934 + $0xb0] sm:$0xff]
        %1322 = vrot.lane.b32.xlu0 %v1282, 72
        %v1323 = vpop.permute.xlu0 %1322
        %1324 = vrot.lane.b32.xlu0 %v1283, 72
        %v1325 = vpop.permute.xlu0 %1324
        %1326 = vrot.lane.b32.xlu0 %v1284, 72
        %v1327 = vpop.permute.xlu0 %1326
        %1328 = vrot.lane.b32.xlu0 %v1285, 72
        %v1329 = vpop.permute.xlu0 %1328
        %1330 = vrot.lane.b32.xlu0 %v1286, 72
        %v1331 = vpop.permute.xlu0 %1330
        %1332 = vrot.lane.b32.xlu0 %v1287, 72
        %v1333 = vpop.permute.xlu0 %1332
        %1334 = vrot.lane.b32.xlu0 %v1288, 72
        %v1335 = vpop.permute.xlu0 %1334
        %1336 = vrot.lane.b32.xlu0 %v1289, 72
        %v1337 = vpop.permute.xlu0 %1336
        %1338 = vrot.lane.b32.xlu0 %v1290, 72
        %v1339 = vpop.permute.xlu0 %1338
        %1340 = vrot.lane.b32.xlu0 %v1291, 72
        %v1341 = vpop.permute.xlu0 %1340
        %1342 = vrot.lane.b32.xlu0 %v1292, 72
        %v1343 = vpop.permute.xlu0 %1342
        %1344 = vrot.lane.b32.xlu0 %v1293, 72
        %v1345 = vpop.permute.xlu0 %1344
        %1346 = vrot.lane.b32.xlu0 %v1294, 72
        %v1347 = vpop.permute.xlu0 %1346
        %1348 = vrot.lane.b32.xlu0 %v1295, 72
        %v1349 = vpop.permute.xlu0 %1348
        %1350 = vrot.lane.b32.xlu0 %v1296, 72
        %v1351 = vpop.permute.xlu0 %1350
        %1352 = vrot.lane.b32.xlu0 %v1297, 72
        %v1353 = vpop.permute.xlu0 %1352
        %1354 = vrot.lane.b32.xlu0 %v1298, 72
        %v1355 = vpop.permute.xlu0 %1354
        %1356 = vrot.lane.b32.xlu0 %v1299, 72
        %v1357 = vpop.permute.xlu0 %1356
        %1358 = vrot.lane.b32.xlu0 %v1300, 72
        %v1359 = vpop.permute.xlu0 %1358
        %1360 = vrot.lane.b32.xlu0 %v1301, 72
        %v1361 = vpop.permute.xlu0 %1360
        %vm1362 = vcmask 588800
        %v1363 = vsel %vm1362, %v1323, %v1325
        %v1364 = vsel %vm1362, %v1325, %v1327
        %v1365 = vsel %vm1362, %v1327, %v1329
        %v1366 = vsel %vm1362, %v1329, %v1331
        %v1367 = vsel %vm1362, %v1333, %v1335
        %v1368 = vsel %vm1362, %v1335, %v1337
        %v1369 = vsel %vm1362, %v1337, %v1339
        %v1370 = vsel %vm1362, %v1339, %v1341
        %v1371 = vsel %vm1362, %v1343, %v1345
        %v1372 = vsel %vm1362, %v1345, %v1347
        %v1373 = vsel %vm1362, %v1347, %v1349
        %v1374 = vsel %vm1362, %v1349, %v1351
        %v1375 = vsel %vm1362, %v1353, %v1355
        %v1376 = vsel %vm1362, %v1355, %v1357
        %v1377 = vsel %vm1362, %v1357, %v1359
        %v1378 = vsel %vm1362, %v1359, %v1361
        %vm1395 = vcmask 261120
        %v1397 = vsel %vm1395, %v416, 0
        %v1400 = vsel %vm1395, %v417, 0
        %v1403 = vsel %vm1395, %v418, 0
        %v1406 = vsel %vm1395, %v419, 0
        %1408 = vmatprep.subr.mxu0 0.0
        %1409 = vmatpush1.msra.mxu0 0.0
        %1410 = vmatprep.subr.mxu0 0.0
        %1411 = vmatpush1.msra.mxu0 0.0
        %1412 = vmatprep.subr.mxu0 0.0
        %1413 = vmatpush1.msra.mxu0 0.0
        %1414 = vmatprep.subr.mxu0 0.0
        %1415 = vmatpush1.msra.mxu0 0.0
        %1416 = vmatprep.subr.mxu0 0.0
        %1417 = vmatpush1.msra.mxu0 0.0
        %1418 = vmatprep.subr.mxu0 0.0
        %1419 = vmatpush1.msra.mxu0 0.0
        %1420 = vmatprep.subr.mxu0 0.0
        %1421 = vmatpush1.msra.mxu0 0.0
        %1422 = vmatprep.subr.mxu0 0.0
        %1423 = vmatpush1.msra.mxu0 0.0
        %1424 = vmatprep.subr.mxu0 0.0
        %1425 = vmatpush1.msra.mxu0 0.0
        %1426 = vmatprep.subr.mxu0 0.0
        %1427 = vmatpush1.msra.mxu0 0.0
        %1428 = vmatprep.subr.mxu0 0.0
        %1429 = vmatpush1.msra.mxu0 0.0
        %1430 = vmatprep.subr.mxu0 0.0
        %1431 = vmatpush1.msra.mxu0 0.0
        %1432 = vmatprep.subr.mxu0 %v1376
        %1433 = vmatpush1.msra.mxu0 %v1375
        %1434 = vmatprep.subr.mxu0 %v1372
        %1435 = vmatpush1.msra.mxu0 %v1371
        %1436 = vmatprep.subr.mxu0 %v1368
        %1437 = vmatpush1.msra.mxu0 %v1367
        %1438 = vmatprep.subr.mxu0 %v1364
        %1439 = vmatpush1.msra.mxu0 %v1363
        %1440 = vmatprep.subr.mxu0 0.0
        %1441 = vmatpush2.msra.mxu0 0.0
        %1442 = vmatprep.subr.mxu0 0.0
        %1443 = vmatpush2.msra.mxu0 0.0
        %1444 = vmatprep.subr.mxu0 0.0
        %1445 = vmatpush2.msra.mxu0 0.0
        %1446 = vmatprep.subr.mxu0 0.0
        %1447 = vmatpush2.msra.mxu0 0.0
        %1448 = vmatprep.subr.mxu0 0.0
        %1449 = vmatpush2.msra.mxu0 0.0
        %1450 = vmatprep.subr.mxu0 0.0
        %1451 = vmatpush2.msra.mxu0 0.0
        %1452 = vmatprep.subr.mxu0 0.0
        %1453 = vmatpush2.msra.mxu0 0.0
        %1454 = vmatprep.subr.mxu0 0.0
        %1455 = vmatpush2.msra.mxu0 0.0
        %1456 = vmatprep.subr.mxu0 0.0
        %1457 = vmatpush2.msra.mxu0 0.0
        %1458 = vmatprep.subr.mxu0 0.0
        %1459 = vmatpush2.msra.mxu0 0.0
        %1460 = vmatprep.subr.mxu0 0.0
        %1461 = vmatpush2.msra.mxu0 0.0
        %1462 = vmatprep.subr.mxu0 0.0
        %1463 = vmatpush2.msra.mxu0 0.0
        %1464 = vmatprep.subr.mxu0 0.0
        %1465 = vmatpush2.msra.mxu0 0.0
        %1466 = vmatprep.subr.mxu0 0.0
        %1467 = vmatpush2.msra.mxu0 0.0
        %1468 = vmatprep.subr.mxu0 0.0
        %1469 = vmatpush2.msra.mxu0 0.0
        %1470 = vmatprep.subr.mxu0 0.0
        %1471 = vmatpush2.msra.mxu0 0.0
        %1472 = vmatprep.mubr.f32.mxu0 0.0
        %1473 = vmatmul.mubr.f32.gmra.mxu0 %v1397
        %v1474 = vpop.f32.mrf.mxu0
        %v1475 = vadd.f32 0.0, %v1474
        %v1476 = vpop.f32.mrf.mxu0
        %v1477 = vadd.f32 0.0, %v1476
        %1478 = vmatprep.mubr.f32.mxu0 0.0
        %1479 = vmatmul.mubr.f32.gmra.mxu0 %v1400
        %v1480 = vpop.f32.mrf.mxu0
        %v1481 = vadd.f32 0.0, %v1480
        %v1482 = vpop.f32.mrf.mxu0
        %v1483 = vadd.f32 0.0, %v1482
        %1484 = vmatprep.mubr.f32.mxu0 0.0
        %1485 = vmatmul.mubr.f32.gmra.mxu0 %v1403
        %v1486 = vpop.f32.mrf.mxu0
        %v1487 = vadd.f32 0.0, %v1486
        %v1488 = vpop.f32.mrf.mxu0
        %v1489 = vadd.f32 0.0, %v1488
        %1490 = vmatprep.mubr.f32.mxu0 0.0
        %1491 = vmatmul.mubr.f32.gmra.mxu0 %v1406
        %v1492 = vpop.f32.mrf.mxu0
        %v1493 = vadd.f32 0.0, %v1492
        %v1494 = vpop.f32.mrf.mxu0
        %v1495 = vadd.f32 0.0, %v1494
        %1496 = vdwg.mxu0
        %1497 = vmatprep.subr.mxu0 0.0
        %1498 = vmatpush1.msra.mxu0 0.0
        %1499 = vmatprep.subr.mxu0 0.0
        %1500 = vmatpush1.msra.mxu0 0.0
        %1501 = vmatprep.subr.mxu0 0.0
        %1502 = vmatpush1.msra.mxu0 0.0
        %1503 = vmatprep.subr.mxu0 0.0
        %1504 = vmatpush1.msra.mxu0 0.0
        %1505 = vmatprep.subr.mxu0 0.0
        %1506 = vmatpush1.msra.mxu0 0.0
        %1507 = vmatprep.subr.mxu0 0.0
        %1508 = vmatpush1.msra.mxu0 0.0
        %1509 = vmatprep.subr.mxu0 0.0
        %1510 = vmatpush1.msra.mxu0 0.0
        %1511 = vmatprep.subr.mxu0 0.0
        %1512 = vmatpush1.msra.mxu0 0.0
        %1513 = vmatprep.subr.mxu0 0.0
        %1514 = vmatpush1.msra.mxu0 0.0
        %1515 = vmatprep.subr.mxu0 0.0
        %1516 = vmatpush1.msra.mxu0 0.0
        %1517 = vmatprep.subr.mxu0 0.0
        %1518 = vmatpush1.msra.mxu0 0.0
        %1519 = vmatprep.subr.mxu0 0.0
        %1520 = vmatpush1.msra.mxu0 0.0
        %1521 = vmatprep.subr.mxu0 %v1378
        %1522 = vmatpush1.msra.mxu0 %v1377
        %1523 = vmatprep.subr.mxu0 %v1374
        %1524 = vmatpush1.msra.mxu0 %v1373
        %1525 = vmatprep.subr.mxu0 %v1370
        %1526 = vmatpush1.msra.mxu0 %v1369
        %1527 = vmatprep.subr.mxu0 %v1366
        %1528 = vmatpush1.msra.mxu0 %v1365
        %1529 = vmatprep.subr.mxu0 0.0
        %1530 = vmatpush2.msra.mxu0 0.0
        %1531 = vmatprep.subr.mxu0 0.0
        %1532 = vmatpush2.msra.mxu0 0.0
        %1533 = vmatprep.subr.mxu0 0.0
        %1534 = vmatpush2.msra.mxu0 0.0
        %1535 = vmatprep.subr.mxu0 0.0
        %1536 = vmatpush2.msra.mxu0 0.0
        %1537 = vmatprep.subr.mxu0 0.0
        %1538 = vmatpush2.msra.mxu0 0.0
        %1539 = vmatprep.subr.mxu0 0.0
        %1540 = vmatpush2.msra.mxu0 0.0
        %1541 = vmatprep.subr.mxu0 0.0
        %1542 = vmatpush2.msra.mxu0 0.0
        %1543 = vmatprep.subr.mxu0 0.0
        %1544 = vmatpush2.msra.mxu0 0.0
        %1545 = vmatprep.subr.mxu0 0.0
        %1546 = vmatpush2.msra.mxu0 0.0
        %1547 = vmatprep.subr.mxu0 0.0
        %1548 = vmatpush2.msra.mxu0 0.0
        %1549 = vmatprep.subr.mxu0 0.0
        %1550 = vmatpush2.msra.mxu0 0.0
        %1551 = vmatprep.subr.mxu0 0.0
        %1552 = vmatpush2.msra.mxu0 0.0
        %1553 = vmatprep.subr.mxu0 0.0
        %1554 = vmatpush2.msra.mxu0 0.0
        %1555 = vmatprep.subr.mxu0 0.0
        %1556 = vmatpush2.msra.mxu0 0.0
        %1557 = vmatprep.subr.mxu0 0.0
        %1558 = vmatpush2.msra.mxu0 0.0
        %1559 = vmatprep.subr.mxu0 0.0
        %1560 = vmatpush2.msra.mxu0 0.0
        %1561 = vmatprep.mubr.f32.mxu0 0.0
        %1562 = vmatmul.mubr.f32.gmra.mxu0 %v1397
        %v1563 = vpop.f32.mrf.mxu0
        %v1564 = vadd.f32 0.0, %v1563
        %v1565 = vpop.f32.mrf.mxu0
        %v1566 = vadd.f32 0.0, %v1565
        %1567 = vmatprep.mubr.f32.mxu0 0.0
        %1568 = vmatmul.mubr.f32.gmra.mxu0 %v1400
        %v1569 = vpop.f32.mrf.mxu0
        %v1570 = vadd.f32 0.0, %v1569
        %v1571 = vpop.f32.mrf.mxu0
        %v1572 = vadd.f32 0.0, %v1571
        %1573 = vmatprep.mubr.f32.mxu0 0.0
        %1574 = vmatmul.mubr.f32.gmra.mxu0 %v1403
        %v1575 = vpop.f32.mrf.mxu0
        %v1576 = vadd.f32 0.0, %v1575
        %v1577 = vpop.f32.mrf.mxu0
        %v1578 = vadd.f32 0.0, %v1577
        %1579 = vmatprep.mubr.f32.mxu0 0.0
        %1580 = vmatmul.mubr.f32.gmra.mxu0 %v1406
        %v1581 = vpop.f32.mrf.mxu0
        %v1582 = vadd.f32 0.0, %v1581
        %v1583 = vpop.f32.mrf.mxu0
        %v1584 = vadd.f32 0.0, %v1583
        %1585 = vdwg.mxu0
        %1606 = vrot.lane.b32.xlu0 %v1262, 73
        %v1607 = vpop.permute.xlu0 %1606
        %1608 = vrot.lane.b32.xlu0 %v1263, 73
        %v1609 = vpop.permute.xlu0 %1608
        %1610 = vrot.lane.b32.xlu0 %v1264, 73
        %v1611 = vpop.permute.xlu0 %1610
        %1612 = vrot.lane.b32.xlu0 %v1265, 73
        %v1613 = vpop.permute.xlu0 %1612
        %1614 = vrot.lane.b32.xlu0 %v1266, 73
        %v1615 = vpop.permute.xlu0 %1614
        %1616 = vrot.lane.b32.xlu0 %v1267, 73
        %v1617 = vpop.permute.xlu0 %1616
        %1618 = vrot.lane.b32.xlu0 %v1268, 73
        %v1619 = vpop.permute.xlu0 %1618
        %1620 = vrot.lane.b32.xlu0 %v1269, 73
        %v1621 = vpop.permute.xlu0 %1620
        %1622 = vrot.lane.b32.xlu0 %v1270, 73
        %v1623 = vpop.permute.xlu0 %1622
        %1624 = vrot.lane.b32.xlu0 %v1271, 73
        %v1625 = vpop.permute.xlu0 %1624
        %1626 = vrot.lane.b32.xlu0 %v1272, 73
        %v1627 = vpop.permute.xlu0 %1626
        %1628 = vrot.lane.b32.xlu0 %v1273, 73
        %v1629 = vpop.permute.xlu0 %1628
        %1630 = vrot.lane.b32.xlu0 %v1274, 73
        %v1631 = vpop.permute.xlu0 %1630
        %1632 = vrot.lane.b32.xlu0 %v1275, 73
        %v1633 = vpop.permute.xlu0 %1632
        %1634 = vrot.lane.b32.xlu0 %v1276, 73
        %v1635 = vpop.permute.xlu0 %1634
        %1636 = vrot.lane.b32.xlu0 %v1277, 73
        %v1637 = vpop.permute.xlu0 %1636
        %1638 = vrot.lane.b32.xlu0 %v1278, 73
        %v1639 = vpop.permute.xlu0 %1638
        %1640 = vrot.lane.b32.xlu0 %v1279, 73
        %v1641 = vpop.permute.xlu0 %1640
        %1642 = vrot.lane.b32.xlu0 %v1280, 73
        %v1643 = vpop.permute.xlu0 %1642
        %1644 = vrot.lane.b32.xlu0 %v1281, 73
        %v1645 = vpop.permute.xlu0 %1644
        %vm1646 = vcmask 596992
        %v1647 = vsel %vm1646, %v1607, %v1609
        %v1648 = vsel %vm1646, %v1609, %v1611
        %v1649 = vsel %vm1646, %v1611, %v1613
        %v1650 = vsel %vm1646, %v1613, %v1615
        %v1651 = vsel %vm1646, %v1617, %v1619
        %v1652 = vsel %vm1646, %v1619, %v1621
        %v1653 = vsel %vm1646, %v1621, %v1623
        %v1654 = vsel %vm1646, %v1623, %v1625
        %v1655 = vsel %vm1646, %v1627, %v1629
        %v1656 = vsel %vm1646, %v1629, %v1631
        %v1657 = vsel %vm1646, %v1631, %v1633
        %v1658 = vsel %vm1646, %v1633, %v1635
        %v1659 = vsel %vm1646, %v1637, %v1639
        %v1660 = vsel %vm1646, %v1639, %v1641
        %v1661 = vsel %vm1646, %v1641, %v1643
        %v1662 = vsel %vm1646, %v1643, %v1645
        %v1680 = vsel %vm1395, %v412, 0
        %v1683 = vsel %vm1395, %v413, 0
        %v1686 = vsel %vm1395, %v414, 0
        %v1689 = vsel %vm1395, %v415, 0
        %1691 = vmatprep.subr.mxu0 0.0
        %1692 = vmatpush1.msra.mxu0 0.0
        %1693 = vmatprep.subr.mxu0 0.0
        %1694 = vmatpush1.msra.mxu0 0.0
        %1695 = vmatprep.subr.mxu0 0.0
        %1696 = vmatpush1.msra.mxu0 0.0
        %1697 = vmatprep.subr.mxu0 0.0
        %1698 = vmatpush1.msra.mxu0 0.0
        %1699 = vmatprep.subr.mxu0 0.0
        %1700 = vmatpush1.msra.mxu0 0.0
        %1701 = vmatprep.subr.mxu0 0.0
        %1702 = vmatpush1.msra.mxu0 0.0
        %1703 = vmatprep.subr.mxu0 0.0
        %1704 = vmatpush1.msra.mxu0 0.0
        %1705 = vmatprep.subr.mxu0 0.0
        %1706 = vmatpush1.msra.mxu0 0.0
        %1707 = vmatprep.subr.mxu0 0.0
        %1708 = vmatpush1.msra.mxu0 0.0
        %1709 = vmatprep.subr.mxu0 0.0
        %1710 = vmatpush1.msra.mxu0 0.0
        %1711 = vmatprep.subr.mxu0 0.0
        %1712 = vmatpush1.msra.mxu0 0.0
        %1713 = vmatprep.subr.mxu0 0.0
        %1714 = vmatpush1.msra.mxu0 0.0
        %1715 = vmatprep.subr.mxu0 %v1660
        %1716 = vmatpush1.msra.mxu0 %v1659
        %1717 = vmatprep.subr.mxu0 %v1656
        %1718 = vmatpush1.msra.mxu0 %v1655
        %1719 = vmatprep.subr.mxu0 %v1652
        %1720 = vmatpush1.msra.mxu0 %v1651
        %1721 = vmatprep.subr.mxu0 %v1648
        %1722 = vmatpush1.msra.mxu0 %v1647
        %1723 = vmatprep.subr.mxu0 0.0
        %1724 = vmatpush2.msra.mxu0 0.0
        %1725 = vmatprep.subr.mxu0 0.0
        %1726 = vmatpush2.msra.mxu0 0.0
        %1727 = vmatprep.subr.mxu0 0.0
        %1728 = vmatpush2.msra.mxu0 0.0
        %1729 = vmatprep.subr.mxu0 0.0
        %1730 = vmatpush2.msra.mxu0 0.0
        %1731 = vmatprep.subr.mxu0 0.0
        %1732 = vmatpush2.msra.mxu0 0.0
        %1733 = vmatprep.subr.mxu0 0.0
        %1734 = vmatpush2.msra.mxu0 0.0
        %1735 = vmatprep.subr.mxu0 0.0
        %1736 = vmatpush2.msra.mxu0 0.0
        %1737 = vmatprep.subr.mxu0 0.0
        %1738 = vmatpush2.msra.mxu0 0.0
        %1739 = vmatprep.subr.mxu0 0.0
        %1740 = vmatpush2.msra.mxu0 0.0
        %1741 = vmatprep.subr.mxu0 0.0
        %1742 = vmatpush2.msra.mxu0 0.0
        %1743 = vmatprep.subr.mxu0 0.0
        %1744 = vmatpush2.msra.mxu0 0.0
        %1745 = vmatprep.subr.mxu0 0.0
        %1746 = vmatpush2.msra.mxu0 0.0
        %1747 = vmatprep.subr.mxu0 0.0
        %1748 = vmatpush2.msra.mxu0 0.0
        %1749 = vmatprep.subr.mxu0 0.0
        %1750 = vmatpush2.msra.mxu0 0.0
        %1751 = vmatprep.subr.mxu0 0.0
        %1752 = vmatpush2.msra.mxu0 0.0
        %1753 = vmatprep.subr.mxu0 0.0
        %1754 = vmatpush2.msra.mxu0 0.0
        %1755 = vmatprep.mubr.f32.mxu0 0.0
        %1756 = vmatmul.mubr.f32.gmra.mxu0 %v1680
        %v1757 = vpop.f32.mrf.mxu0
        %v1758 = vadd.f32 %v1475, %v1757
        %v1759 = vpop.f32.mrf.mxu0
        %v1760 = vadd.f32 %v1477, %v1759
        %1761 = vmatprep.mubr.f32.mxu0 0.0
        %1762 = vmatmul.mubr.f32.gmra.mxu0 %v1683
        %v1763 = vpop.f32.mrf.mxu0
        %v1764 = vadd.f32 %v1481, %v1763
        %v1765 = vpop.f32.mrf.mxu0
        %v1766 = vadd.f32 %v1483, %v1765
        %1767 = vmatprep.mubr.f32.mxu0 0.0
        %1768 = vmatmul.mubr.f32.gmra.mxu0 %v1686
        %v1769 = vpop.f32.mrf.mxu0
        %v1770 = vadd.f32 %v1487, %v1769
        %v1771 = vpop.f32.mrf.mxu0
        %v1772 = vadd.f32 %v1489, %v1771
        %1773 = vmatprep.mubr.f32.mxu0 0.0
        %1774 = vmatmul.mubr.f32.gmra.mxu0 %v1689
        %v1775 = vpop.f32.mrf.mxu0
        %v1776 = vadd.f32 %v1493, %v1775
        %v1777 = vpop.f32.mrf.mxu0
        %v1778 = vadd.f32 %v1495, %v1777
        %1779 = vdwg.mxu0
        %1780 = vmatprep.subr.mxu0 0.0
        %1781 = vmatpush1.msra.mxu0 0.0
        %1782 = vmatprep.subr.mxu0 0.0
        %1783 = vmatpush1.msra.mxu0 0.0
        %1784 = vmatprep.subr.mxu0 0.0
        %1785 = vmatpush1.msra.mxu0 0.0
        %1786 = vmatprep.subr.mxu0 0.0
        %1787 = vmatpush1.msra.mxu0 0.0
        %1788 = vmatprep.subr.mxu0 0.0
        %1789 = vmatpush1.msra.mxu0 0.0
        %1790 = vmatprep.subr.mxu0 0.0
        %1791 = vmatpush1.msra.mxu0 0.0
        %1792 = vmatprep.subr.mxu0 0.0
        %1793 = vmatpush1.msra.mxu0 0.0
        %1794 = vmatprep.subr.mxu0 0.0
        %1795 = vmatpush1.msra.mxu0 0.0
        %1796 = vmatprep.subr.mxu0 0.0
        %1797 = vmatpush1.msra.mxu0 0.0
        %1798 = vmatprep.subr.mxu0 0.0
        %1799 = vmatpush1.msra.mxu0 0.0
        %1800 = vmatprep.subr.mxu0 0.0
        %1801 = vmatpush1.msra.mxu0 0.0
        %1802 = vmatprep.subr.mxu0 0.0
        %1803 = vmatpush1.msra.mxu0 0.0
        %1804 = vmatprep.subr.mxu0 %v1662
        %1805 = vmatpush1.msra.mxu0 %v1661
        %1806 = vmatprep.subr.mxu0 %v1658
        %1807 = vmatpush1.msra.mxu0 %v1657
        %1808 = vmatprep.subr.mxu0 %v1654
        %1809 = vmatpush1.msra.mxu0 %v1653
        %1810 = vmatprep.subr.mxu0 %v1650
        %1811 = vmatpush1.msra.mxu0 %v1649
        %1812 = vmatprep.subr.mxu0 0.0
        %1813 = vmatpush2.msra.mxu0 0.0
        %1814 = vmatprep.subr.mxu0 0.0
        %1815 = vmatpush2.msra.mxu0 0.0
        %1816 = vmatprep.subr.mxu0 0.0
        %1817 = vmatpush2.msra.mxu0 0.0
        %1818 = vmatprep.subr.mxu0 0.0
        %1819 = vmatpush2.msra.mxu0 0.0
        %1820 = vmatprep.subr.mxu0 0.0
        %1821 = vmatpush2.msra.mxu0 0.0
        %1822 = vmatprep.subr.mxu0 0.0
        %1823 = vmatpush2.msra.mxu0 0.0
        %1824 = vmatprep.subr.mxu0 0.0
        %1825 = vmatpush2.msra.mxu0 0.0
        %1826 = vmatprep.subr.mxu0 0.0
        %1827 = vmatpush2.msra.mxu0 0.0
        %1828 = vmatprep.subr.mxu0 0.0
        %1829 = vmatpush2.msra.mxu0 0.0
        %1830 = vmatprep.subr.mxu0 0.0
        %1831 = vmatpush2.msra.mxu0 0.0
        %1832 = vmatprep.subr.mxu0 0.0
        %1833 = vmatpush2.msra.mxu0 0.0
        %1834 = vmatprep.subr.mxu0 0.0
        %1835 = vmatpush2.msra.mxu0 0.0
        %1836 = vmatprep.subr.mxu0 0.0
        %1837 = vmatpush2.msra.mxu0 0.0
        %1838 = vmatprep.subr.mxu0 0.0
        %1839 = vmatpush2.msra.mxu0 0.0
        %1840 = vmatprep.subr.mxu0 0.0
        %1841 = vmatpush2.msra.mxu0 0.0
        %1842 = vmatprep.subr.mxu0 0.0
        %1843 = vmatpush2.msra.mxu0 0.0
        %1844 = vmatprep.mubr.f32.mxu0 0.0
        %1845 = vmatmul.mubr.f32.gmra.mxu0 %v1680
        %v1846 = vpop.f32.mrf.mxu0
        %v1847 = vadd.f32 %v1564, %v1846
        %v1848 = vpop.f32.mrf.mxu0
        %v1849 = vadd.f32 %v1566, %v1848
        %1850 = vmatprep.mubr.f32.mxu0 0.0
        %1851 = vmatmul.mubr.f32.gmra.mxu0 %v1683
        %v1852 = vpop.f32.mrf.mxu0
        %v1853 = vadd.f32 %v1570, %v1852
        %v1854 = vpop.f32.mrf.mxu0
        %v1855 = vadd.f32 %v1572, %v1854
        %1856 = vmatprep.mubr.f32.mxu0 0.0
        %1857 = vmatmul.mubr.f32.gmra.mxu0 %v1686
        %v1858 = vpop.f32.mrf.mxu0
        %v1859 = vadd.f32 %v1576, %v1858
        %v1860 = vpop.f32.mrf.mxu0
        %v1861 = vadd.f32 %v1578, %v1860
        %1862 = vmatprep.mubr.f32.mxu0 0.0
        %1863 = vmatmul.mubr.f32.gmra.mxu0 %v1689
        %v1864 = vpop.f32.mrf.mxu0
        %v1865 = vadd.f32 %v1582, %v1864
        %v1866 = vpop.f32.mrf.mxu0
        %v1867 = vadd.f32 %v1584, %v1866
        %1868 = vdwg.mxu0
        %v1869 = vld [vmem:[%s983] sm:$0xff]
        %v1870 = vld [vmem:[%s983 + $0x8] sm:$0xff]
        %v1871 = vld [vmem:[%s983 + $0x10] sm:$0xff]
        %v1872 = vld [vmem:[%s983 + $0x18] sm:$0xff]
        %v1873 = vld [vmem:[%s983 + $0x20] sm:$0xff]
        %v1874 = vld [vmem:[%s983 + $0x30] sm:$0xff]
        %v1875 = vld [vmem:[%s983 + $0x38] sm:$0xff]
        %v1876 = vld [vmem:[%s983 + $0x40] sm:$0xff]
        %v1877 = vld [vmem:[%s983 + $0x48] sm:$0xff]
        %v1878 = vld [vmem:[%s983 + $0x50] sm:$0xff]
        %v1879 = vld [vmem:[%s983 + $0x60] sm:$0xff]
        %v1880 = vld [vmem:[%s983 + $0x68] sm:$0xff]
        %v1881 = vld [vmem:[%s983 + $0x70] sm:$0xff]
        %v1882 = vld [vmem:[%s983 + $0x78] sm:$0xff]
        %v1883 = vld [vmem:[%s983 + $0x80] sm:$0xff]
        %v1884 = vld [vmem:[%s983 + $0x90] sm:$0xff]
        %v1885 = vld [vmem:[%s983 + $0x98] sm:$0xff]
        %v1886 = vld [vmem:[%s983 + $0xa0] sm:$0xff]
        %v1887 = vld [vmem:[%s983 + $0xa8] sm:$0xff]
        %v1888 = vld [vmem:[%s983 + $0xb0] sm:$0xff]
        %1909 = vrot.lane.b32.xlu0 %v1869, 71
        %v1910 = vpop.permute.xlu0 %1909
        %1911 = vrot.lane.b32.xlu0 %v1870, 71
        %v1912 = vpop.permute.xlu0 %1911
        %1913 = vrot.lane.b32.xlu0 %v1871, 71
        %v1914 = vpop.permute.xlu0 %1913
        %1915 = vrot.lane.b32.xlu0 %v1872, 71
        %v1916 = vpop.permute.xlu0 %1915
        %1917 = vrot.lane.b32.xlu0 %v1873, 71
        %v1918 = vpop.permute.xlu0 %1917
        %1919 = vrot.lane.b32.xlu0 %v1874, 71
        %v1920 = vpop.permute.xlu0 %1919
        %1921 = vrot.lane.b32.xlu0 %v1875, 71
        %v1922 = vpop.permute.xlu0 %1921
        %1923 = vrot.lane.b32.xlu0 %v1876, 71
        %v1924 = vpop.permute.xlu0 %1923
        %1925 = vrot.lane.b32.xlu0 %v1877, 71
        %v1926 = vpop.permute.xlu0 %1925
        %1927 = vrot.lane.b32.xlu0 %v1878, 71
        %v1928 = vpop.permute.xlu0 %1927
        %1929 = vrot.lane.b32.xlu0 %v1879, 71
        %v1930 = vpop.permute.xlu0 %1929
        %1931 = vrot.lane.b32.xlu0 %v1880, 71
        %v1932 = vpop.permute.xlu0 %1931
        %1933 = vrot.lane.b32.xlu0 %v1881, 71
        %v1934 = vpop.permute.xlu0 %1933
        %1935 = vrot.lane.b32.xlu0 %v1882, 71
        %v1936 = vpop.permute.xlu0 %1935
        %1937 = vrot.lane.b32.xlu0 %v1883, 71
        %v1938 = vpop.permute.xlu0 %1937
        %1939 = vrot.lane.b32.xlu0 %v1884, 71
        %v1940 = vpop.permute.xlu0 %1939
        %1941 = vrot.lane.b32.xlu0 %v1885, 71
        %v1942 = vpop.permute.xlu0 %1941
        %1943 = vrot.lane.b32.xlu0 %v1886, 71
        %v1944 = vpop.permute.xlu0 %1943
        %1945 = vrot.lane.b32.xlu0 %v1887, 71
        %v1946 = vpop.permute.xlu0 %1945
        %1947 = vrot.lane.b32.xlu0 %v1888, 71
        %v1948 = vpop.permute.xlu0 %1947
        %vm1949 = vcmask 580608
        %v1950 = vsel %vm1949, %v1910, %v1912
        %v1951 = vsel %vm1949, %v1912, %v1914
        %v1952 = vsel %vm1949, %v1914, %v1916
        %v1953 = vsel %vm1949, %v1916, %v1918
        %v1954 = vsel %vm1949, %v1920, %v1922
        %v1955 = vsel %vm1949, %v1922, %v1924
        %v1956 = vsel %vm1949, %v1924, %v1926
        %v1957 = vsel %vm1949, %v1926, %v1928
        %v1958 = vsel %vm1949, %v1930, %v1932
        %v1959 = vsel %vm1949, %v1932, %v1934
        %v1960 = vsel %vm1949, %v1934, %v1936
        %v1961 = vsel %vm1949, %v1936, %v1938
        %v1962 = vsel %vm1949, %v1940, %v1942
        %v1963 = vsel %vm1949, %v1942, %v1944
        %v1964 = vsel %vm1949, %v1944, %v1946
        %v1965 = vsel %vm1949, %v1946, %v1948
        %v1983 = vsel %vm1395, %v420, 0
        %v1986 = vsel %vm1395, %v421, 0
        %v1989 = vsel %vm1395, %v422, 0
        %v1992 = vsel %vm1395, %v423, 0
        %1994 = vmatprep.subr.mxu0 0.0
        %1995 = vmatpush1.msra.mxu0 0.0
        %1996 = vmatprep.subr.mxu0 0.0
        %1997 = vmatpush1.msra.mxu0 0.0
        %1998 = vmatprep.subr.mxu0 0.0
        %1999 = vmatpush1.msra.mxu0 0.0
        %2000 = vmatprep.subr.mxu0 0.0
        %2001 = vmatpush1.msra.mxu0 0.0
        %2002 = vmatprep.subr.mxu0 0.0
        %2003 = vmatpush1.msra.mxu0 0.0
        %2004 = vmatprep.subr.mxu0 0.0
        %2005 = vmatpush1.msra.mxu0 0.0
        %2006 = vmatprep.subr.mxu0 0.0
        %2007 = vmatpush1.msra.mxu0 0.0
        %2008 = vmatprep.subr.mxu0 0.0
        %2009 = vmatpush1.msra.mxu0 0.0
        %2010 = vmatprep.subr.mxu0 0.0
        %2011 = vmatpush1.msra.mxu0 0.0
        %2012 = vmatprep.subr.mxu0 0.0
        %2013 = vmatpush1.msra.mxu0 0.0
        %2014 = vmatprep.subr.mxu0 0.0
        %2015 = vmatpush1.msra.mxu0 0.0
        %2016 = vmatprep.subr.mxu0 0.0
        %2017 = vmatpush1.msra.mxu0 0.0
        %2018 = vmatprep.subr.mxu0 %v1963
        %2019 = vmatpush1.msra.mxu0 %v1962
        %2020 = vmatprep.subr.mxu0 %v1959
        %2021 = vmatpush1.msra.mxu0 %v1958
        %2022 = vmatprep.subr.mxu0 %v1955
        %2023 = vmatpush1.msra.mxu0 %v1954
        %2024 = vmatprep.subr.mxu0 %v1951
        %2025 = vmatpush1.msra.mxu0 %v1950
        %2026 = vmatprep.subr.mxu0 0.0
        %2027 = vmatpush2.msra.mxu0 0.0
        %2028 = vmatprep.subr.mxu0 0.0
        %2029 = vmatpush2.msra.mxu0 0.0
        %2030 = vmatprep.subr.mxu0 0.0
        %2031 = vmatpush2.msra.mxu0 0.0
        %2032 = vmatprep.subr.mxu0 0.0
        %2033 = vmatpush2.msra.mxu0 0.0
        %2034 = vmatprep.subr.mxu0 0.0
        %2035 = vmatpush2.msra.mxu0 0.0
        %2036 = vmatprep.subr.mxu0 0.0
        %2037 = vmatpush2.msra.mxu0 0.0
        %2038 = vmatprep.subr.mxu0 0.0
        %2039 = vmatpush2.msra.mxu0 0.0
        %2040 = vmatprep.subr.mxu0 0.0
        %2041 = vmatpush2.msra.mxu0 0.0
        %2042 = vmatprep.subr.mxu0 0.0
        %2043 = vmatpush2.msra.mxu0 0.0
        %2044 = vmatprep.subr.mxu0 0.0
        %2045 = vmatpush2.msra.mxu0 0.0
        %2046 = vmatprep.subr.mxu0 0.0
        %2047 = vmatpush2.msra.mxu0 0.0
        %2048 = vmatprep.subr.mxu0 0.0
        %2049 = vmatpush2.msra.mxu0 0.0
        %2050 = vmatprep.subr.mxu0 0.0
        %2051 = vmatpush2.msra.mxu0 0.0
        %2052 = vmatprep.subr.mxu0 0.0
        %2053 = vmatpush2.msra.mxu0 0.0
        %2054 = vmatprep.subr.mxu0 0.0
        %2055 = vmatpush2.msra.mxu0 0.0
        %2056 = vmatprep.subr.mxu0 0.0
        %2057 = vmatpush2.msra.mxu0 0.0
        %2058 = vmatprep.mubr.f32.mxu0 0.0
        %2059 = vmatmul.mubr.f32.gmra.mxu0 %v1983
        %v2060 = vpop.f32.mrf.mxu0
        %v2061 = vadd.f32 0.0, %v2060
        %v2062 = vpop.f32.mrf.mxu0
        %v2063 = vadd.f32 0.0, %v2062
        %2064 = vmatprep.mubr.f32.mxu0 0.0
        %2065 = vmatmul.mubr.f32.gmra.mxu0 %v1986
        %v2066 = vpop.f32.mrf.mxu0
        %v2067 = vadd.f32 0.0, %v2066
        %v2068 = vpop.f32.mrf.mxu0
        %v2069 = vadd.f32 0.0, %v2068
        %2070 = vmatprep.mubr.f32.mxu0 0.0
        %2071 = vmatmul.mubr.f32.gmra.mxu0 %v1989
        %v2072 = vpop.f32.mrf.mxu0
        %v2073 = vadd.f32 0.0, %v2072
        %v2074 = vpop.f32.mrf.mxu0
        %v2075 = vadd.f32 0.0, %v2074
        %2076 = vmatprep.mubr.f32.mxu0 0.0
        %2077 = vmatmul.mubr.f32.gmra.mxu0 %v1992
        %v2078 = vpop.f32.mrf.mxu0
        %v2079 = vadd.f32 0.0, %v2078
        %v2080 = vpop.f32.mrf.mxu0
        %v2081 = vadd.f32 0.0, %v2080
        %2082 = vdwg.mxu0
        %2083 = vmatprep.subr.mxu0 0.0
        %2084 = vmatpush1.msra.mxu0 0.0
        %2085 = vmatprep.subr.mxu0 0.0
        %2086 = vmatpush1.msra.mxu0 0.0
        %2087 = vmatprep.subr.mxu0 0.0
        %2088 = vmatpush1.msra.mxu0 0.0
        %2089 = vmatprep.subr.mxu0 0.0
        %2090 = vmatpush1.msra.mxu0 0.0
        %2091 = vmatprep.subr.mxu0 0.0
        %2092 = vmatpush1.msra.mxu0 0.0
        %2093 = vmatprep.subr.mxu0 0.0
        %2094 = vmatpush1.msra.mxu0 0.0
        %2095 = vmatprep.subr.mxu0 0.0
        %2096 = vmatpush1.msra.mxu0 0.0
        %2097 = vmatprep.subr.mxu0 0.0
        %2098 = vmatpush1.msra.mxu0 0.0
        %2099 = vmatprep.subr.mxu0 0.0
        %2100 = vmatpush1.msra.mxu0 0.0
        %2101 = vmatprep.subr.mxu0 0.0
        %2102 = vmatpush1.msra.mxu0 0.0
        %2103 = vmatprep.subr.mxu0 0.0
        %2104 = vmatpush1.msra.mxu0 0.0
        %2105 = vmatprep.subr.mxu0 0.0
        %2106 = vmatpush1.msra.mxu0 0.0
        %2107 = vmatprep.subr.mxu0 %v1965
        %2108 = vmatpush1.msra.mxu0 %v1964
        %2109 = vmatprep.subr.mxu0 %v1961
        %2110 = vmatpush1.msra.mxu0 %v1960
        %2111 = vmatprep.subr.mxu0 %v1957
        %2112 = vmatpush1.msra.mxu0 %v1956
        %2113 = vmatprep.subr.mxu0 %v1953
        %2114 = vmatpush1.msra.mxu0 %v1952
        %2115 = vmatprep.subr.mxu0 0.0
        %2116 = vmatpush2.msra.mxu0 0.0
        %2117 = vmatprep.subr.mxu0 0.0
        %2118 = vmatpush2.msra.mxu0 0.0
        %2119 = vmatprep.subr.mxu0 0.0
        %2120 = vmatpush2.msra.mxu0 0.0
        %2121 = vmatprep.subr.mxu0 0.0
        %2122 = vmatpush2.msra.mxu0 0.0
        %2123 = vmatprep.subr.mxu0 0.0
        %2124 = vmatpush2.msra.mxu0 0.0
        %2125 = vmatprep.subr.mxu0 0.0
        %2126 = vmatpush2.msra.mxu0 0.0
        %2127 = vmatprep.subr.mxu0 0.0
        %2128 = vmatpush2.msra.mxu0 0.0
        %2129 = vmatprep.subr.mxu0 0.0
        %2130 = vmatpush2.msra.mxu0 0.0
        %2131 = vmatprep.subr.mxu0 0.0
        %2132 = vmatpush2.msra.mxu0 0.0
        %2133 = vmatprep.subr.mxu0 0.0
        %2134 = vmatpush2.msra.mxu0 0.0
        %2135 = vmatprep.subr.mxu0 0.0
        %2136 = vmatpush2.msra.mxu0 0.0
        %2137 = vmatprep.subr.mxu0 0.0
        %2138 = vmatpush2.msra.mxu0 0.0
        %2139 = vmatprep.subr.mxu0 0.0
        %2140 = vmatpush2.msra.mxu0 0.0
        %2141 = vmatprep.subr.mxu0 0.0
        %2142 = vmatpush2.msra.mxu0 0.0
        %2143 = vmatprep.subr.mxu0 0.0
        %2144 = vmatpush2.msra.mxu0 0.0
        %2145 = vmatprep.subr.mxu0 0.0
        %2146 = vmatpush2.msra.mxu0 0.0
        %2147 = vmatprep.mubr.f32.mxu0 0.0
        %2148 = vmatmul.mubr.f32.gmra.mxu0 %v1983
        %v2149 = vpop.f32.mrf.mxu0
        %v2150 = vadd.f32 0.0, %v2149
        %v2151 = vpop.f32.mrf.mxu0
        %v2152 = vadd.f32 0.0, %v2151
        %2153 = vmatprep.mubr.f32.mxu0 0.0
        %2154 = vmatmul.mubr.f32.gmra.mxu0 %v1986
        %v2155 = vpop.f32.mrf.mxu0
        %v2156 = vadd.f32 0.0, %v2155
        %v2157 = vpop.f32.mrf.mxu0
        %v2158 = vadd.f32 0.0, %v2157
        %2159 = vmatprep.mubr.f32.mxu0 0.0
        %2160 = vmatmul.mubr.f32.gmra.mxu0 %v1989
        %v2161 = vpop.f32.mrf.mxu0
        %v2162 = vadd.f32 0.0, %v2161
        %v2163 = vpop.f32.mrf.mxu0
        %v2164 = vadd.f32 0.0, %v2163
        %2165 = vmatprep.mubr.f32.mxu0 0.0
        %2166 = vmatmul.mubr.f32.gmra.mxu0 %v1992
        %v2167 = vpop.f32.mrf.mxu0
        %v2168 = vadd.f32 0.0, %v2167
        %v2169 = vpop.f32.mrf.mxu0
        %v2170 = vadd.f32 0.0, %v2169
        %2171 = vdwg.mxu0
        %v2172 = vadd.f32 %v1758, %v2061
        %v2173 = vadd.f32 %v1760, %v2063
        %v2174 = vadd.f32 %v1847, %v2150
        %v2175 = vadd.f32 %v1849, %v2152
        %v2176 = vadd.f32 %v1764, %v2067
        %v2177 = vadd.f32 %v1766, %v2069
        %v2178 = vadd.f32 %v1853, %v2156
        %v2179 = vadd.f32 %v1855, %v2158
        %v2180 = vadd.f32 %v1770, %v2073
        %v2181 = vadd.f32 %v1772, %v2075
        %v2182 = vadd.f32 %v1859, %v2162
        %v2183 = vadd.f32 %v1861, %v2164
        %v2184 = vadd.f32 %v1776, %v2079
        %v2185 = vadd.f32 %v1778, %v2081
        %v2186 = vadd.f32 %v1865, %v2168
        %v2187 = vadd.f32 %v1867, %v2170
        %v2188 = vld [vmem:[%s1032] sm:$0xff]
        %v2189 = vld [vmem:[%s1032 + $0x8] sm:$0xff]
        %v2190 = vld [vmem:[%s1032 + $0x10] sm:$0xff]
        %v2191 = vld [vmem:[%s1032 + $0x18] sm:$0xff]
        %v2192 = vld [vmem:[%s1032 + $0x20] sm:$0xff]
        %v2193 = vld [vmem:[%s1032 + $0x30] sm:$0xff]
        %v2194 = vld [vmem:[%s1032 + $0x38] sm:$0xff]
        %v2195 = vld [vmem:[%s1032 + $0x40] sm:$0xff]
        %v2196 = vld [vmem:[%s1032 + $0x48] sm:$0xff]
        %v2197 = vld [vmem:[%s1032 + $0x50] sm:$0xff]
        %v2198 = vld [vmem:[%s1032 + $0x60] sm:$0xff]
        %v2199 = vld [vmem:[%s1032 + $0x68] sm:$0xff]
        %v2200 = vld [vmem:[%s1032 + $0x70] sm:$0xff]
        %v2201 = vld [vmem:[%s1032 + $0x78] sm:$0xff]
        %v2202 = vld [vmem:[%s1032 + $0x80] sm:$0xff]
        %v2203 = vld [vmem:[%s1032 + $0x90] sm:$0xff]
        %v2204 = vld [vmem:[%s1032 + $0x98] sm:$0xff]
        %v2205 = vld [vmem:[%s1032 + $0xa0] sm:$0xff]
        %v2206 = vld [vmem:[%s1032 + $0xa8] sm:$0xff]
        %v2207 = vld [vmem:[%s1032 + $0xb0] sm:$0xff]
        %2228 = vrot.lane.b32.xlu0 %v2188, 65
        %v2229 = vpop.permute.xlu0 %2228
        %2230 = vrot.lane.b32.xlu0 %v2189, 65
        %v2231 = vpop.permute.xlu0 %2230
        %2232 = vrot.lane.b32.xlu0 %v2190, 65
        %v2233 = vpop.permute.xlu0 %2232
        %2234 = vrot.lane.b32.xlu0 %v2191, 65
        %v2235 = vpop.permute.xlu0 %2234
        %2236 = vrot.lane.b32.xlu0 %v2192, 65
        %v2237 = vpop.permute.xlu0 %2236
        %2238 = vrot.lane.b32.xlu0 %v2193, 65
        %v2239 = vpop.permute.xlu0 %2238
        %2240 = vrot.lane.b32.xlu0 %v2194, 65
        %v2241 = vpop.permute.xlu0 %2240
        %2242 = vrot.lane.b32.xlu0 %v2195, 65
        %v2243 = vpop.permute.xlu0 %2242
        %2244 = vrot.lane.b32.xlu0 %v2196, 65
        %v2245 = vpop.permute.xlu0 %2244
        %2246 = vrot.lane.b32.xlu0 %v2197, 65
        %v2247 = vpop.permute.xlu0 %2246
        %2248 = vrot.lane.b32.xlu0 %v2198, 65
        %v2249 = vpop.permute.xlu0 %2248
        %2250 = vrot.lane.b32.xlu0 %v2199, 65
        %v2251 = vpop.permute.xlu0 %2250
        %2252 = vrot.lane.b32.xlu0 %v2200, 65
        %v2253 = vpop.permute.xlu0 %2252
        %2254 = vrot.lane.b32.xlu0 %v2201, 65
        %v2255 = vpop.permute.xlu0 %2254
        %2256 = vrot.lane.b32.xlu0 %v2202, 65
        %v2257 = vpop.permute.xlu0 %2256
        %2258 = vrot.lane.b32.xlu0 %v2203, 65
        %v2259 = vpop.permute.xlu0 %2258
        %2260 = vrot.lane.b32.xlu0 %v2204, 65
        %v2261 = vpop.permute.xlu0 %2260
        %2262 = vrot.lane.b32.xlu0 %v2205, 65
        %v2263 = vpop.permute.xlu0 %2262
        %2264 = vrot.lane.b32.xlu0 %v2206, 65
        %v2265 = vpop.permute.xlu0 %2264
        %2266 = vrot.lane.b32.xlu0 %v2207, 65
        %v2267 = vpop.permute.xlu0 %2266
        %vm2268 = vcmask 531456
        %v2269 = vsel %vm2268, %v2229, %v2231
        %v2270 = vsel %vm2268, %v2231, %v2233
        %v2271 = vsel %vm2268, %v2233, %v2235
        %v2272 = vsel %vm2268, %v2235, %v2237
        %v2273 = vsel %vm2268, %v2239, %v2241
        %v2274 = vsel %vm2268, %v2241, %v2243
        %v2275 = vsel %vm2268, %v2243, %v2245
        %v2276 = vsel %vm2268, %v2245, %v2247
        %v2277 = vsel %vm2268, %v2249, %v2251
        %v2278 = vsel %vm2268, %v2251, %v2253
        %v2279 = vsel %vm2268, %v2253, %v2255
        %v2280 = vsel %vm2268, %v2255, %v2257
        %v2281 = vsel %vm2268, %v2259, %v2261
        %v2282 = vsel %vm2268, %v2261, %v2263
        %v2283 = vsel %vm2268, %v2263, %v2265
        %v2284 = vsel %vm2268, %v2265, %v2267
        %v2302 = vsel %vm1395, %v424, 0
        %v2305 = vsel %vm1395, %v425, 0
        %v2308 = vsel %vm1395, %v426, 0
        %v2311 = vsel %vm1395, %v427, 0
        %2313 = vmatprep.subr.mxu0 0.0
        %2314 = vmatpush1.msra.mxu0 0.0
        %2315 = vmatprep.subr.mxu0 0.0
        %2316 = vmatpush1.msra.mxu0 0.0
        %2317 = vmatprep.subr.mxu0 0.0
        %2318 = vmatpush1.msra.mxu0 0.0
        %2319 = vmatprep.subr.mxu0 0.0
        %2320 = vmatpush1.msra.mxu0 0.0
        %2321 = vmatprep.subr.mxu0 0.0
        %2322 = vmatpush1.msra.mxu0 0.0
        %2323 = vmatprep.subr.mxu0 0.0
        %2324 = vmatpush1.msra.mxu0 0.0
        %2325 = vmatprep.subr.mxu0 0.0
        %2326 = vmatpush1.msra.mxu0 0.0
        %2327 = vmatprep.subr.mxu0 0.0
        %2328 = vmatpush1.msra.mxu0 0.0
        %2329 = vmatprep.subr.mxu0 0.0
        %2330 = vmatpush1.msra.mxu0 0.0
        %2331 = vmatprep.subr.mxu0 0.0
        %2332 = vmatpush1.msra.mxu0 0.0
        %2333 = vmatprep.subr.mxu0 0.0
        %2334 = vmatpush1.msra.mxu0 0.0
        %2335 = vmatprep.subr.mxu0 0.0
        %2336 = vmatpush1.msra.mxu0 0.0
        %2337 = vmatprep.subr.mxu0 %v2282
        %2338 = vmatpush1.msra.mxu0 %v2281
        %2339 = vmatprep.subr.mxu0 %v2278
        %2340 = vmatpush1.msra.mxu0 %v2277
        %2341 = vmatprep.subr.mxu0 %v2274
        %2342 = vmatpush1.msra.mxu0 %v2273
        %2343 = vmatprep.subr.mxu0 %v2270
        %2344 = vmatpush1.msra.mxu0 %v2269
        %2345 = vmatprep.subr.mxu0 0.0
        %2346 = vmatpush2.msra.mxu0 0.0
        %2347 = vmatprep.subr.mxu0 0.0
        %2348 = vmatpush2.msra.mxu0 0.0
        %2349 = vmatprep.subr.mxu0 0.0
        %2350 = vmatpush2.msra.mxu0 0.0
        %2351 = vmatprep.subr.mxu0 0.0
        %2352 = vmatpush2.msra.mxu0 0.0
        %2353 = vmatprep.subr.mxu0 0.0
        %2354 = vmatpush2.msra.mxu0 0.0
        %2355 = vmatprep.subr.mxu0 0.0
        %2356 = vmatpush2.msra.mxu0 0.0
        %2357 = vmatprep.subr.mxu0 0.0
        %2358 = vmatpush2.msra.mxu0 0.0
        %2359 = vmatprep.subr.mxu0 0.0
        %2360 = vmatpush2.msra.mxu0 0.0
        %2361 = vmatprep.subr.mxu0 0.0
        %2362 = vmatpush2.msra.mxu0 0.0
        %2363 = vmatprep.subr.mxu0 0.0
        %2364 = vmatpush2.msra.mxu0 0.0
        %2365 = vmatprep.subr.mxu0 0.0
        %2366 = vmatpush2.msra.mxu0 0.0
        %2367 = vmatprep.subr.mxu0 0.0
        %2368 = vmatpush2.msra.mxu0 0.0
        %2369 = vmatprep.subr.mxu0 0.0
        %2370 = vmatpush2.msra.mxu0 0.0
        %2371 = vmatprep.subr.mxu0 0.0
        %2372 = vmatpush2.msra.mxu0 0.0
        %2373 = vmatprep.subr.mxu0 0.0
        %2374 = vmatpush2.msra.mxu0 0.0
        %2375 = vmatprep.subr.mxu0 0.0
        %2376 = vmatpush2.msra.mxu0 0.0
        %2377 = vmatprep.mubr.f32.mxu0 0.0
        %2378 = vmatmul.mubr.f32.gmra.mxu0 %v2302
        %v2379 = vpop.f32.mrf.mxu0
        %v2380 = vadd.f32 0.0, %v2379
        %v2381 = vpop.f32.mrf.mxu0
        %v2382 = vadd.f32 0.0, %v2381
        %2383 = vmatprep.mubr.f32.mxu0 0.0
        %2384 = vmatmul.mubr.f32.gmra.mxu0 %v2305
        %v2385 = vpop.f32.mrf.mxu0
        %v2386 = vadd.f32 0.0, %v2385
        %v2387 = vpop.f32.mrf.mxu0
        %v2388 = vadd.f32 0.0, %v2387
        %2389 = vmatprep.mubr.f32.mxu0 0.0
        %2390 = vmatmul.mubr.f32.gmra.mxu0 %v2308
        %v2391 = vpop.f32.mrf.mxu0
        %v2392 = vadd.f32 0.0, %v2391
        %v2393 = vpop.f32.mrf.mxu0
        %v2394 = vadd.f32 0.0, %v2393
        %2395 = vmatprep.mubr.f32.mxu0 0.0
        %2396 = vmatmul.mubr.f32.gmra.mxu0 %v2311
        %v2397 = vpop.f32.mrf.mxu0
        %v2398 = vadd.f32 0.0, %v2397
        %v2399 = vpop.f32.mrf.mxu0
        %v2400 = vadd.f32 0.0, %v2399
        %2401 = vdwg.mxu0
        %2402 = vmatprep.subr.mxu0 0.0
        %2403 = vmatpush1.msra.mxu0 0.0
        %2404 = vmatprep.subr.mxu0 0.0
        %2405 = vmatpush1.msra.mxu0 0.0
        %2406 = vmatprep.subr.mxu0 0.0
        %2407 = vmatpush1.msra.mxu0 0.0
        %2408 = vmatprep.subr.mxu0 0.0
        %2409 = vmatpush1.msra.mxu0 0.0
        %2410 = vmatprep.subr.mxu0 0.0
        %2411 = vmatpush1.msra.mxu0 0.0
        %2412 = vmatprep.subr.mxu0 0.0
        %2413 = vmatpush1.msra.mxu0 0.0
        %2414 = vmatprep.subr.mxu0 0.0
        %2415 = vmatpush1.msra.mxu0 0.0
        %2416 = vmatprep.subr.mxu0 0.0
        %2417 = vmatpush1.msra.mxu0 0.0
        %2418 = vmatprep.subr.mxu0 0.0
        %2419 = vmatpush1.msra.mxu0 0.0
        %2420 = vmatprep.subr.mxu0 0.0
        %2421 = vmatpush1.msra.mxu0 0.0
        %2422 = vmatprep.subr.mxu0 0.0
        %2423 = vmatpush1.msra.mxu0 0.0
        %2424 = vmatprep.subr.mxu0 0.0
        %2425 = vmatpush1.msra.mxu0 0.0
        %2426 = vmatprep.subr.mxu0 %v2284
        %2427 = vmatpush1.msra.mxu0 %v2283
        %2428 = vmatprep.subr.mxu0 %v2280
        %2429 = vmatpush1.msra.mxu0 %v2279
        %2430 = vmatprep.subr.mxu0 %v2276
        %2431 = vmatpush1.msra.mxu0 %v2275
        %2432 = vmatprep.subr.mxu0 %v2272
        %2433 = vmatpush1.msra.mxu0 %v2271
        %2434 = vmatprep.subr.mxu0 0.0
        %2435 = vmatpush2.msra.mxu0 0.0
        %2436 = vmatprep.subr.mxu0 0.0
        %2437 = vmatpush2.msra.mxu0 0.0
        %2438 = vmatprep.subr.mxu0 0.0
        %2439 = vmatpush2.msra.mxu0 0.0
        %2440 = vmatprep.subr.mxu0 0.0
        %2441 = vmatpush2.msra.mxu0 0.0
        %2442 = vmatprep.subr.mxu0 0.0
        %2443 = vmatpush2.msra.mxu0 0.0
        %2444 = vmatprep.subr.mxu0 0.0
        %2445 = vmatpush2.msra.mxu0 0.0
        %2446 = vmatprep.subr.mxu0 0.0
        %2447 = vmatpush2.msra.mxu0 0.0
        %2448 = vmatprep.subr.mxu0 0.0
        %2449 = vmatpush2.msra.mxu0 0.0
        %2450 = vmatprep.subr.mxu0 0.0
        %2451 = vmatpush2.msra.mxu0 0.0
        %2452 = vmatprep.subr.mxu0 0.0
        %2453 = vmatpush2.msra.mxu0 0.0
        %2454 = vmatprep.subr.mxu0 0.0
        %2455 = vmatpush2.msra.mxu0 0.0
        %2456 = vmatprep.subr.mxu0 0.0
        %2457 = vmatpush2.msra.mxu0 0.0
        %2458 = vmatprep.subr.mxu0 0.0
        %2459 = vmatpush2.msra.mxu0 0.0
        %2460 = vmatprep.subr.mxu0 0.0
        %2461 = vmatpush2.msra.mxu0 0.0
        %2462 = vmatprep.subr.mxu0 0.0
        %2463 = vmatpush2.msra.mxu0 0.0
        %2464 = vmatprep.subr.mxu0 0.0
        %2465 = vmatpush2.msra.mxu0 0.0
        %2466 = vmatprep.mubr.f32.mxu0 0.0
        %2467 = vmatmul.mubr.f32.gmra.mxu0 %v2302
        %v2468 = vpop.f32.mrf.mxu0
        %v2469 = vadd.f32 0.0, %v2468
        %v2470 = vpop.f32.mrf.mxu0
        %v2471 = vadd.f32 0.0, %v2470
        %2472 = vmatprep.mubr.f32.mxu0 0.0
        %2473 = vmatmul.mubr.f32.gmra.mxu0 %v2305
        %v2474 = vpop.f32.mrf.mxu0
        %v2475 = vadd.f32 0.0, %v2474
        %v2476 = vpop.f32.mrf.mxu0
        %v2477 = vadd.f32 0.0, %v2476
        %2478 = vmatprep.mubr.f32.mxu0 0.0
        %2479 = vmatmul.mubr.f32.gmra.mxu0 %v2308
        %v2480 = vpop.f32.mrf.mxu0
        %v2481 = vadd.f32 0.0, %v2480
        %v2482 = vpop.f32.mrf.mxu0
        %v2483 = vadd.f32 0.0, %v2482
        %2484 = vmatprep.mubr.f32.mxu0 0.0
        %2485 = vmatmul.mubr.f32.gmra.mxu0 %v2311
        %v2486 = vpop.f32.mrf.mxu0
        %v2487 = vadd.f32 0.0, %v2486
        %v2488 = vpop.f32.mrf.mxu0
        %v2489 = vadd.f32 0.0, %v2488
        %2490 = vdwg.mxu0
        %v2491 = vadd.f32 %v2172, %v2380
        %v2492 = vadd.f32 %v2173, %v2382
        %v2493 = vadd.f32 %v2174, %v2469
        %v2494 = vadd.f32 %v2175, %v2471
        %v2495 = vadd.f32 %v2176, %v2386
        %v2496 = vadd.f32 %v2177, %v2388
        %v2497 = vadd.f32 %v2178, %v2475
        %v2498 = vadd.f32 %v2179, %v2477
        %v2499 = vadd.f32 %v2180, %v2392
        %v2500 = vadd.f32 %v2181, %v2394
        %v2501 = vadd.f32 %v2182, %v2481
        %v2502 = vadd.f32 %v2183, %v2483
        %v2503 = vadd.f32 %v2184, %v2398
        %v2504 = vadd.f32 %v2185, %v2400
        %v2505 = vadd.f32 %v2186, %v2487
        %v2506 = vadd.f32 %v2187, %v2489
        %v2507 = vld [vmem:[%s1049] sm:$0xff]
        %v2508 = vld [vmem:[%s1049 + $0x8] sm:$0xff]
        %v2509 = vld [vmem:[%s1049 + $0x10] sm:$0xff]
        %v2510 = vld [vmem:[%s1049 + $0x18] sm:$0xff]
        %v2511 = vld [vmem:[%s1049 + $0x20] sm:$0xff]
        %v2512 = vld [vmem:[%s1049 + $0x30] sm:$0xff]
        %v2513 = vld [vmem:[%s1049 + $0x38] sm:$0xff]
        %v2514 = vld [vmem:[%s1049 + $0x40] sm:$0xff]
        %v2515 = vld [vmem:[%s1049 + $0x48] sm:$0xff]
        %v2516 = vld [vmem:[%s1049 + $0x50] sm:$0xff]
        %v2517 = vld [vmem:[%s1049 + $0x60] sm:$0xff]
        %v2518 = vld [vmem:[%s1049 + $0x68] sm:$0xff]
        %v2519 = vld [vmem:[%s1049 + $0x70] sm:$0xff]
        %v2520 = vld [vmem:[%s1049 + $0x78] sm:$0xff]
        %v2521 = vld [vmem:[%s1049 + $0x80] sm:$0xff]
        %v2522 = vld [vmem:[%s1049 + $0x90] sm:$0xff]
        %v2523 = vld [vmem:[%s1049 + $0x98] sm:$0xff]
        %v2524 = vld [vmem:[%s1049 + $0xa0] sm:$0xff]
        %v2525 = vld [vmem:[%s1049 + $0xa8] sm:$0xff]
        %v2526 = vld [vmem:[%s1049 + $0xb0] sm:$0xff]
        %2547 = vrot.lane.b32.xlu0 %v2507, 64
        %v2548 = vpop.permute.xlu0 %2547
        %2549 = vrot.lane.b32.xlu0 %v2508, 64
        %v2550 = vpop.permute.xlu0 %2549
        %2551 = vrot.lane.b32.xlu0 %v2509, 64
        %v2552 = vpop.permute.xlu0 %2551
        %2553 = vrot.lane.b32.xlu0 %v2510, 64
        %v2554 = vpop.permute.xlu0 %2553
        %2555 = vrot.lane.b32.xlu0 %v2511, 64
        %v2556 = vpop.permute.xlu0 %2555
        %2557 = vrot.lane.b32.xlu0 %v2512, 64
        %v2558 = vpop.permute.xlu0 %2557
        %2559 = vrot.lane.b32.xlu0 %v2513, 64
        %v2560 = vpop.permute.xlu0 %2559
        %2561 = vrot.lane.b32.xlu0 %v2514, 64
        %v2562 = vpop.permute.xlu0 %2561
        %2563 = vrot.lane.b32.xlu0 %v2515, 64
        %v2564 = vpop.permute.xlu0 %2563
        %2565 = vrot.lane.b32.xlu0 %v2516, 64
        %v2566 = vpop.permute.xlu0 %2565
        %2567 = vrot.lane.b32.xlu0 %v2517, 64
        %v2568 = vpop.permute.xlu0 %2567
        %2569 = vrot.lane.b32.xlu0 %v2518, 64
        %v2570 = vpop.permute.xlu0 %2569
        %2571 = vrot.lane.b32.xlu0 %v2519, 64
        %v2572 = vpop.permute.xlu0 %2571
        %2573 = vrot.lane.b32.xlu0 %v2520, 64
        %v2574 = vpop.permute.xlu0 %2573
        %2575 = vrot.lane.b32.xlu0 %v2521, 64
        %v2576 = vpop.permute.xlu0 %2575
        %2577 = vrot.lane.b32.xlu0 %v2522, 64
        %v2578 = vpop.permute.xlu0 %2577
        %2579 = vrot.lane.b32.xlu0 %v2523, 64
        %v2580 = vpop.permute.xlu0 %2579
        %2581 = vrot.lane.b32.xlu0 %v2524, 64
        %v2582 = vpop.permute.xlu0 %2581
        %2583 = vrot.lane.b32.xlu0 %v2525, 64
        %v2584 = vpop.permute.xlu0 %2583
        %2585 = vrot.lane.b32.xlu0 %v2526, 64
        %v2586 = vpop.permute.xlu0 %2585
        %vm2587 = vcmask 523264
        %v2588 = vsel %vm2587, %v2548, %v2550
        %v2589 = vsel %vm2587, %v2550, %v2552
        %v2590 = vsel %vm2587, %v2552, %v2554
        %v2591 = vsel %vm2587, %v2554, %v2556
        %v2592 = vsel %vm2587, %v2558, %v2560
        %v2593 = vsel %vm2587, %v2560, %v2562
        %v2594 = vsel %vm2587, %v2562, %v2564
        %v2595 = vsel %vm2587, %v2564, %v2566
        %v2596 = vsel %vm2587, %v2568, %v2570
        %v2597 = vsel %vm2587, %v2570, %v2572
        %v2598 = vsel %vm2587, %v2572, %v2574
        %v2599 = vsel %vm2587, %v2574, %v2576
        %v2600 = vsel %vm2587, %v2578, %v2580
        %v2601 = vsel %vm2587, %v2580, %v2582
        %v2602 = vsel %vm2587, %v2582, %v2584
        %v2603 = vsel %vm2587, %v2584, %v2586
        %v2621 = vsel %vm1395, %v428, 0
        %v2624 = vsel %vm1395, %v429, 0
        %v2627 = vsel %vm1395, %v430, 0
        %v2630 = vsel %vm1395, %v431, 0
        %2632 = vmatprep.subr.mxu0 0.0
        %2633 = vmatpush1.msra.mxu0 0.0
        %2634 = vmatprep.subr.mxu0 0.0
        %2635 = vmatpush1.msra.mxu0 0.0
        %2636 = vmatprep.subr.mxu0 0.0
        %2637 = vmatpush1.msra.mxu0 0.0
        %2638 = vmatprep.subr.mxu0 0.0
        %2639 = vmatpush1.msra.mxu0 0.0
        %2640 = vmatprep.subr.mxu0 0.0
        %2641 = vmatpush1.msra.mxu0 0.0
        %2642 = vmatprep.subr.mxu0 0.0
        %2643 = vmatpush1.msra.mxu0 0.0
        %2644 = vmatprep.subr.mxu0 0.0
        %2645 = vmatpush1.msra.mxu0 0.0
        %2646 = vmatprep.subr.mxu0 0.0
        %2647 = vmatpush1.msra.mxu0 0.0
        %2648 = vmatprep.subr.mxu0 0.0
        %2649 = vmatpush1.msra.mxu0 0.0
        %2650 = vmatprep.subr.mxu0 0.0
        %2651 = vmatpush1.msra.mxu0 0.0
        %2652 = vmatprep.subr.mxu0 0.0
        %2653 = vmatpush1.msra.mxu0 0.0
        %2654 = vmatprep.subr.mxu0 0.0
        %2655 = vmatpush1.msra.mxu0 0.0
        %2656 = vmatprep.subr.mxu0 %v2601
        %2657 = vmatpush1.msra.mxu0 %v2600
        %2658 = vmatprep.subr.mxu0 %v2597
        %2659 = vmatpush1.msra.mxu0 %v2596
        %2660 = vmatprep.subr.mxu0 %v2593
        %2661 = vmatpush1.msra.mxu0 %v2592
        %2662 = vmatprep.subr.mxu0 %v2589
        %2663 = vmatpush1.msra.mxu0 %v2588
        %2664 = vmatprep.subr.mxu0 0.0
        %2665 = vmatpush2.msra.mxu0 0.0
        %2666 = vmatprep.subr.mxu0 0.0
        %2667 = vmatpush2.msra.mxu0 0.0
        %2668 = vmatprep.subr.mxu0 0.0
        %2669 = vmatpush2.msra.mxu0 0.0
        %2670 = vmatprep.subr.mxu0 0.0
        %2671 = vmatpush2.msra.mxu0 0.0
        %2672 = vmatprep.subr.mxu0 0.0
        %2673 = vmatpush2.msra.mxu0 0.0
        %2674 = vmatprep.subr.mxu0 0.0
        %2675 = vmatpush2.msra.mxu0 0.0
        %2676 = vmatprep.subr.mxu0 0.0
        %2677 = vmatpush2.msra.mxu0 0.0
        %2678 = vmatprep.subr.mxu0 0.0
        %2679 = vmatpush2.msra.mxu0 0.0
        %2680 = vmatprep.subr.mxu0 0.0
        %2681 = vmatpush2.msra.mxu0 0.0
        %2682 = vmatprep.subr.mxu0 0.0
        %2683 = vmatpush2.msra.mxu0 0.0
        %2684 = vmatprep.subr.mxu0 0.0
        %2685 = vmatpush2.msra.mxu0 0.0
        %2686 = vmatprep.subr.mxu0 0.0
        %2687 = vmatpush2.msra.mxu0 0.0
        %2688 = vmatprep.subr.mxu0 0.0
        %2689 = vmatpush2.msra.mxu0 0.0
        %2690 = vmatprep.subr.mxu0 0.0
        %2691 = vmatpush2.msra.mxu0 0.0
        %2692 = vmatprep.subr.mxu0 0.0
        %2693 = vmatpush2.msra.mxu0 0.0
        %2694 = vmatprep.subr.mxu0 0.0
        %2695 = vmatpush2.msra.mxu0 0.0
        %2696 = vmatprep.mubr.f32.mxu0 0.0
        %2697 = vmatmul.mubr.f32.gmra.mxu0 %v2621
        %v2698 = vpop.f32.mrf.mxu0
        %v2699 = vadd.f32 0.0, %v2698
        %v2700 = vpop.f32.mrf.mxu0
        %v2701 = vadd.f32 0.0, %v2700
        %2702 = vmatprep.mubr.f32.mxu0 0.0
        %2703 = vmatmul.mubr.f32.gmra.mxu0 %v2624
        %v2704 = vpop.f32.mrf.mxu0
        %v2705 = vadd.f32 0.0, %v2704
        %v2706 = vpop.f32.mrf.mxu0
        %v2707 = vadd.f32 0.0, %v2706
        %2708 = vmatprep.mubr.f32.mxu0 0.0
        %2709 = vmatmul.mubr.f32.gmra.mxu0 %v2627
        %v2710 = vpop.f32.mrf.mxu0
        %v2711 = vadd.f32 0.0, %v2710
        %v2712 = vpop.f32.mrf.mxu0
        %v2713 = vadd.f32 0.0, %v2712
        %2714 = vmatprep.mubr.f32.mxu0 0.0
        %2715 = vmatmul.mubr.f32.gmra.mxu0 %v2630
        %v2716 = vpop.f32.mrf.mxu0
        %v2717 = vadd.f32 0.0, %v2716
        %v2718 = vpop.f32.mrf.mxu0
        %v2719 = vadd.f32 0.0, %v2718
        %2720 = vdwg.mxu0
        %2721 = vmatprep.subr.mxu0 0.0
        %2722 = vmatpush1.msra.mxu0 0.0
        %2723 = vmatprep.subr.mxu0 0.0
        %2724 = vmatpush1.msra.mxu0 0.0
        %2725 = vmatprep.subr.mxu0 0.0
        %2726 = vmatpush1.msra.mxu0 0.0
        %2727 = vmatprep.subr.mxu0 0.0
        %2728 = vmatpush1.msra.mxu0 0.0
        %2729 = vmatprep.subr.mxu0 0.0
        %2730 = vmatpush1.msra.mxu0 0.0
        %2731 = vmatprep.subr.mxu0 0.0
        %2732 = vmatpush1.msra.mxu0 0.0
        %2733 = vmatprep.subr.mxu0 0.0
        %2734 = vmatpush1.msra.mxu0 0.0
        %2735 = vmatprep.subr.mxu0 0.0
        %2736 = vmatpush1.msra.mxu0 0.0
        %2737 = vmatprep.subr.mxu0 0.0
        %2738 = vmatpush1.msra.mxu0 0.0
        %2739 = vmatprep.subr.mxu0 0.0
        %2740 = vmatpush1.msra.mxu0 0.0
        %2741 = vmatprep.subr.mxu0 0.0
        %2742 = vmatpush1.msra.mxu0 0.0
        %2743 = vmatprep.subr.mxu0 0.0
        %2744 = vmatpush1.msra.mxu0 0.0
        %2745 = vmatprep.subr.mxu0 %v2603
        %2746 = vmatpush1.msra.mxu0 %v2602
        %2747 = vmatprep.subr.mxu0 %v2599
        %2748 = vmatpush1.msra.mxu0 %v2598
        %2749 = vmatprep.subr.mxu0 %v2595
        %2750 = vmatpush1.msra.mxu0 %v2594
        %2751 = vmatprep.subr.mxu0 %v2591
        %2752 = vmatpush1.msra.mxu0 %v2590
        %2753 = vmatprep.subr.mxu0 0.0
        %2754 = vmatpush2.msra.mxu0 0.0
        %2755 = vmatprep.subr.mxu0 0.0
        %2756 = vmatpush2.msra.mxu0 0.0
        %2757 = vmatprep.subr.mxu0 0.0
        %2758 = vmatpush2.msra.mxu0 0.0
        %2759 = vmatprep.subr.mxu0 0.0
        %2760 = vmatpush2.msra.mxu0 0.0
        %2761 = vmatprep.subr.mxu0 0.0
        %2762 = vmatpush2.msra.mxu0 0.0
        %2763 = vmatprep.subr.mxu0 0.0
        %2764 = vmatpush2.msra.mxu0 0.0
        %2765 = vmatprep.subr.mxu0 0.0
        %2766 = vmatpush2.msra.mxu0 0.0
        %2767 = vmatprep.subr.mxu0 0.0
        %2768 = vmatpush2.msra.mxu0 0.0
        %2769 = vmatprep.subr.mxu0 0.0
        %2770 = vmatpush2.msra.mxu0 0.0
        %2771 = vmatprep.subr.mxu0 0.0
        %2772 = vmatpush2.msra.mxu0 0.0
        %2773 = vmatprep.subr.mxu0 0.0
        %2774 = vmatpush2.msra.mxu0 0.0
        %2775 = vmatprep.subr.mxu0 0.0
        %2776 = vmatpush2.msra.mxu0 0.0
        %2777 = vmatprep.subr.mxu0 0.0
        %2778 = vmatpush2.msra.mxu0 0.0
        %2779 = vmatprep.subr.mxu0 0.0
        %2780 = vmatpush2.msra.mxu0 0.0
        %2781 = vmatprep.subr.mxu0 0.0
        %2782 = vmatpush2.msra.mxu0 0.0
        %2783 = vmatprep.subr.mxu0 0.0
        %2784 = vmatpush2.msra.mxu0 0.0
        %2785 = vmatprep.mubr.f32.mxu0 0.0
        %2786 = vmatmul.mubr.f32.gmra.mxu0 %v2621
        %v2787 = vpop.f32.mrf.mxu0
        %v2788 = vadd.f32 0.0, %v2787
        %v2789 = vpop.f32.mrf.mxu0
        %v2790 = vadd.f32 0.0, %v2789
        %2791 = vmatprep.mubr.f32.mxu0 0.0
        %2792 = vmatmul.mubr.f32.gmra.mxu0 %v2624
        %v2793 = vpop.f32.mrf.mxu0
        %v2794 = vadd.f32 0.0, %v2793
        %v2795 = vpop.f32.mrf.mxu0
        %v2796 = vadd.f32 0.0, %v2795
        %2797 = vmatprep.mubr.f32.mxu0 0.0
        %2798 = vmatmul.mubr.f32.gmra.mxu0 %v2627
        %v2799 = vpop.f32.mrf.mxu0
        %v2800 = vadd.f32 0.0, %v2799
        %v2801 = vpop.f32.mrf.mxu0
        %v2802 = vadd.f32 0.0, %v2801
        %2803 = vmatprep.mubr.f32.mxu0 0.0
        %2804 = vmatmul.mubr.f32.gmra.mxu0 %v2630
        %v2805 = vpop.f32.mrf.mxu0
        %v2806 = vadd.f32 0.0, %v2805
        %v2807 = vpop.f32.mrf.mxu0
        %v2808 = vadd.f32 0.0, %v2807
        %2809 = vdwg.mxu0
        %v2810 = vadd.f32 %v2491, %v2699
        %v2811 = vadd.f32 %v2492, %v2701
        %v2812 = vadd.f32 %v2493, %v2788
        %v2813 = vadd.f32 %v2494, %v2790
        %v2814 = vadd.f32 %v2495, %v2705
        %v2815 = vadd.f32 %v2496, %v2707
        %v2816 = vadd.f32 %v2497, %v2794
        %v2817 = vadd.f32 %v2498, %v2796
        %v2818 = vadd.f32 %v2499, %v2711
        %v2819 = vadd.f32 %v2500, %v2713
        %v2820 = vadd.f32 %v2501, %v2800
        %v2821 = vadd.f32 %v2502, %v2802
        %v2822 = vadd.f32 %v2503, %v2717
        %v2823 = vadd.f32 %v2504, %v2719
        %v2824 = vadd.f32 %v2505, %v2806
        %v2825 = vadd.f32 %v2506, %v2808
        %v2826 = vld [vmem:[%s1098] sm:$0xff]
        %v2827 = vld [vmem:[%s1098 + $0x8] sm:$0xff]
        %v2828 = vld [vmem:[%s1098 + $0x10] sm:$0xff]
        %v2829 = vld [vmem:[%s1098 + $0x18] sm:$0xff]
        %v2830 = vld [vmem:[%s1098 + $0x20] sm:$0xff]
        %v2831 = vld [vmem:[%s1098 + $0x30] sm:$0xff]
        %v2832 = vld [vmem:[%s1098 + $0x38] sm:$0xff]
        %v2833 = vld [vmem:[%s1098 + $0x40] sm:$0xff]
        %v2834 = vld [vmem:[%s1098 + $0x48] sm:$0xff]
        %v2835 = vld [vmem:[%s1098 + $0x50] sm:$0xff]
        %v2836 = vld [vmem:[%s1098 + $0x60] sm:$0xff]
        %v2837 = vld [vmem:[%s1098 + $0x68] sm:$0xff]
        %v2838 = vld [vmem:[%s1098 + $0x70] sm:$0xff]
        %v2839 = vld [vmem:[%s1098 + $0x78] sm:$0xff]
        %v2840 = vld [vmem:[%s1098 + $0x80] sm:$0xff]
        %v2841 = vld [vmem:[%s1098 + $0x90] sm:$0xff]
        %v2842 = vld [vmem:[%s1098 + $0x98] sm:$0xff]
        %v2843 = vld [vmem:[%s1098 + $0xa0] sm:$0xff]
        %v2844 = vld [vmem:[%s1098 + $0xa8] sm:$0xff]
        %v2845 = vld [vmem:[%s1098 + $0xb0] sm:$0xff]
        %2866 = vrot.lane.b32.xlu0 %v2826, 63
        %v2867 = vpop.permute.xlu0 %2866
        %2868 = vrot.lane.b32.xlu0 %v2827, 63
        %v2869 = vpop.permute.xlu0 %2868
        %2870 = vrot.lane.b32.xlu0 %v2828, 63
        %v2871 = vpop.permute.xlu0 %2870
        %2872 = vrot.lane.b32.xlu0 %v2829, 63
        %v2873 = vpop.permute.xlu0 %2872
        %2874 = vrot.lane.b32.xlu0 %v2830, 63
        %v2875 = vpop.permute.xlu0 %2874
        %2876 = vrot.lane.b32.xlu0 %v2831, 63
        %v2877 = vpop.permute.xlu0 %2876
        %2878 = vrot.lane.b32.xlu0 %v2832, 63
        %v2879 = vpop.permute.xlu0 %2878
        %2880 = vrot.lane.b32.xlu0 %v2833, 63
        %v2881 = vpop.permute.xlu0 %2880
        %2882 = vrot.lane.b32.xlu0 %v2834, 63
        %v2883 = vpop.permute.xlu0 %2882
        %2884 = vrot.lane.b32.xlu0 %v2835, 63
        %v2885 = vpop.permute.xlu0 %2884
        %2886 = vrot.lane.b32.xlu0 %v2836, 63
        %v2887 = vpop.permute.xlu0 %2886
        %2888 = vrot.lane.b32.xlu0 %v2837, 63
        %v2889 = vpop.permute.xlu0 %2888
        %2890 = vrot.lane.b32.xlu0 %v2838, 63
        %v2891 = vpop.permute.xlu0 %2890
        %2892 = vrot.lane.b32.xlu0 %v2839, 63
        %v2893 = vpop.permute.xlu0 %2892
        %2894 = vrot.lane.b32.xlu0 %v2840, 63
        %v2895 = vpop.permute.xlu0 %2894
        %2896 = vrot.lane.b32.xlu0 %v2841, 63
        %v2897 = vpop.permute.xlu0 %2896
        %2898 = vrot.lane.b32.xlu0 %v2842, 63
        %v2899 = vpop.permute.xlu0 %2898
        %2900 = vrot.lane.b32.xlu0 %v2843, 63
        %v2901 = vpop.permute.xlu0 %2900
        %2902 = vrot.lane.b32.xlu0 %v2844, 63
        %v2903 = vpop.permute.xlu0 %2902
        %2904 = vrot.lane.b32.xlu0 %v2845, 63
        %v2905 = vpop.permute.xlu0 %2904
        %vm2906 = vcmask 515072
        %v2907 = vsel %vm2906, %v2867, %v2869
        %v2908 = vsel %vm2906, %v2869, %v2871
        %v2909 = vsel %vm2906, %v2871, %v2873
        %v2910 = vsel %vm2906, %v2873, %v2875
        %v2911 = vsel %vm2906, %v2877, %v2879
        %v2912 = vsel %vm2906, %v2879, %v2881
        %v2913 = vsel %vm2906, %v2881, %v2883
        %v2914 = vsel %vm2906, %v2883, %v2885
        %v2915 = vsel %vm2906, %v2887, %v2889
        %v2916 = vsel %vm2906, %v2889, %v2891
        %v2917 = vsel %vm2906, %v2891, %v2893
        %v2918 = vsel %vm2906, %v2893, %v2895
        %v2919 = vsel %vm2906, %v2897, %v2899
        %v2920 = vsel %vm2906, %v2899, %v2901
        %v2921 = vsel %vm2906, %v2901, %v2903
        %v2922 = vsel %vm2906, %v2903, %v2905
        %v2940 = vsel %vm1395, %v432, 0
        %v2943 = vsel %vm1395, %v433, 0
        %v2946 = vsel %vm1395, %v434, 0
        %v2949 = vsel %vm1395, %v435, 0
        %2951 = vmatprep.subr.mxu0 0.0
        %2952 = vmatpush1.msra.mxu0 0.0
        %2953 = vmatprep.subr.mxu0 0.0
        %2954 = vmatpush1.msra.mxu0 0.0
        %2955 = vmatprep.subr.mxu0 0.0
        %2956 = vmatpush1.msra.mxu0 0.0
        %2957 = vmatprep.subr.mxu0 0.0
        %2958 = vmatpush1.msra.mxu0 0.0
        %2959 = vmatprep.subr.mxu0 0.0
        %2960 = vmatpush1.msra.mxu0 0.0
        %2961 = vmatprep.subr.mxu0 0.0
        %2962 = vmatpush1.msra.mxu0 0.0
        %2963 = vmatprep.subr.mxu0 0.0
        %2964 = vmatpush1.msra.mxu0 0.0
        %2965 = vmatprep.subr.mxu0 0.0
        %2966 = vmatpush1.msra.mxu0 0.0
        %2967 = vmatprep.subr.mxu0 0.0
        %2968 = vmatpush1.msra.mxu0 0.0
        %2969 = vmatprep.subr.mxu0 0.0
        %2970 = vmatpush1.msra.mxu0 0.0
        %2971 = vmatprep.subr.mxu0 0.0
        %2972 = vmatpush1.msra.mxu0 0.0
        %2973 = vmatprep.subr.mxu0 0.0
        %2974 = vmatpush1.msra.mxu0 0.0
        %2975 = vmatprep.subr.mxu0 %v2920
        %2976 = vmatpush1.msra.mxu0 %v2919
        %2977 = vmatprep.subr.mxu0 %v2916
        %2978 = vmatpush1.msra.mxu0 %v2915
        %2979 = vmatprep.subr.mxu0 %v2912
        %2980 = vmatpush1.msra.mxu0 %v2911
        %2981 = vmatprep.subr.mxu0 %v2908
        %2982 = vmatpush1.msra.mxu0 %v2907
        %2983 = vmatprep.subr.mxu0 0.0
        %2984 = vmatpush2.msra.mxu0 0.0
        %2985 = vmatprep.subr.mxu0 0.0
        %2986 = vmatpush2.msra.mxu0 0.0
        %2987 = vmatprep.subr.mxu0 0.0
        %2988 = vmatpush2.msra.mxu0 0.0
        %2989 = vmatprep.subr.mxu0 0.0
        %2990 = vmatpush2.msra.mxu0 0.0
        %2991 = vmatprep.subr.mxu0 0.0
        %2992 = vmatpush2.msra.mxu0 0.0
        %2993 = vmatprep.subr.mxu0 0.0
        %2994 = vmatpush2.msra.mxu0 0.0
        %2995 = vmatprep.subr.mxu0 0.0
        %2996 = vmatpush2.msra.mxu0 0.0
        %2997 = vmatprep.subr.mxu0 0.0
        %2998 = vmatpush2.msra.mxu0 0.0
        %2999 = vmatprep.subr.mxu0 0.0
        %3000 = vmatpush2.msra.mxu0 0.0
        %3001 = vmatprep.subr.mxu0 0.0
        %3002 = vmatpush2.msra.mxu0 0.0
        %3003 = vmatprep.subr.mxu0 0.0
        %3004 = vmatpush2.msra.mxu0 0.0
        %3005 = vmatprep.subr.mxu0 0.0
        %3006 = vmatpush2.msra.mxu0 0.0
        %3007 = vmatprep.subr.mxu0 0.0
        %3008 = vmatpush2.msra.mxu0 0.0
        %3009 = vmatprep.subr.mxu0 0.0
        %3010 = vmatpush2.msra.mxu0 0.0
        %3011 = vmatprep.subr.mxu0 0.0
        %3012 = vmatpush2.msra.mxu0 0.0
        %3013 = vmatprep.subr.mxu0 0.0
        %3014 = vmatpush2.msra.mxu0 0.0
        %3015 = vmatprep.mubr.f32.mxu0 0.0
        %3016 = vmatmul.mubr.f32.gmra.mxu0 %v2940
        %v3017 = vpop.f32.mrf.mxu0
        %v3018 = vadd.f32 0.0, %v3017
        %v3019 = vpop.f32.mrf.mxu0
        %v3020 = vadd.f32 0.0, %v3019
        %3021 = vmatprep.mubr.f32.mxu0 0.0
        %3022 = vmatmul.mubr.f32.gmra.mxu0 %v2943
        %v3023 = vpop.f32.mrf.mxu0
        %v3024 = vadd.f32 0.0, %v3023
        %v3025 = vpop.f32.mrf.mxu0
        %v3026 = vadd.f32 0.0, %v3025
        %3027 = vmatprep.mubr.f32.mxu0 0.0
        %3028 = vmatmul.mubr.f32.gmra.mxu0 %v2946
        %v3029 = vpop.f32.mrf.mxu0
        %v3030 = vadd.f32 0.0, %v3029
        %v3031 = vpop.f32.mrf.mxu0
        %v3032 = vadd.f32 0.0, %v3031
        %3033 = vmatprep.mubr.f32.mxu0 0.0
        %3034 = vmatmul.mubr.f32.gmra.mxu0 %v2949
        %v3035 = vpop.f32.mrf.mxu0
        %v3036 = vadd.f32 0.0, %v3035
        %v3037 = vpop.f32.mrf.mxu0
        %v3038 = vadd.f32 0.0, %v3037
        %3039 = vdwg.mxu0
        %3040 = vmatprep.subr.mxu0 0.0
        %3041 = vmatpush1.msra.mxu0 0.0
        %3042 = vmatprep.subr.mxu0 0.0
        %3043 = vmatpush1.msra.mxu0 0.0
        %3044 = vmatprep.subr.mxu0 0.0
        %3045 = vmatpush1.msra.mxu0 0.0
        %3046 = vmatprep.subr.mxu0 0.0
        %3047 = vmatpush1.msra.mxu0 0.0
        %3048 = vmatprep.subr.mxu0 0.0
        %3049 = vmatpush1.msra.mxu0 0.0
        %3050 = vmatprep.subr.mxu0 0.0
        %3051 = vmatpush1.msra.mxu0 0.0
        %3052 = vmatprep.subr.mxu0 0.0
        %3053 = vmatpush1.msra.mxu0 0.0
        %3054 = vmatprep.subr.mxu0 0.0
        %3055 = vmatpush1.msra.mxu0 0.0
        %3056 = vmatprep.subr.mxu0 0.0
        %3057 = vmatpush1.msra.mxu0 0.0
        %3058 = vmatprep.subr.mxu0 0.0
        %3059 = vmatpush1.msra.mxu0 0.0
        %3060 = vmatprep.subr.mxu0 0.0
        %3061 = vmatpush1.msra.mxu0 0.0
        %3062 = vmatprep.subr.mxu0 0.0
        %3063 = vmatpush1.msra.mxu0 0.0
        %3064 = vmatprep.subr.mxu0 %v2922
        %3065 = vmatpush1.msra.mxu0 %v2921
        %3066 = vmatprep.subr.mxu0 %v2918
        %3067 = vmatpush1.msra.mxu0 %v2917
        %3068 = vmatprep.subr.mxu0 %v2914
        %3069 = vmatpush1.msra.mxu0 %v2913
        %3070 = vmatprep.subr.mxu0 %v2910
        %3071 = vmatpush1.msra.mxu0 %v2909
        %3072 = vmatprep.subr.mxu0 0.0
        %3073 = vmatpush2.msra.mxu0 0.0
        %3074 = vmatprep.subr.mxu0 0.0
        %3075 = vmatpush2.msra.mxu0 0.0
        %3076 = vmatprep.subr.mxu0 0.0
        %3077 = vmatpush2.msra.mxu0 0.0
        %3078 = vmatprep.subr.mxu0 0.0
        %3079 = vmatpush2.msra.mxu0 0.0
        %3080 = vmatprep.subr.mxu0 0.0
        %3081 = vmatpush2.msra.mxu0 0.0
        %3082 = vmatprep.subr.mxu0 0.0
        %3083 = vmatpush2.msra.mxu0 0.0
        %3084 = vmatprep.subr.mxu0 0.0
        %3085 = vmatpush2.msra.mxu0 0.0
        %3086 = vmatprep.subr.mxu0 0.0
        %3087 = vmatpush2.msra.mxu0 0.0
        %3088 = vmatprep.subr.mxu0 0.0
        %3089 = vmatpush2.msra.mxu0 0.0
        %3090 = vmatprep.subr.mxu0 0.0
        %3091 = vmatpush2.msra.mxu0 0.0
        %3092 = vmatprep.subr.mxu0 0.0
        %3093 = vmatpush2.msra.mxu0 0.0
        %3094 = vmatprep.subr.mxu0 0.0
        %3095 = vmatpush2.msra.mxu0 0.0
        %3096 = vmatprep.subr.mxu0 0.0
        %3097 = vmatpush2.msra.mxu0 0.0
        %3098 = vmatprep.subr.mxu0 0.0
        %3099 = vmatpush2.msra.mxu0 0.0
        %3100 = vmatprep.subr.mxu0 0.0
        %3101 = vmatpush2.msra.mxu0 0.0
        %3102 = vmatprep.subr.mxu0 0.0
        %3103 = vmatpush2.msra.mxu0 0.0
        %3104 = vmatprep.mubr.f32.mxu0 0.0
        %3105 = vmatmul.mubr.f32.gmra.mxu0 %v2940
        %v3106 = vpop.f32.mrf.mxu0
        %v3107 = vadd.f32 0.0, %v3106
        %v3108 = vpop.f32.mrf.mxu0
        %v3109 = vadd.f32 0.0, %v3108
        %3110 = vmatprep.mubr.f32.mxu0 0.0
        %3111 = vmatmul.mubr.f32.gmra.mxu0 %v2943
        %v3112 = vpop.f32.mrf.mxu0
        %v3113 = vadd.f32 0.0, %v3112
        %v3114 = vpop.f32.mrf.mxu0
        %v3115 = vadd.f32 0.0, %v3114
        %3116 = vmatprep.mubr.f32.mxu0 0.0
        %3117 = vmatmul.mubr.f32.gmra.mxu0 %v2946
        %v3118 = vpop.f32.mrf.mxu0
        %v3119 = vadd.f32 0.0, %v3118
        %v3120 = vpop.f32.mrf.mxu0
        %v3121 = vadd.f32 0.0, %v3120
        %3122 = vmatprep.mubr.f32.mxu0 0.0
        %3123 = vmatmul.mubr.f32.gmra.mxu0 %v2949
        %v3124 = vpop.f32.mrf.mxu0
        %v3125 = vadd.f32 0.0, %v3124
        %v3126 = vpop.f32.mrf.mxu0
        %v3127 = vadd.f32 0.0, %v3126
        %3128 = vdwg.mxu0
        %v3129 = vadd.f32 %v2810, %v3018
        %v3130 = vadd.f32 %v2811, %v3020
        %v3131 = vadd.f32 %v2812, %v3107
        %v3132 = vadd.f32 %v2813, %v3109
        %v3133 = vadd.f32 %v2814, %v3024
        %v3134 = vadd.f32 %v2815, %v3026
        %v3135 = vadd.f32 %v2816, %v3113
        %v3136 = vadd.f32 %v2817, %v3115
        %v3137 = vadd.f32 %v2818, %v3030
        %v3138 = vadd.f32 %v2819, %v3032
        %v3139 = vadd.f32 %v2820, %v3119
        %v3140 = vadd.f32 %v2821, %v3121
        %v3141 = vadd.f32 %v2822, %v3036
        %v3142 = vadd.f32 %v2823, %v3038
        %v3143 = vadd.f32 %v2824, %v3125
        %v3144 = vadd.f32 %v2825, %v3127
        %v3145 = vld [vmem:[%s1147] sm:$0xff]
        %v3146 = vld [vmem:[%s1147 + $0x8] sm:$0xff]
        %v3147 = vld [vmem:[%s1147 + $0x10] sm:$0xff]
        %v3148 = vld [vmem:[%s1147 + $0x18] sm:$0xff]
        %v3149 = vld [vmem:[%s1147 + $0x20] sm:$0xff]
        %v3150 = vld [vmem:[%s1147 + $0x30] sm:$0xff]
        %v3151 = vld [vmem:[%s1147 + $0x38] sm:$0xff]
        %v3152 = vld [vmem:[%s1147 + $0x40] sm:$0xff]
        %v3153 = vld [vmem:[%s1147 + $0x48] sm:$0xff]
        %v3154 = vld [vmem:[%s1147 + $0x50] sm:$0xff]
        %v3155 = vld [vmem:[%s1147 + $0x60] sm:$0xff]
        %v3156 = vld [vmem:[%s1147 + $0x68] sm:$0xff]
        %v3157 = vld [vmem:[%s1147 + $0x70] sm:$0xff]
        %v3158 = vld [vmem:[%s1147 + $0x78] sm:$0xff]
        %v3159 = vld [vmem:[%s1147 + $0x80] sm:$0xff]
        %v3160 = vld [vmem:[%s1147 + $0x90] sm:$0xff]
        %v3161 = vld [vmem:[%s1147 + $0x98] sm:$0xff]
        %v3162 = vld [vmem:[%s1147 + $0xa0] sm:$0xff]
        %v3163 = vld [vmem:[%s1147 + $0xa8] sm:$0xff]
        %v3164 = vld [vmem:[%s1147 + $0xb0] sm:$0xff]
        %3185 = vrot.lane.b32.xlu0 %v3145, 57
        %v3186 = vpop.permute.xlu0 %3185
        %3187 = vrot.lane.b32.xlu0 %v3146, 57
        %v3188 = vpop.permute.xlu0 %3187
        %3189 = vrot.lane.b32.xlu0 %v3147, 57
        %v3190 = vpop.permute.xlu0 %3189
        %3191 = vrot.lane.b32.xlu0 %v3148, 57
        %v3192 = vpop.permute.xlu0 %3191
        %3193 = vrot.lane.b32.xlu0 %v3149, 57
        %v3194 = vpop.permute.xlu0 %3193
        %3195 = vrot.lane.b32.xlu0 %v3150, 57
        %v3196 = vpop.permute.xlu0 %3195
        %3197 = vrot.lane.b32.xlu0 %v3151, 57
        %v3198 = vpop.permute.xlu0 %3197
        %3199 = vrot.lane.b32.xlu0 %v3152, 57
        %v3200 = vpop.permute.xlu0 %3199
        %3201 = vrot.lane.b32.xlu0 %v3153, 57
        %v3202 = vpop.permute.xlu0 %3201
        %3203 = vrot.lane.b32.xlu0 %v3154, 57
        %v3204 = vpop.permute.xlu0 %3203
        %3205 = vrot.lane.b32.xlu0 %v3155, 57
        %v3206 = vpop.permute.xlu0 %3205
        %3207 = vrot.lane.b32.xlu0 %v3156, 57
        %v3208 = vpop.permute.xlu0 %3207
        %3209 = vrot.lane.b32.xlu0 %v3157, 57
        %v3210 = vpop.permute.xlu0 %3209
        %3211 = vrot.lane.b32.xlu0 %v3158, 57
        %v3212 = vpop.permute.xlu0 %3211
        %3213 = vrot.lane.b32.xlu0 %v3159, 57
        %v3214 = vpop.permute.xlu0 %3213
        %3215 = vrot.lane.b32.xlu0 %v3160, 57
        %v3216 = vpop.permute.xlu0 %3215
        %3217 = vrot.lane.b32.xlu0 %v3161, 57
        %v3218 = vpop.permute.xlu0 %3217
        %3219 = vrot.lane.b32.xlu0 %v3162, 57
        %v3220 = vpop.permute.xlu0 %3219
        %3221 = vrot.lane.b32.xlu0 %v3163, 57
        %v3222 = vpop.permute.xlu0 %3221
        %3223 = vrot.lane.b32.xlu0 %v3164, 57
        %v3224 = vpop.permute.xlu0 %3223
        %vm3225 = vcmask 465920
        %v3226 = vsel %vm3225, %v3186, %v3188
        %v3227 = vsel %vm3225, %v3188, %v3190
        %v3228 = vsel %vm3225, %v3190, %v3192
        %v3229 = vsel %vm3225, %v3192, %v3194
        %v3230 = vsel %vm3225, %v3196, %v3198
        %v3231 = vsel %vm3225, %v3198, %v3200
        %v3232 = vsel %vm3225, %v3200, %v3202
        %v3233 = vsel %vm3225, %v3202, %v3204
        %v3234 = vsel %vm3225, %v3206, %v3208
        %v3235 = vsel %vm3225, %v3208, %v3210
        %v3236 = vsel %vm3225, %v3210, %v3212
        %v3237 = vsel %vm3225, %v3212, %v3214
        %v3238 = vsel %vm3225, %v3216, %v3218
        %v3239 = vsel %vm3225, %v3218, %v3220
        %v3240 = vsel %vm3225, %v3220, %v3222
        %v3241 = vsel %vm3225, %v3222, %v3224
        %v3259 = vsel %vm1395, %v436, 0
        %v3262 = vsel %vm1395, %v437, 0
        %v3265 = vsel %vm1395, %v438, 0
        %v3268 = vsel %vm1395, %v439, 0
        %3270 = vmatprep.subr.mxu0 0.0
        %3271 = vmatpush1.msra.mxu0 0.0
        %3272 = vmatprep.subr.mxu0 0.0
        %3273 = vmatpush1.msra.mxu0 0.0
        %3274 = vmatprep.subr.mxu0 0.0
        %3275 = vmatpush1.msra.mxu0 0.0
        %3276 = vmatprep.subr.mxu0 0.0
        %3277 = vmatpush1.msra.mxu0 0.0
        %3278 = vmatprep.subr.mxu0 0.0
        %3279 = vmatpush1.msra.mxu0 0.0
        %3280 = vmatprep.subr.mxu0 0.0
        %3281 = vmatpush1.msra.mxu0 0.0
        %3282 = vmatprep.subr.mxu0 0.0
        %3283 = vmatpush1.msra.mxu0 0.0
        %3284 = vmatprep.subr.mxu0 0.0
        %3285 = vmatpush1.msra.mxu0 0.0
        %3286 = vmatprep.subr.mxu0 0.0
        %3287 = vmatpush1.msra.mxu0 0.0
        %3288 = vmatprep.subr.mxu0 0.0
        %3289 = vmatpush1.msra.mxu0 0.0
        %3290 = vmatprep.subr.mxu0 0.0
        %3291 = vmatpush1.msra.mxu0 0.0
        %3292 = vmatprep.subr.mxu0 0.0
        %3293 = vmatpush1.msra.mxu0 0.0
        %3294 = vmatprep.subr.mxu0 %v3239
        %3295 = vmatpush1.msra.mxu0 %v3238
        %3296 = vmatprep.subr.mxu0 %v3235
        %3297 = vmatpush1.msra.mxu0 %v3234
        %3298 = vmatprep.subr.mxu0 %v3231
        %3299 = vmatpush1.msra.mxu0 %v3230
        %3300 = vmatprep.subr.mxu0 %v3227
        %3301 = vmatpush1.msra.mxu0 %v3226
        %3302 = vmatprep.subr.mxu0 0.0
        %3303 = vmatpush2.msra.mxu0 0.0
        %3304 = vmatprep.subr.mxu0 0.0
        %3305 = vmatpush2.msra.mxu0 0.0
        %3306 = vmatprep.subr.mxu0 0.0
        %3307 = vmatpush2.msra.mxu0 0.0
        %3308 = vmatprep.subr.mxu0 0.0
        %3309 = vmatpush2.msra.mxu0 0.0
        %3310 = vmatprep.subr.mxu0 0.0
        %3311 = vmatpush2.msra.mxu0 0.0
        %3312 = vmatprep.subr.mxu0 0.0
        %3313 = vmatpush2.msra.mxu0 0.0
        %3314 = vmatprep.subr.mxu0 0.0
        %3315 = vmatpush2.msra.mxu0 0.0
        %3316 = vmatprep.subr.mxu0 0.0
        %3317 = vmatpush2.msra.mxu0 0.0
        %3318 = vmatprep.subr.mxu0 0.0
        %3319 = vmatpush2.msra.mxu0 0.0
        %3320 = vmatprep.subr.mxu0 0.0
        %3321 = vmatpush2.msra.mxu0 0.0
        %3322 = vmatprep.subr.mxu0 0.0
        %3323 = vmatpush2.msra.mxu0 0.0
        %3324 = vmatprep.subr.mxu0 0.0
        %3325 = vmatpush2.msra.mxu0 0.0
        %3326 = vmatprep.subr.mxu0 0.0
        %3327 = vmatpush2.msra.mxu0 0.0
        %3328 = vmatprep.subr.mxu0 0.0
        %3329 = vmatpush2.msra.mxu0 0.0
        %3330 = vmatprep.subr.mxu0 0.0
        %3331 = vmatpush2.msra.mxu0 0.0
        %3332 = vmatprep.subr.mxu0 0.0
        %3333 = vmatpush2.msra.mxu0 0.0
        %3334 = vmatprep.mubr.f32.mxu0 0.0
        %3335 = vmatmul.mubr.f32.gmra.mxu0 %v3259
        %v3336 = vpop.f32.mrf.mxu0
        %v3337 = vadd.f32 0.0, %v3336
        %v3338 = vpop.f32.mrf.mxu0
        %v3339 = vadd.f32 0.0, %v3338
        %3340 = vmatprep.mubr.f32.mxu0 0.0
        %3341 = vmatmul.mubr.f32.gmra.mxu0 %v3262
        %v3342 = vpop.f32.mrf.mxu0
        %v3343 = vadd.f32 0.0, %v3342
        %v3344 = vpop.f32.mrf.mxu0
        %v3345 = vadd.f32 0.0, %v3344
        %3346 = vmatprep.mubr.f32.mxu0 0.0
        %3347 = vmatmul.mubr.f32.gmra.mxu0 %v3265
        %v3348 = vpop.f32.mrf.mxu0
        %v3349 = vadd.f32 0.0, %v3348
        %v3350 = vpop.f32.mrf.mxu0
        %v3351 = vadd.f32 0.0, %v3350
        %3352 = vmatprep.mubr.f32.mxu0 0.0
        %3353 = vmatmul.mubr.f32.gmra.mxu0 %v3268
        %v3354 = vpop.f32.mrf.mxu0
        %v3355 = vadd.f32 0.0, %v3354
        %v3356 = vpop.f32.mrf.mxu0
        %v3357 = vadd.f32 0.0, %v3356
        %3358 = vdwg.mxu0
        %3359 = vmatprep.subr.mxu0 0.0
        %3360 = vmatpush1.msra.mxu0 0.0
        %3361 = vmatprep.subr.mxu0 0.0
        %3362 = vmatpush1.msra.mxu0 0.0
        %3363 = vmatprep.subr.mxu0 0.0
        %3364 = vmatpush1.msra.mxu0 0.0
        %3365 = vmatprep.subr.mxu0 0.0
        %3366 = vmatpush1.msra.mxu0 0.0
        %3367 = vmatprep.subr.mxu0 0.0
        %3368 = vmatpush1.msra.mxu0 0.0
        %3369 = vmatprep.subr.mxu0 0.0
        %3370 = vmatpush1.msra.mxu0 0.0
        %3371 = vmatprep.subr.mxu0 0.0
        %3372 = vmatpush1.msra.mxu0 0.0
        %3373 = vmatprep.subr.mxu0 0.0
        %3374 = vmatpush1.msra.mxu0 0.0
        %3375 = vmatprep.subr.mxu0 0.0
        %3376 = vmatpush1.msra.mxu0 0.0
        %3377 = vmatprep.subr.mxu0 0.0
        %3378 = vmatpush1.msra.mxu0 0.0
        %3379 = vmatprep.subr.mxu0 0.0
        %3380 = vmatpush1.msra.mxu0 0.0
        %3381 = vmatprep.subr.mxu0 0.0
        %3382 = vmatpush1.msra.mxu0 0.0
        %3383 = vmatprep.subr.mxu0 %v3241
        %3384 = vmatpush1.msra.mxu0 %v3240
        %3385 = vmatprep.subr.mxu0 %v3237
        %3386 = vmatpush1.msra.mxu0 %v3236
        %3387 = vmatprep.subr.mxu0 %v3233
        %3388 = vmatpush1.msra.mxu0 %v3232
        %3389 = vmatprep.subr.mxu0 %v3229
        %3390 = vmatpush1.msra.mxu0 %v3228
        %3391 = vmatprep.subr.mxu0 0.0
        %3392 = vmatpush2.msra.mxu0 0.0
        %3393 = vmatprep.subr.mxu0 0.0
        %3394 = vmatpush2.msra.mxu0 0.0
        %3395 = vmatprep.subr.mxu0 0.0
        %3396 = vmatpush2.msra.mxu0 0.0
        %3397 = vmatprep.subr.mxu0 0.0
        %3398 = vmatpush2.msra.mxu0 0.0
        %3399 = vmatprep.subr.mxu0 0.0
        %3400 = vmatpush2.msra.mxu0 0.0
        %3401 = vmatprep.subr.mxu0 0.0
        %3402 = vmatpush2.msra.mxu0 0.0
        %3403 = vmatprep.subr.mxu0 0.0
        %3404 = vmatpush2.msra.mxu0 0.0
        %3405 = vmatprep.subr.mxu0 0.0
        %3406 = vmatpush2.msra.mxu0 0.0
        %3407 = vmatprep.subr.mxu0 0.0
        %3408 = vmatpush2.msra.mxu0 0.0
        %3409 = vmatprep.subr.mxu0 0.0
        %3410 = vmatpush2.msra.mxu0 0.0
        %3411 = vmatprep.subr.mxu0 0.0
        %3412 = vmatpush2.msra.mxu0 0.0
        %3413 = vmatprep.subr.mxu0 0.0
        %3414 = vmatpush2.msra.mxu0 0.0
        %3415 = vmatprep.subr.mxu0 0.0
        %3416 = vmatpush2.msra.mxu0 0.0
        %3417 = vmatprep.subr.mxu0 0.0
        %3418 = vmatpush2.msra.mxu0 0.0
        %3419 = vmatprep.subr.mxu0 0.0
        %3420 = vmatpush2.msra.mxu0 0.0
        %3421 = vmatprep.subr.mxu0 0.0
        %3422 = vmatpush2.msra.mxu0 0.0
        %3423 = vmatprep.mubr.f32.mxu0 0.0
        %3424 = vmatmul.mubr.f32.gmra.mxu0 %v3259
        %v3425 = vpop.f32.mrf.mxu0
        %v3426 = vadd.f32 0.0, %v3425
        %v3427 = vpop.f32.mrf.mxu0
        %v3428 = vadd.f32 0.0, %v3427
        %3429 = vmatprep.mubr.f32.mxu0 0.0
        %3430 = vmatmul.mubr.f32.gmra.mxu0 %v3262
        %v3431 = vpop.f32.mrf.mxu0
        %v3432 = vadd.f32 0.0, %v3431
        %v3433 = vpop.f32.mrf.mxu0
        %v3434 = vadd.f32 0.0, %v3433
        %3435 = vmatprep.mubr.f32.mxu0 0.0
        %3436 = vmatmul.mubr.f32.gmra.mxu0 %v3265
        %v3437 = vpop.f32.mrf.mxu0
        %v3438 = vadd.f32 0.0, %v3437
        %v3439 = vpop.f32.mrf.mxu0
        %v3440 = vadd.f32 0.0, %v3439
        %3441 = vmatprep.mubr.f32.mxu0 0.0
        %3442 = vmatmul.mubr.f32.gmra.mxu0 %v3268
        %v3443 = vpop.f32.mrf.mxu0
        %v3444 = vadd.f32 0.0, %v3443
        %v3445 = vpop.f32.mrf.mxu0
        %v3446 = vadd.f32 0.0, %v3445
        %3447 = vdwg.mxu0
        %v3448 = vadd.f32 %v3129, %v3337
        %v3449 = vadd.f32 %v3130, %v3339
        %v3450 = vadd.f32 %v3131, %v3426
        %v3451 = vadd.f32 %v3132, %v3428
        %v3452 = vadd.f32 %v3133, %v3343
        %v3453 = vadd.f32 %v3134, %v3345
        %v3454 = vadd.f32 %v3135, %v3432
        %v3455 = vadd.f32 %v3136, %v3434
        %v3456 = vadd.f32 %v3137, %v3349
        %v3457 = vadd.f32 %v3138, %v3351
        %v3458 = vadd.f32 %v3139, %v3438
        %v3459 = vadd.f32 %v3140, %v3440
        %v3460 = vadd.f32 %v3141, %v3355
        %v3461 = vadd.f32 %v3142, %v3357
        %v3462 = vadd.f32 %v3143, %v3444
        %v3463 = vadd.f32 %v3144, %v3446
        %v3464 = vld [vmem:[%s1196] sm:$0xff]
        %v3465 = vld [vmem:[%s1196 + $0x8] sm:$0xff]
        %v3466 = vld [vmem:[%s1196 + $0x10] sm:$0xff]
        %v3467 = vld [vmem:[%s1196 + $0x18] sm:$0xff]
        %v3468 = vld [vmem:[%s1196 + $0x20] sm:$0xff]
        %v3469 = vld [vmem:[%s1196 + $0x30] sm:$0xff]
        %v3470 = vld [vmem:[%s1196 + $0x38] sm:$0xff]
        %v3471 = vld [vmem:[%s1196 + $0x40] sm:$0xff]
        %v3472 = vld [vmem:[%s1196 + $0x48] sm:$0xff]
        %v3473 = vld [vmem:[%s1196 + $0x50] sm:$0xff]
        %v3474 = vld [vmem:[%s1196 + $0x60] sm:$0xff]
        %v3475 = vld [vmem:[%s1196 + $0x68] sm:$0xff]
        %v3476 = vld [vmem:[%s1196 + $0x70] sm:$0xff]
        %v3477 = vld [vmem:[%s1196 + $0x78] sm:$0xff]
        %v3478 = vld [vmem:[%s1196 + $0x80] sm:$0xff]
        %v3479 = vld [vmem:[%s1196 + $0x90] sm:$0xff]
        %v3480 = vld [vmem:[%s1196 + $0x98] sm:$0xff]
        %v3481 = vld [vmem:[%s1196 + $0xa0] sm:$0xff]
        %v3482 = vld [vmem:[%s1196 + $0xa8] sm:$0xff]
        %v3483 = vld [vmem:[%s1196 + $0xb0] sm:$0xff]
        %3504 = vrot.lane.b32.xlu0 %v3464, 56
        %v3505 = vpop.permute.xlu0 %3504
        %3506 = vrot.lane.b32.xlu0 %v3465, 56
        %v3507 = vpop.permute.xlu0 %3506
        %3508 = vrot.lane.b32.xlu0 %v3466, 56
        %v3509 = vpop.permute.xlu0 %3508
        %3510 = vrot.lane.b32.xlu0 %v3467, 56
        %v3511 = vpop.permute.xlu0 %3510
        %3512 = vrot.lane.b32.xlu0 %v3468, 56
        %v3513 = vpop.permute.xlu0 %3512
        %3514 = vrot.lane.b32.xlu0 %v3469, 56
        %v3515 = vpop.permute.xlu0 %3514
        %3516 = vrot.lane.b32.xlu0 %v3470, 56
        %v3517 = vpop.permute.xlu0 %3516
        %3518 = vrot.lane.b32.xlu0 %v3471, 56
        %v3519 = vpop.permute.xlu0 %3518
        %3520 = vrot.lane.b32.xlu0 %v3472, 56
        %v3521 = vpop.permute.xlu0 %3520
        %3522 = vrot.lane.b32.xlu0 %v3473, 56
        %v3523 = vpop.permute.xlu0 %3522
        %3524 = vrot.lane.b32.xlu0 %v3474, 56
        %v3525 = vpop.permute.xlu0 %3524
        %3526 = vrot.lane.b32.xlu0 %v3475, 56
        %v3527 = vpop.permute.xlu0 %3526
        %3528 = vrot.lane.b32.xlu0 %v3476, 56
        %v3529 = vpop.permute.xlu0 %3528
        %3530 = vrot.lane.b32.xlu0 %v3477, 56
        %v3531 = vpop.permute.xlu0 %3530
        %3532 = vrot.lane.b32.xlu0 %v3478, 56
        %v3533 = vpop.permute.xlu0 %3532
        %3534 = vrot.lane.b32.xlu0 %v3479, 56
        %v3535 = vpop.permute.xlu0 %3534
        %3536 = vrot.lane.b32.xlu0 %v3480, 56
        %v3537 = vpop.permute.xlu0 %3536
        %3538 = vrot.lane.b32.xlu0 %v3481, 56
        %v3539 = vpop.permute.xlu0 %3538
        %3540 = vrot.lane.b32.xlu0 %v3482, 56
        %v3541 = vpop.permute.xlu0 %3540
        %3542 = vrot.lane.b32.xlu0 %v3483, 56
        %v3543 = vpop.permute.xlu0 %3542
        %vm3544 = vcmask 457728
        %v3545 = vsel %vm3544, %v3505, %v3507
        %v3546 = vsel %vm3544, %v3507, %v3509
        %v3547 = vsel %vm3544, %v3509, %v3511
        %v3548 = vsel %vm3544, %v3511, %v3513
        %v3549 = vsel %vm3544, %v3515, %v3517
        %v3550 = vsel %vm3544, %v3517, %v3519
        %v3551 = vsel %vm3544, %v3519, %v3521
        %v3552 = vsel %vm3544, %v3521, %v3523
        %v3553 = vsel %vm3544, %v3525, %v3527
        %v3554 = vsel %vm3544, %v3527, %v3529
        %v3555 = vsel %vm3544, %v3529, %v3531
        %v3556 = vsel %vm3544, %v3531, %v3533
        %v3557 = vsel %vm3544, %v3535, %v3537
        %v3558 = vsel %vm3544, %v3537, %v3539
        %v3559 = vsel %vm3544, %v3539, %v3541
        %v3560 = vsel %vm3544, %v3541, %v3543
        %v3578 = vsel %vm1395, %v440, 0
        %v3581 = vsel %vm1395, %v441, 0
        %v3584 = vsel %vm1395, %v442, 0
        %v3587 = vsel %vm1395, %v443, 0
        %3589 = vmatprep.subr.mxu0 0.0
        %3590 = vmatpush1.msra.mxu0 0.0
        %3591 = vmatprep.subr.mxu0 0.0
        %3592 = vmatpush1.msra.mxu0 0.0
        %3593 = vmatprep.subr.mxu0 0.0
        %3594 = vmatpush1.msra.mxu0 0.0
        %3595 = vmatprep.subr.mxu0 0.0
        %3596 = vmatpush1.msra.mxu0 0.0
        %3597 = vmatprep.subr.mxu0 0.0
        %3598 = vmatpush1.msra.mxu0 0.0
        %3599 = vmatprep.subr.mxu0 0.0
        %3600 = vmatpush1.msra.mxu0 0.0
        %3601 = vmatprep.subr.mxu0 0.0
        %3602 = vmatpush1.msra.mxu0 0.0
        %3603 = vmatprep.subr.mxu0 0.0
        %3604 = vmatpush1.msra.mxu0 0.0
        %3605 = vmatprep.subr.mxu0 0.0
        %3606 = vmatpush1.msra.mxu0 0.0
        %3607 = vmatprep.subr.mxu0 0.0
        %3608 = vmatpush1.msra.mxu0 0.0
        %3609 = vmatprep.subr.mxu0 0.0
        %3610 = vmatpush1.msra.mxu0 0.0
        %3611 = vmatprep.subr.mxu0 0.0
        %3612 = vmatpush1.msra.mxu0 0.0
        %3613 = vmatprep.subr.mxu0 %v3558
        %3614 = vmatpush1.msra.mxu0 %v3557
        %3615 = vmatprep.subr.mxu0 %v3554
        %3616 = vmatpush1.msra.mxu0 %v3553
        %3617 = vmatprep.subr.mxu0 %v3550
        %3618 = vmatpush1.msra.mxu0 %v3549
        %3619 = vmatprep.subr.mxu0 %v3546
        %3620 = vmatpush1.msra.mxu0 %v3545
        %3621 = vmatprep.subr.mxu0 0.0
        %3622 = vmatpush2.msra.mxu0 0.0
        %3623 = vmatprep.subr.mxu0 0.0
        %3624 = vmatpush2.msra.mxu0 0.0
        %3625 = vmatprep.subr.mxu0 0.0
        %3626 = vmatpush2.msra.mxu0 0.0
        %3627 = vmatprep.subr.mxu0 0.0
        %3628 = vmatpush2.msra.mxu0 0.0
        %3629 = vmatprep.subr.mxu0 0.0
        %3630 = vmatpush2.msra.mxu0 0.0
        %3631 = vmatprep.subr.mxu0 0.0
        %3632 = vmatpush2.msra.mxu0 0.0
        %3633 = vmatprep.subr.mxu0 0.0
        %3634 = vmatpush2.msra.mxu0 0.0
        %3635 = vmatprep.subr.mxu0 0.0
        %3636 = vmatpush2.msra.mxu0 0.0
        %3637 = vmatprep.subr.mxu0 0.0
        %3638 = vmatpush2.msra.mxu0 0.0
        %3639 = vmatprep.subr.mxu0 0.0
        %3640 = vmatpush2.msra.mxu0 0.0
        %3641 = vmatprep.subr.mxu0 0.0
        %3642 = vmatpush2.msra.mxu0 0.0
        %3643 = vmatprep.subr.mxu0 0.0
        %3644 = vmatpush2.msra.mxu0 0.0
        %3645 = vmatprep.subr.mxu0 0.0
        %3646 = vmatpush2.msra.mxu0 0.0
        %3647 = vmatprep.subr.mxu0 0.0
        %3648 = vmatpush2.msra.mxu0 0.0
        %3649 = vmatprep.subr.mxu0 0.0
        %3650 = vmatpush2.msra.mxu0 0.0
        %3651 = vmatprep.subr.mxu0 0.0
        %3652 = vmatpush2.msra.mxu0 0.0
        %3653 = vmatprep.mubr.f32.mxu0 0.0
        %3654 = vmatmul.mubr.f32.gmra.mxu0 %v3578
        %v3655 = vpop.f32.mrf.mxu0
        %v3656 = vadd.f32 0.0, %v3655
        %v3657 = vpop.f32.mrf.mxu0
        %v3658 = vadd.f32 0.0, %v3657
        %3659 = vmatprep.mubr.f32.mxu0 0.0
        %3660 = vmatmul.mubr.f32.gmra.mxu0 %v3581
        %v3661 = vpop.f32.mrf.mxu0
        %v3662 = vadd.f32 0.0, %v3661
        %v3663 = vpop.f32.mrf.mxu0
        %v3664 = vadd.f32 0.0, %v3663
        %3665 = vmatprep.mubr.f32.mxu0 0.0
        %3666 = vmatmul.mubr.f32.gmra.mxu0 %v3584
        %v3667 = vpop.f32.mrf.mxu0
        %v3668 = vadd.f32 0.0, %v3667
        %v3669 = vpop.f32.mrf.mxu0
        %v3670 = vadd.f32 0.0, %v3669
        %3671 = vmatprep.mubr.f32.mxu0 0.0
        %3672 = vmatmul.mubr.f32.gmra.mxu0 %v3587
        %v3673 = vpop.f32.mrf.mxu0
        %v3674 = vadd.f32 0.0, %v3673
        %v3675 = vpop.f32.mrf.mxu0
        %v3676 = vadd.f32 0.0, %v3675
        %3677 = vdwg.mxu0
        %3678 = vmatprep.subr.mxu0 0.0
        %3679 = vmatpush1.msra.mxu0 0.0
        %3680 = vmatprep.subr.mxu0 0.0
        %3681 = vmatpush1.msra.mxu0 0.0
        %3682 = vmatprep.subr.mxu0 0.0
        %3683 = vmatpush1.msra.mxu0 0.0
        %3684 = vmatprep.subr.mxu0 0.0
        %3685 = vmatpush1.msra.mxu0 0.0
        %3686 = vmatprep.subr.mxu0 0.0
        %3687 = vmatpush1.msra.mxu0 0.0
        %3688 = vmatprep.subr.mxu0 0.0
        %3689 = vmatpush1.msra.mxu0 0.0
        %3690 = vmatprep.subr.mxu0 0.0
        %3691 = vmatpush1.msra.mxu0 0.0
        %3692 = vmatprep.subr.mxu0 0.0
        %3693 = vmatpush1.msra.mxu0 0.0
        %3694 = vmatprep.subr.mxu0 0.0
        %3695 = vmatpush1.msra.mxu0 0.0
        %3696 = vmatprep.subr.mxu0 0.0
        %3697 = vmatpush1.msra.mxu0 0.0
        %3698 = vmatprep.subr.mxu0 0.0
        %3699 = vmatpush1.msra.mxu0 0.0
        %3700 = vmatprep.subr.mxu0 0.0
        %3701 = vmatpush1.msra.mxu0 0.0
        %3702 = vmatprep.subr.mxu0 %v3560
        %3703 = vmatpush1.msra.mxu0 %v3559
        %3704 = vmatprep.subr.mxu0 %v3556
        %3705 = vmatpush1.msra.mxu0 %v3555
        %3706 = vmatprep.subr.mxu0 %v3552
        %3707 = vmatpush1.msra.mxu0 %v3551
        %3708 = vmatprep.subr.mxu0 %v3548
        %3709 = vmatpush1.msra.mxu0 %v3547
        %3710 = vmatprep.subr.mxu0 0.0
        %3711 = vmatpush2.msra.mxu0 0.0
        %3712 = vmatprep.subr.mxu0 0.0
        %3713 = vmatpush2.msra.mxu0 0.0
        %3714 = vmatprep.subr.mxu0 0.0
        %3715 = vmatpush2.msra.mxu0 0.0
        %3716 = vmatprep.subr.mxu0 0.0
        %3717 = vmatpush2.msra.mxu0 0.0
        %3718 = vmatprep.subr.mxu0 0.0
        %3719 = vmatpush2.msra.mxu0 0.0
        %3720 = vmatprep.subr.mxu0 0.0
        %3721 = vmatpush2.msra.mxu0 0.0
        %3722 = vmatprep.subr.mxu0 0.0
        %3723 = vmatpush2.msra.mxu0 0.0
        %3724 = vmatprep.subr.mxu0 0.0
        %3725 = vmatpush2.msra.mxu0 0.0
        %3726 = vmatprep.subr.mxu0 0.0
        %3727 = vmatpush2.msra.mxu0 0.0
        %3728 = vmatprep.subr.mxu0 0.0
        %3729 = vmatpush2.msra.mxu0 0.0
        %3730 = vmatprep.subr.mxu0 0.0
        %3731 = vmatpush2.msra.mxu0 0.0
        %3732 = vmatprep.subr.mxu0 0.0
        %3733 = vmatpush2.msra.mxu0 0.0
        %3734 = vmatprep.subr.mxu0 0.0
        %3735 = vmatpush2.msra.mxu0 0.0
        %3736 = vmatprep.subr.mxu0 0.0
        %3737 = vmatpush2.msra.mxu0 0.0
        %3738 = vmatprep.subr.mxu0 0.0
        %3739 = vmatpush2.msra.mxu0 0.0
        %3740 = vmatprep.subr.mxu0 0.0
        %3741 = vmatpush2.msra.mxu0 0.0
        %3742 = vmatprep.mubr.f32.mxu0 0.0
        %3743 = vmatmul.mubr.f32.gmra.mxu0 %v3578
        %v3744 = vpop.f32.mrf.mxu0
        %v3745 = vadd.f32 0.0, %v3744
        %v3746 = vpop.f32.mrf.mxu0
        %v3747 = vadd.f32 0.0, %v3746
        %3748 = vmatprep.mubr.f32.mxu0 0.0
        %3749 = vmatmul.mubr.f32.gmra.mxu0 %v3581
        %v3750 = vpop.f32.mrf.mxu0
        %v3751 = vadd.f32 0.0, %v3750
        %v3752 = vpop.f32.mrf.mxu0
        %v3753 = vadd.f32 0.0, %v3752
        %3754 = vmatprep.mubr.f32.mxu0 0.0
        %3755 = vmatmul.mubr.f32.gmra.mxu0 %v3584
        %v3756 = vpop.f32.mrf.mxu0
        %v3757 = vadd.f32 0.0, %v3756
        %v3758 = vpop.f32.mrf.mxu0
        %v3759 = vadd.f32 0.0, %v3758
        %3760 = vmatprep.mubr.f32.mxu0 0.0
        %3761 = vmatmul.mubr.f32.gmra.mxu0 %v3587
        %v3762 = vpop.f32.mrf.mxu0
        %v3763 = vadd.f32 0.0, %v3762
        %v3764 = vpop.f32.mrf.mxu0
        %v3765 = vadd.f32 0.0, %v3764
        %3766 = vdwg.mxu0
        %v3767 = vadd.f32 %v3448, %v3656
        %v3768 = vadd.f32 %v3449, %v3658
        %v3769 = vadd.f32 %v3450, %v3745
        %v3770 = vadd.f32 %v3451, %v3747
        %v3771 = vadd.f32 %v3452, %v3662
        %v3772 = vadd.f32 %v3453, %v3664
        %v3773 = vadd.f32 %v3454, %v3751
        %v3774 = vadd.f32 %v3455, %v3753
        %v3775 = vadd.f32 %v3456, %v3668
        %v3776 = vadd.f32 %v3457, %v3670
        %v3777 = vadd.f32 %v3458, %v3757
        %v3778 = vadd.f32 %v3459, %v3759
        %v3779 = vadd.f32 %v3460, %v3674
        %v3780 = vadd.f32 %v3461, %v3676
        %v3781 = vadd.f32 %v3462, %v3763
        %v3782 = vadd.f32 %v3463, %v3765
        %v3783 = vld [vmem:[%s1245] sm:$0xff]
        %v3784 = vld [vmem:[%s1245 + $0x8] sm:$0xff]
        %v3785 = vld [vmem:[%s1245 + $0x10] sm:$0xff]
        %v3786 = vld [vmem:[%s1245 + $0x18] sm:$0xff]
        %v3787 = vld [vmem:[%s1245 + $0x20] sm:$0xff]
        %v3788 = vld [vmem:[%s1245 + $0x30] sm:$0xff]
        %v3789 = vld [vmem:[%s1245 + $0x38] sm:$0xff]
        %v3790 = vld [vmem:[%s1245 + $0x40] sm:$0xff]
        %v3791 = vld [vmem:[%s1245 + $0x48] sm:$0xff]
        %v3792 = vld [vmem:[%s1245 + $0x50] sm:$0xff]
        %v3793 = vld [vmem:[%s1245 + $0x60] sm:$0xff]
        %v3794 = vld [vmem:[%s1245 + $0x68] sm:$0xff]
        %v3795 = vld [vmem:[%s1245 + $0x70] sm:$0xff]
        %v3796 = vld [vmem:[%s1245 + $0x78] sm:$0xff]
        %v3797 = vld [vmem:[%s1245 + $0x80] sm:$0xff]
        %v3798 = vld [vmem:[%s1245 + $0x90] sm:$0xff]
        %v3799 = vld [vmem:[%s1245 + $0x98] sm:$0xff]
        %v3800 = vld [vmem:[%s1245 + $0xa0] sm:$0xff]
        %v3801 = vld [vmem:[%s1245 + $0xa8] sm:$0xff]
        %v3802 = vld [vmem:[%s1245 + $0xb0] sm:$0xff]
        %3823 = vrot.lane.b32.xlu0 %v3783, 55
        %v3824 = vpop.permute.xlu0 %3823
        %3825 = vrot.lane.b32.xlu0 %v3784, 55
        %v3826 = vpop.permute.xlu0 %3825
        %3827 = vrot.lane.b32.xlu0 %v3785, 55
        %v3828 = vpop.permute.xlu0 %3827
        %3829 = vrot.lane.b32.xlu0 %v3786, 55
        %v3830 = vpop.permute.xlu0 %3829
        %3831 = vrot.lane.b32.xlu0 %v3787, 55
        %v3832 = vpop.permute.xlu0 %3831
        %3833 = vrot.lane.b32.xlu0 %v3788, 55
        %v3834 = vpop.permute.xlu0 %3833
        %3835 = vrot.lane.b32.xlu0 %v3789, 55
        %v3836 = vpop.permute.xlu0 %3835
        %3837 = vrot.lane.b32.xlu0 %v3790, 55
        %v3838 = vpop.permute.xlu0 %3837
        %3839 = vrot.lane.b32.xlu0 %v3791, 55
        %v3840 = vpop.permute.xlu0 %3839
        %3841 = vrot.lane.b32.xlu0 %v3792, 55
        %v3842 = vpop.permute.xlu0 %3841
        %3843 = vrot.lane.b32.xlu0 %v3793, 55
        %v3844 = vpop.permute.xlu0 %3843
        %3845 = vrot.lane.b32.xlu0 %v3794, 55
        %v3846 = vpop.permute.xlu0 %3845
        %3847 = vrot.lane.b32.xlu0 %v3795, 55
        %v3848 = vpop.permute.xlu0 %3847
        %3849 = vrot.lane.b32.xlu0 %v3796, 55
        %v3850 = vpop.permute.xlu0 %3849
        %3851 = vrot.lane.b32.xlu0 %v3797, 55
        %v3852 = vpop.permute.xlu0 %3851
        %3853 = vrot.lane.b32.xlu0 %v3798, 55
        %v3854 = vpop.permute.xlu0 %3853
        %3855 = vrot.lane.b32.xlu0 %v3799, 55
        %v3856 = vpop.permute.xlu0 %3855
        %3857 = vrot.lane.b32.xlu0 %v3800, 55
        %v3858 = vpop.permute.xlu0 %3857
        %3859 = vrot.lane.b32.xlu0 %v3801, 55
        %v3860 = vpop.permute.xlu0 %3859
        %3861 = vrot.lane.b32.xlu0 %v3802, 55
        %v3862 = vpop.permute.xlu0 %3861
        %vm3863 = vcmask 449536
        %v3864 = vsel %vm3863, %v3824, %v3826
        %v3865 = vsel %vm3863, %v3826, %v3828
        %v3866 = vsel %vm3863, %v3828, %v3830
        %v3867 = vsel %vm3863, %v3830, %v3832
        %v3868 = vsel %vm3863, %v3834, %v3836
        %v3869 = vsel %vm3863, %v3836, %v3838
        %v3870 = vsel %vm3863, %v3838, %v3840
        %v3871 = vsel %vm3863, %v3840, %v3842
        %v3872 = vsel %vm3863, %v3844, %v3846
        %v3873 = vsel %vm3863, %v3846, %v3848
        %v3874 = vsel %vm3863, %v3848, %v3850
        %v3875 = vsel %vm3863, %v3850, %v3852
        %v3876 = vsel %vm3863, %v3854, %v3856
        %v3877 = vsel %vm3863, %v3856, %v3858
        %v3878 = vsel %vm3863, %v3858, %v3860
        %v3879 = vsel %vm3863, %v3860, %v3862
        %v3897 = vsel %vm1395, %v444, 0
        %v3900 = vsel %vm1395, %v445, 0
        %v3903 = vsel %vm1395, %v446, 0
        %v3906 = vsel %vm1395, %v447, 0
        %3908 = vmatprep.subr.mxu0 0.0
        %3909 = vmatpush1.msra.mxu0 0.0
        %3910 = vmatprep.subr.mxu0 0.0
        %3911 = vmatpush1.msra.mxu0 0.0
        %3912 = vmatprep.subr.mxu0 0.0
        %3913 = vmatpush1.msra.mxu0 0.0
        %3914 = vmatprep.subr.mxu0 0.0
        %3915 = vmatpush1.msra.mxu0 0.0
        %3916 = vmatprep.subr.mxu0 0.0
        %3917 = vmatpush1.msra.mxu0 0.0
        %3918 = vmatprep.subr.mxu0 0.0
        %3919 = vmatpush1.msra.mxu0 0.0
        %3920 = vmatprep.subr.mxu0 0.0
        %3921 = vmatpush1.msra.mxu0 0.0
        %3922 = vmatprep.subr.mxu0 0.0
        %3923 = vmatpush1.msra.mxu0 0.0
        %3924 = vmatprep.subr.mxu0 0.0
        %3925 = vmatpush1.msra.mxu0 0.0
        %3926 = vmatprep.subr.mxu0 0.0
        %3927 = vmatpush1.msra.mxu0 0.0
        %3928 = vmatprep.subr.mxu0 0.0
        %3929 = vmatpush1.msra.mxu0 0.0
        %3930 = vmatprep.subr.mxu0 0.0
        %3931 = vmatpush1.msra.mxu0 0.0
        %3932 = vmatprep.subr.mxu0 %v3877
        %3933 = vmatpush1.msra.mxu0 %v3876
        %3934 = vmatprep.subr.mxu0 %v3873
        %3935 = vmatpush1.msra.mxu0 %v3872
        %3936 = vmatprep.subr.mxu0 %v3869
        %3937 = vmatpush1.msra.mxu0 %v3868
        %3938 = vmatprep.subr.mxu0 %v3865
        %3939 = vmatpush1.msra.mxu0 %v3864
        %3940 = vmatprep.subr.mxu0 0.0
        %3941 = vmatpush2.msra.mxu0 0.0
        %3942 = vmatprep.subr.mxu0 0.0
        %3943 = vmatpush2.msra.mxu0 0.0
        %3944 = vmatprep.subr.mxu0 0.0
        %3945 = vmatpush2.msra.mxu0 0.0
        %3946 = vmatprep.subr.mxu0 0.0
        %3947 = vmatpush2.msra.mxu0 0.0
        %3948 = vmatprep.subr.mxu0 0.0
        %3949 = vmatpush2.msra.mxu0 0.0
        %3950 = vmatprep.subr.mxu0 0.0
        %3951 = vmatpush2.msra.mxu0 0.0
        %3952 = vmatprep.subr.mxu0 0.0
        %3953 = vmatpush2.msra.mxu0 0.0
        %3954 = vmatprep.subr.mxu0 0.0
        %3955 = vmatpush2.msra.mxu0 0.0
        %3956 = vmatprep.subr.mxu0 0.0
        %3957 = vmatpush2.msra.mxu0 0.0
        %3958 = vmatprep.subr.mxu0 0.0
        %3959 = vmatpush2.msra.mxu0 0.0
        %3960 = vmatprep.subr.mxu0 0.0
        %3961 = vmatpush2.msra.mxu0 0.0
        %3962 = vmatprep.subr.mxu0 0.0
        %3963 = vmatpush2.msra.mxu0 0.0
        %3964 = vmatprep.subr.mxu0 0.0
        %3965 = vmatpush2.msra.mxu0 0.0
        %3966 = vmatprep.subr.mxu0 0.0
        %3967 = vmatpush2.msra.mxu0 0.0
        %3968 = vmatprep.subr.mxu0 0.0
        %3969 = vmatpush2.msra.mxu0 0.0
        %3970 = vmatprep.subr.mxu0 0.0
        %3971 = vmatpush2.msra.mxu0 0.0
        %3972 = vmatprep.mubr.f32.mxu0 0.0
        %3973 = vmatmul.mubr.f32.gmra.mxu0 %v3897
        %v3974 = vpop.f32.mrf.mxu0
        %v3975 = vadd.f32 0.0, %v3974
        %v3976 = vpop.f32.mrf.mxu0
        %v3977 = vadd.f32 0.0, %v3976
        %3978 = vmatprep.mubr.f32.mxu0 0.0
        %3979 = vmatmul.mubr.f32.gmra.mxu0 %v3900
        %v3980 = vpop.f32.mrf.mxu0
        %v3981 = vadd.f32 0.0, %v3980
        %v3982 = vpop.f32.mrf.mxu0
        %v3983 = vadd.f32 0.0, %v3982
        %3984 = vmatprep.mubr.f32.mxu0 0.0
        %3985 = vmatmul.mubr.f32.gmra.mxu0 %v3903
        %v3986 = vpop.f32.mrf.mxu0
        %v3987 = vadd.f32 0.0, %v3986
        %v3988 = vpop.f32.mrf.mxu0
        %v3989 = vadd.f32 0.0, %v3988
        %3990 = vmatprep.mubr.f32.mxu0 0.0
        %3991 = vmatmul.mubr.f32.gmra.mxu0 %v3906
        %v3992 = vpop.f32.mrf.mxu0
        %v3993 = vadd.f32 0.0, %v3992
        %v3994 = vpop.f32.mrf.mxu0
        %v3995 = vadd.f32 0.0, %v3994
        %3996 = vdwg.mxu0
        %3997 = vmatprep.subr.mxu0 0.0
        %3998 = vmatpush1.msra.mxu0 0.0
        %3999 = vmatprep.subr.mxu0 0.0
        %4000 = vmatpush1.msra.mxu0 0.0
        %4001 = vmatprep.subr.mxu0 0.0
        %4002 = vmatpush1.msra.mxu0 0.0
        %4003 = vmatprep.subr.mxu0 0.0
        %4004 = vmatpush1.msra.mxu0 0.0
        %4005 = vmatprep.subr.mxu0 0.0
        %4006 = vmatpush1.msra.mxu0 0.0
        %4007 = vmatprep.subr.mxu0 0.0
        %4008 = vmatpush1.msra.mxu0 0.0
        %4009 = vmatprep.subr.mxu0 0.0
        %4010 = vmatpush1.msra.mxu0 0.0
        %4011 = vmatprep.subr.mxu0 0.0
        %4012 = vmatpush1.msra.mxu0 0.0
        %4013 = vmatprep.subr.mxu0 0.0
        %4014 = vmatpush1.msra.mxu0 0.0
        %4015 = vmatprep.subr.mxu0 0.0
        %4016 = vmatpush1.msra.mxu0 0.0
        %4017 = vmatprep.subr.mxu0 0.0
        %4018 = vmatpush1.msra.mxu0 0.0
        %4019 = vmatprep.subr.mxu0 0.0
        %4020 = vmatpush1.msra.mxu0 0.0
        %4021 = vmatprep.subr.mxu0 %v3879
        %4022 = vmatpush1.msra.mxu0 %v3878
        %4023 = vmatprep.subr.mxu0 %v3875
        %4024 = vmatpush1.msra.mxu0 %v3874
        %4025 = vmatprep.subr.mxu0 %v3871
        %4026 = vmatpush1.msra.mxu0 %v3870
        %4027 = vmatprep.subr.mxu0 %v3867
        %4028 = vmatpush1.msra.mxu0 %v3866
        %4029 = vmatprep.subr.mxu0 0.0
        %4030 = vmatpush2.msra.mxu0 0.0
        %4031 = vmatprep.subr.mxu0 0.0
        %4032 = vmatpush2.msra.mxu0 0.0
        %4033 = vmatprep.subr.mxu0 0.0
        %4034 = vmatpush2.msra.mxu0 0.0
        %4035 = vmatprep.subr.mxu0 0.0
        %4036 = vmatpush2.msra.mxu0 0.0
        %4037 = vmatprep.subr.mxu0 0.0
        %4038 = vmatpush2.msra.mxu0 0.0
        %4039 = vmatprep.subr.mxu0 0.0
        %4040 = vmatpush2.msra.mxu0 0.0
        %4041 = vmatprep.subr.mxu0 0.0
        %4042 = vmatpush2.msra.mxu0 0.0
        %4043 = vmatprep.subr.mxu0 0.0
        %4044 = vmatpush2.msra.mxu0 0.0
        %4045 = vmatprep.subr.mxu0 0.0
        %4046 = vmatpush2.msra.mxu0 0.0
        %4047 = vmatprep.subr.mxu0 0.0
        %4048 = vmatpush2.msra.mxu0 0.0
        %4049 = vmatprep.subr.mxu0 0.0
        %4050 = vmatpush2.msra.mxu0 0.0
        %4051 = vmatprep.subr.mxu0 0.0
        %4052 = vmatpush2.msra.mxu0 0.0
        %4053 = vmatprep.subr.mxu0 0.0
        %4054 = vmatpush2.msra.mxu0 0.0
        %4055 = vmatprep.subr.mxu0 0.0
        %4056 = vmatpush2.msra.mxu0 0.0
        %4057 = vmatprep.subr.mxu0 0.0
        %4058 = vmatpush2.msra.mxu0 0.0
        %4059 = vmatprep.subr.mxu0 0.0
        %4060 = vmatpush2.msra.mxu0 0.0
        %4061 = vmatprep.mubr.f32.mxu0 0.0
        %4062 = vmatmul.mubr.f32.gmra.mxu0 %v3897
        %v4063 = vpop.f32.mrf.mxu0
        %v4064 = vadd.f32 0.0, %v4063
        %v4065 = vpop.f32.mrf.mxu0
        %v4066 = vadd.f32 0.0, %v4065
        %4067 = vmatprep.mubr.f32.mxu0 0.0
        %4068 = vmatmul.mubr.f32.gmra.mxu0 %v3900
        %v4069 = vpop.f32.mrf.mxu0
        %v4070 = vadd.f32 0.0, %v4069
        %v4071 = vpop.f32.mrf.mxu0
        %v4072 = vadd.f32 0.0, %v4071
        %4073 = vmatprep.mubr.f32.mxu0 0.0
        %4074 = vmatmul.mubr.f32.gmra.mxu0 %v3903
        %v4075 = vpop.f32.mrf.mxu0
        %v4076 = vadd.f32 0.0, %v4075
        %v4077 = vpop.f32.mrf.mxu0
        %v4078 = vadd.f32 0.0, %v4077
        %4079 = vmatprep.mubr.f32.mxu0 0.0
        %4080 = vmatmul.mubr.f32.gmra.mxu0 %v3906
        %v4081 = vpop.f32.mrf.mxu0
        %v4082 = vadd.f32 0.0, %v4081
        %v4083 = vpop.f32.mrf.mxu0
        %v4084 = vadd.f32 0.0, %v4083
        %4085 = vdwg.mxu0
        %v4086 = vadd.f32 %v3767, %v3975
        %v4087 = vadd.f32 %v3768, %v3977
        %v4088 = vadd.f32 %v3769, %v4064
        %v4089 = vadd.f32 %v3770, %v4066
        %v4090 = vadd.f32 %v3771, %v3981
        %v4091 = vadd.f32 %v3772, %v3983
        %v4092 = vadd.f32 %v3773, %v4070
        %v4093 = vadd.f32 %v3774, %v4072
        %v4094 = vadd.f32 %v3775, %v3987
        %v4095 = vadd.f32 %v3776, %v3989
        %v4096 = vadd.f32 %v3777, %v4076
        %v4097 = vadd.f32 %v3778, %v4078
        %v4098 = vadd.f32 %v3779, %v3993
        %v4099 = vadd.f32 %v3780, %v3995
        %v4100 = vadd.f32 %v3781, %v4082
        %v4101 = vadd.f32 %v3782, %v4084
        %4102 = vrot.lane.b32.xlu0 %v1262, 9
        %v4103 = vpop.permute.xlu0 %4102
        %4104 = vrot.lane.b32.xlu0 %v1263, 9
        %v4105 = vpop.permute.xlu0 %4104
        %4106 = vrot.lane.b32.xlu0 %v1264, 9
        %v4107 = vpop.permute.xlu0 %4106
        %4108 = vrot.lane.b32.xlu0 %v1265, 9
        %v4109 = vpop.permute.xlu0 %4108
        %4110 = vrot.lane.b32.xlu0 %v1266, 9
        %v4111 = vpop.permute.xlu0 %4110
        %4112 = vrot.lane.b32.xlu0 %v1267, 9
        %v4113 = vpop.permute.xlu0 %4112
        %4114 = vrot.lane.b32.xlu0 %v1268, 9
        %v4115 = vpop.permute.xlu0 %4114
        %4116 = vrot.lane.b32.xlu0 %v1269, 9
        %v4117 = vpop.permute.xlu0 %4116
        %4118 = vrot.lane.b32.xlu0 %v1270, 9
        %v4119 = vpop.permute.xlu0 %4118
        %4120 = vrot.lane.b32.xlu0 %v1271, 9
        %v4121 = vpop.permute.xlu0 %4120
        %4122 = vrot.lane.b32.xlu0 %v1272, 9
        %v4123 = vpop.permute.xlu0 %4122
        %4124 = vrot.lane.b32.xlu0 %v1273, 9
        %v4125 = vpop.permute.xlu0 %4124
        %4126 = vrot.lane.b32.xlu0 %v1274, 9
        %v4127 = vpop.permute.xlu0 %4126
        %4128 = vrot.lane.b32.xlu0 %v1275, 9
        %v4129 = vpop.permute.xlu0 %4128
        %4130 = vrot.lane.b32.xlu0 %v1276, 9
        %v4131 = vpop.permute.xlu0 %4130
        %4132 = vrot.lane.b32.xlu0 %v1277, 9
        %v4133 = vpop.permute.xlu0 %4132
        %4134 = vrot.lane.b32.xlu0 %v1278, 9
        %v4135 = vpop.permute.xlu0 %4134
        %4136 = vrot.lane.b32.xlu0 %v1279, 9
        %v4137 = vpop.permute.xlu0 %4136
        %4138 = vrot.lane.b32.xlu0 %v1280, 9
        %v4139 = vpop.permute.xlu0 %4138
        %4140 = vrot.lane.b32.xlu0 %v1281, 9
        %v4141 = vpop.permute.xlu0 %4140
        %vm4142 = vcmask 72704
        %v4143 = vsel %vm4142, %v4103, %v4105
        %v4144 = vsel %vm4142, %v4105, %v4107
        %v4145 = vsel %vm4142, %v4107, %v4109
        %v4146 = vsel %vm4142, %v4109, %v4111
        %v4147 = vsel %vm4142, %v4113, %v4115
        %v4148 = vsel %vm4142, %v4115, %v4117
        %v4149 = vsel %vm4142, %v4117, %v4119
        %v4150 = vsel %vm4142, %v4119, %v4121
        %v4151 = vsel %vm4142, %v4123, %v4125
        %v4152 = vsel %vm4142, %v4125, %v4127
        %v4153 = vsel %vm4142, %v4127, %v4129
        %v4154 = vsel %vm4142, %v4129, %v4131
        %v4155 = vsel %vm4142, %v4133, %v4135
        %v4156 = vsel %vm4142, %v4135, %v4137
        %v4157 = vsel %vm4142, %v4137, %v4139
        %v4158 = vsel %vm4142, %v4139, %v4141
        %v4176 = vsel %vm1395, %v448, 0
        %v4179 = vsel %vm1395, %v449, 0
        %v4182 = vsel %vm1395, %v450, 0
        %v4185 = vsel %vm1395, %v451, 0
        %4187 = vmatprep.subr.mxu0 0.0
        %4188 = vmatpush1.msra.mxu0 0.0
        %4189 = vmatprep.subr.mxu0 0.0
        %4190 = vmatpush1.msra.mxu0 0.0
        %4191 = vmatprep.subr.mxu0 0.0
        %4192 = vmatpush1.msra.mxu0 0.0
        %4193 = vmatprep.subr.mxu0 0.0
        %4194 = vmatpush1.msra.mxu0 0.0
        %4195 = vmatprep.subr.mxu0 0.0
        %4196 = vmatpush1.msra.mxu0 0.0
        %4197 = vmatprep.subr.mxu0 0.0
        %4198 = vmatpush1.msra.mxu0 0.0
        %4199 = vmatprep.subr.mxu0 0.0
        %4200 = vmatpush1.msra.mxu0 0.0
        %4201 = vmatprep.subr.mxu0 0.0
        %4202 = vmatpush1.msra.mxu0 0.0
        %4203 = vmatprep.subr.mxu0 0.0
        %4204 = vmatpush1.msra.mxu0 0.0
        %4205 = vmatprep.subr.mxu0 0.0
        %4206 = vmatpush1.msra.mxu0 0.0
        %4207 = vmatprep.subr.mxu0 0.0
        %4208 = vmatpush1.msra.mxu0 0.0
        %4209 = vmatprep.subr.mxu0 0.0
        %4210 = vmatpush1.msra.mxu0 0.0
        %4211 = vmatprep.subr.mxu0 %v4156
        %4212 = vmatpush1.msra.mxu0 %v4155
        %4213 = vmatprep.subr.mxu0 %v4152
        %4214 = vmatpush1.msra.mxu0 %v4151
        %4215 = vmatprep.subr.mxu0 %v4148
        %4216 = vmatpush1.msra.mxu0 %v4147
        %4217 = vmatprep.subr.mxu0 %v4144
        %4218 = vmatpush1.msra.mxu0 %v4143
        %4219 = vmatprep.subr.mxu0 0.0
        %4220 = vmatpush2.msra.mxu0 0.0
        %4221 = vmatprep.subr.mxu0 0.0
        %4222 = vmatpush2.msra.mxu0 0.0
        %4223 = vmatprep.subr.mxu0 0.0
        %4224 = vmatpush2.msra.mxu0 0.0
        %4225 = vmatprep.subr.mxu0 0.0
        %4226 = vmatpush2.msra.mxu0 0.0
        %4227 = vmatprep.subr.mxu0 0.0
        %4228 = vmatpush2.msra.mxu0 0.0
        %4229 = vmatprep.subr.mxu0 0.0
        %4230 = vmatpush2.msra.mxu0 0.0
        %4231 = vmatprep.subr.mxu0 0.0
        %4232 = vmatpush2.msra.mxu0 0.0
        %4233 = vmatprep.subr.mxu0 0.0
        %4234 = vmatpush2.msra.mxu0 0.0
        %4235 = vmatprep.subr.mxu0 0.0
        %4236 = vmatpush2.msra.mxu0 0.0
        %4237 = vmatprep.subr.mxu0 0.0
        %4238 = vmatpush2.msra.mxu0 0.0
        %4239 = vmatprep.subr.mxu0 0.0
        %4240 = vmatpush2.msra.mxu0 0.0
        %4241 = vmatprep.subr.mxu0 0.0
        %4242 = vmatpush2.msra.mxu0 0.0
        %4243 = vmatprep.subr.mxu0 0.0
        %4244 = vmatpush2.msra.mxu0 0.0
        %4245 = vmatprep.subr.mxu0 0.0
        %4246 = vmatpush2.msra.mxu0 0.0
        %4247 = vmatprep.subr.mxu0 0.0
        %4248 = vmatpush2.msra.mxu0 0.0
        %4249 = vmatprep.subr.mxu0 0.0
        %4250 = vmatpush2.msra.mxu0 0.0
        %4251 = vmatprep.mubr.f32.mxu0 0.0
        %4252 = vmatmul.mubr.f32.gmra.mxu0 %v4176
        %v4253 = vpop.f32.mrf.mxu0
        %v4254 = vadd.f32 0.0, %v4253
        %v4255 = vpop.f32.mrf.mxu0
        %v4256 = vadd.f32 0.0, %v4255
        %4257 = vmatprep.mubr.f32.mxu0 0.0
        %4258 = vmatmul.mubr.f32.gmra.mxu0 %v4179
        %v4259 = vpop.f32.mrf.mxu0
        %v4260 = vadd.f32 0.0, %v4259
        %v4261 = vpop.f32.mrf.mxu0
        %v4262 = vadd.f32 0.0, %v4261
        %4263 = vmatprep.mubr.f32.mxu0 0.0
        %4264 = vmatmul.mubr.f32.gmra.mxu0 %v4182
        %v4265 = vpop.f32.mrf.mxu0
        %v4266 = vadd.f32 0.0, %v4265
        %v4267 = vpop.f32.mrf.mxu0
        %v4268 = vadd.f32 0.0, %v4267
        %4269 = vmatprep.mubr.f32.mxu0 0.0
        %4270 = vmatmul.mubr.f32.gmra.mxu0 %v4185
        %v4271 = vpop.f32.mrf.mxu0
        %v4272 = vadd.f32 0.0, %v4271
        %v4273 = vpop.f32.mrf.mxu0
        %v4274 = vadd.f32 0.0, %v4273
        %4275 = vdwg.mxu0
        %4276 = vmatprep.subr.mxu0 0.0
        %4277 = vmatpush1.msra.mxu0 0.0
        %4278 = vmatprep.subr.mxu0 0.0
        %4279 = vmatpush1.msra.mxu0 0.0
        %4280 = vmatprep.subr.mxu0 0.0
        %4281 = vmatpush1.msra.mxu0 0.0
        %4282 = vmatprep.subr.mxu0 0.0
        %4283 = vmatpush1.msra.mxu0 0.0
        %4284 = vmatprep.subr.mxu0 0.0
        %4285 = vmatpush1.msra.mxu0 0.0
        %4286 = vmatprep.subr.mxu0 0.0
        %4287 = vmatpush1.msra.mxu0 0.0
        %4288 = vmatprep.subr.mxu0 0.0
        %4289 = vmatpush1.msra.mxu0 0.0
        %4290 = vmatprep.subr.mxu0 0.0
        %4291 = vmatpush1.msra.mxu0 0.0
        %4292 = vmatprep.subr.mxu0 0.0
        %4293 = vmatpush1.msra.mxu0 0.0
        %4294 = vmatprep.subr.mxu0 0.0
        %4295 = vmatpush1.msra.mxu0 0.0
        %4296 = vmatprep.subr.mxu0 0.0
        %4297 = vmatpush1.msra.mxu0 0.0
        %4298 = vmatprep.subr.mxu0 0.0
        %4299 = vmatpush1.msra.mxu0 0.0
        %4300 = vmatprep.subr.mxu0 %v4158
        %4301 = vmatpush1.msra.mxu0 %v4157
        %4302 = vmatprep.subr.mxu0 %v4154
        %4303 = vmatpush1.msra.mxu0 %v4153
        %4304 = vmatprep.subr.mxu0 %v4150
        %4305 = vmatpush1.msra.mxu0 %v4149
        %4306 = vmatprep.subr.mxu0 %v4146
        %4307 = vmatpush1.msra.mxu0 %v4145
        %4308 = vmatprep.subr.mxu0 0.0
        %4309 = vmatpush2.msra.mxu0 0.0
        %4310 = vmatprep.subr.mxu0 0.0
        %4311 = vmatpush2.msra.mxu0 0.0
        %4312 = vmatprep.subr.mxu0 0.0
        %4313 = vmatpush2.msra.mxu0 0.0
        %4314 = vmatprep.subr.mxu0 0.0
        %4315 = vmatpush2.msra.mxu0 0.0
        %4316 = vmatprep.subr.mxu0 0.0
        %4317 = vmatpush2.msra.mxu0 0.0
        %4318 = vmatprep.subr.mxu0 0.0
        %4319 = vmatpush2.msra.mxu0 0.0
        %4320 = vmatprep.subr.mxu0 0.0
        %4321 = vmatpush2.msra.mxu0 0.0
        %4322 = vmatprep.subr.mxu0 0.0
        %4323 = vmatpush2.msra.mxu0 0.0
        %4324 = vmatprep.subr.mxu0 0.0
        %4325 = vmatpush2.msra.mxu0 0.0
        %4326 = vmatprep.subr.mxu0 0.0
        %4327 = vmatpush2.msra.mxu0 0.0
        %4328 = vmatprep.subr.mxu0 0.0
        %4329 = vmatpush2.msra.mxu0 0.0
        %4330 = vmatprep.subr.mxu0 0.0
        %4331 = vmatpush2.msra.mxu0 0.0
        %4332 = vmatprep.subr.mxu0 0.0
        %4333 = vmatpush2.msra.mxu0 0.0
        %4334 = vmatprep.subr.mxu0 0.0
        %4335 = vmatpush2.msra.mxu0 0.0
        %4336 = vmatprep.subr.mxu0 0.0
        %4337 = vmatpush2.msra.mxu0 0.0
        %4338 = vmatprep.subr.mxu0 0.0
        %4339 = vmatpush2.msra.mxu0 0.0
        %4340 = vmatprep.mubr.f32.mxu0 0.0
        %4341 = vmatmul.mubr.f32.gmra.mxu0 %v4176
        %v4342 = vpop.f32.mrf.mxu0
        %v4343 = vadd.f32 0.0, %v4342
        %v4344 = vpop.f32.mrf.mxu0
        %v4345 = vadd.f32 0.0, %v4344
        %4346 = vmatprep.mubr.f32.mxu0 0.0
        %4347 = vmatmul.mubr.f32.gmra.mxu0 %v4179
        %v4348 = vpop.f32.mrf.mxu0
        %v4349 = vadd.f32 0.0, %v4348
        %v4350 = vpop.f32.mrf.mxu0
        %v4351 = vadd.f32 0.0, %v4350
        %4352 = vmatprep.mubr.f32.mxu0 0.0
        %4353 = vmatmul.mubr.f32.gmra.mxu0 %v4182
        %v4354 = vpop.f32.mrf.mxu0
        %v4355 = vadd.f32 0.0, %v4354
        %v4356 = vpop.f32.mrf.mxu0
        %v4357 = vadd.f32 0.0, %v4356
        %4358 = vmatprep.mubr.f32.mxu0 0.0
        %4359 = vmatmul.mubr.f32.gmra.mxu0 %v4185
        %v4360 = vpop.f32.mrf.mxu0
        %v4361 = vadd.f32 0.0, %v4360
        %v4362 = vpop.f32.mrf.mxu0
        %v4363 = vadd.f32 0.0, %v4362
        %4364 = vdwg.mxu0
        %v4365 = vadd.f32 %v4086, %v4254
        %v4366 = vadd.f32 %v4087, %v4256
        %v4367 = vadd.f32 %v4088, %v4343
        %v4368 = vadd.f32 %v4089, %v4345
        %v4369 = vadd.f32 %v4090, %v4260
        %v4370 = vadd.f32 %v4091, %v4262
        %v4371 = vadd.f32 %v4092, %v4349
        %v4372 = vadd.f32 %v4093, %v4351
        %v4373 = vadd.f32 %v4094, %v4266
        %v4374 = vadd.f32 %v4095, %v4268
        %v4375 = vadd.f32 %v4096, %v4355
        %v4376 = vadd.f32 %v4097, %v4357
        %v4377 = vadd.f32 %v4098, %v4272
        %v4378 = vadd.f32 %v4099, %v4274
        %v4379 = vadd.f32 %v4100, %v4361
        %v4380 = vadd.f32 %v4101, %v4363
        %4381 = vrot.lane.b32.xlu0 %v1282, 8
        %v4382 = vpop.permute.xlu0 %4381
        %4383 = vrot.lane.b32.xlu0 %v1283, 8
        %v4384 = vpop.permute.xlu0 %4383
        %4385 = vrot.lane.b32.xlu0 %v1284, 8
        %v4386 = vpop.permute.xlu0 %4385
        %4387 = vrot.lane.b32.xlu0 %v1285, 8
        %v4388 = vpop.permute.xlu0 %4387
        %4389 = vrot.lane.b32.xlu0 %v1286, 8
        %v4390 = vpop.permute.xlu0 %4389
        %4391 = vrot.lane.b32.xlu0 %v1287, 8
        %v4392 = vpop.permute.xlu0 %4391
        %4393 = vrot.lane.b32.xlu0 %v1288, 8
        %v4394 = vpop.permute.xlu0 %4393
        %4395 = vrot.lane.b32.xlu0 %v1289, 8
        %v4396 = vpop.permute.xlu0 %4395
        %4397 = vrot.lane.b32.xlu0 %v1290, 8
        %v4398 = vpop.permute.xlu0 %4397
        %4399 = vrot.lane.b32.xlu0 %v1291, 8
        %v4400 = vpop.permute.xlu0 %4399
        %4401 = vrot.lane.b32.xlu0 %v1292, 8
        %v4402 = vpop.permute.xlu0 %4401
        %4403 = vrot.lane.b32.xlu0 %v1293, 8
        %v4404 = vpop.permute.xlu0 %4403
        %4405 = vrot.lane.b32.xlu0 %v1294, 8
        %v4406 = vpop.permute.xlu0 %4405
        %4407 = vrot.lane.b32.xlu0 %v1295, 8
        %v4408 = vpop.permute.xlu0 %4407
        %4409 = vrot.lane.b32.xlu0 %v1296, 8
        %v4410 = vpop.permute.xlu0 %4409
        %4411 = vrot.lane.b32.xlu0 %v1297, 8
        %v4412 = vpop.permute.xlu0 %4411
        %4413 = vrot.lane.b32.xlu0 %v1298, 8
        %v4414 = vpop.permute.xlu0 %4413
        %4415 = vrot.lane.b32.xlu0 %v1299, 8
        %v4416 = vpop.permute.xlu0 %4415
        %4417 = vrot.lane.b32.xlu0 %v1300, 8
        %v4418 = vpop.permute.xlu0 %4417
        %4419 = vrot.lane.b32.xlu0 %v1301, 8
        %v4420 = vpop.permute.xlu0 %4419
        %vm4421 = vcmask 64512
        %v4422 = vsel %vm4421, %v4382, %v4384
        %v4423 = vsel %vm4421, %v4384, %v4386
        %v4424 = vsel %vm4421, %v4386, %v4388
        %v4425 = vsel %vm4421, %v4388, %v4390
        %v4426 = vsel %vm4421, %v4392, %v4394
        %v4427 = vsel %vm4421, %v4394, %v4396
        %v4428 = vsel %vm4421, %v4396, %v4398
        %v4429 = vsel %vm4421, %v4398, %v4400
        %v4430 = vsel %vm4421, %v4402, %v4404
        %v4431 = vsel %vm4421, %v4404, %v4406
        %v4432 = vsel %vm4421, %v4406, %v4408
        %v4433 = vsel %vm4421, %v4408, %v4410
        %v4434 = vsel %vm4421, %v4412, %v4414
        %v4435 = vsel %vm4421, %v4414, %v4416
        %v4436 = vsel %vm4421, %v4416, %v4418
        %v4437 = vsel %vm4421, %v4418, %v4420
        %v4455 = vsel %vm1395, %v452, 0
        %v4458 = vsel %vm1395, %v453, 0
        %v4461 = vsel %vm1395, %v454, 0
        %v4464 = vsel %vm1395, %v455, 0
        %4466 = vmatprep.subr.mxu0 0.0
        %4467 = vmatpush1.msra.mxu0 0.0
        %4468 = vmatprep.subr.mxu0 0.0
        %4469 = vmatpush1.msra.mxu0 0.0
        %4470 = vmatprep.subr.mxu0 0.0
        %4471 = vmatpush1.msra.mxu0 0.0
        %4472 = vmatprep.subr.mxu0 0.0
        %4473 = vmatpush1.msra.mxu0 0.0
        %4474 = vmatprep.subr.mxu0 0.0
        %4475 = vmatpush1.msra.mxu0 0.0
        %4476 = vmatprep.subr.mxu0 0.0
        %4477 = vmatpush1.msra.mxu0 0.0
        %4478 = vmatprep.subr.mxu0 0.0
        %4479 = vmatpush1.msra.mxu0 0.0
        %4480 = vmatprep.subr.mxu0 0.0
        %4481 = vmatpush1.msra.mxu0 0.0
        %4482 = vmatprep.subr.mxu0 0.0
        %4483 = vmatpush1.msra.mxu0 0.0
        %4484 = vmatprep.subr.mxu0 0.0
        %4485 = vmatpush1.msra.mxu0 0.0
        %4486 = vmatprep.subr.mxu0 0.0
        %4487 = vmatpush1.msra.mxu0 0.0
        %4488 = vmatprep.subr.mxu0 0.0
        %4489 = vmatpush1.msra.mxu0 0.0
        %4490 = vmatprep.subr.mxu0 %v4435
        %4491 = vmatpush1.msra.mxu0 %v4434
        %4492 = vmatprep.subr.mxu0 %v4431
        %4493 = vmatpush1.msra.mxu0 %v4430
        %4494 = vmatprep.subr.mxu0 %v4427
        %4495 = vmatpush1.msra.mxu0 %v4426
        %4496 = vmatprep.subr.mxu0 %v4423
        %4497 = vmatpush1.msra.mxu0 %v4422
        %4498 = vmatprep.subr.mxu0 0.0
        %4499 = vmatpush2.msra.mxu0 0.0
        %4500 = vmatprep.subr.mxu0 0.0
        %4501 = vmatpush2.msra.mxu0 0.0
        %4502 = vmatprep.subr.mxu0 0.0
        %4503 = vmatpush2.msra.mxu0 0.0
        %4504 = vmatprep.subr.mxu0 0.0
        %4505 = vmatpush2.msra.mxu0 0.0
        %4506 = vmatprep.subr.mxu0 0.0
        %4507 = vmatpush2.msra.mxu0 0.0
        %4508 = vmatprep.subr.mxu0 0.0
        %4509 = vmatpush2.msra.mxu0 0.0
        %4510 = vmatprep.subr.mxu0 0.0
        %4511 = vmatpush2.msra.mxu0 0.0
        %4512 = vmatprep.subr.mxu0 0.0
        %4513 = vmatpush2.msra.mxu0 0.0
        %4514 = vmatprep.subr.mxu0 0.0
        %4515 = vmatpush2.msra.mxu0 0.0
        %4516 = vmatprep.subr.mxu0 0.0
        %4517 = vmatpush2.msra.mxu0 0.0
        %4518 = vmatprep.subr.mxu0 0.0
        %4519 = vmatpush2.msra.mxu0 0.0
        %4520 = vmatprep.subr.mxu0 0.0
        %4521 = vmatpush2.msra.mxu0 0.0
        %4522 = vmatprep.subr.mxu0 0.0
        %4523 = vmatpush2.msra.mxu0 0.0
        %4524 = vmatprep.subr.mxu0 0.0
        %4525 = vmatpush2.msra.mxu0 0.0
        %4526 = vmatprep.subr.mxu0 0.0
        %4527 = vmatpush2.msra.mxu0 0.0
        %4528 = vmatprep.subr.mxu0 0.0
        %4529 = vmatpush2.msra.mxu0 0.0
        %4530 = vmatprep.mubr.f32.mxu0 0.0
        %4531 = vmatmul.mubr.f32.gmra.mxu0 %v4455
        %v4532 = vpop.f32.mrf.mxu0
        %v4533 = vadd.f32 0.0, %v4532
        %v4534 = vpop.f32.mrf.mxu0
        %v4535 = vadd.f32 0.0, %v4534
        %4536 = vmatprep.mubr.f32.mxu0 0.0
        %4537 = vmatmul.mubr.f32.gmra.mxu0 %v4458
        %v4538 = vpop.f32.mrf.mxu0
        %v4539 = vadd.f32 0.0, %v4538
        %v4540 = vpop.f32.mrf.mxu0
        %v4541 = vadd.f32 0.0, %v4540
        %4542 = vmatprep.mubr.f32.mxu0 0.0
        %4543 = vmatmul.mubr.f32.gmra.mxu0 %v4461
        %v4544 = vpop.f32.mrf.mxu0
        %v4545 = vadd.f32 0.0, %v4544
        %v4546 = vpop.f32.mrf.mxu0
        %v4547 = vadd.f32 0.0, %v4546
        %4548 = vmatprep.mubr.f32.mxu0 0.0
        %4549 = vmatmul.mubr.f32.gmra.mxu0 %v4464
        %v4550 = vpop.f32.mrf.mxu0
        %v4551 = vadd.f32 0.0, %v4550
        %v4552 = vpop.f32.mrf.mxu0
        %v4553 = vadd.f32 0.0, %v4552
        %4554 = vdwg.mxu0
        %4555 = vmatprep.subr.mxu0 0.0
        %4556 = vmatpush1.msra.mxu0 0.0
        %4557 = vmatprep.subr.mxu0 0.0
        %4558 = vmatpush1.msra.mxu0 0.0
        %4559 = vmatprep.subr.mxu0 0.0
        %4560 = vmatpush1.msra.mxu0 0.0
        %4561 = vmatprep.subr.mxu0 0.0
        %4562 = vmatpush1.msra.mxu0 0.0
        %4563 = vmatprep.subr.mxu0 0.0
        %4564 = vmatpush1.msra.mxu0 0.0
        %4565 = vmatprep.subr.mxu0 0.0
        %4566 = vmatpush1.msra.mxu0 0.0
        %4567 = vmatprep.subr.mxu0 0.0
        %4568 = vmatpush1.msra.mxu0 0.0
        %4569 = vmatprep.subr.mxu0 0.0
        %4570 = vmatpush1.msra.mxu0 0.0
        %4571 = vmatprep.subr.mxu0 0.0
        %4572 = vmatpush1.msra.mxu0 0.0
        %4573 = vmatprep.subr.mxu0 0.0
        %4574 = vmatpush1.msra.mxu0 0.0
        %4575 = vmatprep.subr.mxu0 0.0
        %4576 = vmatpush1.msra.mxu0 0.0
        %4577 = vmatprep.subr.mxu0 0.0
        %4578 = vmatpush1.msra.mxu0 0.0
        %4579 = vmatprep.subr.mxu0 %v4437
        %4580 = vmatpush1.msra.mxu0 %v4436
        %4581 = vmatprep.subr.mxu0 %v4433
        %4582 = vmatpush1.msra.mxu0 %v4432
        %4583 = vmatprep.subr.mxu0 %v4429
        %4584 = vmatpush1.msra.mxu0 %v4428
        %4585 = vmatprep.subr.mxu0 %v4425
        %4586 = vmatpush1.msra.mxu0 %v4424
        %4587 = vmatprep.subr.mxu0 0.0
        %4588 = vmatpush2.msra.mxu0 0.0
        %4589 = vmatprep.subr.mxu0 0.0
        %4590 = vmatpush2.msra.mxu0 0.0
        %4591 = vmatprep.subr.mxu0 0.0
        %4592 = vmatpush2.msra.mxu0 0.0
        %4593 = vmatprep.subr.mxu0 0.0
        %4594 = vmatpush2.msra.mxu0 0.0
        %4595 = vmatprep.subr.mxu0 0.0
        %4596 = vmatpush2.msra.mxu0 0.0
        %4597 = vmatprep.subr.mxu0 0.0
        %4598 = vmatpush2.msra.mxu0 0.0
        %4599 = vmatprep.subr.mxu0 0.0
        %4600 = vmatpush2.msra.mxu0 0.0
        %4601 = vmatprep.subr.mxu0 0.0
        %4602 = vmatpush2.msra.mxu0 0.0
        %4603 = vmatprep.subr.mxu0 0.0
        %4604 = vmatpush2.msra.mxu0 0.0
        %4605 = vmatprep.subr.mxu0 0.0
        %4606 = vmatpush2.msra.mxu0 0.0
        %4607 = vmatprep.subr.mxu0 0.0
        %4608 = vmatpush2.msra.mxu0 0.0
        %4609 = vmatprep.subr.mxu0 0.0
        %4610 = vmatpush2.msra.mxu0 0.0
        %4611 = vmatprep.subr.mxu0 0.0
        %4612 = vmatpush2.msra.mxu0 0.0
        %4613 = vmatprep.subr.mxu0 0.0
        %4614 = vmatpush2.msra.mxu0 0.0
        %4615 = vmatprep.subr.mxu0 0.0
        %4616 = vmatpush2.msra.mxu0 0.0
        %4617 = vmatprep.subr.mxu0 0.0
        %4618 = vmatpush2.msra.mxu0 0.0
        %4619 = vmatprep.mubr.f32.mxu0 0.0
        %4620 = vmatmul.mubr.f32.gmra.mxu0 %v4455
        %v4621 = vpop.f32.mrf.mxu0
        %v4622 = vadd.f32 0.0, %v4621
        %v4623 = vpop.f32.mrf.mxu0
        %v4624 = vadd.f32 0.0, %v4623
        %4625 = vmatprep.mubr.f32.mxu0 0.0
        %4626 = vmatmul.mubr.f32.gmra.mxu0 %v4458
        %v4627 = vpop.f32.mrf.mxu0
        %v4628 = vadd.f32 0.0, %v4627
        %v4629 = vpop.f32.mrf.mxu0
        %v4630 = vadd.f32 0.0, %v4629
        %4631 = vmatprep.mubr.f32.mxu0 0.0
        %4632 = vmatmul.mubr.f32.gmra.mxu0 %v4461
        %v4633 = vpop.f32.mrf.mxu0
        %v4634 = vadd.f32 0.0, %v4633
        %v4635 = vpop.f32.mrf.mxu0
        %v4636 = vadd.f32 0.0, %v4635
        %4637 = vmatprep.mubr.f32.mxu0 0.0
        %4638 = vmatmul.mubr.f32.gmra.mxu0 %v4464
        %v4639 = vpop.f32.mrf.mxu0
        %v4640 = vadd.f32 0.0, %v4639
        %v4641 = vpop.f32.mrf.mxu0
        %v4642 = vadd.f32 0.0, %v4641
        %4643 = vdwg.mxu0
        %v4644 = vadd.f32 %v4365, %v4533
        %v4645 = vadd.f32 %v4366, %v4535
        %v4646 = vadd.f32 %v4367, %v4622
        %v4647 = vadd.f32 %v4368, %v4624
        %v4648 = vadd.f32 %v4369, %v4539
        %v4649 = vadd.f32 %v4370, %v4541
        %v4650 = vadd.f32 %v4371, %v4628
        %v4651 = vadd.f32 %v4372, %v4630
        %v4652 = vadd.f32 %v4373, %v4545
        %v4653 = vadd.f32 %v4374, %v4547
        %v4654 = vadd.f32 %v4375, %v4634
        %v4655 = vadd.f32 %v4376, %v4636
        %v4656 = vadd.f32 %v4377, %v4551
        %v4657 = vadd.f32 %v4378, %v4553
        %v4658 = vadd.f32 %v4379, %v4640
        %v4659 = vadd.f32 %v4380, %v4642
        %4660 = vrot.lane.b32.xlu0 %v1869, 7
        %v4661 = vpop.permute.xlu0 %4660
        %4662 = vrot.lane.b32.xlu0 %v1870, 7
        %v4663 = vpop.permute.xlu0 %4662
        %4664 = vrot.lane.b32.xlu0 %v1871, 7
        %v4665 = vpop.permute.xlu0 %4664
        %4666 = vrot.lane.b32.xlu0 %v1872, 7
        %v4667 = vpop.permute.xlu0 %4666
        %4668 = vrot.lane.b32.xlu0 %v1873, 7
        %v4669 = vpop.permute.xlu0 %4668
        %4670 = vrot.lane.b32.xlu0 %v1874, 7
        %v4671 = vpop.permute.xlu0 %4670
        %4672 = vrot.lane.b32.xlu0 %v1875, 7
        %v4673 = vpop.permute.xlu0 %4672
        %4674 = vrot.lane.b32.xlu0 %v1876, 7
        %v4675 = vpop.permute.xlu0 %4674
        %4676 = vrot.lane.b32.xlu0 %v1877, 7
        %v4677 = vpop.permute.xlu0 %4676
        %4678 = vrot.lane.b32.xlu0 %v1878, 7
        %v4679 = vpop.permute.xlu0 %4678
        %4680 = vrot.lane.b32.xlu0 %v1879, 7
        %v4681 = vpop.permute.xlu0 %4680
        %4682 = vrot.lane.b32.xlu0 %v1880, 7
        %v4683 = vpop.permute.xlu0 %4682
        %4684 = vrot.lane.b32.xlu0 %v1881, 7
        %v4685 = vpop.permute.xlu0 %4684
        %4686 = vrot.lane.b32.xlu0 %v1882, 7
        %v4687 = vpop.permute.xlu0 %4686
        %4688 = vrot.lane.b32.xlu0 %v1883, 7
        %v4689 = vpop.permute.xlu0 %4688
        %4690 = vrot.lane.b32.xlu0 %v1884, 7
        %v4691 = vpop.permute.xlu0 %4690
        %4692 = vrot.lane.b32.xlu0 %v1885, 7
        %v4693 = vpop.permute.xlu0 %4692
        %4694 = vrot.lane.b32.xlu0 %v1886, 7
        %v4695 = vpop.permute.xlu0 %4694
        %4696 = vrot.lane.b32.xlu0 %v1887, 7
        %v4697 = vpop.permute.xlu0 %4696
        %4698 = vrot.lane.b32.xlu0 %v1888, 7
        %v4699 = vpop.permute.xlu0 %4698
        %vm4700 = vcmask 56320
        %v4701 = vsel %vm4700, %v4661, %v4663
        %v4702 = vsel %vm4700, %v4663, %v4665
        %v4703 = vsel %vm4700, %v4665, %v4667
        %v4704 = vsel %vm4700, %v4667, %v4669
        %v4705 = vsel %vm4700, %v4671, %v4673
        %v4706 = vsel %vm4700, %v4673, %v4675
        %v4707 = vsel %vm4700, %v4675, %v4677
        %v4708 = vsel %vm4700, %v4677, %v4679
        %v4709 = vsel %vm4700, %v4681, %v4683
        %v4710 = vsel %vm4700, %v4683, %v4685
        %v4711 = vsel %vm4700, %v4685, %v4687
        %v4712 = vsel %vm4700, %v4687, %v4689
        %v4713 = vsel %vm4700, %v4691, %v4693
        %v4714 = vsel %vm4700, %v4693, %v4695
        %v4715 = vsel %vm4700, %v4695, %v4697
        %v4716 = vsel %vm4700, %v4697, %v4699
        %v4734 = vsel %vm1395, %v456, 0
        %v4737 = vsel %vm1395, %v457, 0
        %v4740 = vsel %vm1395, %v458, 0
        %v4743 = vsel %vm1395, %v459, 0
        %4745 = vmatprep.subr.mxu0 0.0
        %4746 = vmatpush1.msra.mxu0 0.0
        %4747 = vmatprep.subr.mxu0 0.0
        %4748 = vmatpush1.msra.mxu0 0.0
        %4749 = vmatprep.subr.mxu0 0.0
        %4750 = vmatpush1.msra.mxu0 0.0
        %4751 = vmatprep.subr.mxu0 0.0
        %4752 = vmatpush1.msra.mxu0 0.0
        %4753 = vmatprep.subr.mxu0 0.0
        %4754 = vmatpush1.msra.mxu0 0.0
        %4755 = vmatprep.subr.mxu0 0.0
        %4756 = vmatpush1.msra.mxu0 0.0
        %4757 = vmatprep.subr.mxu0 0.0
        %4758 = vmatpush1.msra.mxu0 0.0
        %4759 = vmatprep.subr.mxu0 0.0
        %4760 = vmatpush1.msra.mxu0 0.0
        %4761 = vmatprep.subr.mxu0 0.0
        %4762 = vmatpush1.msra.mxu0 0.0
        %4763 = vmatprep.subr.mxu0 0.0
        %4764 = vmatpush1.msra.mxu0 0.0
        %4765 = vmatprep.subr.mxu0 0.0
        %4766 = vmatpush1.msra.mxu0 0.0
        %4767 = vmatprep.subr.mxu0 0.0
        %4768 = vmatpush1.msra.mxu0 0.0
        %4769 = vmatprep.subr.mxu0 %v4714
        %4770 = vmatpush1.msra.mxu0 %v4713
        %4771 = vmatprep.subr.mxu0 %v4710
        %4772 = vmatpush1.msra.mxu0 %v4709
        %4773 = vmatprep.subr.mxu0 %v4706
        %4774 = vmatpush1.msra.mxu0 %v4705
        %4775 = vmatprep.subr.mxu0 %v4702
        %4776 = vmatpush1.msra.mxu0 %v4701
        %4777 = vmatprep.subr.mxu0 0.0
        %4778 = vmatpush2.msra.mxu0 0.0
        %4779 = vmatprep.subr.mxu0 0.0
        %4780 = vmatpush2.msra.mxu0 0.0
        %4781 = vmatprep.subr.mxu0 0.0
        %4782 = vmatpush2.msra.mxu0 0.0
        %4783 = vmatprep.subr.mxu0 0.0
        %4784 = vmatpush2.msra.mxu0 0.0
        %4785 = vmatprep.subr.mxu0 0.0
        %4786 = vmatpush2.msra.mxu0 0.0
        %4787 = vmatprep.subr.mxu0 0.0
        %4788 = vmatpush2.msra.mxu0 0.0
        %4789 = vmatprep.subr.mxu0 0.0
        %4790 = vmatpush2.msra.mxu0 0.0
        %4791 = vmatprep.subr.mxu0 0.0
        %4792 = vmatpush2.msra.mxu0 0.0
        %4793 = vmatprep.subr.mxu0 0.0
        %4794 = vmatpush2.msra.mxu0 0.0
        %4795 = vmatprep.subr.mxu0 0.0
        %4796 = vmatpush2.msra.mxu0 0.0
        %4797 = vmatprep.subr.mxu0 0.0
        %4798 = vmatpush2.msra.mxu0 0.0
        %4799 = vmatprep.subr.mxu0 0.0
        %4800 = vmatpush2.msra.mxu0 0.0
        %4801 = vmatprep.subr.mxu0 0.0
        %4802 = vmatpush2.msra.mxu0 0.0
        %4803 = vmatprep.subr.mxu0 0.0
        %4804 = vmatpush2.msra.mxu0 0.0
        %4805 = vmatprep.subr.mxu0 0.0
        %4806 = vmatpush2.msra.mxu0 0.0
        %4807 = vmatprep.subr.mxu0 0.0
        %4808 = vmatpush2.msra.mxu0 0.0
        %4809 = vmatprep.mubr.f32.mxu0 0.0
        %4810 = vmatmul.mubr.f32.gmra.mxu0 %v4734
        %v4811 = vpop.f32.mrf.mxu0
        %v4812 = vadd.f32 0.0, %v4811
        %v4813 = vpop.f32.mrf.mxu0
        %v4814 = vadd.f32 0.0, %v4813
        %4815 = vmatprep.mubr.f32.mxu0 0.0
        %4816 = vmatmul.mubr.f32.gmra.mxu0 %v4737
        %v4817 = vpop.f32.mrf.mxu0
        %v4818 = vadd.f32 0.0, %v4817
        %v4819 = vpop.f32.mrf.mxu0
        %v4820 = vadd.f32 0.0, %v4819
        %4821 = vmatprep.mubr.f32.mxu0 0.0
        %4822 = vmatmul.mubr.f32.gmra.mxu0 %v4740
        %v4823 = vpop.f32.mrf.mxu0
        %v4824 = vadd.f32 0.0, %v4823
        %v4825 = vpop.f32.mrf.mxu0
        %v4826 = vadd.f32 0.0, %v4825
        %4827 = vmatprep.mubr.f32.mxu0 0.0
        %4828 = vmatmul.mubr.f32.gmra.mxu0 %v4743
        %v4829 = vpop.f32.mrf.mxu0
        %v4830 = vadd.f32 0.0, %v4829
        %v4831 = vpop.f32.mrf.mxu0
        %v4832 = vadd.f32 0.0, %v4831
        %4833 = vdwg.mxu0
        %4834 = vmatprep.subr.mxu0 0.0
        %4835 = vmatpush1.msra.mxu0 0.0
        %4836 = vmatprep.subr.mxu0 0.0
        %4837 = vmatpush1.msra.mxu0 0.0
        %4838 = vmatprep.subr.mxu0 0.0
        %4839 = vmatpush1.msra.mxu0 0.0
        %4840 = vmatprep.subr.mxu0 0.0
        %4841 = vmatpush1.msra.mxu0 0.0
        %4842 = vmatprep.subr.mxu0 0.0
        %4843 = vmatpush1.msra.mxu0 0.0
        %4844 = vmatprep.subr.mxu0 0.0
        %4845 = vmatpush1.msra.mxu0 0.0
        %4846 = vmatprep.subr.mxu0 0.0
        %4847 = vmatpush1.msra.mxu0 0.0
        %4848 = vmatprep.subr.mxu0 0.0
        %4849 = vmatpush1.msra.mxu0 0.0
        %4850 = vmatprep.subr.mxu0 0.0
        %4851 = vmatpush1.msra.mxu0 0.0
        %4852 = vmatprep.subr.mxu0 0.0
        %4853 = vmatpush1.msra.mxu0 0.0
        %4854 = vmatprep.subr.mxu0 0.0
        %4855 = vmatpush1.msra.mxu0 0.0
        %4856 = vmatprep.subr.mxu0 0.0
        %4857 = vmatpush1.msra.mxu0 0.0
        %4858 = vmatprep.subr.mxu0 %v4716
        %4859 = vmatpush1.msra.mxu0 %v4715
        %4860 = vmatprep.subr.mxu0 %v4712
        %4861 = vmatpush1.msra.mxu0 %v4711
        %4862 = vmatprep.subr.mxu0 %v4708
        %4863 = vmatpush1.msra.mxu0 %v4707
        %4864 = vmatprep.subr.mxu0 %v4704
        %4865 = vmatpush1.msra.mxu0 %v4703
        %4866 = vmatprep.subr.mxu0 0.0
        %4867 = vmatpush2.msra.mxu0 0.0
        %4868 = vmatprep.subr.mxu0 0.0
        %4869 = vmatpush2.msra.mxu0 0.0
        %4870 = vmatprep.subr.mxu0 0.0
        %4871 = vmatpush2.msra.mxu0 0.0
        %4872 = vmatprep.subr.mxu0 0.0
        %4873 = vmatpush2.msra.mxu0 0.0
        %4874 = vmatprep.subr.mxu0 0.0
        %4875 = vmatpush2.msra.mxu0 0.0
        %4876 = vmatprep.subr.mxu0 0.0
        %4877 = vmatpush2.msra.mxu0 0.0
        %4878 = vmatprep.subr.mxu0 0.0
        %4879 = vmatpush2.msra.mxu0 0.0
        %4880 = vmatprep.subr.mxu0 0.0
        %4881 = vmatpush2.msra.mxu0 0.0
        %4882 = vmatprep.subr.mxu0 0.0
        %4883 = vmatpush2.msra.mxu0 0.0
        %4884 = vmatprep.subr.mxu0 0.0
        %4885 = vmatpush2.msra.mxu0 0.0
        %4886 = vmatprep.subr.mxu0 0.0
        %4887 = vmatpush2.msra.mxu0 0.0
        %4888 = vmatprep.subr.mxu0 0.0
        %4889 = vmatpush2.msra.mxu0 0.0
        %4890 = vmatprep.subr.mxu0 0.0
        %4891 = vmatpush2.msra.mxu0 0.0
        %4892 = vmatprep.subr.mxu0 0.0
        %4893 = vmatpush2.msra.mxu0 0.0
        %4894 = vmatprep.subr.mxu0 0.0
        %4895 = vmatpush2.msra.mxu0 0.0
        %4896 = vmatprep.subr.mxu0 0.0
        %4897 = vmatpush2.msra.mxu0 0.0
        %4898 = vmatprep.mubr.f32.mxu0 0.0
        %4899 = vmatmul.mubr.f32.gmra.mxu0 %v4734
        %v4900 = vpop.f32.mrf.mxu0
        %v4901 = vadd.f32 0.0, %v4900
        %v4902 = vpop.f32.mrf.mxu0
        %v4903 = vadd.f32 0.0, %v4902
        %4904 = vmatprep.mubr.f32.mxu0 0.0
        %4905 = vmatmul.mubr.f32.gmra.mxu0 %v4737
        %v4906 = vpop.f32.mrf.mxu0
        %v4907 = vadd.f32 0.0, %v4906
        %v4908 = vpop.f32.mrf.mxu0
        %v4909 = vadd.f32 0.0, %v4908
        %4910 = vmatprep.mubr.f32.mxu0 0.0
        %4911 = vmatmul.mubr.f32.gmra.mxu0 %v4740
        %v4912 = vpop.f32.mrf.mxu0
        %v4913 = vadd.f32 0.0, %v4912
        %v4914 = vpop.f32.mrf.mxu0
        %v4915 = vadd.f32 0.0, %v4914
        %4916 = vmatprep.mubr.f32.mxu0 0.0
        %4917 = vmatmul.mubr.f32.gmra.mxu0 %v4743
        %v4918 = vpop.f32.mrf.mxu0
        %v4919 = vadd.f32 0.0, %v4918
        %v4920 = vpop.f32.mrf.mxu0
        %v4921 = vadd.f32 0.0, %v4920
        %4922 = vdwg.mxu0
        %v4923 = vadd.f32 %v4644, %v4812
        %v4924 = vadd.f32 %v4645, %v4814
        %v4925 = vadd.f32 %v4646, %v4901
        %v4926 = vadd.f32 %v4647, %v4903
        %v4927 = vadd.f32 %v4648, %v4818
        %v4928 = vadd.f32 %v4649, %v4820
        %v4929 = vadd.f32 %v4650, %v4907
        %v4930 = vadd.f32 %v4651, %v4909
        %v4931 = vadd.f32 %v4652, %v4824
        %v4932 = vadd.f32 %v4653, %v4826
        %v4933 = vadd.f32 %v4654, %v4913
        %v4934 = vadd.f32 %v4655, %v4915
        %v4935 = vadd.f32 %v4656, %v4830
        %v4936 = vadd.f32 %v4657, %v4832
        %v4937 = vadd.f32 %v4658, %v4919
        %v4938 = vadd.f32 %v4659, %v4921
        %4939 = vrot.lane.b32.xlu0 %v2188, 1
        %v4940 = vpop.permute.xlu0 %4939
        %4941 = vrot.lane.b32.xlu0 %v2189, 1
        %v4942 = vpop.permute.xlu0 %4941
        %4943 = vrot.lane.b32.xlu0 %v2190, 1
        %v4944 = vpop.permute.xlu0 %4943
        %4945 = vrot.lane.b32.xlu0 %v2191, 1
        %v4946 = vpop.permute.xlu0 %4945
        %4947 = vrot.lane.b32.xlu0 %v2192, 1
        %v4948 = vpop.permute.xlu0 %4947
        %4949 = vrot.lane.b32.xlu0 %v2193, 1
        %v4950 = vpop.permute.xlu0 %4949
        %4951 = vrot.lane.b32.xlu0 %v2194, 1
        %v4952 = vpop.permute.xlu0 %4951
        %4953 = vrot.lane.b32.xlu0 %v2195, 1
        %v4954 = vpop.permute.xlu0 %4953
        %4955 = vrot.lane.b32.xlu0 %v2196, 1
        %v4956 = vpop.permute.xlu0 %4955
        %4957 = vrot.lane.b32.xlu0 %v2197, 1
        %v4958 = vpop.permute.xlu0 %4957
        %4959 = vrot.lane.b32.xlu0 %v2198, 1
        %v4960 = vpop.permute.xlu0 %4959
        %4961 = vrot.lane.b32.xlu0 %v2199, 1
        %v4962 = vpop.permute.xlu0 %4961
        %4963 = vrot.lane.b32.xlu0 %v2200, 1
        %v4964 = vpop.permute.xlu0 %4963
        %4965 = vrot.lane.b32.xlu0 %v2201, 1
        %v4966 = vpop.permute.xlu0 %4965
        %4967 = vrot.lane.b32.xlu0 %v2202, 1
        %v4968 = vpop.permute.xlu0 %4967
        %4969 = vrot.lane.b32.xlu0 %v2203, 1
        %v4970 = vpop.permute.xlu0 %4969
        %4971 = vrot.lane.b32.xlu0 %v2204, 1
        %v4972 = vpop.permute.xlu0 %4971
        %4973 = vrot.lane.b32.xlu0 %v2205, 1
        %v4974 = vpop.permute.xlu0 %4973
        %4975 = vrot.lane.b32.xlu0 %v2206, 1
        %v4976 = vpop.permute.xlu0 %4975
        %4977 = vrot.lane.b32.xlu0 %v2207, 1
        %v4978 = vpop.permute.xlu0 %4977
        %vm4979 = vcmask 7168
        %v4980 = vsel %vm4979, %v4940, %v4942
        %v4981 = vsel %vm4979, %v4942, %v4944
        %v4982 = vsel %vm4979, %v4944, %v4946
        %v4983 = vsel %vm4979, %v4946, %v4948
        %v4984 = vsel %vm4979, %v4950, %v4952
        %v4985 = vsel %vm4979, %v4952, %v4954
        %v4986 = vsel %vm4979, %v4954, %v4956
        %v4987 = vsel %vm4979, %v4956, %v4958
        %v4988 = vsel %vm4979, %v4960, %v4962
        %v4989 = vsel %vm4979, %v4962, %v4964
        %v4990 = vsel %vm4979, %v4964, %v4966
        %v4991 = vsel %vm4979, %v4966, %v4968
        %v4992 = vsel %vm4979, %v4970, %v4972
        %v4993 = vsel %vm4979, %v4972, %v4974
        %v4994 = vsel %vm4979, %v4974, %v4976
        %v4995 = vsel %vm4979, %v4976, %v4978
        %v5013 = vsel %vm1395, %v460, 0
        %v5016 = vsel %vm1395, %v461, 0
        %v5019 = vsel %vm1395, %v462, 0
        %v5022 = vsel %vm1395, %v463, 0
        %5024 = vmatprep.subr.mxu0 0.0
        %5025 = vmatpush1.msra.mxu0 0.0
        %5026 = vmatprep.subr.mxu0 0.0
        %5027 = vmatpush1.msra.mxu0 0.0
        %5028 = vmatprep.subr.mxu0 0.0
        %5029 = vmatpush1.msra.mxu0 0.0
        %5030 = vmatprep.subr.mxu0 0.0
        %5031 = vmatpush1.msra.mxu0 0.0
        %5032 = vmatprep.subr.mxu0 0.0
        %5033 = vmatpush1.msra.mxu0 0.0
        %5034 = vmatprep.subr.mxu0 0.0
        %5035 = vmatpush1.msra.mxu0 0.0
        %5036 = vmatprep.subr.mxu0 0.0
        %5037 = vmatpush1.msra.mxu0 0.0
        %5038 = vmatprep.subr.mxu0 0.0
        %5039 = vmatpush1.msra.mxu0 0.0
        %5040 = vmatprep.subr.mxu0 0.0
        %5041 = vmatpush1.msra.mxu0 0.0
        %5042 = vmatprep.subr.mxu0 0.0
        %5043 = vmatpush1.msra.mxu0 0.0
        %5044 = vmatprep.subr.mxu0 0.0
        %5045 = vmatpush1.msra.mxu0 0.0
        %5046 = vmatprep.subr.mxu0 0.0
        %5047 = vmatpush1.msra.mxu0 0.0
        %5048 = vmatprep.subr.mxu0 %v4993
        %5049 = vmatpush1.msra.mxu0 %v4992
        %5050 = vmatprep.subr.mxu0 %v4989
        %5051 = vmatpush1.msra.mxu0 %v4988
        %5052 = vmatprep.subr.mxu0 %v4985
        %5053 = vmatpush1.msra.mxu0 %v4984
        %5054 = vmatprep.subr.mxu0 %v4981
        %5055 = vmatpush1.msra.mxu0 %v4980
        %5056 = vmatprep.subr.mxu0 0.0
        %5057 = vmatpush2.msra.mxu0 0.0
        %5058 = vmatprep.subr.mxu0 0.0
        %5059 = vmatpush2.msra.mxu0 0.0
        %5060 = vmatprep.subr.mxu0 0.0
        %5061 = vmatpush2.msra.mxu0 0.0
        %5062 = vmatprep.subr.mxu0 0.0
        %5063 = vmatpush2.msra.mxu0 0.0
        %5064 = vmatprep.subr.mxu0 0.0
        %5065 = vmatpush2.msra.mxu0 0.0
        %5066 = vmatprep.subr.mxu0 0.0
        %5067 = vmatpush2.msra.mxu0 0.0
        %5068 = vmatprep.subr.mxu0 0.0
        %5069 = vmatpush2.msra.mxu0 0.0
        %5070 = vmatprep.subr.mxu0 0.0
        %5071 = vmatpush2.msra.mxu0 0.0
        %5072 = vmatprep.subr.mxu0 0.0
        %5073 = vmatpush2.msra.mxu0 0.0
        %5074 = vmatprep.subr.mxu0 0.0
        %5075 = vmatpush2.msra.mxu0 0.0
        %5076 = vmatprep.subr.mxu0 0.0
        %5077 = vmatpush2.msra.mxu0 0.0
        %5078 = vmatprep.subr.mxu0 0.0
        %5079 = vmatpush2.msra.mxu0 0.0
        %5080 = vmatprep.subr.mxu0 0.0
        %5081 = vmatpush2.msra.mxu0 0.0
        %5082 = vmatprep.subr.mxu0 0.0
        %5083 = vmatpush2.msra.mxu0 0.0
        %5084 = vmatprep.subr.mxu0 0.0
        %5085 = vmatpush2.msra.mxu0 0.0
        %5086 = vmatprep.subr.mxu0 0.0
        %5087 = vmatpush2.msra.mxu0 0.0
        %5088 = vmatprep.mubr.f32.mxu0 0.0
        %5089 = vmatmul.mubr.f32.gmra.mxu0 %v5013
        %v5090 = vpop.f32.mrf.mxu0
        %v5091 = vadd.f32 0.0, %v5090
        %v5092 = vpop.f32.mrf.mxu0
        %v5093 = vadd.f32 0.0, %v5092
        %5094 = vmatprep.mubr.f32.mxu0 0.0
        %5095 = vmatmul.mubr.f32.gmra.mxu0 %v5016
        %v5096 = vpop.f32.mrf.mxu0
        %v5097 = vadd.f32 0.0, %v5096
        %v5098 = vpop.f32.mrf.mxu0
        %v5099 = vadd.f32 0.0, %v5098
        %5100 = vmatprep.mubr.f32.mxu0 0.0
        %5101 = vmatmul.mubr.f32.gmra.mxu0 %v5019
        %v5102 = vpop.f32.mrf.mxu0
        %v5103 = vadd.f32 0.0, %v5102
        %v5104 = vpop.f32.mrf.mxu0
        %v5105 = vadd.f32 0.0, %v5104
        %5106 = vmatprep.mubr.f32.mxu0 0.0
        %5107 = vmatmul.mubr.f32.gmra.mxu0 %v5022
        %v5108 = vpop.f32.mrf.mxu0
        %v5109 = vadd.f32 0.0, %v5108
        %v5110 = vpop.f32.mrf.mxu0
        %v5111 = vadd.f32 0.0, %v5110
        %5112 = vdwg.mxu0
        %5113 = vmatprep.subr.mxu0 0.0
        %5114 = vmatpush1.msra.mxu0 0.0
        %5115 = vmatprep.subr.mxu0 0.0
        %5116 = vmatpush1.msra.mxu0 0.0
        %5117 = vmatprep.subr.mxu0 0.0
        %5118 = vmatpush1.msra.mxu0 0.0
        %5119 = vmatprep.subr.mxu0 0.0
        %5120 = vmatpush1.msra.mxu0 0.0
        %5121 = vmatprep.subr.mxu0 0.0
        %5122 = vmatpush1.msra.mxu0 0.0
        %5123 = vmatprep.subr.mxu0 0.0
        %5124 = vmatpush1.msra.mxu0 0.0
        %5125 = vmatprep.subr.mxu0 0.0
        %5126 = vmatpush1.msra.mxu0 0.0
        %5127 = vmatprep.subr.mxu0 0.0
        %5128 = vmatpush1.msra.mxu0 0.0
        %5129 = vmatprep.subr.mxu0 0.0
        %5130 = vmatpush1.msra.mxu0 0.0
        %5131 = vmatprep.subr.mxu0 0.0
        %5132 = vmatpush1.msra.mxu0 0.0
        %5133 = vmatprep.subr.mxu0 0.0
        %5134 = vmatpush1.msra.mxu0 0.0
        %5135 = vmatprep.subr.mxu0 0.0
        %5136 = vmatpush1.msra.mxu0 0.0
        %5137 = vmatprep.subr.mxu0 %v4995
        %5138 = vmatpush1.msra.mxu0 %v4994
        %5139 = vmatprep.subr.mxu0 %v4991
        %5140 = vmatpush1.msra.mxu0 %v4990
        %5141 = vmatprep.subr.mxu0 %v4987
        %5142 = vmatpush1.msra.mxu0 %v4986
        %5143 = vmatprep.subr.mxu0 %v4983
        %5144 = vmatpush1.msra.mxu0 %v4982
        %5145 = vmatprep.subr.mxu0 0.0
        %5146 = vmatpush2.msra.mxu0 0.0
        %5147 = vmatprep.subr.mxu0 0.0
        %5148 = vmatpush2.msra.mxu0 0.0
        %5149 = vmatprep.subr.mxu0 0.0
        %5150 = vmatpush2.msra.mxu0 0.0
        %5151 = vmatprep.subr.mxu0 0.0
        %5152 = vmatpush2.msra.mxu0 0.0
        %5153 = vmatprep.subr.mxu0 0.0
        %5154 = vmatpush2.msra.mxu0 0.0
        %5155 = vmatprep.subr.mxu0 0.0
        %5156 = vmatpush2.msra.mxu0 0.0
        %5157 = vmatprep.subr.mxu0 0.0
        %5158 = vmatpush2.msra.mxu0 0.0
        %5159 = vmatprep.subr.mxu0 0.0
        %5160 = vmatpush2.msra.mxu0 0.0
        %5161 = vmatprep.subr.mxu0 0.0
        %5162 = vmatpush2.msra.mxu0 0.0
        %5163 = vmatprep.subr.mxu0 0.0
        %5164 = vmatpush2.msra.mxu0 0.0
        %5165 = vmatprep.subr.mxu0 0.0
        %5166 = vmatpush2.msra.mxu0 0.0
        %5167 = vmatprep.subr.mxu0 0.0
        %5168 = vmatpush2.msra.mxu0 0.0
        %5169 = vmatprep.subr.mxu0 0.0
        %5170 = vmatpush2.msra.mxu0 0.0
        %5171 = vmatprep.subr.mxu0 0.0
        %5172 = vmatpush2.msra.mxu0 0.0
        %5173 = vmatprep.subr.mxu0 0.0
        %5174 = vmatpush2.msra.mxu0 0.0
        %5175 = vmatprep.subr.mxu0 0.0
        %5176 = vmatpush2.msra.mxu0 0.0
        %5177 = vmatprep.mubr.f32.mxu0 0.0
        %5178 = vmatmul.mubr.f32.gmra.mxu0 %v5013
        %v5179 = vpop.f32.mrf.mxu0
        %v5180 = vadd.f32 0.0, %v5179
        %v5181 = vpop.f32.mrf.mxu0
        %v5182 = vadd.f32 0.0, %v5181
        %5183 = vmatprep.mubr.f32.mxu0 0.0
        %5184 = vmatmul.mubr.f32.gmra.mxu0 %v5016
        %v5185 = vpop.f32.mrf.mxu0
        %v5186 = vadd.f32 0.0, %v5185
        %v5187 = vpop.f32.mrf.mxu0
        %v5188 = vadd.f32 0.0, %v5187
        %5189 = vmatprep.mubr.f32.mxu0 0.0
        %5190 = vmatmul.mubr.f32.gmra.mxu0 %v5019
        %v5191 = vpop.f32.mrf.mxu0
        %v5192 = vadd.f32 0.0, %v5191
        %v5193 = vpop.f32.mrf.mxu0
        %v5194 = vadd.f32 0.0, %v5193
        %5195 = vmatprep.mubr.f32.mxu0 0.0
        %5196 = vmatmul.mubr.f32.gmra.mxu0 %v5022
        %v5197 = vpop.f32.mrf.mxu0
        %v5198 = vadd.f32 0.0, %v5197
        %v5199 = vpop.f32.mrf.mxu0
        %v5200 = vadd.f32 0.0, %v5199
        %5201 = vdwg.mxu0
        %v5202 = vadd.f32 %v4923, %v5091
        %v5203 = vadd.f32 %v4924, %v5093
        %v5204 = vadd.f32 %v4925, %v5180
        %v5205 = vadd.f32 %v4926, %v5182
        %v5206 = vadd.f32 %v4927, %v5097
        %v5207 = vadd.f32 %v4928, %v5099
        %v5208 = vadd.f32 %v4929, %v5186
        %v5209 = vadd.f32 %v4930, %v5188
        %v5210 = vadd.f32 %v4931, %v5103
        %v5211 = vadd.f32 %v4932, %v5105
        %v5212 = vadd.f32 %v4933, %v5192
        %v5213 = vadd.f32 %v4934, %v5194
        %v5214 = vadd.f32 %v4935, %v5109
        %v5215 = vadd.f32 %v4936, %v5111
        %v5216 = vadd.f32 %v4937, %v5198
        %v5217 = vadd.f32 %v4938, %v5200
        %v5219 = vsel %vm1395, %v464, 0
        %v5222 = vsel %vm1395, %v465, 0
        %v5225 = vsel %vm1395, %v466, 0
        %v5228 = vsel %vm1395, %v467, 0
        %5230 = vmatprep.subr.mxu0 0.0
        %5231 = vmatpush1.msra.mxu0 0.0
        %5232 = vmatprep.subr.mxu0 0.0
        %5233 = vmatpush1.msra.mxu0 0.0
        %5234 = vmatprep.subr.mxu0 0.0
        %5235 = vmatpush1.msra.mxu0 0.0
        %5236 = vmatprep.subr.mxu0 0.0
        %5237 = vmatpush1.msra.mxu0 0.0
        %5238 = vmatprep.subr.mxu0 0.0
        %5239 = vmatpush1.msra.mxu0 0.0
        %5240 = vmatprep.subr.mxu0 0.0
        %5241 = vmatpush1.msra.mxu0 0.0
        %5242 = vmatprep.subr.mxu0 0.0
        %5243 = vmatpush1.msra.mxu0 0.0
        %5244 = vmatprep.subr.mxu0 0.0
        %5245 = vmatpush1.msra.mxu0 0.0
        %5246 = vmatprep.subr.mxu0 0.0
        %5247 = vmatpush1.msra.mxu0 0.0
        %5248 = vmatprep.subr.mxu0 0.0
        %5249 = vmatpush1.msra.mxu0 0.0
        %5250 = vmatprep.subr.mxu0 0.0
        %5251 = vmatpush1.msra.mxu0 0.0
        %5252 = vmatprep.subr.mxu0 0.0
        %5253 = vmatpush1.msra.mxu0 0.0
        %5254 = vmatprep.subr.mxu0 %v2524
        %5255 = vmatpush1.msra.mxu0 %v2523
        %5256 = vmatprep.subr.mxu0 %v2519
        %5257 = vmatpush1.msra.mxu0 %v2518
        %5258 = vmatprep.subr.mxu0 %v2514
        %5259 = vmatpush1.msra.mxu0 %v2513
        %5260 = vmatprep.subr.mxu0 %v2509
        %5261 = vmatpush1.msra.mxu0 %v2508
        %5262 = vmatprep.subr.mxu0 0.0
        %5263 = vmatpush2.msra.mxu0 0.0
        %5264 = vmatprep.subr.mxu0 0.0
        %5265 = vmatpush2.msra.mxu0 0.0
        %5266 = vmatprep.subr.mxu0 0.0
        %5267 = vmatpush2.msra.mxu0 0.0
        %5268 = vmatprep.subr.mxu0 0.0
        %5269 = vmatpush2.msra.mxu0 0.0
        %5270 = vmatprep.subr.mxu0 0.0
        %5271 = vmatpush2.msra.mxu0 0.0
        %5272 = vmatprep.subr.mxu0 0.0
        %5273 = vmatpush2.msra.mxu0 0.0
        %5274 = vmatprep.subr.mxu0 0.0
        %5275 = vmatpush2.msra.mxu0 0.0
        %5276 = vmatprep.subr.mxu0 0.0
        %5277 = vmatpush2.msra.mxu0 0.0
        %5278 = vmatprep.subr.mxu0 0.0
        %5279 = vmatpush2.msra.mxu0 0.0
        %5280 = vmatprep.subr.mxu0 0.0
        %5281 = vmatpush2.msra.mxu0 0.0
        %5282 = vmatprep.subr.mxu0 0.0
        %5283 = vmatpush2.msra.mxu0 0.0
        %5284 = vmatprep.subr.mxu0 0.0
        %5285 = vmatpush2.msra.mxu0 0.0
        %5286 = vmatprep.subr.mxu0 0.0
        %5287 = vmatpush2.msra.mxu0 0.0
        %5288 = vmatprep.subr.mxu0 0.0
        %5289 = vmatpush2.msra.mxu0 0.0
        %5290 = vmatprep.subr.mxu0 0.0
        %5291 = vmatpush2.msra.mxu0 0.0
        %5292 = vmatprep.subr.mxu0 0.0
        %5293 = vmatpush2.msra.mxu0 0.0
        %5294 = vmatprep.mubr.f32.mxu0 0.0
        %5295 = vmatmul.mubr.f32.gmra.mxu0 %v5219
        %v5296 = vpop.f32.mrf.mxu0
        %v5297 = vadd.f32 0.0, %v5296
        %v5298 = vpop.f32.mrf.mxu0
        %v5299 = vadd.f32 0.0, %v5298
        %5300 = vmatprep.mubr.f32.mxu0 0.0
        %5301 = vmatmul.mubr.f32.gmra.mxu0 %v5222
        %v5302 = vpop.f32.mrf.mxu0
        %v5303 = vadd.f32 0.0, %v5302
        %v5304 = vpop.f32.mrf.mxu0
        %v5305 = vadd.f32 0.0, %v5304
        %5306 = vmatprep.mubr.f32.mxu0 0.0
        %5307 = vmatmul.mubr.f32.gmra.mxu0 %v5225
        %v5308 = vpop.f32.mrf.mxu0
        %v5309 = vadd.f32 0.0, %v5308
        %v5310 = vpop.f32.mrf.mxu0
        %v5311 = vadd.f32 0.0, %v5310
        %5312 = vmatprep.mubr.f32.mxu0 0.0
        %5313 = vmatmul.mubr.f32.gmra.mxu0 %v5228
        %v5314 = vpop.f32.mrf.mxu0
        %v5315 = vadd.f32 0.0, %v5314
        %v5316 = vpop.f32.mrf.mxu0
        %v5317 = vadd.f32 0.0, %v5316
        %5318 = vdwg.mxu0
        %5319 = vmatprep.subr.mxu0 0.0
        %5320 = vmatpush1.msra.mxu0 0.0
        %5321 = vmatprep.subr.mxu0 0.0
        %5322 = vmatpush1.msra.mxu0 0.0
        %5323 = vmatprep.subr.mxu0 0.0
        %5324 = vmatpush1.msra.mxu0 0.0
        %5325 = vmatprep.subr.mxu0 0.0
        %5326 = vmatpush1.msra.mxu0 0.0
        %5327 = vmatprep.subr.mxu0 0.0
        %5328 = vmatpush1.msra.mxu0 0.0
        %5329 = vmatprep.subr.mxu0 0.0
        %5330 = vmatpush1.msra.mxu0 0.0
        %5331 = vmatprep.subr.mxu0 0.0
        %5332 = vmatpush1.msra.mxu0 0.0
        %5333 = vmatprep.subr.mxu0 0.0
        %5334 = vmatpush1.msra.mxu0 0.0
        %5335 = vmatprep.subr.mxu0 0.0
        %5336 = vmatpush1.msra.mxu0 0.0
        %5337 = vmatprep.subr.mxu0 0.0
        %5338 = vmatpush1.msra.mxu0 0.0
        %5339 = vmatprep.subr.mxu0 0.0
        %5340 = vmatpush1.msra.mxu0 0.0
        %5341 = vmatprep.subr.mxu0 0.0
        %5342 = vmatpush1.msra.mxu0 0.0
        %5343 = vmatprep.subr.mxu0 %v2526
        %5344 = vmatpush1.msra.mxu0 %v2525
        %5345 = vmatprep.subr.mxu0 %v2521
        %5346 = vmatpush1.msra.mxu0 %v2520
        %5347 = vmatprep.subr.mxu0 %v2516
        %5348 = vmatpush1.msra.mxu0 %v2515
        %5349 = vmatprep.subr.mxu0 %v2511
        %5350 = vmatpush1.msra.mxu0 %v2510
        %5351 = vmatprep.subr.mxu0 0.0
        %5352 = vmatpush2.msra.mxu0 0.0
        %5353 = vmatprep.subr.mxu0 0.0
        %5354 = vmatpush2.msra.mxu0 0.0
        %5355 = vmatprep.subr.mxu0 0.0
        %5356 = vmatpush2.msra.mxu0 0.0
        %5357 = vmatprep.subr.mxu0 0.0
        %5358 = vmatpush2.msra.mxu0 0.0
        %5359 = vmatprep.subr.mxu0 0.0
        %5360 = vmatpush2.msra.mxu0 0.0
        %5361 = vmatprep.subr.mxu0 0.0
        %5362 = vmatpush2.msra.mxu0 0.0
        %5363 = vmatprep.subr.mxu0 0.0
        %5364 = vmatpush2.msra.mxu0 0.0
        %5365 = vmatprep.subr.mxu0 0.0
        %5366 = vmatpush2.msra.mxu0 0.0
        %5367 = vmatprep.subr.mxu0 0.0
        %5368 = vmatpush2.msra.mxu0 0.0
        %5369 = vmatprep.subr.mxu0 0.0
        %5370 = vmatpush2.msra.mxu0 0.0
        %5371 = vmatprep.subr.mxu0 0.0
        %5372 = vmatpush2.msra.mxu0 0.0
        %5373 = vmatprep.subr.mxu0 0.0
        %5374 = vmatpush2.msra.mxu0 0.0
        %5375 = vmatprep.subr.mxu0 0.0
        %5376 = vmatpush2.msra.mxu0 0.0
        %5377 = vmatprep.subr.mxu0 0.0
        %5378 = vmatpush2.msra.mxu0 0.0
        %5379 = vmatprep.subr.mxu0 0.0
        %5380 = vmatpush2.msra.mxu0 0.0
        %5381 = vmatprep.subr.mxu0 0.0
        %5382 = vmatpush2.msra.mxu0 0.0
        %5383 = vmatprep.mubr.f32.mxu0 0.0
        %5384 = vmatmul.mubr.f32.gmra.mxu0 %v5219
        %v5385 = vpop.f32.mrf.mxu0
        %v5386 = vadd.f32 0.0, %v5385
        %v5387 = vpop.f32.mrf.mxu0
        %v5388 = vadd.f32 0.0, %v5387
        %5389 = vmatprep.mubr.f32.mxu0 0.0
        %5390 = vmatmul.mubr.f32.gmra.mxu0 %v5222
        %v5391 = vpop.f32.mrf.mxu0
        %v5392 = vadd.f32 0.0, %v5391
        %v5393 = vpop.f32.mrf.mxu0
        %v5394 = vadd.f32 0.0, %v5393
        %5395 = vmatprep.mubr.f32.mxu0 0.0
        %5396 = vmatmul.mubr.f32.gmra.mxu0 %v5225
        %v5397 = vpop.f32.mrf.mxu0
        %v5398 = vadd.f32 0.0, %v5397
        %v5399 = vpop.f32.mrf.mxu0
        %v5400 = vadd.f32 0.0, %v5399
        %5401 = vmatprep.mubr.f32.mxu0 0.0
        %5402 = vmatmul.mubr.f32.gmra.mxu0 %v5228
        %v5403 = vpop.f32.mrf.mxu0
        %v5404 = vadd.f32 0.0, %v5403
        %v5405 = vpop.f32.mrf.mxu0
        %v5406 = vadd.f32 0.0, %v5405
        %5407 = vdwg.mxu0
        %v5408 = vadd.f32 %v5202, %v5297
        %v5409 = vadd.f32 %v5203, %v5299
        %v5410 = vadd.f32 %v5204, %v5386
        %v5411 = vadd.f32 %v5205, %v5388
        %v5412 = vadd.f32 %v5206, %v5303
        %v5413 = vadd.f32 %v5207, %v5305
        %v5414 = vadd.f32 %v5208, %v5392
        %v5415 = vadd.f32 %v5209, %v5394
        %v5416 = vadd.f32 %v5210, %v5309
        %v5417 = vadd.f32 %v5211, %v5311
        %v5418 = vadd.f32 %v5212, %v5398
        %v5419 = vadd.f32 %v5213, %v5400
        %v5420 = vadd.f32 %v5214, %v5315
        %v5421 = vadd.f32 %v5215, %v5317
        %v5422 = vadd.f32 %v5216, %v5404
        %v5423 = vadd.f32 %v5217, %v5406
        %v5424 = vld [vmem:[%s1098 + $0x8] sm:$0xff]
        %v5425 = vld [vmem:[%s1098 + $0x10] sm:$0xff]
        %v5426 = vld [vmem:[%s1098 + $0x18] sm:$0xff]
        %v5427 = vld [vmem:[%s1098 + $0x20] sm:$0xff]
        %v5428 = vld [vmem:[%s1098 + $0x28] sm:$0xff]
        %v5429 = vld [vmem:[%s1098 + $0x38] sm:$0xff]
        %v5430 = vld [vmem:[%s1098 + $0x40] sm:$0xff]
        %v5431 = vld [vmem:[%s1098 + $0x48] sm:$0xff]
        %v5432 = vld [vmem:[%s1098 + $0x50] sm:$0xff]
        %v5433 = vld [vmem:[%s1098 + $0x58] sm:$0xff]
        %v5434 = vld [vmem:[%s1098 + $0x68] sm:$0xff]
        %v5435 = vld [vmem:[%s1098 + $0x70] sm:$0xff]
        %v5436 = vld [vmem:[%s1098 + $0x78] sm:$0xff]
        %v5437 = vld [vmem:[%s1098 + $0x80] sm:$0xff]
        %v5438 = vld [vmem:[%s1098 + $0x88] sm:$0xff]
        %v5439 = vld [vmem:[%s1098 + $0x98] sm:$0xff]
        %v5440 = vld [vmem:[%s1098 + $0xa0] sm:$0xff]
        %v5441 = vld [vmem:[%s1098 + $0xa8] sm:$0xff]
        %v5442 = vld [vmem:[%s1098 + $0xb0] sm:$0xff]
        %v5443 = vld [vmem:[%s1098 + $0xb8] sm:$0xff]
        %5464 = vrot.lane.b32.xlu0 %v5424, 127
        %v5465 = vpop.permute.xlu0 %5464
        %5466 = vrot.lane.b32.xlu0 %v5425, 127
        %v5467 = vpop.permute.xlu0 %5466
        %5468 = vrot.lane.b32.xlu0 %v5426, 127
        %v5469 = vpop.permute.xlu0 %5468
        %5470 = vrot.lane.b32.xlu0 %v5427, 127
        %v5471 = vpop.permute.xlu0 %5470
        %5472 = vrot.lane.b32.xlu0 %v5428, 127
        %v5473 = vpop.permute.xlu0 %5472
        %5474 = vrot.lane.b32.xlu0 %v5429, 127
        %v5475 = vpop.permute.xlu0 %5474
        %5476 = vrot.lane.b32.xlu0 %v5430, 127
        %v5477 = vpop.permute.xlu0 %5476
        %5478 = vrot.lane.b32.xlu0 %v5431, 127
        %v5479 = vpop.permute.xlu0 %5478
        %5480 = vrot.lane.b32.xlu0 %v5432, 127
        %v5481 = vpop.permute.xlu0 %5480
        %5482 = vrot.lane.b32.xlu0 %v5433, 127
        %v5483 = vpop.permute.xlu0 %5482
        %5484 = vrot.lane.b32.xlu0 %v5434, 127
        %v5485 = vpop.permute.xlu0 %5484
        %5486 = vrot.lane.b32.xlu0 %v5435, 127
        %v5487 = vpop.permute.xlu0 %5486
        %5488 = vrot.lane.b32.xlu0 %v5436, 127
        %v5489 = vpop.permute.xlu0 %5488
        %5490 = vrot.lane.b32.xlu0 %v5437, 127
        %v5491 = vpop.permute.xlu0 %5490
        %5492 = vrot.lane.b32.xlu0 %v5438, 127
        %v5493 = vpop.permute.xlu0 %5492
        %5494 = vrot.lane.b32.xlu0 %v5439, 127
        %v5495 = vpop.permute.xlu0 %5494
        %5496 = vrot.lane.b32.xlu0 %v5440, 127
        %v5497 = vpop.permute.xlu0 %5496
        %5498 = vrot.lane.b32.xlu0 %v5441, 127
        %v5499 = vpop.permute.xlu0 %5498
        %5500 = vrot.lane.b32.xlu0 %v5442, 127
        %v5501 = vpop.permute.xlu0 %5500
        %5502 = vrot.lane.b32.xlu0 %v5443, 127
        %v5503 = vpop.permute.xlu0 %5502
        %vm5504 = vcmask 1039360
        %v5505 = vsel %vm5504, %v5465, %v5467
        %v5506 = vsel %vm5504, %v5467, %v5469
        %v5507 = vsel %vm5504, %v5469, %v5471
        %v5508 = vsel %vm5504, %v5471, %v5473
        %v5509 = vsel %vm5504, %v5475, %v5477
        %v5510 = vsel %vm5504, %v5477, %v5479
        %v5511 = vsel %vm5504, %v5479, %v5481
        %v5512 = vsel %vm5504, %v5481, %v5483
        %v5513 = vsel %vm5504, %v5485, %v5487
        %v5514 = vsel %vm5504, %v5487, %v5489
        %v5515 = vsel %vm5504, %v5489, %v5491
        %v5516 = vsel %vm5504, %v5491, %v5493
        %v5517 = vsel %vm5504, %v5495, %v5497
        %v5518 = vsel %vm5504, %v5497, %v5499
        %v5519 = vsel %vm5504, %v5499, %v5501
        %v5520 = vsel %vm5504, %v5501, %v5503
        %v5538 = vsel %vm1395, %v468, 0
        %v5541 = vsel %vm1395, %v469, 0
        %v5544 = vsel %vm1395, %v470, 0
        %v5547 = vsel %vm1395, %v471, 0
        %5549 = vmatprep.subr.mxu0 0.0
        %5550 = vmatpush1.msra.mxu0 0.0
        %5551 = vmatprep.subr.mxu0 0.0
        %5552 = vmatpush1.msra.mxu0 0.0
        %5553 = vmatprep.subr.mxu0 0.0
        %5554 = vmatpush1.msra.mxu0 0.0
        %5555 = vmatprep.subr.mxu0 0.0
        %5556 = vmatpush1.msra.mxu0 0.0
        %5557 = vmatprep.subr.mxu0 0.0
        %5558 = vmatpush1.msra.mxu0 0.0
        %5559 = vmatprep.subr.mxu0 0.0
        %5560 = vmatpush1.msra.mxu0 0.0
        %5561 = vmatprep.subr.mxu0 0.0
        %5562 = vmatpush1.msra.mxu0 0.0
        %5563 = vmatprep.subr.mxu0 0.0
        %5564 = vmatpush1.msra.mxu0 0.0
        %5565 = vmatprep.subr.mxu0 0.0
        %5566 = vmatpush1.msra.mxu0 0.0
        %5567 = vmatprep.subr.mxu0 0.0
        %5568 = vmatpush1.msra.mxu0 0.0
        %5569 = vmatprep.subr.mxu0 0.0
        %5570 = vmatpush1.msra.mxu0 0.0
        %5571 = vmatprep.subr.mxu0 0.0
        %5572 = vmatpush1.msra.mxu0 0.0
        %5573 = vmatprep.subr.mxu0 %v5518
        %5574 = vmatpush1.msra.mxu0 %v5517
        %5575 = vmatprep.subr.mxu0 %v5514
        %5576 = vmatpush1.msra.mxu0 %v5513
        %5577 = vmatprep.subr.mxu0 %v5510
        %5578 = vmatpush1.msra.mxu0 %v5509
        %5579 = vmatprep.subr.mxu0 %v5506
        %5580 = vmatpush1.msra.mxu0 %v5505
        %5581 = vmatprep.subr.mxu0 0.0
        %5582 = vmatpush2.msra.mxu0 0.0
        %5583 = vmatprep.subr.mxu0 0.0
        %5584 = vmatpush2.msra.mxu0 0.0
        %5585 = vmatprep.subr.mxu0 0.0
        %5586 = vmatpush2.msra.mxu0 0.0
        %5587 = vmatprep.subr.mxu0 0.0
        %5588 = vmatpush2.msra.mxu0 0.0
        %5589 = vmatprep.subr.mxu0 0.0
        %5590 = vmatpush2.msra.mxu0 0.0
        %5591 = vmatprep.subr.mxu0 0.0
        %5592 = vmatpush2.msra.mxu0 0.0
        %5593 = vmatprep.subr.mxu0 0.0
        %5594 = vmatpush2.msra.mxu0 0.0
        %5595 = vmatprep.subr.mxu0 0.0
        %5596 = vmatpush2.msra.mxu0 0.0
        %5597 = vmatprep.subr.mxu0 0.0
        %5598 = vmatpush2.msra.mxu0 0.0
        %5599 = vmatprep.subr.mxu0 0.0
        %5600 = vmatpush2.msra.mxu0 0.0
        %5601 = vmatprep.subr.mxu0 0.0
        %5602 = vmatpush2.msra.mxu0 0.0
        %5603 = vmatprep.subr.mxu0 0.0
        %5604 = vmatpush2.msra.mxu0 0.0
        %5605 = vmatprep.subr.mxu0 0.0
        %5606 = vmatpush2.msra.mxu0 0.0
        %5607 = vmatprep.subr.mxu0 0.0
        %5608 = vmatpush2.msra.mxu0 0.0
        %5609 = vmatprep.subr.mxu0 0.0
        %5610 = vmatpush2.msra.mxu0 0.0
        %5611 = vmatprep.subr.mxu0 0.0
        %5612 = vmatpush2.msra.mxu0 0.0
        %5613 = vmatprep.mubr.f32.mxu0 0.0
        %5614 = vmatmul.mubr.f32.gmra.mxu0 %v5538
        %v5615 = vpop.f32.mrf.mxu0
        %v5616 = vadd.f32 0.0, %v5615
        %v5617 = vpop.f32.mrf.mxu0
        %v5618 = vadd.f32 0.0, %v5617
        %5619 = vmatprep.mubr.f32.mxu0 0.0
        %5620 = vmatmul.mubr.f32.gmra.mxu0 %v5541
        %v5621 = vpop.f32.mrf.mxu0
        %v5622 = vadd.f32 0.0, %v5621
        %v5623 = vpop.f32.mrf.mxu0
        %v5624 = vadd.f32 0.0, %v5623
        %5625 = vmatprep.mubr.f32.mxu0 0.0
        %5626 = vmatmul.mubr.f32.gmra.mxu0 %v5544
        %v5627 = vpop.f32.mrf.mxu0
        %v5628 = vadd.f32 0.0, %v5627
        %v5629 = vpop.f32.mrf.mxu0
        %v5630 = vadd.f32 0.0, %v5629
        %5631 = vmatprep.mubr.f32.mxu0 0.0
        %5632 = vmatmul.mubr.f32.gmra.mxu0 %v5547
        %v5633 = vpop.f32.mrf.mxu0
        %v5634 = vadd.f32 0.0, %v5633
        %v5635 = vpop.f32.mrf.mxu0
        %v5636 = vadd.f32 0.0, %v5635
        %5637 = vdwg.mxu0
        %5638 = vmatprep.subr.mxu0 0.0
        %5639 = vmatpush1.msra.mxu0 0.0
        %5640 = vmatprep.subr.mxu0 0.0
        %5641 = vmatpush1.msra.mxu0 0.0
        %5642 = vmatprep.subr.mxu0 0.0
        %5643 = vmatpush1.msra.mxu0 0.0
        %5644 = vmatprep.subr.mxu0 0.0
        %5645 = vmatpush1.msra.mxu0 0.0
        %5646 = vmatprep.subr.mxu0 0.0
        %5647 = vmatpush1.msra.mxu0 0.0
        %5648 = vmatprep.subr.mxu0 0.0
        %5649 = vmatpush1.msra.mxu0 0.0
        %5650 = vmatprep.subr.mxu0 0.0
        %5651 = vmatpush1.msra.mxu0 0.0
        %5652 = vmatprep.subr.mxu0 0.0
        %5653 = vmatpush1.msra.mxu0 0.0
        %5654 = vmatprep.subr.mxu0 0.0
        %5655 = vmatpush1.msra.mxu0 0.0
        %5656 = vmatprep.subr.mxu0 0.0
        %5657 = vmatpush1.msra.mxu0 0.0
        %5658 = vmatprep.subr.mxu0 0.0
        %5659 = vmatpush1.msra.mxu0 0.0
        %5660 = vmatprep.subr.mxu0 0.0
        %5661 = vmatpush1.msra.mxu0 0.0
        %5662 = vmatprep.subr.mxu0 %v5520
        %5663 = vmatpush1.msra.mxu0 %v5519
        %5664 = vmatprep.subr.mxu0 %v5516
        %5665 = vmatpush1.msra.mxu0 %v5515
        %5666 = vmatprep.subr.mxu0 %v5512
        %5667 = vmatpush1.msra.mxu0 %v5511
        %5668 = vmatprep.subr.mxu0 %v5508
        %5669 = vmatpush1.msra.mxu0 %v5507
        %5670 = vmatprep.subr.mxu0 0.0
        %5671 = vmatpush2.msra.mxu0 0.0
        %5672 = vmatprep.subr.mxu0 0.0
        %5673 = vmatpush2.msra.mxu0 0.0
        %5674 = vmatprep.subr.mxu0 0.0
        %5675 = vmatpush2.msra.mxu0 0.0
        %5676 = vmatprep.subr.mxu0 0.0
        %5677 = vmatpush2.msra.mxu0 0.0
        %5678 = vmatprep.subr.mxu0 0.0
        %5679 = vmatpush2.msra.mxu0 0.0
        %5680 = vmatprep.subr.mxu0 0.0
        %5681 = vmatpush2.msra.mxu0 0.0
        %5682 = vmatprep.subr.mxu0 0.0
        %5683 = vmatpush2.msra.mxu0 0.0
        %5684 = vmatprep.subr.mxu0 0.0
        %5685 = vmatpush2.msra.mxu0 0.0
        %5686 = vmatprep.subr.mxu0 0.0
        %5687 = vmatpush2.msra.mxu0 0.0
        %5688 = vmatprep.subr.mxu0 0.0
        %5689 = vmatpush2.msra.mxu0 0.0
        %5690 = vmatprep.subr.mxu0 0.0
        %5691 = vmatpush2.msra.mxu0 0.0
        %5692 = vmatprep.subr.mxu0 0.0
        %5693 = vmatpush2.msra.mxu0 0.0
        %5694 = vmatprep.subr.mxu0 0.0
        %5695 = vmatpush2.msra.mxu0 0.0
        %5696 = vmatprep.subr.mxu0 0.0
        %5697 = vmatpush2.msra.mxu0 0.0
        %5698 = vmatprep.subr.mxu0 0.0
        %5699 = vmatpush2.msra.mxu0 0.0
        %5700 = vmatprep.subr.mxu0 0.0
        %5701 = vmatpush2.msra.mxu0 0.0
        %5702 = vmatprep.mubr.f32.mxu0 0.0
        %5703 = vmatmul.mubr.f32.gmra.mxu0 %v5538
        %v5704 = vpop.f32.mrf.mxu0
        %v5705 = vadd.f32 0.0, %v5704
        %v5706 = vpop.f32.mrf.mxu0
        %v5707 = vadd.f32 0.0, %v5706
        %5708 = vmatprep.mubr.f32.mxu0 0.0
        %5709 = vmatmul.mubr.f32.gmra.mxu0 %v5541
        %v5710 = vpop.f32.mrf.mxu0
        %v5711 = vadd.f32 0.0, %v5710
        %v5712 = vpop.f32.mrf.mxu0
        %v5713 = vadd.f32 0.0, %v5712
        %5714 = vmatprep.mubr.f32.mxu0 0.0
        %5715 = vmatmul.mubr.f32.gmra.mxu0 %v5544
        %v5716 = vpop.f32.mrf.mxu0
        %v5717 = vadd.f32 0.0, %v5716
        %v5718 = vpop.f32.mrf.mxu0
        %v5719 = vadd.f32 0.0, %v5718
        %5720 = vmatprep.mubr.f32.mxu0 0.0
        %5721 = vmatmul.mubr.f32.gmra.mxu0 %v5547
        %v5722 = vpop.f32.mrf.mxu0
        %v5723 = vadd.f32 0.0, %v5722
        %v5724 = vpop.f32.mrf.mxu0
        %v5725 = vadd.f32 0.0, %v5724
        %5726 = vdwg.mxu0
        %v5727 = vadd.f32 %v5408, %v5616
        %v5728 = vadd.f32 %v5409, %v5618
        %v5729 = vadd.f32 %v5410, %v5705
        %v5730 = vadd.f32 %v5411, %v5707
        %v5731 = vadd.f32 %v5412, %v5622
        %v5732 = vadd.f32 %v5413, %v5624
        %v5733 = vadd.f32 %v5414, %v5711
        %v5734 = vadd.f32 %v5415, %v5713
        %v5735 = vadd.f32 %v5416, %v5628
        %v5736 = vadd.f32 %v5417, %v5630
        %v5737 = vadd.f32 %v5418, %v5717
        %v5738 = vadd.f32 %v5419, %v5719
        %v5739 = vadd.f32 %v5420, %v5634
        %v5740 = vadd.f32 %v5421, %v5636
        %v5741 = vadd.f32 %v5422, %v5723
        %v5742 = vadd.f32 %v5423, %v5725
        %v5743 = vld [vmem:[%s1147 + $0x8] sm:$0xff]
        %v5744 = vld [vmem:[%s1147 + $0x10] sm:$0xff]
        %v5745 = vld [vmem:[%s1147 + $0x18] sm:$0xff]
        %v5746 = vld [vmem:[%s1147 + $0x20] sm:$0xff]
        %v5747 = vld [vmem:[%s1147 + $0x28] sm:$0xff]
        %v5748 = vld [vmem:[%s1147 + $0x38] sm:$0xff]
        %v5749 = vld [vmem:[%s1147 + $0x40] sm:$0xff]
        %v5750 = vld [vmem:[%s1147 + $0x48] sm:$0xff]
        %v5751 = vld [vmem:[%s1147 + $0x50] sm:$0xff]
        %v5752 = vld [vmem:[%s1147 + $0x58] sm:$0xff]
        %v5753 = vld [vmem:[%s1147 + $0x68] sm:$0xff]
        %v5754 = vld [vmem:[%s1147 + $0x70] sm:$0xff]
        %v5755 = vld [vmem:[%s1147 + $0x78] sm:$0xff]
        %v5756 = vld [vmem:[%s1147 + $0x80] sm:$0xff]
        %v5757 = vld [vmem:[%s1147 + $0x88] sm:$0xff]
        %v5758 = vld [vmem:[%s1147 + $0x98] sm:$0xff]
        %v5759 = vld [vmem:[%s1147 + $0xa0] sm:$0xff]
        %v5760 = vld [vmem:[%s1147 + $0xa8] sm:$0xff]
        %v5761 = vld [vmem:[%s1147 + $0xb0] sm:$0xff]
        %v5762 = vld [vmem:[%s1147 + $0xb8] sm:$0xff]
        %5783 = vrot.lane.b32.xlu0 %v5743, 121
        %v5784 = vpop.permute.xlu0 %5783
        %5785 = vrot.lane.b32.xlu0 %v5744, 121
        %v5786 = vpop.permute.xlu0 %5785
        %5787 = vrot.lane.b32.xlu0 %v5745, 121
        %v5788 = vpop.permute.xlu0 %5787
        %5789 = vrot.lane.b32.xlu0 %v5746, 121
        %v5790 = vpop.permute.xlu0 %5789
        %5791 = vrot.lane.b32.xlu0 %v5747, 121
        %v5792 = vpop.permute.xlu0 %5791
        %5793 = vrot.lane.b32.xlu0 %v5748, 121
        %v5794 = vpop.permute.xlu0 %5793
        %5795 = vrot.lane.b32.xlu0 %v5749, 121
        %v5796 = vpop.permute.xlu0 %5795
        %5797 = vrot.lane.b32.xlu0 %v5750, 121
        %v5798 = vpop.permute.xlu0 %5797
        %5799 = vrot.lane.b32.xlu0 %v5751, 121
        %v5800 = vpop.permute.xlu0 %5799
        %5801 = vrot.lane.b32.xlu0 %v5752, 121
        %v5802 = vpop.permute.xlu0 %5801
        %5803 = vrot.lane.b32.xlu0 %v5753, 121
        %v5804 = vpop.permute.xlu0 %5803
        %5805 = vrot.lane.b32.xlu0 %v5754, 121
        %v5806 = vpop.permute.xlu0 %5805
        %5807 = vrot.lane.b32.xlu0 %v5755, 121
        %v5808 = vpop.permute.xlu0 %5807
        %5809 = vrot.lane.b32.xlu0 %v5756, 121
        %v5810 = vpop.permute.xlu0 %5809
        %5811 = vrot.lane.b32.xlu0 %v5757, 121
        %v5812 = vpop.permute.xlu0 %5811
        %5813 = vrot.lane.b32.xlu0 %v5758, 121
        %v5814 = vpop.permute.xlu0 %5813
        %5815 = vrot.lane.b32.xlu0 %v5759, 121
        %v5816 = vpop.permute.xlu0 %5815
        %5817 = vrot.lane.b32.xlu0 %v5760, 121
        %v5818 = vpop.permute.xlu0 %5817
        %5819 = vrot.lane.b32.xlu0 %v5761, 121
        %v5820 = vpop.permute.xlu0 %5819
        %5821 = vrot.lane.b32.xlu0 %v5762, 121
        %v5822 = vpop.permute.xlu0 %5821
        %vm5823 = vcmask 990208
        %v5824 = vsel %vm5823, %v5784, %v5786
        %v5825 = vsel %vm5823, %v5786, %v5788
        %v5826 = vsel %vm5823, %v5788, %v5790
        %v5827 = vsel %vm5823, %v5790, %v5792
        %v5828 = vsel %vm5823, %v5794, %v5796
        %v5829 = vsel %vm5823, %v5796, %v5798
        %v5830 = vsel %vm5823, %v5798, %v5800
        %v5831 = vsel %vm5823, %v5800, %v5802
        %v5832 = vsel %vm5823, %v5804, %v5806
        %v5833 = vsel %vm5823, %v5806, %v5808
        %v5834 = vsel %vm5823, %v5808, %v5810
        %v5835 = vsel %vm5823, %v5810, %v5812
        %v5836 = vsel %vm5823, %v5814, %v5816
        %v5837 = vsel %vm5823, %v5816, %v5818
        %v5838 = vsel %vm5823, %v5818, %v5820
        %v5839 = vsel %vm5823, %v5820, %v5822
        %v5857 = vsel %vm1395, %v472, 0
        %v5860 = vsel %vm1395, %v473, 0
        %v5863 = vsel %vm1395, %v474, 0
        %v5866 = vsel %vm1395, %v475, 0
        %5868 = vmatprep.subr.mxu0 0.0
        %5869 = vmatpush1.msra.mxu0 0.0
        %5870 = vmatprep.subr.mxu0 0.0
        %5871 = vmatpush1.msra.mxu0 0.0
        %5872 = vmatprep.subr.mxu0 0.0
        %5873 = vmatpush1.msra.mxu0 0.0
        %5874 = vmatprep.subr.mxu0 0.0
        %5875 = vmatpush1.msra.mxu0 0.0
        %5876 = vmatprep.subr.mxu0 0.0
        %5877 = vmatpush1.msra.mxu0 0.0
        %5878 = vmatprep.subr.mxu0 0.0
        %5879 = vmatpush1.msra.mxu0 0.0
        %5880 = vmatprep.subr.mxu0 0.0
        %5881 = vmatpush1.msra.mxu0 0.0
        %5882 = vmatprep.subr.mxu0 0.0
        %5883 = vmatpush1.msra.mxu0 0.0
        %5884 = vmatprep.subr.mxu0 0.0
        %5885 = vmatpush1.msra.mxu0 0.0
        %5886 = vmatprep.subr.mxu0 0.0
        %5887 = vmatpush1.msra.mxu0 0.0
        %5888 = vmatprep.subr.mxu0 0.0
        %5889 = vmatpush1.msra.mxu0 0.0
        %5890 = vmatprep.subr.mxu0 0.0
        %5891 = vmatpush1.msra.mxu0 0.0
        %5892 = vmatprep.subr.mxu0 %v5837
        %5893 = vmatpush1.msra.mxu0 %v5836
        %5894 = vmatprep.subr.mxu0 %v5833
        %5895 = vmatpush1.msra.mxu0 %v5832
        %5896 = vmatprep.subr.mxu0 %v5829
        %5897 = vmatpush1.msra.mxu0 %v5828
        %5898 = vmatprep.subr.mxu0 %v5825
        %5899 = vmatpush1.msra.mxu0 %v5824
        %5900 = vmatprep.subr.mxu0 0.0
        %5901 = vmatpush2.msra.mxu0 0.0
        %5902 = vmatprep.subr.mxu0 0.0
        %5903 = vmatpush2.msra.mxu0 0.0
        %5904 = vmatprep.subr.mxu0 0.0
        %5905 = vmatpush2.msra.mxu0 0.0
        %5906 = vmatprep.subr.mxu0 0.0
        %5907 = vmatpush2.msra.mxu0 0.0
        %5908 = vmatprep.subr.mxu0 0.0
        %5909 = vmatpush2.msra.mxu0 0.0
        %5910 = vmatprep.subr.mxu0 0.0
        %5911 = vmatpush2.msra.mxu0 0.0
        %5912 = vmatprep.subr.mxu0 0.0
        %5913 = vmatpush2.msra.mxu0 0.0
        %5914 = vmatprep.subr.mxu0 0.0
        %5915 = vmatpush2.msra.mxu0 0.0
        %5916 = vmatprep.subr.mxu0 0.0
        %5917 = vmatpush2.msra.mxu0 0.0
        %5918 = vmatprep.subr.mxu0 0.0
        %5919 = vmatpush2.msra.mxu0 0.0
        %5920 = vmatprep.subr.mxu0 0.0
        %5921 = vmatpush2.msra.mxu0 0.0
        %5922 = vmatprep.subr.mxu0 0.0
        %5923 = vmatpush2.msra.mxu0 0.0
        %5924 = vmatprep.subr.mxu0 0.0
        %5925 = vmatpush2.msra.mxu0 0.0
        %5926 = vmatprep.subr.mxu0 0.0
        %5927 = vmatpush2.msra.mxu0 0.0
        %5928 = vmatprep.subr.mxu0 0.0
        %5929 = vmatpush2.msra.mxu0 0.0
        %5930 = vmatprep.subr.mxu0 0.0
        %5931 = vmatpush2.msra.mxu0 0.0
        %5932 = vmatprep.mubr.f32.mxu0 0.0
        %5933 = vmatmul.mubr.f32.gmra.mxu0 %v5857
        %v5934 = vpop.f32.mrf.mxu0
        %v5935 = vadd.f32 0.0, %v5934
        %v5936 = vpop.f32.mrf.mxu0
        %v5937 = vadd.f32 0.0, %v5936
        %5938 = vmatprep.mubr.f32.mxu0 0.0
        %5939 = vmatmul.mubr.f32.gmra.mxu0 %v5860
        %v5940 = vpop.f32.mrf.mxu0
        %v5941 = vadd.f32 0.0, %v5940
        %v5942 = vpop.f32.mrf.mxu0
        %v5943 = vadd.f32 0.0, %v5942
        %5944 = vmatprep.mubr.f32.mxu0 0.0
        %5945 = vmatmul.mubr.f32.gmra.mxu0 %v5863
        %v5946 = vpop.f32.mrf.mxu0
        %v5947 = vadd.f32 0.0, %v5946
        %v5948 = vpop.f32.mrf.mxu0
        %v5949 = vadd.f32 0.0, %v5948
        %5950 = vmatprep.mubr.f32.mxu0 0.0
        %5951 = vmatmul.mubr.f32.gmra.mxu0 %v5866
        %v5952 = vpop.f32.mrf.mxu0
        %v5953 = vadd.f32 0.0, %v5952
        %v5954 = vpop.f32.mrf.mxu0
        %v5955 = vadd.f32 0.0, %v5954
        %5956 = vdwg.mxu0
        %5957 = vmatprep.subr.mxu0 0.0
        %5958 = vmatpush1.msra.mxu0 0.0
        %5959 = vmatprep.subr.mxu0 0.0
        %5960 = vmatpush1.msra.mxu0 0.0
        %5961 = vmatprep.subr.mxu0 0.0
        %5962 = vmatpush1.msra.mxu0 0.0
        %5963 = vmatprep.subr.mxu0 0.0
        %5964 = vmatpush1.msra.mxu0 0.0
        %5965 = vmatprep.subr.mxu0 0.0
        %5966 = vmatpush1.msra.mxu0 0.0
        %5967 = vmatprep.subr.mxu0 0.0
        %5968 = vmatpush1.msra.mxu0 0.0
        %5969 = vmatprep.subr.mxu0 0.0
        %5970 = vmatpush1.msra.mxu0 0.0
        %5971 = vmatprep.subr.mxu0 0.0
        %5972 = vmatpush1.msra.mxu0 0.0
        %5973 = vmatprep.subr.mxu0 0.0
        %5974 = vmatpush1.msra.mxu0 0.0
        %5975 = vmatprep.subr.mxu0 0.0
        %5976 = vmatpush1.msra.mxu0 0.0
        %5977 = vmatprep.subr.mxu0 0.0
        %5978 = vmatpush1.msra.mxu0 0.0
        %5979 = vmatprep.subr.mxu0 0.0
        %5980 = vmatpush1.msra.mxu0 0.0
        %5981 = vmatprep.subr.mxu0 %v5839
        %5982 = vmatpush1.msra.mxu0 %v5838
        %5983 = vmatprep.subr.mxu0 %v5835
        %5984 = vmatpush1.msra.mxu0 %v5834
        %5985 = vmatprep.subr.mxu0 %v5831
        %5986 = vmatpush1.msra.mxu0 %v5830
        %5987 = vmatprep.subr.mxu0 %v5827
        %5988 = vmatpush1.msra.mxu0 %v5826
        %5989 = vmatprep.subr.mxu0 0.0
        %5990 = vmatpush2.msra.mxu0 0.0
        %5991 = vmatprep.subr.mxu0 0.0
        %5992 = vmatpush2.msra.mxu0 0.0
        %5993 = vmatprep.subr.mxu0 0.0
        %5994 = vmatpush2.msra.mxu0 0.0
        %5995 = vmatprep.subr.mxu0 0.0
        %5996 = vmatpush2.msra.mxu0 0.0
        %5997 = vmatprep.subr.mxu0 0.0
        %5998 = vmatpush2.msra.mxu0 0.0
        %5999 = vmatprep.subr.mxu0 0.0
        %6000 = vmatpush2.msra.mxu0 0.0
        %6001 = vmatprep.subr.mxu0 0.0
        %6002 = vmatpush2.msra.mxu0 0.0
        %6003 = vmatprep.subr.mxu0 0.0
        %6004 = vmatpush2.msra.mxu0 0.0
        %6005 = vmatprep.subr.mxu0 0.0
        %6006 = vmatpush2.msra.mxu0 0.0
        %6007 = vmatprep.subr.mxu0 0.0
        %6008 = vmatpush2.msra.mxu0 0.0
        %6009 = vmatprep.subr.mxu0 0.0
        %6010 = vmatpush2.msra.mxu0 0.0
        %6011 = vmatprep.subr.mxu0 0.0
        %6012 = vmatpush2.msra.mxu0 0.0
        %6013 = vmatprep.subr.mxu0 0.0
        %6014 = vmatpush2.msra.mxu0 0.0
        %6015 = vmatprep.subr.mxu0 0.0
        %6016 = vmatpush2.msra.mxu0 0.0
        %6017 = vmatprep.subr.mxu0 0.0
        %6018 = vmatpush2.msra.mxu0 0.0
        %6019 = vmatprep.subr.mxu0 0.0
        %6020 = vmatpush2.msra.mxu0 0.0
        %6021 = vmatprep.mubr.f32.mxu0 0.0
        %6022 = vmatmul.mubr.f32.gmra.mxu0 %v5857
        %v6023 = vpop.f32.mrf.mxu0
        %v6024 = vadd.f32 0.0, %v6023
        %v6025 = vpop.f32.mrf.mxu0
        %v6026 = vadd.f32 0.0, %v6025
        %6027 = vmatprep.mubr.f32.mxu0 0.0
        %6028 = vmatmul.mubr.f32.gmra.mxu0 %v5860
        %v6029 = vpop.f32.mrf.mxu0
        %v6030 = vadd.f32 0.0, %v6029
        %v6031 = vpop.f32.mrf.mxu0
        %v6032 = vadd.f32 0.0, %v6031
        %6033 = vmatprep.mubr.f32.mxu0 0.0
        %6034 = vmatmul.mubr.f32.gmra.mxu0 %v5863
        %v6035 = vpop.f32.mrf.mxu0
        %v6036 = vadd.f32 0.0, %v6035
        %v6037 = vpop.f32.mrf.mxu0
        %v6038 = vadd.f32 0.0, %v6037
        %6039 = vmatprep.mubr.f32.mxu0 0.0
        %6040 = vmatmul.mubr.f32.gmra.mxu0 %v5866
        %v6041 = vpop.f32.mrf.mxu0
        %v6042 = vadd.f32 0.0, %v6041
        %v6043 = vpop.f32.mrf.mxu0
        %v6044 = vadd.f32 0.0, %v6043
        %6045 = vdwg.mxu0
        %v6046 = vadd.f32 %v5727, %v5935
        %v6047 = vadd.f32 %v5728, %v5937
        %v6048 = vadd.f32 %v5729, %v6024
        %v6049 = vadd.f32 %v5730, %v6026
        %v6050 = vadd.f32 %v5731, %v5941
        %v6051 = vadd.f32 %v5732, %v5943
        %v6052 = vadd.f32 %v5733, %v6030
        %v6053 = vadd.f32 %v5734, %v6032
        %v6054 = vadd.f32 %v5735, %v5947
        %v6055 = vadd.f32 %v5736, %v5949
        %v6056 = vadd.f32 %v5737, %v6036
        %v6057 = vadd.f32 %v5738, %v6038
        %v6058 = vadd.f32 %v5739, %v5953
        %v6059 = vadd.f32 %v5740, %v5955
        %v6060 = vadd.f32 %v5741, %v6042
        %v6061 = vadd.f32 %v5742, %v6044
        %v6062 = vld [vmem:[%s1196 + $0x8] sm:$0xff]
        %v6063 = vld [vmem:[%s1196 + $0x10] sm:$0xff]
        %v6064 = vld [vmem:[%s1196 + $0x18] sm:$0xff]
        %v6065 = vld [vmem:[%s1196 + $0x20] sm:$0xff]
        %v6066 = vld [vmem:[%s1196 + $0x28] sm:$0xff]
        %v6067 = vld [vmem:[%s1196 + $0x38] sm:$0xff]
        %v6068 = vld [vmem:[%s1196 + $0x40] sm:$0xff]
        %v6069 = vld [vmem:[%s1196 + $0x48] sm:$0xff]
        %v6070 = vld [vmem:[%s1196 + $0x50] sm:$0xff]
        %v6071 = vld [vmem:[%s1196 + $0x58] sm:$0xff]
        %v6072 = vld [vmem:[%s1196 + $0x68] sm:$0xff]
        %v6073 = vld [vmem:[%s1196 + $0x70] sm:$0xff]
        %v6074 = vld [vmem:[%s1196 + $0x78] sm:$0xff]
        %v6075 = vld [vmem:[%s1196 + $0x80] sm:$0xff]
        %v6076 = vld [vmem:[%s1196 + $0x88] sm:$0xff]
        %v6077 = vld [vmem:[%s1196 + $0x98] sm:$0xff]
        %v6078 = vld [vmem:[%s1196 + $0xa0] sm:$0xff]
        %v6079 = vld [vmem:[%s1196 + $0xa8] sm:$0xff]
        %v6080 = vld [vmem:[%s1196 + $0xb0] sm:$0xff]
        %v6081 = vld [vmem:[%s1196 + $0xb8] sm:$0xff]
        %6102 = vrot.lane.b32.xlu0 %v6062, 120
        %v6103 = vpop.permute.xlu0 %6102
        %6104 = vrot.lane.b32.xlu0 %v6063, 120
        %v6105 = vpop.permute.xlu0 %6104
        %6106 = vrot.lane.b32.xlu0 %v6064, 120
        %v6107 = vpop.permute.xlu0 %6106
        %6108 = vrot.lane.b32.xlu0 %v6065, 120
        %v6109 = vpop.permute.xlu0 %6108
        %6110 = vrot.lane.b32.xlu0 %v6066, 120
        %v6111 = vpop.permute.xlu0 %6110
        %6112 = vrot.lane.b32.xlu0 %v6067, 120
        %v6113 = vpop.permute.xlu0 %6112
        %6114 = vrot.lane.b32.xlu0 %v6068, 120
        %v6115 = vpop.permute.xlu0 %6114
        %6116 = vrot.lane.b32.xlu0 %v6069, 120
        %v6117 = vpop.permute.xlu0 %6116
        %6118 = vrot.lane.b32.xlu0 %v6070, 120
        %v6119 = vpop.permute.xlu0 %6118
        %6120 = vrot.lane.b32.xlu0 %v6071, 120
        %v6121 = vpop.permute.xlu0 %6120
        %6122 = vrot.lane.b32.xlu0 %v6072, 120
        %v6123 = vpop.permute.xlu0 %6122
        %6124 = vrot.lane.b32.xlu0 %v6073, 120
        %v6125 = vpop.permute.xlu0 %6124
        %6126 = vrot.lane.b32.xlu0 %v6074, 120
        %v6127 = vpop.permute.xlu0 %6126
        %6128 = vrot.lane.b32.xlu0 %v6075, 120
        %v6129 = vpop.permute.xlu0 %6128
        %6130 = vrot.lane.b32.xlu0 %v6076, 120
        %v6131 = vpop.permute.xlu0 %6130
        %6132 = vrot.lane.b32.xlu0 %v6077, 120
        %v6133 = vpop.permute.xlu0 %6132
        %6134 = vrot.lane.b32.xlu0 %v6078, 120
        %v6135 = vpop.permute.xlu0 %6134
        %6136 = vrot.lane.b32.xlu0 %v6079, 120
        %v6137 = vpop.permute.xlu0 %6136
        %6138 = vrot.lane.b32.xlu0 %v6080, 120
        %v6139 = vpop.permute.xlu0 %6138
        %6140 = vrot.lane.b32.xlu0 %v6081, 120
        %v6141 = vpop.permute.xlu0 %6140
        %vm6142 = vcmask 982016
        %v6143 = vsel %vm6142, %v6103, %v6105
        %v6144 = vsel %vm6142, %v6105, %v6107
        %v6145 = vsel %vm6142, %v6107, %v6109
        %v6146 = vsel %vm6142, %v6109, %v6111
        %v6147 = vsel %vm6142, %v6113, %v6115
        %v6148 = vsel %vm6142, %v6115, %v6117
        %v6149 = vsel %vm6142, %v6117, %v6119
        %v6150 = vsel %vm6142, %v6119, %v6121
        %v6151 = vsel %vm6142, %v6123, %v6125
        %v6152 = vsel %vm6142, %v6125, %v6127
        %v6153 = vsel %vm6142, %v6127, %v6129
        %v6154 = vsel %vm6142, %v6129, %v6131
        %v6155 = vsel %vm6142, %v6133, %v6135
        %v6156 = vsel %vm6142, %v6135, %v6137
        %v6157 = vsel %vm6142, %v6137, %v6139
        %v6158 = vsel %vm6142, %v6139, %v6141
        %v6176 = vsel %vm1395, %v476, 0
        %v6179 = vsel %vm1395, %v477, 0
        %v6182 = vsel %vm1395, %v478, 0
        %v6185 = vsel %vm1395, %v479, 0
        %6187 = vmatprep.subr.mxu0 0.0
        %6188 = vmatpush1.msra.mxu0 0.0
        %6189 = vmatprep.subr.mxu0 0.0
        %6190 = vmatpush1.msra.mxu0 0.0
        %6191 = vmatprep.subr.mxu0 0.0
        %6192 = vmatpush1.msra.mxu0 0.0
        %6193 = vmatprep.subr.mxu0 0.0
        %6194 = vmatpush1.msra.mxu0 0.0
        %6195 = vmatprep.subr.mxu0 0.0
        %6196 = vmatpush1.msra.mxu0 0.0
        %6197 = vmatprep.subr.mxu0 0.0
        %6198 = vmatpush1.msra.mxu0 0.0
        %6199 = vmatprep.subr.mxu0 0.0
        %6200 = vmatpush1.msra.mxu0 0.0
        %6201 = vmatprep.subr.mxu0 0.0
        %6202 = vmatpush1.msra.mxu0 0.0
        %6203 = vmatprep.subr.mxu0 0.0
        %6204 = vmatpush1.msra.mxu0 0.0
        %6205 = vmatprep.subr.mxu0 0.0
        %6206 = vmatpush1.msra.mxu0 0.0
        %6207 = vmatprep.subr.mxu0 0.0
        %6208 = vmatpush1.msra.mxu0 0.0
        %6209 = vmatprep.subr.mxu0 0.0
        %6210 = vmatpush1.msra.mxu0 0.0
        %6211 = vmatprep.subr.mxu0 %v6156
        %6212 = vmatpush1.msra.mxu0 %v6155
        %6213 = vmatprep.subr.mxu0 %v6152
        %6214 = vmatpush1.msra.mxu0 %v6151
        %6215 = vmatprep.subr.mxu0 %v6148
        %6216 = vmatpush1.msra.mxu0 %v6147
        %6217 = vmatprep.subr.mxu0 %v6144
        %6218 = vmatpush1.msra.mxu0 %v6143
        %6219 = vmatprep.subr.mxu0 0.0
        %6220 = vmatpush2.msra.mxu0 0.0
        %6221 = vmatprep.subr.mxu0 0.0
        %6222 = vmatpush2.msra.mxu0 0.0
        %6223 = vmatprep.subr.mxu0 0.0
        %6224 = vmatpush2.msra.mxu0 0.0
        %6225 = vmatprep.subr.mxu0 0.0
        %6226 = vmatpush2.msra.mxu0 0.0
        %6227 = vmatprep.subr.mxu0 0.0
        %6228 = vmatpush2.msra.mxu0 0.0
        %6229 = vmatprep.subr.mxu0 0.0
        %6230 = vmatpush2.msra.mxu0 0.0
        %6231 = vmatprep.subr.mxu0 0.0
        %6232 = vmatpush2.msra.mxu0 0.0
        %6233 = vmatprep.subr.mxu0 0.0
        %6234 = vmatpush2.msra.mxu0 0.0
        %6235 = vmatprep.subr.mxu0 0.0
        %6236 = vmatpush2.msra.mxu0 0.0
        %6237 = vmatprep.subr.mxu0 0.0
        %6238 = vmatpush2.msra.mxu0 0.0
        %6239 = vmatprep.subr.mxu0 0.0
        %6240 = vmatpush2.msra.mxu0 0.0
        %6241 = vmatprep.subr.mxu0 0.0
        %6242 = vmatpush2.msra.mxu0 0.0
        %6243 = vmatprep.subr.mxu0 0.0
        %6244 = vmatpush2.msra.mxu0 0.0
        %6245 = vmatprep.subr.mxu0 0.0
        %6246 = vmatpush2.msra.mxu0 0.0
        %6247 = vmatprep.subr.mxu0 0.0
        %6248 = vmatpush2.msra.mxu0 0.0
        %6249 = vmatprep.subr.mxu0 0.0
        %6250 = vmatpush2.msra.mxu0 0.0
        %6251 = vmatprep.mubr.f32.mxu0 0.0
        %6252 = vmatmul.mubr.f32.gmra.mxu0 %v6176
        %v6253 = vpop.f32.mrf.mxu0
        %v6254 = vadd.f32 0.0, %v6253
        %v6255 = vpop.f32.mrf.mxu0
        %v6256 = vadd.f32 0.0, %v6255
        %6257 = vmatprep.mubr.f32.mxu0 0.0
        %6258 = vmatmul.mubr.f32.gmra.mxu0 %v6179
        %v6259 = vpop.f32.mrf.mxu0
        %v6260 = vadd.f32 0.0, %v6259
        %v6261 = vpop.f32.mrf.mxu0
        %v6262 = vadd.f32 0.0, %v6261
        %6263 = vmatprep.mubr.f32.mxu0 0.0
        %6264 = vmatmul.mubr.f32.gmra.mxu0 %v6182
        %v6265 = vpop.f32.mrf.mxu0
        %v6266 = vadd.f32 0.0, %v6265
        %v6267 = vpop.f32.mrf.mxu0
        %v6268 = vadd.f32 0.0, %v6267
        %6269 = vmatprep.mubr.f32.mxu0 0.0
        %6270 = vmatmul.mubr.f32.gmra.mxu0 %v6185
        %v6271 = vpop.f32.mrf.mxu0
        %v6272 = vadd.f32 0.0, %v6271
        %v6273 = vpop.f32.mrf.mxu0
        %v6274 = vadd.f32 0.0, %v6273
        %6275 = vdwg.mxu0
        %6276 = vmatprep.subr.mxu0 0.0
        %6277 = vmatpush1.msra.mxu0 0.0
        %6278 = vmatprep.subr.mxu0 0.0
        %6279 = vmatpush1.msra.mxu0 0.0
        %6280 = vmatprep.subr.mxu0 0.0
        %6281 = vmatpush1.msra.mxu0 0.0
        %6282 = vmatprep.subr.mxu0 0.0
        %6283 = vmatpush1.msra.mxu0 0.0
        %6284 = vmatprep.subr.mxu0 0.0
        %6285 = vmatpush1.msra.mxu0 0.0
        %6286 = vmatprep.subr.mxu0 0.0
        %6287 = vmatpush1.msra.mxu0 0.0
        %6288 = vmatprep.subr.mxu0 0.0
        %6289 = vmatpush1.msra.mxu0 0.0
        %6290 = vmatprep.subr.mxu0 0.0
        %6291 = vmatpush1.msra.mxu0 0.0
        %6292 = vmatprep.subr.mxu0 0.0
        %6293 = vmatpush1.msra.mxu0 0.0
        %6294 = vmatprep.subr.mxu0 0.0
        %6295 = vmatpush1.msra.mxu0 0.0
        %6296 = vmatprep.subr.mxu0 0.0
        %6297 = vmatpush1.msra.mxu0 0.0
        %6298 = vmatprep.subr.mxu0 0.0
        %6299 = vmatpush1.msra.mxu0 0.0
        %6300 = vmatprep.subr.mxu0 %v6158
        %6301 = vmatpush1.msra.mxu0 %v6157
        %6302 = vmatprep.subr.mxu0 %v6154
        %6303 = vmatpush1.msra.mxu0 %v6153
        %6304 = vmatprep.subr.mxu0 %v6150
        %6305 = vmatpush1.msra.mxu0 %v6149
        %6306 = vmatprep.subr.mxu0 %v6146
        %6307 = vmatpush1.msra.mxu0 %v6145
        %6308 = vmatprep.subr.mxu0 0.0
        %6309 = vmatpush2.msra.mxu0 0.0
        %6310 = vmatprep.subr.mxu0 0.0
        %6311 = vmatpush2.msra.mxu0 0.0
        %6312 = vmatprep.subr.mxu0 0.0
        %6313 = vmatpush2.msra.mxu0 0.0
        %6314 = vmatprep.subr.mxu0 0.0
        %6315 = vmatpush2.msra.mxu0 0.0
        %6316 = vmatprep.subr.mxu0 0.0
        %6317 = vmatpush2.msra.mxu0 0.0
        %6318 = vmatprep.subr.mxu0 0.0
        %6319 = vmatpush2.msra.mxu0 0.0
        %6320 = vmatprep.subr.mxu0 0.0
        %6321 = vmatpush2.msra.mxu0 0.0
        %6322 = vmatprep.subr.mxu0 0.0
        %6323 = vmatpush2.msra.mxu0 0.0
        %6324 = vmatprep.subr.mxu0 0.0
        %6325 = vmatpush2.msra.mxu0 0.0
        %6326 = vmatprep.subr.mxu0 0.0
        %6327 = vmatpush2.msra.mxu0 0.0
        %6328 = vmatprep.subr.mxu0 0.0
        %6329 = vmatpush2.msra.mxu0 0.0
        %6330 = vmatprep.subr.mxu0 0.0
        %6331 = vmatpush2.msra.mxu0 0.0
        %6332 = vmatprep.subr.mxu0 0.0
        %6333 = vmatpush2.msra.mxu0 0.0
        %6334 = vmatprep.subr.mxu0 0.0
        %6335 = vmatpush2.msra.mxu0 0.0
        %6336 = vmatprep.subr.mxu0 0.0
        %6337 = vmatpush2.msra.mxu0 0.0
        %6338 = vmatprep.subr.mxu0 0.0
        %6339 = vmatpush2.msra.mxu0 0.0
        %6340 = vmatprep.mubr.f32.mxu0 0.0
        %6341 = vmatmul.mubr.f32.gmra.mxu0 %v6176
        %v6342 = vpop.f32.mrf.mxu0
        %v6343 = vadd.f32 0.0, %v6342
        %v6344 = vpop.f32.mrf.mxu0
        %v6345 = vadd.f32 0.0, %v6344
        %6346 = vmatprep.mubr.f32.mxu0 0.0
        %6347 = vmatmul.mubr.f32.gmra.mxu0 %v6179
        %v6348 = vpop.f32.mrf.mxu0
        %v6349 = vadd.f32 0.0, %v6348
        %v6350 = vpop.f32.mrf.mxu0
        %v6351 = vadd.f32 0.0, %v6350
        %6352 = vmatprep.mubr.f32.mxu0 0.0
        %6353 = vmatmul.mubr.f32.gmra.mxu0 %v6182
        %v6354 = vpop.f32.mrf.mxu0
        %v6355 = vadd.f32 0.0, %v6354
        %v6356 = vpop.f32.mrf.mxu0
        %v6357 = vadd.f32 0.0, %v6356
        %6358 = vmatprep.mubr.f32.mxu0 0.0
        %6359 = vmatmul.mubr.f32.gmra.mxu0 %v6185
        %v6360 = vpop.f32.mrf.mxu0
        %v6361 = vadd.f32 0.0, %v6360
        %v6362 = vpop.f32.mrf.mxu0
        %v6363 = vadd.f32 0.0, %v6362
        %6364 = vdwg.mxu0
        %v6365 = vadd.f32 %v6046, %v6254
        %v6366 = vadd.f32 %v6047, %v6256
        %v6367 = vadd.f32 %v6048, %v6343
        %v6368 = vadd.f32 %v6049, %v6345
        %v6369 = vadd.f32 %v6050, %v6260
        %v6370 = vadd.f32 %v6051, %v6262
        %v6371 = vadd.f32 %v6052, %v6349
        %v6372 = vadd.f32 %v6053, %v6351
        %v6373 = vadd.f32 %v6054, %v6266
        %v6374 = vadd.f32 %v6055, %v6268
        %v6375 = vadd.f32 %v6056, %v6355
        %v6376 = vadd.f32 %v6057, %v6357
        %v6377 = vadd.f32 %v6058, %v6272
        %v6378 = vadd.f32 %v6059, %v6274
        %v6379 = vadd.f32 %v6060, %v6361
        %v6380 = vadd.f32 %v6061, %v6363
        %v6381 = vld [vmem:[%s1245 + $0x8] sm:$0xff]
        %v6382 = vld [vmem:[%s1245 + $0x10] sm:$0xff]
        %v6383 = vld [vmem:[%s1245 + $0x18] sm:$0xff]
        %v6384 = vld [vmem:[%s1245 + $0x20] sm:$0xff]
        %v6385 = vld [vmem:[%s1245 + $0x28] sm:$0xff]
        %v6386 = vld [vmem:[%s1245 + $0x38] sm:$0xff]
        %v6387 = vld [vmem:[%s1245 + $0x40] sm:$0xff]
        %v6388 = vld [vmem:[%s1245 + $0x48] sm:$0xff]
        %v6389 = vld [vmem:[%s1245 + $0x50] sm:$0xff]
        %v6390 = vld [vmem:[%s1245 + $0x58] sm:$0xff]
        %v6391 = vld [vmem:[%s1245 + $0x68] sm:$0xff]
        %v6392 = vld [vmem:[%s1245 + $0x70] sm:$0xff]
        %v6393 = vld [vmem:[%s1245 + $0x78] sm:$0xff]
        %v6394 = vld [vmem:[%s1245 + $0x80] sm:$0xff]
        %v6395 = vld [vmem:[%s1245 + $0x88] sm:$0xff]
        %v6396 = vld [vmem:[%s1245 + $0x98] sm:$0xff]
        %v6397 = vld [vmem:[%s1245 + $0xa0] sm:$0xff]
        %v6398 = vld [vmem:[%s1245 + $0xa8] sm:$0xff]
        %v6399 = vld [vmem:[%s1245 + $0xb0] sm:$0xff]
        %v6400 = vld [vmem:[%s1245 + $0xb8] sm:$0xff]
        %6421 = vrot.lane.b32.xlu0 %v6381, 119
        %v6422 = vpop.permute.xlu0 %6421
        %6423 = vrot.lane.b32.xlu0 %v6382, 119
        %v6424 = vpop.permute.xlu0 %6423
        %6425 = vrot.lane.b32.xlu0 %v6383, 119
        %v6426 = vpop.permute.xlu0 %6425
        %6427 = vrot.lane.b32.xlu0 %v6384, 119
        %v6428 = vpop.permute.xlu0 %6427
        %6429 = vrot.lane.b32.xlu0 %v6385, 119
        %v6430 = vpop.permute.xlu0 %6429
        %6431 = vrot.lane.b32.xlu0 %v6386, 119
        %v6432 = vpop.permute.xlu0 %6431
        %6433 = vrot.lane.b32.xlu0 %v6387, 119
        %v6434 = vpop.permute.xlu0 %6433
        %6435 = vrot.lane.b32.xlu0 %v6388, 119
        %v6436 = vpop.permute.xlu0 %6435
        %6437 = vrot.lane.b32.xlu0 %v6389, 119
        %v6438 = vpop.permute.xlu0 %6437
        %6439 = vrot.lane.b32.xlu0 %v6390, 119
        %v6440 = vpop.permute.xlu0 %6439
        %6441 = vrot.lane.b32.xlu0 %v6391, 119
        %v6442 = vpop.permute.xlu0 %6441
        %6443 = vrot.lane.b32.xlu0 %v6392, 119
        %v6444 = vpop.permute.xlu0 %6443
        %6445 = vrot.lane.b32.xlu0 %v6393, 119
        %v6446 = vpop.permute.xlu0 %6445
        %6447 = vrot.lane.b32.xlu0 %v6394, 119
        %v6448 = vpop.permute.xlu0 %6447
        %6449 = vrot.lane.b32.xlu0 %v6395, 119
        %v6450 = vpop.permute.xlu0 %6449
        %6451 = vrot.lane.b32.xlu0 %v6396, 119
        %v6452 = vpop.permute.xlu0 %6451
        %6453 = vrot.lane.b32.xlu0 %v6397, 119
        %v6454 = vpop.permute.xlu0 %6453
        %6455 = vrot.lane.b32.xlu0 %v6398, 119
        %v6456 = vpop.permute.xlu0 %6455
        %6457 = vrot.lane.b32.xlu0 %v6399, 119
        %v6458 = vpop.permute.xlu0 %6457
        %6459 = vrot.lane.b32.xlu0 %v6400, 119
        %v6460 = vpop.permute.xlu0 %6459
        %vm6461 = vcmask 973824
        %v6462 = vsel %vm6461, %v6422, %v6424
        %v6463 = vsel %vm6461, %v6424, %v6426
        %v6464 = vsel %vm6461, %v6426, %v6428
        %v6465 = vsel %vm6461, %v6428, %v6430
        %v6466 = vsel %vm6461, %v6432, %v6434
        %v6467 = vsel %vm6461, %v6434, %v6436
        %v6468 = vsel %vm6461, %v6436, %v6438
        %v6469 = vsel %vm6461, %v6438, %v6440
        %v6470 = vsel %vm6461, %v6442, %v6444
        %v6471 = vsel %vm6461, %v6444, %v6446
        %v6472 = vsel %vm6461, %v6446, %v6448
        %v6473 = vsel %vm6461, %v6448, %v6450
        %v6474 = vsel %vm6461, %v6452, %v6454
        %v6475 = vsel %vm6461, %v6454, %v6456
        %v6476 = vsel %vm6461, %v6456, %v6458
        %v6477 = vsel %vm6461, %v6458, %v6460
        %v6495 = vsel %vm1395, %v480, 0
        %v6498 = vsel %vm1395, %v481, 0
        %v6501 = vsel %vm1395, %v482, 0
        %v6504 = vsel %vm1395, %v483, 0
        %6506 = vmatprep.subr.mxu0 0.0
        %6507 = vmatpush1.msra.mxu0 0.0
        %6508 = vmatprep.subr.mxu0 0.0
        %6509 = vmatpush1.msra.mxu0 0.0
        %6510 = vmatprep.subr.mxu0 0.0
        %6511 = vmatpush1.msra.mxu0 0.0
        %6512 = vmatprep.subr.mxu0 0.0
        %6513 = vmatpush1.msra.mxu0 0.0
        %6514 = vmatprep.subr.mxu0 0.0
        %6515 = vmatpush1.msra.mxu0 0.0
        %6516 = vmatprep.subr.mxu0 0.0
        %6517 = vmatpush1.msra.mxu0 0.0
        %6518 = vmatprep.subr.mxu0 0.0
        %6519 = vmatpush1.msra.mxu0 0.0
        %6520 = vmatprep.subr.mxu0 0.0
        %6521 = vmatpush1.msra.mxu0 0.0
        %6522 = vmatprep.subr.mxu0 0.0
        %6523 = vmatpush1.msra.mxu0 0.0
        %6524 = vmatprep.subr.mxu0 0.0
        %6525 = vmatpush1.msra.mxu0 0.0
        %6526 = vmatprep.subr.mxu0 0.0
        %6527 = vmatpush1.msra.mxu0 0.0
        %6528 = vmatprep.subr.mxu0 0.0
        %6529 = vmatpush1.msra.mxu0 0.0
        %6530 = vmatprep.subr.mxu0 %v6475
        %6531 = vmatpush1.msra.mxu0 %v6474
        %6532 = vmatprep.subr.mxu0 %v6471
        %6533 = vmatpush1.msra.mxu0 %v6470
        %6534 = vmatprep.subr.mxu0 %v6467
        %6535 = vmatpush1.msra.mxu0 %v6466
        %6536 = vmatprep.subr.mxu0 %v6463
        %6537 = vmatpush1.msra.mxu0 %v6462
        %6538 = vmatprep.subr.mxu0 0.0
        %6539 = vmatpush2.msra.mxu0 0.0
        %6540 = vmatprep.subr.mxu0 0.0
        %6541 = vmatpush2.msra.mxu0 0.0
        %6542 = vmatprep.subr.mxu0 0.0
        %6543 = vmatpush2.msra.mxu0 0.0
        %6544 = vmatprep.subr.mxu0 0.0
        %6545 = vmatpush2.msra.mxu0 0.0
        %6546 = vmatprep.subr.mxu0 0.0
        %6547 = vmatpush2.msra.mxu0 0.0
        %6548 = vmatprep.subr.mxu0 0.0
        %6549 = vmatpush2.msra.mxu0 0.0
        %6550 = vmatprep.subr.mxu0 0.0
        %6551 = vmatpush2.msra.mxu0 0.0
        %6552 = vmatprep.subr.mxu0 0.0
        %6553 = vmatpush2.msra.mxu0 0.0
        %6554 = vmatprep.subr.mxu0 0.0
        %6555 = vmatpush2.msra.mxu0 0.0
        %6556 = vmatprep.subr.mxu0 0.0
        %6557 = vmatpush2.msra.mxu0 0.0
        %6558 = vmatprep.subr.mxu0 0.0
        %6559 = vmatpush2.msra.mxu0 0.0
        %6560 = vmatprep.subr.mxu0 0.0
        %6561 = vmatpush2.msra.mxu0 0.0
        %6562 = vmatprep.subr.mxu0 0.0
        %6563 = vmatpush2.msra.mxu0 0.0
        %6564 = vmatprep.subr.mxu0 0.0
        %6565 = vmatpush2.msra.mxu0 0.0
        %6566 = vmatprep.subr.mxu0 0.0
        %6567 = vmatpush2.msra.mxu0 0.0
        %6568 = vmatprep.subr.mxu0 0.0
        %6569 = vmatpush2.msra.mxu0 0.0
        %6570 = vmatprep.mubr.f32.mxu0 0.0
        %6571 = vmatmul.mubr.f32.gmra.mxu0 %v6495
        %v6572 = vpop.f32.mrf.mxu0
        %v6573 = vadd.f32 0.0, %v6572
        %v6574 = vpop.f32.mrf.mxu0
        %v6575 = vadd.f32 0.0, %v6574
        %6576 = vmatprep.mubr.f32.mxu0 0.0
        %6577 = vmatmul.mubr.f32.gmra.mxu0 %v6498
        %v6578 = vpop.f32.mrf.mxu0
        %v6579 = vadd.f32 0.0, %v6578
        %v6580 = vpop.f32.mrf.mxu0
        %v6581 = vadd.f32 0.0, %v6580
        %6582 = vmatprep.mubr.f32.mxu0 0.0
        %6583 = vmatmul.mubr.f32.gmra.mxu0 %v6501
        %v6584 = vpop.f32.mrf.mxu0
        %v6585 = vadd.f32 0.0, %v6584
        %v6586 = vpop.f32.mrf.mxu0
        %v6587 = vadd.f32 0.0, %v6586
        %6588 = vmatprep.mubr.f32.mxu0 0.0
        %6589 = vmatmul.mubr.f32.gmra.mxu0 %v6504
        %v6590 = vpop.f32.mrf.mxu0
        %v6591 = vadd.f32 0.0, %v6590
        %v6592 = vpop.f32.mrf.mxu0
        %v6593 = vadd.f32 0.0, %v6592
        %6594 = vdwg.mxu0
        %6595 = vmatprep.subr.mxu0 0.0
        %6596 = vmatpush1.msra.mxu0 0.0
        %6597 = vmatprep.subr.mxu0 0.0
        %6598 = vmatpush1.msra.mxu0 0.0
        %6599 = vmatprep.subr.mxu0 0.0
        %6600 = vmatpush1.msra.mxu0 0.0
        %6601 = vmatprep.subr.mxu0 0.0
        %6602 = vmatpush1.msra.mxu0 0.0
        %6603 = vmatprep.subr.mxu0 0.0
        %6604 = vmatpush1.msra.mxu0 0.0
        %6605 = vmatprep.subr.mxu0 0.0
        %6606 = vmatpush1.msra.mxu0 0.0
        %6607 = vmatprep.subr.mxu0 0.0
        %6608 = vmatpush1.msra.mxu0 0.0
        %6609 = vmatprep.subr.mxu0 0.0
        %6610 = vmatpush1.msra.mxu0 0.0
        %6611 = vmatprep.subr.mxu0 0.0
        %6612 = vmatpush1.msra.mxu0 0.0
        %6613 = vmatprep.subr.mxu0 0.0
        %6614 = vmatpush1.msra.mxu0 0.0
        %6615 = vmatprep.subr.mxu0 0.0
        %6616 = vmatpush1.msra.mxu0 0.0
        %6617 = vmatprep.subr.mxu0 0.0
        %6618 = vmatpush1.msra.mxu0 0.0
        %6619 = vmatprep.subr.mxu0 %v6477
        %6620 = vmatpush1.msra.mxu0 %v6476
        %6621 = vmatprep.subr.mxu0 %v6473
        %6622 = vmatpush1.msra.mxu0 %v6472
        %6623 = vmatprep.subr.mxu0 %v6469
        %6624 = vmatpush1.msra.mxu0 %v6468
        %6625 = vmatprep.subr.mxu0 %v6465
        %6626 = vmatpush1.msra.mxu0 %v6464
        %6627 = vmatprep.subr.mxu0 0.0
        %6628 = vmatpush2.msra.mxu0 0.0
        %6629 = vmatprep.subr.mxu0 0.0
        %6630 = vmatpush2.msra.mxu0 0.0
        %6631 = vmatprep.subr.mxu0 0.0
        %6632 = vmatpush2.msra.mxu0 0.0
        %6633 = vmatprep.subr.mxu0 0.0
        %6634 = vmatpush2.msra.mxu0 0.0
        %6635 = vmatprep.subr.mxu0 0.0
        %6636 = vmatpush2.msra.mxu0 0.0
        %6637 = vmatprep.subr.mxu0 0.0
        %6638 = vmatpush2.msra.mxu0 0.0
        %6639 = vmatprep.subr.mxu0 0.0
        %6640 = vmatpush2.msra.mxu0 0.0
        %6641 = vmatprep.subr.mxu0 0.0
        %6642 = vmatpush2.msra.mxu0 0.0
        %6643 = vmatprep.subr.mxu0 0.0
        %6644 = vmatpush2.msra.mxu0 0.0
        %6645 = vmatprep.subr.mxu0 0.0
        %6646 = vmatpush2.msra.mxu0 0.0
        %6647 = vmatprep.subr.mxu0 0.0
        %6648 = vmatpush2.msra.mxu0 0.0
        %6649 = vmatprep.subr.mxu0 0.0
        %6650 = vmatpush2.msra.mxu0 0.0
        %6651 = vmatprep.subr.mxu0 0.0
        %6652 = vmatpush2.msra.mxu0 0.0
        %6653 = vmatprep.subr.mxu0 0.0
        %6654 = vmatpush2.msra.mxu0 0.0
        %6655 = vmatprep.subr.mxu0 0.0
        %6656 = vmatpush2.msra.mxu0 0.0
        %6657 = vmatprep.subr.mxu0 0.0
        %6658 = vmatpush2.msra.mxu0 0.0
        %6659 = vmatprep.mubr.f32.mxu0 0.0
        %6660 = vmatmul.mubr.f32.gmra.mxu0 %v6495
        %v6661 = vpop.f32.mrf.mxu0
        %v6662 = vadd.f32 0.0, %v6661
        %v6663 = vpop.f32.mrf.mxu0
        %v6664 = vadd.f32 0.0, %v6663
        %6665 = vmatprep.mubr.f32.mxu0 0.0
        %6666 = vmatmul.mubr.f32.gmra.mxu0 %v6498
        %v6667 = vpop.f32.mrf.mxu0
        %v6668 = vadd.f32 0.0, %v6667
        %v6669 = vpop.f32.mrf.mxu0
        %v6670 = vadd.f32 0.0, %v6669
        %6671 = vmatprep.mubr.f32.mxu0 0.0
        %6672 = vmatmul.mubr.f32.gmra.mxu0 %v6501
        %v6673 = vpop.f32.mrf.mxu0
        %v6674 = vadd.f32 0.0, %v6673
        %v6675 = vpop.f32.mrf.mxu0
        %v6676 = vadd.f32 0.0, %v6675
        %6677 = vmatprep.mubr.f32.mxu0 0.0
        %6678 = vmatmul.mubr.f32.gmra.mxu0 %v6504
        %v6679 = vpop.f32.mrf.mxu0
        %v6680 = vadd.f32 0.0, %v6679
        %v6681 = vpop.f32.mrf.mxu0
        %v6682 = vadd.f32 0.0, %v6681
        %6683 = vdwg.mxu0
        %v6684 = vadd.f32 %v6365, %v6573
        %v6685 = vadd.f32 %v6366, %v6575
        %v6686 = vadd.f32 %v6367, %v6662
        %v6687 = vadd.f32 %v6368, %v6664
        %v6688 = vadd.f32 %v6369, %v6579
        %v6689 = vadd.f32 %v6370, %v6581
        %v6690 = vadd.f32 %v6371, %v6668
        %v6691 = vadd.f32 %v6372, %v6670
        %v6692 = vadd.f32 %v6373, %v6585
        %v6693 = vadd.f32 %v6374, %v6587
        %v6694 = vadd.f32 %v6375, %v6674
        %v6695 = vadd.f32 %v6376, %v6676
        %v6696 = vadd.f32 %v6377, %v6591
        %v6697 = vadd.f32 %v6378, %v6593
        %v6698 = vadd.f32 %v6379, %v6680
        %v6699 = vadd.f32 %v6380, %v6682
        %v6700 = vld [vmem:[#allocation2 + $0x8] sm:$0xff]
        %v6701 = vld [vmem:[#allocation2 + $0x10] sm:$0xff]
        %v6702 = vld [vmem:[#allocation2 + $0x18] sm:$0xff]
        %v6703 = vld [vmem:[#allocation2 + $0x20] sm:$0xff]
        %v6704 = vld [vmem:[#allocation2 + $0x28] sm:$0xff]
        %v6705 = vld [vmem:[#allocation2 + $0x38] sm:$0xff]
        %v6706 = vld [vmem:[#allocation2 + $0x40] sm:$0xff]
        %v6707 = vld [vmem:[#allocation2 + $0x48] sm:$0xff]
        %v6708 = vld [vmem:[#allocation2 + $0x50] sm:$0xff]
        %v6709 = vld [vmem:[#allocation2 + $0x58] sm:$0xff]
        %v6710 = vld [vmem:[#allocation2 + $0x68] sm:$0xff]
        %v6711 = vld [vmem:[#allocation2 + $0x70] sm:$0xff]
        %v6712 = vld [vmem:[#allocation2 + $0x78] sm:$0xff]
        %v6713 = vld [vmem:[#allocation2 + $0x80] sm:$0xff]
        %v6714 = vld [vmem:[#allocation2 + $0x88] sm:$0xff]
        %v6715 = vld [vmem:[#allocation2 + $0x98] sm:$0xff]
        %v6716 = vld [vmem:[#allocation2 + $0xa0] sm:$0xff]
        %v6717 = vld [vmem:[#allocation2 + $0xa8] sm:$0xff]
        %v6718 = vld [vmem:[#allocation2 + $0xb0] sm:$0xff]
        %v6719 = vld [vmem:[#allocation2 + $0xb8] sm:$0xff]
        %6740 = vrot.lane.b32.xlu0 %v6700, 73
        %v6741 = vpop.permute.xlu0 %6740
        %6742 = vrot.lane.b32.xlu0 %v6701, 73
        %v6743 = vpop.permute.xlu0 %6742
        %6744 = vrot.lane.b32.xlu0 %v6702, 73
        %v6745 = vpop.permute.xlu0 %6744
        %6746 = vrot.lane.b32.xlu0 %v6703, 73
        %v6747 = vpop.permute.xlu0 %6746
        %6748 = vrot.lane.b32.xlu0 %v6704, 73
        %v6749 = vpop.permute.xlu0 %6748
        %6750 = vrot.lane.b32.xlu0 %v6705, 73
        %v6751 = vpop.permute.xlu0 %6750
        %6752 = vrot.lane.b32.xlu0 %v6706, 73
        %v6753 = vpop.permute.xlu0 %6752
        %6754 = vrot.lane.b32.xlu0 %v6707, 73
        %v6755 = vpop.permute.xlu0 %6754
        %6756 = vrot.lane.b32.xlu0 %v6708, 73
        %v6757 = vpop.permute.xlu0 %6756
        %6758 = vrot.lane.b32.xlu0 %v6709, 73
        %v6759 = vpop.permute.xlu0 %6758
        %6760 = vrot.lane.b32.xlu0 %v6710, 73
        %v6761 = vpop.permute.xlu0 %6760
        %6762 = vrot.lane.b32.xlu0 %v6711, 73
        %v6763 = vpop.permute.xlu0 %6762
        %6764 = vrot.lane.b32.xlu0 %v6712, 73
        %v6765 = vpop.permute.xlu0 %6764
        %6766 = vrot.lane.b32.xlu0 %v6713, 73
        %v6767 = vpop.permute.xlu0 %6766
        %6768 = vrot.lane.b32.xlu0 %v6714, 73
        %v6769 = vpop.permute.xlu0 %6768
        %6770 = vrot.lane.b32.xlu0 %v6715, 73
        %v6771 = vpop.permute.xlu0 %6770
        %6772 = vrot.lane.b32.xlu0 %v6716, 73
        %v6773 = vpop.permute.xlu0 %6772
        %6774 = vrot.lane.b32.xlu0 %v6717, 73
        %v6775 = vpop.permute.xlu0 %6774
        %6776 = vrot.lane.b32.xlu0 %v6718, 73
        %v6777 = vpop.permute.xlu0 %6776
        %6778 = vrot.lane.b32.xlu0 %v6719, 73
        %v6779 = vpop.permute.xlu0 %6778
        %v6780 = vsel %vm1646, %v6741, %v6743
        %v6781 = vsel %vm1646, %v6743, %v6745
        %v6782 = vsel %vm1646, %v6745, %v6747
        %v6783 = vsel %vm1646, %v6747, %v6749
        %v6784 = vsel %vm1646, %v6751, %v6753
        %v6785 = vsel %vm1646, %v6753, %v6755
        %v6786 = vsel %vm1646, %v6755, %v6757
        %v6787 = vsel %vm1646, %v6757, %v6759
        %v6788 = vsel %vm1646, %v6761, %v6763
        %v6789 = vsel %vm1646, %v6763, %v6765
        %v6790 = vsel %vm1646, %v6765, %v6767
        %v6791 = vsel %vm1646, %v6767, %v6769
        %v6792 = vsel %vm1646, %v6771, %v6773
        %v6793 = vsel %vm1646, %v6773, %v6775
        %v6794 = vsel %vm1646, %v6775, %v6777
        %v6795 = vsel %vm1646, %v6777, %v6779
        %v6813 = vsel %vm1395, %v484, 0
        %v6816 = vsel %vm1395, %v485, 0
        %v6819 = vsel %vm1395, %v486, 0
        %v6822 = vsel %vm1395, %v487, 0
        %6824 = vmatprep.subr.mxu0 0.0
        %6825 = vmatpush1.msra.mxu0 0.0
        %6826 = vmatprep.subr.mxu0 0.0
        %6827 = vmatpush1.msra.mxu0 0.0
        %6828 = vmatprep.subr.mxu0 0.0
        %6829 = vmatpush1.msra.mxu0 0.0
        %6830 = vmatprep.subr.mxu0 0.0
        %6831 = vmatpush1.msra.mxu0 0.0
        %6832 = vmatprep.subr.mxu0 0.0
        %6833 = vmatpush1.msra.mxu0 0.0
        %6834 = vmatprep.subr.mxu0 0.0
        %6835 = vmatpush1.msra.mxu0 0.0
        %6836 = vmatprep.subr.mxu0 0.0
        %6837 = vmatpush1.msra.mxu0 0.0
        %6838 = vmatprep.subr.mxu0 0.0
        %6839 = vmatpush1.msra.mxu0 0.0
        %6840 = vmatprep.subr.mxu0 0.0
        %6841 = vmatpush1.msra.mxu0 0.0
        %6842 = vmatprep.subr.mxu0 0.0
        %6843 = vmatpush1.msra.mxu0 0.0
        %6844 = vmatprep.subr.mxu0 0.0
        %6845 = vmatpush1.msra.mxu0 0.0
        %6846 = vmatprep.subr.mxu0 0.0
        %6847 = vmatpush1.msra.mxu0 0.0
        %6848 = vmatprep.subr.mxu0 %v6793
        %6849 = vmatpush1.msra.mxu0 %v6792
        %6850 = vmatprep.subr.mxu0 %v6789
        %6851 = vmatpush1.msra.mxu0 %v6788
        %6852 = vmatprep.subr.mxu0 %v6785
        %6853 = vmatpush1.msra.mxu0 %v6784
        %6854 = vmatprep.subr.mxu0 %v6781
        %6855 = vmatpush1.msra.mxu0 %v6780
        %6856 = vmatprep.subr.mxu0 0.0
        %6857 = vmatpush2.msra.mxu0 0.0
        %6858 = vmatprep.subr.mxu0 0.0
        %6859 = vmatpush2.msra.mxu0 0.0
        %6860 = vmatprep.subr.mxu0 0.0
        %6861 = vmatpush2.msra.mxu0 0.0
        %6862 = vmatprep.subr.mxu0 0.0
        %6863 = vmatpush2.msra.mxu0 0.0
        %6864 = vmatprep.subr.mxu0 0.0
        %6865 = vmatpush2.msra.mxu0 0.0
        %6866 = vmatprep.subr.mxu0 0.0
        %6867 = vmatpush2.msra.mxu0 0.0
        %6868 = vmatprep.subr.mxu0 0.0
        %6869 = vmatpush2.msra.mxu0 0.0
        %6870 = vmatprep.subr.mxu0 0.0
        %6871 = vmatpush2.msra.mxu0 0.0
        %6872 = vmatprep.subr.mxu0 0.0
        %6873 = vmatpush2.msra.mxu0 0.0
        %6874 = vmatprep.subr.mxu0 0.0
        %6875 = vmatpush2.msra.mxu0 0.0
        %6876 = vmatprep.subr.mxu0 0.0
        %6877 = vmatpush2.msra.mxu0 0.0
        %6878 = vmatprep.subr.mxu0 0.0
        %6879 = vmatpush2.msra.mxu0 0.0
        %6880 = vmatprep.subr.mxu0 0.0
        %6881 = vmatpush2.msra.mxu0 0.0
        %6882 = vmatprep.subr.mxu0 0.0
        %6883 = vmatpush2.msra.mxu0 0.0
        %6884 = vmatprep.subr.mxu0 0.0
        %6885 = vmatpush2.msra.mxu0 0.0
        %6886 = vmatprep.subr.mxu0 0.0
        %6887 = vmatpush2.msra.mxu0 0.0
        %6888 = vmatprep.mubr.f32.mxu0 0.0
        %6889 = vmatmul.mubr.f32.gmra.mxu0 %v6813
        %v6890 = vpop.f32.mrf.mxu0
        %v6891 = vadd.f32 0.0, %v6890
        %v6892 = vpop.f32.mrf.mxu0
        %v6893 = vadd.f32 0.0, %v6892
        %6894 = vmatprep.mubr.f32.mxu0 0.0
        %6895 = vmatmul.mubr.f32.gmra.mxu0 %v6816
        %v6896 = vpop.f32.mrf.mxu0
        %v6897 = vadd.f32 0.0, %v6896
        %v6898 = vpop.f32.mrf.mxu0
        %v6899 = vadd.f32 0.0, %v6898
        %6900 = vmatprep.mubr.f32.mxu0 0.0
        %6901 = vmatmul.mubr.f32.gmra.mxu0 %v6819
        %v6902 = vpop.f32.mrf.mxu0
        %v6903 = vadd.f32 0.0, %v6902
        %v6904 = vpop.f32.mrf.mxu0
        %v6905 = vadd.f32 0.0, %v6904
        %6906 = vmatprep.mubr.f32.mxu0 0.0
        %6907 = vmatmul.mubr.f32.gmra.mxu0 %v6822
        %v6908 = vpop.f32.mrf.mxu0
        %v6909 = vadd.f32 0.0, %v6908
        %v6910 = vpop.f32.mrf.mxu0
        %v6911 = vadd.f32 0.0, %v6910
        %6912 = vdwg.mxu0
        %6913 = vmatprep.subr.mxu0 0.0
        %6914 = vmatpush1.msra.mxu0 0.0
        %6915 = vmatprep.subr.mxu0 0.0
        %6916 = vmatpush1.msra.mxu0 0.0
        %6917 = vmatprep.subr.mxu0 0.0
        %6918 = vmatpush1.msra.mxu0 0.0
        %6919 = vmatprep.subr.mxu0 0.0
        %6920 = vmatpush1.msra.mxu0 0.0
        %6921 = vmatprep.subr.mxu0 0.0
        %6922 = vmatpush1.msra.mxu0 0.0
        %6923 = vmatprep.subr.mxu0 0.0
        %6924 = vmatpush1.msra.mxu0 0.0
        %6925 = vmatprep.subr.mxu0 0.0
        %6926 = vmatpush1.msra.mxu0 0.0
        %6927 = vmatprep.subr.mxu0 0.0
        %6928 = vmatpush1.msra.mxu0 0.0
        %6929 = vmatprep.subr.mxu0 0.0
        %6930 = vmatpush1.msra.mxu0 0.0
        %6931 = vmatprep.subr.mxu0 0.0
        %6932 = vmatpush1.msra.mxu0 0.0
        %6933 = vmatprep.subr.mxu0 0.0
        %6934 = vmatpush1.msra.mxu0 0.0
        %6935 = vmatprep.subr.mxu0 0.0
        %6936 = vmatpush1.msra.mxu0 0.0
        %6937 = vmatprep.subr.mxu0 %v6795
        %6938 = vmatpush1.msra.mxu0 %v6794
        %6939 = vmatprep.subr.mxu0 %v6791
        %6940 = vmatpush1.msra.mxu0 %v6790
        %6941 = vmatprep.subr.mxu0 %v6787
        %6942 = vmatpush1.msra.mxu0 %v6786
        %6943 = vmatprep.subr.mxu0 %v6783
        %6944 = vmatpush1.msra.mxu0 %v6782
        %6945 = vmatprep.subr.mxu0 0.0
        %6946 = vmatpush2.msra.mxu0 0.0
        %6947 = vmatprep.subr.mxu0 0.0
        %6948 = vmatpush2.msra.mxu0 0.0
        %6949 = vmatprep.subr.mxu0 0.0
        %6950 = vmatpush2.msra.mxu0 0.0
        %6951 = vmatprep.subr.mxu0 0.0
        %6952 = vmatpush2.msra.mxu0 0.0
        %6953 = vmatprep.subr.mxu0 0.0
        %6954 = vmatpush2.msra.mxu0 0.0
        %6955 = vmatprep.subr.mxu0 0.0
        %6956 = vmatpush2.msra.mxu0 0.0
        %6957 = vmatprep.subr.mxu0 0.0
        %6958 = vmatpush2.msra.mxu0 0.0
        %6959 = vmatprep.subr.mxu0 0.0
        %6960 = vmatpush2.msra.mxu0 0.0
        %6961 = vmatprep.subr.mxu0 0.0
        %6962 = vmatpush2.msra.mxu0 0.0
        %6963 = vmatprep.subr.mxu0 0.0
        %6964 = vmatpush2.msra.mxu0 0.0
        %6965 = vmatprep.subr.mxu0 0.0
        %6966 = vmatpush2.msra.mxu0 0.0
        %6967 = vmatprep.subr.mxu0 0.0
        %6968 = vmatpush2.msra.mxu0 0.0
        %6969 = vmatprep.subr.mxu0 0.0
        %6970 = vmatpush2.msra.mxu0 0.0
        %6971 = vmatprep.subr.mxu0 0.0
        %6972 = vmatpush2.msra.mxu0 0.0
        %6973 = vmatprep.subr.mxu0 0.0
        %6974 = vmatpush2.msra.mxu0 0.0
        %6975 = vmatprep.subr.mxu0 0.0
        %6976 = vmatpush2.msra.mxu0 0.0
        %6977 = vmatprep.mubr.f32.mxu0 0.0
        %6978 = vmatmul.mubr.f32.gmra.mxu0 %v6813
        %v6979 = vpop.f32.mrf.mxu0
        %v6980 = vadd.f32 0.0, %v6979
        %v6981 = vpop.f32.mrf.mxu0
        %v6982 = vadd.f32 0.0, %v6981
        %6983 = vmatprep.mubr.f32.mxu0 0.0
        %6984 = vmatmul.mubr.f32.gmra.mxu0 %v6816
        %v6985 = vpop.f32.mrf.mxu0
        %v6986 = vadd.f32 0.0, %v6985
        %v6987 = vpop.f32.mrf.mxu0
        %v6988 = vadd.f32 0.0, %v6987
        %6989 = vmatprep.mubr.f32.mxu0 0.0
        %6990 = vmatmul.mubr.f32.gmra.mxu0 %v6819
        %v6991 = vpop.f32.mrf.mxu0
        %v6992 = vadd.f32 0.0, %v6991
        %v6993 = vpop.f32.mrf.mxu0
        %v6994 = vadd.f32 0.0, %v6993
        %6995 = vmatprep.mubr.f32.mxu0 0.0
        %6996 = vmatmul.mubr.f32.gmra.mxu0 %v6822
        %v6997 = vpop.f32.mrf.mxu0
        %v6998 = vadd.f32 0.0, %v6997
        %v6999 = vpop.f32.mrf.mxu0
        %v7000 = vadd.f32 0.0, %v6999
        %7001 = vdwg.mxu0
        %v7002 = vadd.f32 %v6684, %v6891
        %v7003 = vadd.f32 %v6685, %v6893
        %v7004 = vadd.f32 %v6686, %v6980
        %v7005 = vadd.f32 %v6687, %v6982
        %v7006 = vadd.f32 %v6688, %v6897
        %v7007 = vadd.f32 %v6689, %v6899
        %v7008 = vadd.f32 %v6690, %v6986
        %v7009 = vadd.f32 %v6691, %v6988
        %v7010 = vadd.f32 %v6692, %v6903
        %v7011 = vadd.f32 %v6693, %v6905
        %v7012 = vadd.f32 %v6694, %v6992
        %v7013 = vadd.f32 %v6695, %v6994
        %v7014 = vadd.f32 %v6696, %v6909
        %v7015 = vadd.f32 %v6697, %v6911
        %v7016 = vadd.f32 %v6698, %v6998
        %v7017 = vadd.f32 %v6699, %v7000
        %v7018 = vld [vmem:[%s934 + $0x8] sm:$0xff]
        %v7019 = vld [vmem:[%s934 + $0x10] sm:$0xff]
        %v7020 = vld [vmem:[%s934 + $0x18] sm:$0xff]
        %v7021 = vld [vmem:[%s934 + $0x20] sm:$0xff]
        %v7022 = vld [vmem:[%s934 + $0x28] sm:$0xff]
        %v7023 = vld [vmem:[%s934 + $0x38] sm:$0xff]
        %v7024 = vld [vmem:[%s934 + $0x40] sm:$0xff]
        %v7025 = vld [vmem:[%s934 + $0x48] sm:$0xff]
        %v7026 = vld [vmem:[%s934 + $0x50] sm:$0xff]
        %v7027 = vld [vmem:[%s934 + $0x58] sm:$0xff]
        %v7028 = vld [vmem:[%s934 + $0x68] sm:$0xff]
        %v7029 = vld [vmem:[%s934 + $0x70] sm:$0xff]
        %v7030 = vld [vmem:[%s934 + $0x78] sm:$0xff]
        %v7031 = vld [vmem:[%s934 + $0x80] sm:$0xff]
        %v7032 = vld [vmem:[%s934 + $0x88] sm:$0xff]
        %v7033 = vld [vmem:[%s934 + $0x98] sm:$0xff]
        %v7034 = vld [vmem:[%s934 + $0xa0] sm:$0xff]
        %v7035 = vld [vmem:[%s934 + $0xa8] sm:$0xff]
        %v7036 = vld [vmem:[%s934 + $0xb0] sm:$0xff]
        %v7037 = vld [vmem:[%s934 + $0xb8] sm:$0xff]
        %7058 = vrot.lane.b32.xlu0 %v7018, 72
        %v7059 = vpop.permute.xlu0 %7058
        %7060 = vrot.lane.b32.xlu0 %v7019, 72
        %v7061 = vpop.permute.xlu0 %7060
        %7062 = vrot.lane.b32.xlu0 %v7020, 72
        %v7063 = vpop.permute.xlu0 %7062
        %7064 = vrot.lane.b32.xlu0 %v7021, 72
        %v7065 = vpop.permute.xlu0 %7064
        %7066 = vrot.lane.b32.xlu0 %v7022, 72
        %v7067 = vpop.permute.xlu0 %7066
        %7068 = vrot.lane.b32.xlu0 %v7023, 72
        %v7069 = vpop.permute.xlu0 %7068
        %7070 = vrot.lane.b32.xlu0 %v7024, 72
        %v7071 = vpop.permute.xlu0 %7070
        %7072 = vrot.lane.b32.xlu0 %v7025, 72
        %v7073 = vpop.permute.xlu0 %7072
        %7074 = vrot.lane.b32.xlu0 %v7026, 72
        %v7075 = vpop.permute.xlu0 %7074
        %7076 = vrot.lane.b32.xlu0 %v7027, 72
        %v7077 = vpop.permute.xlu0 %7076
        %7078 = vrot.lane.b32.xlu0 %v7028, 72
        %v7079 = vpop.permute.xlu0 %7078
        %7080 = vrot.lane.b32.xlu0 %v7029, 72
        %v7081 = vpop.permute.xlu0 %7080
        %7082 = vrot.lane.b32.xlu0 %v7030, 72
        %v7083 = vpop.permute.xlu0 %7082
        %7084 = vrot.lane.b32.xlu0 %v7031, 72
        %v7085 = vpop.permute.xlu0 %7084
        %7086 = vrot.lane.b32.xlu0 %v7032, 72
        %v7087 = vpop.permute.xlu0 %7086
        %7088 = vrot.lane.b32.xlu0 %v7033, 72
        %v7089 = vpop.permute.xlu0 %7088
        %7090 = vrot.lane.b32.xlu0 %v7034, 72
        %v7091 = vpop.permute.xlu0 %7090
        %7092 = vrot.lane.b32.xlu0 %v7035, 72
        %v7093 = vpop.permute.xlu0 %7092
        %7094 = vrot.lane.b32.xlu0 %v7036, 72
        %v7095 = vpop.permute.xlu0 %7094
        %7096 = vrot.lane.b32.xlu0 %v7037, 72
        %v7097 = vpop.permute.xlu0 %7096
        %v7098 = vsel %vm1362, %v7059, %v7061
        %v7099 = vsel %vm1362, %v7061, %v7063
        %v7100 = vsel %vm1362, %v7063, %v7065
        %v7101 = vsel %vm1362, %v7065, %v7067
        %v7102 = vsel %vm1362, %v7069, %v7071
        %v7103 = vsel %vm1362, %v7071, %v7073
        %v7104 = vsel %vm1362, %v7073, %v7075
        %v7105 = vsel %vm1362, %v7075, %v7077
        %v7106 = vsel %vm1362, %v7079, %v7081
        %v7107 = vsel %vm1362, %v7081, %v7083
        %v7108 = vsel %vm1362, %v7083, %v7085
        %v7109 = vsel %vm1362, %v7085, %v7087
        %v7110 = vsel %vm1362, %v7089, %v7091
        %v7111 = vsel %vm1362, %v7091, %v7093
        %v7112 = vsel %vm1362, %v7093, %v7095
        %v7113 = vsel %vm1362, %v7095, %v7097
        %v7131 = vsel %vm1395, %v488, 0
        %v7134 = vsel %vm1395, %v489, 0
        %v7137 = vsel %vm1395, %v490, 0
        %v7140 = vsel %vm1395, %v491, 0
        %7142 = vmatprep.subr.mxu0 0.0
        %7143 = vmatpush1.msra.mxu0 0.0
        %7144 = vmatprep.subr.mxu0 0.0
        %7145 = vmatpush1.msra.mxu0 0.0
        %7146 = vmatprep.subr.mxu0 0.0
        %7147 = vmatpush1.msra.mxu0 0.0
        %7148 = vmatprep.subr.mxu0 0.0
        %7149 = vmatpush1.msra.mxu0 0.0
        %7150 = vmatprep.subr.mxu0 0.0
        %7151 = vmatpush1.msra.mxu0 0.0
        %7152 = vmatprep.subr.mxu0 0.0
        %7153 = vmatpush1.msra.mxu0 0.0
        %7154 = vmatprep.subr.mxu0 0.0
        %7155 = vmatpush1.msra.mxu0 0.0
        %7156 = vmatprep.subr.mxu0 0.0
        %7157 = vmatpush1.msra.mxu0 0.0
        %7158 = vmatprep.subr.mxu0 0.0
        %7159 = vmatpush1.msra.mxu0 0.0
        %7160 = vmatprep.subr.mxu0 0.0
        %7161 = vmatpush1.msra.mxu0 0.0
        %7162 = vmatprep.subr.mxu0 0.0
        %7163 = vmatpush1.msra.mxu0 0.0
        %7164 = vmatprep.subr.mxu0 0.0
        %7165 = vmatpush1.msra.mxu0 0.0
        %7166 = vmatprep.subr.mxu0 %v7111
        %7167 = vmatpush1.msra.mxu0 %v7110
        %7168 = vmatprep.subr.mxu0 %v7107
        %7169 = vmatpush1.msra.mxu0 %v7106
        %7170 = vmatprep.subr.mxu0 %v7103
        %7171 = vmatpush1.msra.mxu0 %v7102
        %7172 = vmatprep.subr.mxu0 %v7099
        %7173 = vmatpush1.msra.mxu0 %v7098
        %7174 = vmatprep.subr.mxu0 0.0
        %7175 = vmatpush2.msra.mxu0 0.0
        %7176 = vmatprep.subr.mxu0 0.0
        %7177 = vmatpush2.msra.mxu0 0.0
        %7178 = vmatprep.subr.mxu0 0.0
        %7179 = vmatpush2.msra.mxu0 0.0
        %7180 = vmatprep.subr.mxu0 0.0
        %7181 = vmatpush2.msra.mxu0 0.0
        %7182 = vmatprep.subr.mxu0 0.0
        %7183 = vmatpush2.msra.mxu0 0.0
        %7184 = vmatprep.subr.mxu0 0.0
        %7185 = vmatpush2.msra.mxu0 0.0
        %7186 = vmatprep.subr.mxu0 0.0
        %7187 = vmatpush2.msra.mxu0 0.0
        %7188 = vmatprep.subr.mxu0 0.0
        %7189 = vmatpush2.msra.mxu0 0.0
        %7190 = vmatprep.subr.mxu0 0.0
        %7191 = vmatpush2.msra.mxu0 0.0
        %7192 = vmatprep.subr.mxu0 0.0
        %7193 = vmatpush2.msra.mxu0 0.0
        %7194 = vmatprep.subr.mxu0 0.0
        %7195 = vmatpush2.msra.mxu0 0.0
        %7196 = vmatprep.subr.mxu0 0.0
        %7197 = vmatpush2.msra.mxu0 0.0
        %7198 = vmatprep.subr.mxu0 0.0
        %7199 = vmatpush2.msra.mxu0 0.0
        %7200 = vmatprep.subr.mxu0 0.0
        %7201 = vmatpush2.msra.mxu0 0.0
        %7202 = vmatprep.subr.mxu0 0.0
        %7203 = vmatpush2.msra.mxu0 0.0
        %7204 = vmatprep.subr.mxu0 0.0
        %7205 = vmatpush2.msra.mxu0 0.0
        %7206 = vmatprep.mubr.f32.mxu0 0.0
        %7207 = vmatmul.mubr.f32.gmra.mxu0 %v7131
        %v7208 = vpop.f32.mrf.mxu0
        %v7209 = vadd.f32 0.0, %v7208
        %v7210 = vpop.f32.mrf.mxu0
        %v7211 = vadd.f32 0.0, %v7210
        %7212 = vmatprep.mubr.f32.mxu0 0.0
        %7213 = vmatmul.mubr.f32.gmra.mxu0 %v7134
        %v7214 = vpop.f32.mrf.mxu0
        %v7215 = vadd.f32 0.0, %v7214
        %v7216 = vpop.f32.mrf.mxu0
        %v7217 = vadd.f32 0.0, %v7216
        %7218 = vmatprep.mubr.f32.mxu0 0.0
        %7219 = vmatmul.mubr.f32.gmra.mxu0 %v7137
        %v7220 = vpop.f32.mrf.mxu0
        %v7221 = vadd.f32 0.0, %v7220
        %v7222 = vpop.f32.mrf.mxu0
        %v7223 = vadd.f32 0.0, %v7222
        %7224 = vmatprep.mubr.f32.mxu0 0.0
        %7225 = vmatmul.mubr.f32.gmra.mxu0 %v7140
        %v7226 = vpop.f32.mrf.mxu0
        %v7227 = vadd.f32 0.0, %v7226
        %v7228 = vpop.f32.mrf.mxu0
        %v7229 = vadd.f32 0.0, %v7228
        %7230 = vdwg.mxu0
        %7231 = vmatprep.subr.mxu0 0.0
        %7232 = vmatpush1.msra.mxu0 0.0
        %7233 = vmatprep.subr.mxu0 0.0
        %7234 = vmatpush1.msra.mxu0 0.0
        %7235 = vmatprep.subr.mxu0 0.0
        %7236 = vmatpush1.msra.mxu0 0.0
        %7237 = vmatprep.subr.mxu0 0.0
        %7238 = vmatpush1.msra.mxu0 0.0
        %7239 = vmatprep.subr.mxu0 0.0
        %7240 = vmatpush1.msra.mxu0 0.0
        %7241 = vmatprep.subr.mxu0 0.0
        %7242 = vmatpush1.msra.mxu0 0.0
        %7243 = vmatprep.subr.mxu0 0.0
        %7244 = vmatpush1.msra.mxu0 0.0
        %7245 = vmatprep.subr.mxu0 0.0
        %7246 = vmatpush1.msra.mxu0 0.0
        %7247 = vmatprep.subr.mxu0 0.0
        %7248 = vmatpush1.msra.mxu0 0.0
        %7249 = vmatprep.subr.mxu0 0.0
        %7250 = vmatpush1.msra.mxu0 0.0
        %7251 = vmatprep.subr.mxu0 0.0
        %7252 = vmatpush1.msra.mxu0 0.0
        %7253 = vmatprep.subr.mxu0 0.0
        %7254 = vmatpush1.msra.mxu0 0.0
        %7255 = vmatprep.subr.mxu0 %v7113
        %7256 = vmatpush1.msra.mxu0 %v7112
        %7257 = vmatprep.subr.mxu0 %v7109
        %7258 = vmatpush1.msra.mxu0 %v7108
        %7259 = vmatprep.subr.mxu0 %v7105
        %7260 = vmatpush1.msra.mxu0 %v7104
        %7261 = vmatprep.subr.mxu0 %v7101
        %7262 = vmatpush1.msra.mxu0 %v7100
        %7263 = vmatprep.subr.mxu0 0.0
        %7264 = vmatpush2.msra.mxu0 0.0
        %7265 = vmatprep.subr.mxu0 0.0
        %7266 = vmatpush2.msra.mxu0 0.0
        %7267 = vmatprep.subr.mxu0 0.0
        %7268 = vmatpush2.msra.mxu0 0.0
        %7269 = vmatprep.subr.mxu0 0.0
        %7270 = vmatpush2.msra.mxu0 0.0
        %7271 = vmatprep.subr.mxu0 0.0
        %7272 = vmatpush2.msra.mxu0 0.0
        %7273 = vmatprep.subr.mxu0 0.0
        %7274 = vmatpush2.msra.mxu0 0.0
        %7275 = vmatprep.subr.mxu0 0.0
        %7276 = vmatpush2.msra.mxu0 0.0
        %7277 = vmatprep.subr.mxu0 0.0
        %7278 = vmatpush2.msra.mxu0 0.0
        %7279 = vmatprep.subr.mxu0 0.0
        %7280 = vmatpush2.msra.mxu0 0.0
        %7281 = vmatprep.subr.mxu0 0.0
        %7282 = vmatpush2.msra.mxu0 0.0
        %7283 = vmatprep.subr.mxu0 0.0
        %7284 = vmatpush2.msra.mxu0 0.0
        %7285 = vmatprep.subr.mxu0 0.0
        %7286 = vmatpush2.msra.mxu0 0.0
        %7287 = vmatprep.subr.mxu0 0.0
        %7288 = vmatpush2.msra.mxu0 0.0
        %7289 = vmatprep.subr.mxu0 0.0
        %7290 = vmatpush2.msra.mxu0 0.0
        %7291 = vmatprep.subr.mxu0 0.0
        %7292 = vmatpush2.msra.mxu0 0.0
        %7293 = vmatprep.subr.mxu0 0.0
        %7294 = vmatpush2.msra.mxu0 0.0
        %7295 = vmatprep.mubr.f32.mxu0 0.0
        %7296 = vmatmul.mubr.f32.gmra.mxu0 %v7131
        %v7297 = vpop.f32.mrf.mxu0
        %v7298 = vadd.f32 0.0, %v7297
        %v7299 = vpop.f32.mrf.mxu0
        %v7300 = vadd.f32 0.0, %v7299
        %7301 = vmatprep.mubr.f32.mxu0 0.0
        %7302 = vmatmul.mubr.f32.gmra.mxu0 %v7134
        %v7303 = vpop.f32.mrf.mxu0
        %v7304 = vadd.f32 0.0, %v7303
        %v7305 = vpop.f32.mrf.mxu0
        %v7306 = vadd.f32 0.0, %v7305
        %7307 = vmatprep.mubr.f32.mxu0 0.0
        %7308 = vmatmul.mubr.f32.gmra.mxu0 %v7137
        %v7309 = vpop.f32.mrf.mxu0
        %v7310 = vadd.f32 0.0, %v7309
        %v7311 = vpop.f32.mrf.mxu0
        %v7312 = vadd.f32 0.0, %v7311
        %7313 = vmatprep.mubr.f32.mxu0 0.0
        %7314 = vmatmul.mubr.f32.gmra.mxu0 %v7140
        %v7315 = vpop.f32.mrf.mxu0
        %v7316 = vadd.f32 0.0, %v7315
        %v7317 = vpop.f32.mrf.mxu0
        %v7318 = vadd.f32 0.0, %v7317
        %7319 = vdwg.mxu0
        %v7320 = vadd.f32 %v7002, %v7209
        %v7321 = vadd.f32 %v7003, %v7211
        %v7322 = vadd.f32 %v7004, %v7298
        %v7323 = vadd.f32 %v7005, %v7300
        %v7324 = vadd.f32 %v7006, %v7215
        %v7325 = vadd.f32 %v7007, %v7217
        %v7326 = vadd.f32 %v7008, %v7304
        %v7327 = vadd.f32 %v7009, %v7306
        %v7328 = vadd.f32 %v7010, %v7221
        %v7329 = vadd.f32 %v7011, %v7223
        %v7330 = vadd.f32 %v7012, %v7310
        %v7331 = vadd.f32 %v7013, %v7312
        %v7332 = vadd.f32 %v7014, %v7227
        %v7333 = vadd.f32 %v7015, %v7229
        %v7334 = vadd.f32 %v7016, %v7316
        %v7335 = vadd.f32 %v7017, %v7318
        %v7336 = vld [vmem:[%s983 + $0x8] sm:$0xff]
        %v7337 = vld [vmem:[%s983 + $0x10] sm:$0xff]
        %v7338 = vld [vmem:[%s983 + $0x18] sm:$0xff]
        %v7339 = vld [vmem:[%s983 + $0x20] sm:$0xff]
        %v7340 = vld [vmem:[%s983 + $0x28] sm:$0xff]
        %v7341 = vld [vmem:[%s983 + $0x38] sm:$0xff]
        %v7342 = vld [vmem:[%s983 + $0x40] sm:$0xff]
        %v7343 = vld [vmem:[%s983 + $0x48] sm:$0xff]
        %v7344 = vld [vmem:[%s983 + $0x50] sm:$0xff]
        %v7345 = vld [vmem:[%s983 + $0x58] sm:$0xff]
        %v7346 = vld [vmem:[%s983 + $0x68] sm:$0xff]
        %v7347 = vld [vmem:[%s983 + $0x70] sm:$0xff]
        %v7348 = vld [vmem:[%s983 + $0x78] sm:$0xff]
        %v7349 = vld [vmem:[%s983 + $0x80] sm:$0xff]
        %v7350 = vld [vmem:[%s983 + $0x88] sm:$0xff]
        %v7351 = vld [vmem:[%s983 + $0x98] sm:$0xff]
        %v7352 = vld [vmem:[%s983 + $0xa0] sm:$0xff]
        %v7353 = vld [vmem:[%s983 + $0xa8] sm:$0xff]
        %v7354 = vld [vmem:[%s983 + $0xb0] sm:$0xff]
        %v7355 = vld [vmem:[%s983 + $0xb8] sm:$0xff]
        %7376 = vrot.lane.b32.xlu0 %v7336, 71
        %v7377 = vpop.permute.xlu0 %7376
        %7378 = vrot.lane.b32.xlu0 %v7337, 71
        %v7379 = vpop.permute.xlu0 %7378
        %7380 = vrot.lane.b32.xlu0 %v7338, 71
        %v7381 = vpop.permute.xlu0 %7380
        %7382 = vrot.lane.b32.xlu0 %v7339, 71
        %v7383 = vpop.permute.xlu0 %7382
        %7384 = vrot.lane.b32.xlu0 %v7340, 71
        %v7385 = vpop.permute.xlu0 %7384
        %7386 = vrot.lane.b32.xlu0 %v7341, 71
        %v7387 = vpop.permute.xlu0 %7386
        %7388 = vrot.lane.b32.xlu0 %v7342, 71
        %v7389 = vpop.permute.xlu0 %7388
        %7390 = vrot.lane.b32.xlu0 %v7343, 71
        %v7391 = vpop.permute.xlu0 %7390
        %7392 = vrot.lane.b32.xlu0 %v7344, 71
        %v7393 = vpop.permute.xlu0 %7392
        %7394 = vrot.lane.b32.xlu0 %v7345, 71
        %v7395 = vpop.permute.xlu0 %7394
        %7396 = vrot.lane.b32.xlu0 %v7346, 71
        %v7397 = vpop.permute.xlu0 %7396
        %7398 = vrot.lane.b32.xlu0 %v7347, 71
        %v7399 = vpop.permute.xlu0 %7398
        %7400 = vrot.lane.b32.xlu0 %v7348, 71
        %v7401 = vpop.permute.xlu0 %7400
        %7402 = vrot.lane.b32.xlu0 %v7349, 71
        %v7403 = vpop.permute.xlu0 %7402
        %7404 = vrot.lane.b32.xlu0 %v7350, 71
        %v7405 = vpop.permute.xlu0 %7404
        %7406 = vrot.lane.b32.xlu0 %v7351, 71
        %v7407 = vpop.permute.xlu0 %7406
        %7408 = vrot.lane.b32.xlu0 %v7352, 71
        %v7409 = vpop.permute.xlu0 %7408
        %7410 = vrot.lane.b32.xlu0 %v7353, 71
        %v7411 = vpop.permute.xlu0 %7410
        %7412 = vrot.lane.b32.xlu0 %v7354, 71
        %v7413 = vpop.permute.xlu0 %7412
        %7414 = vrot.lane.b32.xlu0 %v7355, 71
        %v7415 = vpop.permute.xlu0 %7414
        %v7416 = vsel %vm1949, %v7377, %v7379
        %v7417 = vsel %vm1949, %v7379, %v7381
        %v7418 = vsel %vm1949, %v7381, %v7383
        %v7419 = vsel %vm1949, %v7383, %v7385
        %v7420 = vsel %vm1949, %v7387, %v7389
        %v7421 = vsel %vm1949, %v7389, %v7391
        %v7422 = vsel %vm1949, %v7391, %v7393
        %v7423 = vsel %vm1949, %v7393, %v7395
        %v7424 = vsel %vm1949, %v7397, %v7399
        %v7425 = vsel %vm1949, %v7399, %v7401
        %v7426 = vsel %vm1949, %v7401, %v7403
        %v7427 = vsel %vm1949, %v7403, %v7405
        %v7428 = vsel %vm1949, %v7407, %v7409
        %v7429 = vsel %vm1949, %v7409, %v7411
        %v7430 = vsel %vm1949, %v7411, %v7413
        %v7431 = vsel %vm1949, %v7413, %v7415
        %v7449 = vsel %vm1395, %v492, 0
        %v7452 = vsel %vm1395, %v493, 0
        %v7455 = vsel %vm1395, %v494, 0
        %v7458 = vsel %vm1395, %v495, 0
        %7460 = vmatprep.subr.mxu0 0.0
        %7461 = vmatpush1.msra.mxu0 0.0
        %7462 = vmatprep.subr.mxu0 0.0
        %7463 = vmatpush1.msra.mxu0 0.0
        %7464 = vmatprep.subr.mxu0 0.0
        %7465 = vmatpush1.msra.mxu0 0.0
        %7466 = vmatprep.subr.mxu0 0.0
        %7467 = vmatpush1.msra.mxu0 0.0
        %7468 = vmatprep.subr.mxu0 0.0
        %7469 = vmatpush1.msra.mxu0 0.0
        %7470 = vmatprep.subr.mxu0 0.0
        %7471 = vmatpush1.msra.mxu0 0.0
        %7472 = vmatprep.subr.mxu0 0.0
        %7473 = vmatpush1.msra.mxu0 0.0
        %7474 = vmatprep.subr.mxu0 0.0
        %7475 = vmatpush1.msra.mxu0 0.0
        %7476 = vmatprep.subr.mxu0 0.0
        %7477 = vmatpush1.msra.mxu0 0.0
        %7478 = vmatprep.subr.mxu0 0.0
        %7479 = vmatpush1.msra.mxu0 0.0
        %7480 = vmatprep.subr.mxu0 0.0
        %7481 = vmatpush1.msra.mxu0 0.0
        %7482 = vmatprep.subr.mxu0 0.0
        %7483 = vmatpush1.msra.mxu0 0.0
        %7484 = vmatprep.subr.mxu0 %v7429
        %7485 = vmatpush1.msra.mxu0 %v7428
        %7486 = vmatprep.subr.mxu0 %v7425
        %7487 = vmatpush1.msra.mxu0 %v7424
        %7488 = vmatprep.subr.mxu0 %v7421
        %7489 = vmatpush1.msra.mxu0 %v7420
        %7490 = vmatprep.subr.mxu0 %v7417
        %7491 = vmatpush1.msra.mxu0 %v7416
        %7492 = vmatprep.subr.mxu0 0.0
        %7493 = vmatpush2.msra.mxu0 0.0
        %7494 = vmatprep.subr.mxu0 0.0
        %7495 = vmatpush2.msra.mxu0 0.0
        %7496 = vmatprep.subr.mxu0 0.0
        %7497 = vmatpush2.msra.mxu0 0.0
        %7498 = vmatprep.subr.mxu0 0.0
        %7499 = vmatpush2.msra.mxu0 0.0
        %7500 = vmatprep.subr.mxu0 0.0
        %7501 = vmatpush2.msra.mxu0 0.0
        %7502 = vmatprep.subr.mxu0 0.0
        %7503 = vmatpush2.msra.mxu0 0.0
        %7504 = vmatprep.subr.mxu0 0.0
        %7505 = vmatpush2.msra.mxu0 0.0
        %7506 = vmatprep.subr.mxu0 0.0
        %7507 = vmatpush2.msra.mxu0 0.0
        %7508 = vmatprep.subr.mxu0 0.0
        %7509 = vmatpush2.msra.mxu0 0.0
        %7510 = vmatprep.subr.mxu0 0.0
        %7511 = vmatpush2.msra.mxu0 0.0
        %7512 = vmatprep.subr.mxu0 0.0
        %7513 = vmatpush2.msra.mxu0 0.0
        %7514 = vmatprep.subr.mxu0 0.0
        %7515 = vmatpush2.msra.mxu0 0.0
        %7516 = vmatprep.subr.mxu0 0.0
        %7517 = vmatpush2.msra.mxu0 0.0
        %7518 = vmatprep.subr.mxu0 0.0
        %7519 = vmatpush2.msra.mxu0 0.0
        %7520 = vmatprep.subr.mxu0 0.0
        %7521 = vmatpush2.msra.mxu0 0.0
        %7522 = vmatprep.subr.mxu0 0.0
        %7523 = vmatpush2.msra.mxu0 0.0
        %7524 = vmatprep.mubr.f32.mxu0 0.0
        %7525 = vmatmul.mubr.f32.gmra.mxu0 %v7449
        %v7526 = vpop.f32.mrf.mxu0
        %v7527 = vadd.f32 0.0, %v7526
        %v7528 = vpop.f32.mrf.mxu0
        %v7529 = vadd.f32 0.0, %v7528
        %7530 = vmatprep.mubr.f32.mxu0 0.0
        %7531 = vmatmul.mubr.f32.gmra.mxu0 %v7452
        %v7532 = vpop.f32.mrf.mxu0
        %v7533 = vadd.f32 0.0, %v7532
        %v7534 = vpop.f32.mrf.mxu0
        %v7535 = vadd.f32 0.0, %v7534
        %7536 = vmatprep.mubr.f32.mxu0 0.0
        %7537 = vmatmul.mubr.f32.gmra.mxu0 %v7455
        %v7538 = vpop.f32.mrf.mxu0
        %v7539 = vadd.f32 0.0, %v7538
        %v7540 = vpop.f32.mrf.mxu0
        %v7541 = vadd.f32 0.0, %v7540
        %7542 = vmatprep.mubr.f32.mxu0 0.0
        %7543 = vmatmul.mubr.f32.gmra.mxu0 %v7458
        %v7544 = vpop.f32.mrf.mxu0
        %v7545 = vadd.f32 0.0, %v7544
        %v7546 = vpop.f32.mrf.mxu0
        %v7547 = vadd.f32 0.0, %v7546
        %7548 = vdwg.mxu0
        %7549 = vmatprep.subr.mxu0 0.0
        %7550 = vmatpush1.msra.mxu0 0.0
        %7551 = vmatprep.subr.mxu0 0.0
        %7552 = vmatpush1.msra.mxu0 0.0
        %7553 = vmatprep.subr.mxu0 0.0
        %7554 = vmatpush1.msra.mxu0 0.0
        %7555 = vmatprep.subr.mxu0 0.0
        %7556 = vmatpush1.msra.mxu0 0.0
        %7557 = vmatprep.subr.mxu0 0.0
        %7558 = vmatpush1.msra.mxu0 0.0
        %7559 = vmatprep.subr.mxu0 0.0
        %7560 = vmatpush1.msra.mxu0 0.0
        %7561 = vmatprep.subr.mxu0 0.0
        %7562 = vmatpush1.msra.mxu0 0.0
        %7563 = vmatprep.subr.mxu0 0.0
        %7564 = vmatpush1.msra.mxu0 0.0
        %7565 = vmatprep.subr.mxu0 0.0
        %7566 = vmatpush1.msra.mxu0 0.0
        %7567 = vmatprep.subr.mxu0 0.0
        %7568 = vmatpush1.msra.mxu0 0.0
        %7569 = vmatprep.subr.mxu0 0.0
        %7570 = vmatpush1.msra.mxu0 0.0
        %7571 = vmatprep.subr.mxu0 0.0
        %7572 = vmatpush1.msra.mxu0 0.0
        %7573 = vmatprep.subr.mxu0 %v7431
        %7574 = vmatpush1.msra.mxu0 %v7430
        %7575 = vmatprep.subr.mxu0 %v7427
        %7576 = vmatpush1.msra.mxu0 %v7426
        %7577 = vmatprep.subr.mxu0 %v7423
        %7578 = vmatpush1.msra.mxu0 %v7422
        %7579 = vmatprep.subr.mxu0 %v7419
        %7580 = vmatpush1.msra.mxu0 %v7418
        %7581 = vmatprep.subr.mxu0 0.0
        %7582 = vmatpush2.msra.mxu0 0.0
        %7583 = vmatprep.subr.mxu0 0.0
        %7584 = vmatpush2.msra.mxu0 0.0
        %7585 = vmatprep.subr.mxu0 0.0
        %7586 = vmatpush2.msra.mxu0 0.0
        %7587 = vmatprep.subr.mxu0 0.0
        %7588 = vmatpush2.msra.mxu0 0.0
        %7589 = vmatprep.subr.mxu0 0.0
        %7590 = vmatpush2.msra.mxu0 0.0
        %7591 = vmatprep.subr.mxu0 0.0
        %7592 = vmatpush2.msra.mxu0 0.0
        %7593 = vmatprep.subr.mxu0 0.0
        %7594 = vmatpush2.msra.mxu0 0.0
        %7595 = vmatprep.subr.mxu0 0.0
        %7596 = vmatpush2.msra.mxu0 0.0
        %7597 = vmatprep.subr.mxu0 0.0
        %7598 = vmatpush2.msra.mxu0 0.0
        %7599 = vmatprep.subr.mxu0 0.0
        %7600 = vmatpush2.msra.mxu0 0.0
        %7601 = vmatprep.subr.mxu0 0.0
        %7602 = vmatpush2.msra.mxu0 0.0
        %7603 = vmatprep.subr.mxu0 0.0
        %7604 = vmatpush2.msra.mxu0 0.0
        %7605 = vmatprep.subr.mxu0 0.0
        %7606 = vmatpush2.msra.mxu0 0.0
        %7607 = vmatprep.subr.mxu0 0.0
        %7608 = vmatpush2.msra.mxu0 0.0
        %7609 = vmatprep.subr.mxu0 0.0
        %7610 = vmatpush2.msra.mxu0 0.0
        %7611 = vmatprep.subr.mxu0 0.0
        %7612 = vmatpush2.msra.mxu0 0.0
        %7613 = vmatprep.mubr.f32.mxu0 0.0
        %7614 = vmatmul.mubr.f32.gmra.mxu0 %v7449
        %v7615 = vpop.f32.mrf.mxu0
        %v7616 = vadd.f32 0.0, %v7615
        %v7617 = vpop.f32.mrf.mxu0
        %v7618 = vadd.f32 0.0, %v7617
        %7619 = vmatprep.mubr.f32.mxu0 0.0
        %7620 = vmatmul.mubr.f32.gmra.mxu0 %v7452
        %v7621 = vpop.f32.mrf.mxu0
        %v7622 = vadd.f32 0.0, %v7621
        %v7623 = vpop.f32.mrf.mxu0
        %v7624 = vadd.f32 0.0, %v7623
        %7625 = vmatprep.mubr.f32.mxu0 0.0
        %7626 = vmatmul.mubr.f32.gmra.mxu0 %v7455
        %v7627 = vpop.f32.mrf.mxu0
        %v7628 = vadd.f32 0.0, %v7627
        %v7629 = vpop.f32.mrf.mxu0
        %v7630 = vadd.f32 0.0, %v7629
        %7631 = vmatprep.mubr.f32.mxu0 0.0
        %7632 = vmatmul.mubr.f32.gmra.mxu0 %v7458
        %v7633 = vpop.f32.mrf.mxu0
        %v7634 = vadd.f32 0.0, %v7633
        %v7635 = vpop.f32.mrf.mxu0
        %v7636 = vadd.f32 0.0, %v7635
        %7637 = vdwg.mxu0
        %v7638 = vadd.f32 %v7320, %v7527
        %v7639 = vadd.f32 %v7321, %v7529
        %v7640 = vadd.f32 %v7322, %v7616
        %v7641 = vadd.f32 %v7323, %v7618
        %v7642 = vadd.f32 %v7324, %v7533
        %v7643 = vadd.f32 %v7325, %v7535
        %v7644 = vadd.f32 %v7326, %v7622
        %v7645 = vadd.f32 %v7327, %v7624
        %v7646 = vadd.f32 %v7328, %v7539
        %v7647 = vadd.f32 %v7329, %v7541
        %v7648 = vadd.f32 %v7330, %v7628
        %v7649 = vadd.f32 %v7331, %v7630
        %v7650 = vadd.f32 %v7332, %v7545
        %v7651 = vadd.f32 %v7333, %v7547
        %v7652 = vadd.f32 %v7334, %v7634
        %v7653 = vadd.f32 %v7335, %v7636
        %v7654 = vld [vmem:[%s1032 + $0x8] sm:$0xff]
        %v7655 = vld [vmem:[%s1032 + $0x10] sm:$0xff]
        %v7656 = vld [vmem:[%s1032 + $0x18] sm:$0xff]
        %v7657 = vld [vmem:[%s1032 + $0x20] sm:$0xff]
        %v7658 = vld [vmem:[%s1032 + $0x28] sm:$0xff]
        %v7659 = vld [vmem:[%s1032 + $0x38] sm:$0xff]
        %v7660 = vld [vmem:[%s1032 + $0x40] sm:$0xff]
        %v7661 = vld [vmem:[%s1032 + $0x48] sm:$0xff]
        %v7662 = vld [vmem:[%s1032 + $0x50] sm:$0xff]
        %v7663 = vld [vmem:[%s1032 + $0x58] sm:$0xff]
        %v7664 = vld [vmem:[%s1032 + $0x68] sm:$0xff]
        %v7665 = vld [vmem:[%s1032 + $0x70] sm:$0xff]
        %v7666 = vld [vmem:[%s1032 + $0x78] sm:$0xff]
        %v7667 = vld [vmem:[%s1032 + $0x80] sm:$0xff]
        %v7668 = vld [vmem:[%s1032 + $0x88] sm:$0xff]
        %v7669 = vld [vmem:[%s1032 + $0x98] sm:$0xff]
        %v7670 = vld [vmem:[%s1032 + $0xa0] sm:$0xff]
        %v7671 = vld [vmem:[%s1032 + $0xa8] sm:$0xff]
        %v7672 = vld [vmem:[%s1032 + $0xb0] sm:$0xff]
        %v7673 = vld [vmem:[%s1032 + $0xb8] sm:$0xff]
        %7694 = vrot.lane.b32.xlu0 %v7654, 65
        %v7695 = vpop.permute.xlu0 %7694
        %7696 = vrot.lane.b32.xlu0 %v7655, 65
        %v7697 = vpop.permute.xlu0 %7696
        %7698 = vrot.lane.b32.xlu0 %v7656, 65
        %v7699 = vpop.permute.xlu0 %7698
        %7700 = vrot.lane.b32.xlu0 %v7657, 65
        %v7701 = vpop.permute.xlu0 %7700
        %7702 = vrot.lane.b32.xlu0 %v7658, 65
        %v7703 = vpop.permute.xlu0 %7702
        %7704 = vrot.lane.b32.xlu0 %v7659, 65
        %v7705 = vpop.permute.xlu0 %7704
        %7706 = vrot.lane.b32.xlu0 %v7660, 65
        %v7707 = vpop.permute.xlu0 %7706
        %7708 = vrot.lane.b32.xlu0 %v7661, 65
        %v7709 = vpop.permute.xlu0 %7708
        %7710 = vrot.lane.b32.xlu0 %v7662, 65
        %v7711 = vpop.permute.xlu0 %7710
        %7712 = vrot.lane.b32.xlu0 %v7663, 65
        %v7713 = vpop.permute.xlu0 %7712
        %7714 = vrot.lane.b32.xlu0 %v7664, 65
        %v7715 = vpop.permute.xlu0 %7714
        %7716 = vrot.lane.b32.xlu0 %v7665, 65
        %v7717 = vpop.permute.xlu0 %7716
        %7718 = vrot.lane.b32.xlu0 %v7666, 65
        %v7719 = vpop.permute.xlu0 %7718
        %7720 = vrot.lane.b32.xlu0 %v7667, 65
        %v7721 = vpop.permute.xlu0 %7720
        %7722 = vrot.lane.b32.xlu0 %v7668, 65
        %v7723 = vpop.permute.xlu0 %7722
        %7724 = vrot.lane.b32.xlu0 %v7669, 65
        %v7725 = vpop.permute.xlu0 %7724
        %7726 = vrot.lane.b32.xlu0 %v7670, 65
        %v7727 = vpop.permute.xlu0 %7726
        %7728 = vrot.lane.b32.xlu0 %v7671, 65
        %v7729 = vpop.permute.xlu0 %7728
        %7730 = vrot.lane.b32.xlu0 %v7672, 65
        %v7731 = vpop.permute.xlu0 %7730
        %7732 = vrot.lane.b32.xlu0 %v7673, 65
        %v7733 = vpop.permute.xlu0 %7732
        %v7734 = vsel %vm2268, %v7695, %v7697
        %v7735 = vsel %vm2268, %v7697, %v7699
        %v7736 = vsel %vm2268, %v7699, %v7701
        %v7737 = vsel %vm2268, %v7701, %v7703
        %v7738 = vsel %vm2268, %v7705, %v7707
        %v7739 = vsel %vm2268, %v7707, %v7709
        %v7740 = vsel %vm2268, %v7709, %v7711
        %v7741 = vsel %vm2268, %v7711, %v7713
        %v7742 = vsel %vm2268, %v7715, %v7717
        %v7743 = vsel %vm2268, %v7717, %v7719
        %v7744 = vsel %vm2268, %v7719, %v7721
        %v7745 = vsel %vm2268, %v7721, %v7723
        %v7746 = vsel %vm2268, %v7725, %v7727
        %v7747 = vsel %vm2268, %v7727, %v7729
        %v7748 = vsel %vm2268, %v7729, %v7731
        %v7749 = vsel %vm2268, %v7731, %v7733
        %v7767 = vsel %vm1395, %v496, 0
        %v7770 = vsel %vm1395, %v497, 0
        %v7773 = vsel %vm1395, %v498, 0
        %v7776 = vsel %vm1395, %v499, 0
        %7778 = vmatprep.subr.mxu0 0.0
        %7779 = vmatpush1.msra.mxu0 0.0
        %7780 = vmatprep.subr.mxu0 0.0
        %7781 = vmatpush1.msra.mxu0 0.0
        %7782 = vmatprep.subr.mxu0 0.0
        %7783 = vmatpush1.msra.mxu0 0.0
        %7784 = vmatprep.subr.mxu0 0.0
        %7785 = vmatpush1.msra.mxu0 0.0
        %7786 = vmatprep.subr.mxu0 0.0
        %7787 = vmatpush1.msra.mxu0 0.0
        %7788 = vmatprep.subr.mxu0 0.0
        %7789 = vmatpush1.msra.mxu0 0.0
        %7790 = vmatprep.subr.mxu0 0.0
        %7791 = vmatpush1.msra.mxu0 0.0
        %7792 = vmatprep.subr.mxu0 0.0
        %7793 = vmatpush1.msra.mxu0 0.0
        %7794 = vmatprep.subr.mxu0 0.0
        %7795 = vmatpush1.msra.mxu0 0.0
        %7796 = vmatprep.subr.mxu0 0.0
        %7797 = vmatpush1.msra.mxu0 0.0
        %7798 = vmatprep.subr.mxu0 0.0
        %7799 = vmatpush1.msra.mxu0 0.0
        %7800 = vmatprep.subr.mxu0 0.0
        %7801 = vmatpush1.msra.mxu0 0.0
        %7802 = vmatprep.subr.mxu0 %v7747
        %7803 = vmatpush1.msra.mxu0 %v7746
        %7804 = vmatprep.subr.mxu0 %v7743
        %7805 = vmatpush1.msra.mxu0 %v7742
        %7806 = vmatprep.subr.mxu0 %v7739
        %7807 = vmatpush1.msra.mxu0 %v7738
        %7808 = vmatprep.subr.mxu0 %v7735
        %7809 = vmatpush1.msra.mxu0 %v7734
        %7810 = vmatprep.subr.mxu0 0.0
        %7811 = vmatpush2.msra.mxu0 0.0
        %7812 = vmatprep.subr.mxu0 0.0
        %7813 = vmatpush2.msra.mxu0 0.0
        %7814 = vmatprep.subr.mxu0 0.0
        %7815 = vmatpush2.msra.mxu0 0.0
        %7816 = vmatprep.subr.mxu0 0.0
        %7817 = vmatpush2.msra.mxu0 0.0
        %7818 = vmatprep.subr.mxu0 0.0
        %7819 = vmatpush2.msra.mxu0 0.0
        %7820 = vmatprep.subr.mxu0 0.0
        %7821 = vmatpush2.msra.mxu0 0.0
        %7822 = vmatprep.subr.mxu0 0.0
        %7823 = vmatpush2.msra.mxu0 0.0
        %7824 = vmatprep.subr.mxu0 0.0
        %7825 = vmatpush2.msra.mxu0 0.0
        %7826 = vmatprep.subr.mxu0 0.0
        %7827 = vmatpush2.msra.mxu0 0.0
        %7828 = vmatprep.subr.mxu0 0.0
        %7829 = vmatpush2.msra.mxu0 0.0
        %7830 = vmatprep.subr.mxu0 0.0
        %7831 = vmatpush2.msra.mxu0 0.0
        %7832 = vmatprep.subr.mxu0 0.0
        %7833 = vmatpush2.msra.mxu0 0.0
        %7834 = vmatprep.subr.mxu0 0.0
        %7835 = vmatpush2.msra.mxu0 0.0
        %7836 = vmatprep.subr.mxu0 0.0
        %7837 = vmatpush2.msra.mxu0 0.0
        %7838 = vmatprep.subr.mxu0 0.0
        %7839 = vmatpush2.msra.mxu0 0.0
        %7840 = vmatprep.subr.mxu0 0.0
        %7841 = vmatpush2.msra.mxu0 0.0
        %7842 = vmatprep.mubr.f32.mxu0 0.0
        %7843 = vmatmul.mubr.f32.gmra.mxu0 %v7767
        %v7844 = vpop.f32.mrf.mxu0
        %v7845 = vadd.f32 0.0, %v7844
        %v7846 = vpop.f32.mrf.mxu0
        %v7847 = vadd.f32 0.0, %v7846
        %7848 = vmatprep.mubr.f32.mxu0 0.0
        %7849 = vmatmul.mubr.f32.gmra.mxu0 %v7770
        %v7850 = vpop.f32.mrf.mxu0
        %v7851 = vadd.f32 0.0, %v7850
        %v7852 = vpop.f32.mrf.mxu0
        %v7853 = vadd.f32 0.0, %v7852
        %7854 = vmatprep.mubr.f32.mxu0 0.0
        %7855 = vmatmul.mubr.f32.gmra.mxu0 %v7773
        %v7856 = vpop.f32.mrf.mxu0
        %v7857 = vadd.f32 0.0, %v7856
        %v7858 = vpop.f32.mrf.mxu0
        %v7859 = vadd.f32 0.0, %v7858
        %7860 = vmatprep.mubr.f32.mxu0 0.0
        %7861 = vmatmul.mubr.f32.gmra.mxu0 %v7776
        %v7862 = vpop.f32.mrf.mxu0
        %v7863 = vadd.f32 0.0, %v7862
        %v7864 = vpop.f32.mrf.mxu0
        %v7865 = vadd.f32 0.0, %v7864
        %7866 = vdwg.mxu0
        %7867 = vmatprep.subr.mxu0 0.0
        %7868 = vmatpush1.msra.mxu0 0.0
        %7869 = vmatprep.subr.mxu0 0.0
        %7870 = vmatpush1.msra.mxu0 0.0
        %7871 = vmatprep.subr.mxu0 0.0
        %7872 = vmatpush1.msra.mxu0 0.0
        %7873 = vmatprep.subr.mxu0 0.0
        %7874 = vmatpush1.msra.mxu0 0.0
        %7875 = vmatprep.subr.mxu0 0.0
        %7876 = vmatpush1.msra.mxu0 0.0
        %7877 = vmatprep.subr.mxu0 0.0
        %7878 = vmatpush1.msra.mxu0 0.0
        %7879 = vmatprep.subr.mxu0 0.0
        %7880 = vmatpush1.msra.mxu0 0.0
        %7881 = vmatprep.subr.mxu0 0.0
        %7882 = vmatpush1.msra.mxu0 0.0
        %7883 = vmatprep.subr.mxu0 0.0
        %7884 = vmatpush1.msra.mxu0 0.0
        %7885 = vmatprep.subr.mxu0 0.0
        %7886 = vmatpush1.msra.mxu0 0.0
        %7887 = vmatprep.subr.mxu0 0.0
        %7888 = vmatpush1.msra.mxu0 0.0
        %7889 = vmatprep.subr.mxu0 0.0
        %7890 = vmatpush1.msra.mxu0 0.0
        %7891 = vmatprep.subr.mxu0 %v7749
        %7892 = vmatpush1.msra.mxu0 %v7748
        %7893 = vmatprep.subr.mxu0 %v7745
        %7894 = vmatpush1.msra.mxu0 %v7744
        %7895 = vmatprep.subr.mxu0 %v7741
        %7896 = vmatpush1.msra.mxu0 %v7740
        %7897 = vmatprep.subr.mxu0 %v7737
        %7898 = vmatpush1.msra.mxu0 %v7736
        %7899 = vmatprep.subr.mxu0 0.0
        %7900 = vmatpush2.msra.mxu0 0.0
        %7901 = vmatprep.subr.mxu0 0.0
        %7902 = vmatpush2.msra.mxu0 0.0
        %7903 = vmatprep.subr.mxu0 0.0
        %7904 = vmatpush2.msra.mxu0 0.0
        %7905 = vmatprep.subr.mxu0 0.0
        %7906 = vmatpush2.msra.mxu0 0.0
        %7907 = vmatprep.subr.mxu0 0.0
        %7908 = vmatpush2.msra.mxu0 0.0
        %7909 = vmatprep.subr.mxu0 0.0
        %7910 = vmatpush2.msra.mxu0 0.0
        %7911 = vmatprep.subr.mxu0 0.0
        %7912 = vmatpush2.msra.mxu0 0.0
        %7913 = vmatprep.subr.mxu0 0.0
        %7914 = vmatpush2.msra.mxu0 0.0
        %7915 = vmatprep.subr.mxu0 0.0
        %7916 = vmatpush2.msra.mxu0 0.0
        %7917 = vmatprep.subr.mxu0 0.0
        %7918 = vmatpush2.msra.mxu0 0.0
        %7919 = vmatprep.subr.mxu0 0.0
        %7920 = vmatpush2.msra.mxu0 0.0
        %7921 = vmatprep.subr.mxu0 0.0
        %7922 = vmatpush2.msra.mxu0 0.0
        %7923 = vmatprep.subr.mxu0 0.0
        %7924 = vmatpush2.msra.mxu0 0.0
        %7925 = vmatprep.subr.mxu0 0.0
        %7926 = vmatpush2.msra.mxu0 0.0
        %7927 = vmatprep.subr.mxu0 0.0
        %7928 = vmatpush2.msra.mxu0 0.0
        %7929 = vmatprep.subr.mxu0 0.0
        %7930 = vmatpush2.msra.mxu0 0.0
        %7931 = vmatprep.mubr.f32.mxu0 0.0
        %7932 = vmatmul.mubr.f32.gmra.mxu0 %v7767
        %v7933 = vpop.f32.mrf.mxu0
        %v7934 = vadd.f32 0.0, %v7933
        %v7935 = vpop.f32.mrf.mxu0
        %v7936 = vadd.f32 0.0, %v7935
        %7937 = vmatprep.mubr.f32.mxu0 0.0
        %7938 = vmatmul.mubr.f32.gmra.mxu0 %v7770
        %v7939 = vpop.f32.mrf.mxu0
        %v7940 = vadd.f32 0.0, %v7939
        %v7941 = vpop.f32.mrf.mxu0
        %v7942 = vadd.f32 0.0, %v7941
        %7943 = vmatprep.mubr.f32.mxu0 0.0
        %7944 = vmatmul.mubr.f32.gmra.mxu0 %v7773
        %v7945 = vpop.f32.mrf.mxu0
        %v7946 = vadd.f32 0.0, %v7945
        %v7947 = vpop.f32.mrf.mxu0
        %v7948 = vadd.f32 0.0, %v7947
        %7949 = vmatprep.mubr.f32.mxu0 0.0
        %7950 = vmatmul.mubr.f32.gmra.mxu0 %v7776
        %v7951 = vpop.f32.mrf.mxu0
        %v7952 = vadd.f32 0.0, %v7951
        %v7953 = vpop.f32.mrf.mxu0
        %v7954 = vadd.f32 0.0, %v7953
        %7955 = vdwg.mxu0
        %v7956 = vadd.f32 %v7638, %v7845
        %v7957 = vadd.f32 %v7639, %v7847
        %v7958 = vadd.f32 %v7640, %v7934
        %v7959 = vadd.f32 %v7641, %v7936
        %v7960 = vadd.f32 %v7642, %v7851
        %v7961 = vadd.f32 %v7643, %v7853
        %v7962 = vadd.f32 %v7644, %v7940
        %v7963 = vadd.f32 %v7645, %v7942
        %v7964 = vadd.f32 %v7646, %v7857
        %v7965 = vadd.f32 %v7647, %v7859
        %v7966 = vadd.f32 %v7648, %v7946
        %v7967 = vadd.f32 %v7649, %v7948
        %v7968 = vadd.f32 %v7650, %v7863
        %v7969 = vadd.f32 %v7651, %v7865
        %v7970 = vadd.f32 %v7652, %v7952
        %v7971 = vadd.f32 %v7653, %v7954
        %v7972 = vld [vmem:[%s1049 + $0x8] sm:$0xff]
        %v7973 = vld [vmem:[%s1049 + $0x10] sm:$0xff]
        %v7974 = vld [vmem:[%s1049 + $0x18] sm:$0xff]
        %v7975 = vld [vmem:[%s1049 + $0x20] sm:$0xff]
        %v7976 = vld [vmem:[%s1049 + $0x28] sm:$0xff]
        %v7977 = vld [vmem:[%s1049 + $0x38] sm:$0xff]
        %v7978 = vld [vmem:[%s1049 + $0x40] sm:$0xff]
        %v7979 = vld [vmem:[%s1049 + $0x48] sm:$0xff]
        %v7980 = vld [vmem:[%s1049 + $0x50] sm:$0xff]
        %v7981 = vld [vmem:[%s1049 + $0x58] sm:$0xff]
        %v7982 = vld [vmem:[%s1049 + $0x68] sm:$0xff]
        %v7983 = vld [vmem:[%s1049 + $0x70] sm:$0xff]
        %v7984 = vld [vmem:[%s1049 + $0x78] sm:$0xff]
        %v7985 = vld [vmem:[%s1049 + $0x80] sm:$0xff]
        %v7986 = vld [vmem:[%s1049 + $0x88] sm:$0xff]
        %v7987 = vld [vmem:[%s1049 + $0x98] sm:$0xff]
        %v7988 = vld [vmem:[%s1049 + $0xa0] sm:$0xff]
        %v7989 = vld [vmem:[%s1049 + $0xa8] sm:$0xff]
        %v7990 = vld [vmem:[%s1049 + $0xb0] sm:$0xff]
        %v7991 = vld [vmem:[%s1049 + $0xb8] sm:$0xff]
        %8012 = vrot.lane.b32.xlu0 %v7972, 64
        %v8013 = vpop.permute.xlu0 %8012
        %8014 = vrot.lane.b32.xlu0 %v7973, 64
        %v8015 = vpop.permute.xlu0 %8014
        %8016 = vrot.lane.b32.xlu0 %v7974, 64
        %v8017 = vpop.permute.xlu0 %8016
        %8018 = vrot.lane.b32.xlu0 %v7975, 64
        %v8019 = vpop.permute.xlu0 %8018
        %8020 = vrot.lane.b32.xlu0 %v7976, 64
        %v8021 = vpop.permute.xlu0 %8020
        %8022 = vrot.lane.b32.xlu0 %v7977, 64
        %v8023 = vpop.permute.xlu0 %8022
        %8024 = vrot.lane.b32.xlu0 %v7978, 64
        %v8025 = vpop.permute.xlu0 %8024
        %8026 = vrot.lane.b32.xlu0 %v7979, 64
        %v8027 = vpop.permute.xlu0 %8026
        %8028 = vrot.lane.b32.xlu0 %v7980, 64
        %v8029 = vpop.permute.xlu0 %8028
        %8030 = vrot.lane.b32.xlu0 %v7981, 64
        %v8031 = vpop.permute.xlu0 %8030
        %8032 = vrot.lane.b32.xlu0 %v7982, 64
        %v8033 = vpop.permute.xlu0 %8032
        %8034 = vrot.lane.b32.xlu0 %v7983, 64
        %v8035 = vpop.permute.xlu0 %8034
        %8036 = vrot.lane.b32.xlu0 %v7984, 64
        %v8037 = vpop.permute.xlu0 %8036
        %8038 = vrot.lane.b32.xlu0 %v7985, 64
        %v8039 = vpop.permute.xlu0 %8038
        %8040 = vrot.lane.b32.xlu0 %v7986, 64
        %v8041 = vpop.permute.xlu0 %8040
        %8042 = vrot.lane.b32.xlu0 %v7987, 64
        %v8043 = vpop.permute.xlu0 %8042
        %8044 = vrot.lane.b32.xlu0 %v7988, 64
        %v8045 = vpop.permute.xlu0 %8044
        %8046 = vrot.lane.b32.xlu0 %v7989, 64
        %v8047 = vpop.permute.xlu0 %8046
        %8048 = vrot.lane.b32.xlu0 %v7990, 64
        %v8049 = vpop.permute.xlu0 %8048
        %8050 = vrot.lane.b32.xlu0 %v7991, 64
        %v8051 = vpop.permute.xlu0 %8050
        %v8052 = vsel %vm2587, %v8013, %v8015
        %v8053 = vsel %vm2587, %v8015, %v8017
        %v8054 = vsel %vm2587, %v8017, %v8019
        %v8055 = vsel %vm2587, %v8019, %v8021
        %v8056 = vsel %vm2587, %v8023, %v8025
        %v8057 = vsel %vm2587, %v8025, %v8027
        %v8058 = vsel %vm2587, %v8027, %v8029
        %v8059 = vsel %vm2587, %v8029, %v8031
        %v8060 = vsel %vm2587, %v8033, %v8035
        %v8061 = vsel %vm2587, %v8035, %v8037
        %v8062 = vsel %vm2587, %v8037, %v8039
        %v8063 = vsel %vm2587, %v8039, %v8041
        %v8064 = vsel %vm2587, %v8043, %v8045
        %v8065 = vsel %vm2587, %v8045, %v8047
        %v8066 = vsel %vm2587, %v8047, %v8049
        %v8067 = vsel %vm2587, %v8049, %v8051
        %v8085 = vsel %vm1395, %v500, 0
        %v8088 = vsel %vm1395, %v501, 0
        %v8091 = vsel %vm1395, %v502, 0
        %v8094 = vsel %vm1395, %v503, 0
        %8096 = vmatprep.subr.mxu0 0.0
        %8097 = vmatpush1.msra.mxu0 0.0
        %8098 = vmatprep.subr.mxu0 0.0
        %8099 = vmatpush1.msra.mxu0 0.0
        %8100 = vmatprep.subr.mxu0 0.0
        %8101 = vmatpush1.msra.mxu0 0.0
        %8102 = vmatprep.subr.mxu0 0.0
        %8103 = vmatpush1.msra.mxu0 0.0
        %8104 = vmatprep.subr.mxu0 0.0
        %8105 = vmatpush1.msra.mxu0 0.0
        %8106 = vmatprep.subr.mxu0 0.0
        %8107 = vmatpush1.msra.mxu0 0.0
        %8108 = vmatprep.subr.mxu0 0.0
        %8109 = vmatpush1.msra.mxu0 0.0
        %8110 = vmatprep.subr.mxu0 0.0
        %8111 = vmatpush1.msra.mxu0 0.0
        %8112 = vmatprep.subr.mxu0 0.0
        %8113 = vmatpush1.msra.mxu0 0.0
        %8114 = vmatprep.subr.mxu0 0.0
        %8115 = vmatpush1.msra.mxu0 0.0
        %8116 = vmatprep.subr.mxu0 0.0
        %8117 = vmatpush1.msra.mxu0 0.0
        %8118 = vmatprep.subr.mxu0 0.0
        %8119 = vmatpush1.msra.mxu0 0.0
        %8120 = vmatprep.subr.mxu0 %v8065
        %8121 = vmatpush1.msra.mxu0 %v8064
        %8122 = vmatprep.subr.mxu0 %v8061
        %8123 = vmatpush1.msra.mxu0 %v8060
        %8124 = vmatprep.subr.mxu0 %v8057
        %8125 = vmatpush1.msra.mxu0 %v8056
        %8126 = vmatprep.subr.mxu0 %v8053
        %8127 = vmatpush1.msra.mxu0 %v8052
        %8128 = vmatprep.subr.mxu0 0.0
        %8129 = vmatpush2.msra.mxu0 0.0
        %8130 = vmatprep.subr.mxu0 0.0
        %8131 = vmatpush2.msra.mxu0 0.0
        %8132 = vmatprep.subr.mxu0 0.0
        %8133 = vmatpush2.msra.mxu0 0.0
        %8134 = vmatprep.subr.mxu0 0.0
        %8135 = vmatpush2.msra.mxu0 0.0
        %8136 = vmatprep.subr.mxu0 0.0
        %8137 = vmatpush2.msra.mxu0 0.0
        %8138 = vmatprep.subr.mxu0 0.0
        %8139 = vmatpush2.msra.mxu0 0.0
        %8140 = vmatprep.subr.mxu0 0.0
        %8141 = vmatpush2.msra.mxu0 0.0
        %8142 = vmatprep.subr.mxu0 0.0
        %8143 = vmatpush2.msra.mxu0 0.0
        %8144 = vmatprep.subr.mxu0 0.0
        %8145 = vmatpush2.msra.mxu0 0.0
        %8146 = vmatprep.subr.mxu0 0.0
        %8147 = vmatpush2.msra.mxu0 0.0
        %8148 = vmatprep.subr.mxu0 0.0
        %8149 = vmatpush2.msra.mxu0 0.0
        %8150 = vmatprep.subr.mxu0 0.0
        %8151 = vmatpush2.msra.mxu0 0.0
        %8152 = vmatprep.subr.mxu0 0.0
        %8153 = vmatpush2.msra.mxu0 0.0
        %8154 = vmatprep.subr.mxu0 0.0
        %8155 = vmatpush2.msra.mxu0 0.0
        %8156 = vmatprep.subr.mxu0 0.0
        %8157 = vmatpush2.msra.mxu0 0.0
        %8158 = vmatprep.subr.mxu0 0.0
        %8159 = vmatpush2.msra.mxu0 0.0
        %8160 = vmatprep.mubr.f32.mxu0 0.0
        %8161 = vmatmul.mubr.f32.gmra.mxu0 %v8085
        %v8162 = vpop.f32.mrf.mxu0
        %v8163 = vadd.f32 0.0, %v8162
        %v8164 = vpop.f32.mrf.mxu0
        %v8165 = vadd.f32 0.0, %v8164
        %8166 = vmatprep.mubr.f32.mxu0 0.0
        %8167 = vmatmul.mubr.f32.gmra.mxu0 %v8088
        %v8168 = vpop.f32.mrf.mxu0
        %v8169 = vadd.f32 0.0, %v8168
        %v8170 = vpop.f32.mrf.mxu0
        %v8171 = vadd.f32 0.0, %v8170
        %8172 = vmatprep.mubr.f32.mxu0 0.0
        %8173 = vmatmul.mubr.f32.gmra.mxu0 %v8091
        %v8174 = vpop.f32.mrf.mxu0
        %v8175 = vadd.f32 0.0, %v8174
        %v8176 = vpop.f32.mrf.mxu0
        %v8177 = vadd.f32 0.0, %v8176
        %8178 = vmatprep.mubr.f32.mxu0 0.0
        %8179 = vmatmul.mubr.f32.gmra.mxu0 %v8094
        %v8180 = vpop.f32.mrf.mxu0
        %v8181 = vadd.f32 0.0, %v8180
        %v8182 = vpop.f32.mrf.mxu0
        %v8183 = vadd.f32 0.0, %v8182
        %8184 = vdwg.mxu0
        %8185 = vmatprep.subr.mxu0 0.0
        %8186 = vmatpush1.msra.mxu0 0.0
        %8187 = vmatprep.subr.mxu0 0.0
        %8188 = vmatpush1.msra.mxu0 0.0
        %8189 = vmatprep.subr.mxu0 0.0
        %8190 = vmatpush1.msra.mxu0 0.0
        %8191 = vmatprep.subr.mxu0 0.0
        %8192 = vmatpush1.msra.mxu0 0.0
        %8193 = vmatprep.subr.mxu0 0.0
        %8194 = vmatpush1.msra.mxu0 0.0
        %8195 = vmatprep.subr.mxu0 0.0
        %8196 = vmatpush1.msra.mxu0 0.0
        %8197 = vmatprep.subr.mxu0 0.0
        %8198 = vmatpush1.msra.mxu0 0.0
        %8199 = vmatprep.subr.mxu0 0.0
        %8200 = vmatpush1.msra.mxu0 0.0
        %8201 = vmatprep.subr.mxu0 0.0
        %8202 = vmatpush1.msra.mxu0 0.0
        %8203 = vmatprep.subr.mxu0 0.0
        %8204 = vmatpush1.msra.mxu0 0.0
        %8205 = vmatprep.subr.mxu0 0.0
        %8206 = vmatpush1.msra.mxu0 0.0
        %8207 = vmatprep.subr.mxu0 0.0
        %8208 = vmatpush1.msra.mxu0 0.0
        %8209 = vmatprep.subr.mxu0 %v8067
        %8210 = vmatpush1.msra.mxu0 %v8066
        %8211 = vmatprep.subr.mxu0 %v8063
        %8212 = vmatpush1.msra.mxu0 %v8062
        %8213 = vmatprep.subr.mxu0 %v8059
        %8214 = vmatpush1.msra.mxu0 %v8058
        %8215 = vmatprep.subr.mxu0 %v8055
        %8216 = vmatpush1.msra.mxu0 %v8054
        %8217 = vmatprep.subr.mxu0 0.0
        %8218 = vmatpush2.msra.mxu0 0.0
        %8219 = vmatprep.subr.mxu0 0.0
        %8220 = vmatpush2.msra.mxu0 0.0
        %8221 = vmatprep.subr.mxu0 0.0
        %8222 = vmatpush2.msra.mxu0 0.0
        %8223 = vmatprep.subr.mxu0 0.0
        %8224 = vmatpush2.msra.mxu0 0.0
        %8225 = vmatprep.subr.mxu0 0.0
        %8226 = vmatpush2.msra.mxu0 0.0
        %8227 = vmatprep.subr.mxu0 0.0
        %8228 = vmatpush2.msra.mxu0 0.0
        %8229 = vmatprep.subr.mxu0 0.0
        %8230 = vmatpush2.msra.mxu0 0.0
        %8231 = vmatprep.subr.mxu0 0.0
        %8232 = vmatpush2.msra.mxu0 0.0
        %8233 = vmatprep.subr.mxu0 0.0
        %8234 = vmatpush2.msra.mxu0 0.0
        %8235 = vmatprep.subr.mxu0 0.0
        %8236 = vmatpush2.msra.mxu0 0.0
        %8237 = vmatprep.subr.mxu0 0.0
        %8238 = vmatpush2.msra.mxu0 0.0
        %8239 = vmatprep.subr.mxu0 0.0
        %8240 = vmatpush2.msra.mxu0 0.0
        %8241 = vmatprep.subr.mxu0 0.0
        %8242 = vmatpush2.msra.mxu0 0.0
        %8243 = vmatprep.subr.mxu0 0.0
        %8244 = vmatpush2.msra.mxu0 0.0
        %8245 = vmatprep.subr.mxu0 0.0
        %8246 = vmatpush2.msra.mxu0 0.0
        %8247 = vmatprep.subr.mxu0 0.0
        %8248 = vmatpush2.msra.mxu0 0.0
        %8249 = vmatprep.mubr.f32.mxu0 0.0
        %8250 = vmatmul.mubr.f32.gmra.mxu0 %v8085
        %v8251 = vpop.f32.mrf.mxu0
        %v8252 = vadd.f32 0.0, %v8251
        %v8253 = vpop.f32.mrf.mxu0
        %v8254 = vadd.f32 0.0, %v8253
        %8255 = vmatprep.mubr.f32.mxu0 0.0
        %8256 = vmatmul.mubr.f32.gmra.mxu0 %v8088
        %v8257 = vpop.f32.mrf.mxu0
        %v8258 = vadd.f32 0.0, %v8257
        %v8259 = vpop.f32.mrf.mxu0
        %v8260 = vadd.f32 0.0, %v8259
        %8261 = vmatprep.mubr.f32.mxu0 0.0
        %8262 = vmatmul.mubr.f32.gmra.mxu0 %v8091
        %v8263 = vpop.f32.mrf.mxu0
        %v8264 = vadd.f32 0.0, %v8263
        %v8265 = vpop.f32.mrf.mxu0
        %v8266 = vadd.f32 0.0, %v8265
        %8267 = vmatprep.mubr.f32.mxu0 0.0
        %8268 = vmatmul.mubr.f32.gmra.mxu0 %v8094
        %v8269 = vpop.f32.mrf.mxu0
        %v8270 = vadd.f32 0.0, %v8269
        %v8271 = vpop.f32.mrf.mxu0
        %v8272 = vadd.f32 0.0, %v8271
        %8273 = vdwg.mxu0
        %v8274 = vadd.f32 %v7956, %v8163
        %v8275 = vadd.f32 %v7957, %v8165
        %v8276 = vadd.f32 %v7958, %v8252
        %v8277 = vadd.f32 %v7959, %v8254
        %v8278 = vadd.f32 %v7960, %v8169
        %v8279 = vadd.f32 %v7961, %v8171
        %v8280 = vadd.f32 %v7962, %v8258
        %v8281 = vadd.f32 %v7963, %v8260
        %v8282 = vadd.f32 %v7964, %v8175
        %v8283 = vadd.f32 %v7965, %v8177
        %v8284 = vadd.f32 %v7966, %v8264
        %v8285 = vadd.f32 %v7967, %v8266
        %v8286 = vadd.f32 %v7968, %v8181
        %v8287 = vadd.f32 %v7969, %v8183
        %v8288 = vadd.f32 %v7970, %v8270
        %v8289 = vadd.f32 %v7971, %v8272
        %8290 = vrot.lane.b32.xlu0 %v5424, 63
        %v8291 = vpop.permute.xlu0 %8290
        %8292 = vrot.lane.b32.xlu0 %v5425, 63
        %v8293 = vpop.permute.xlu0 %8292
        %8294 = vrot.lane.b32.xlu0 %v5426, 63
        %v8295 = vpop.permute.xlu0 %8294
        %8296 = vrot.lane.b32.xlu0 %v5427, 63
        %v8297 = vpop.permute.xlu0 %8296
        %8298 = vrot.lane.b32.xlu0 %v5428, 63
        %v8299 = vpop.permute.xlu0 %8298
        %8300 = vrot.lane.b32.xlu0 %v5429, 63
        %v8301 = vpop.permute.xlu0 %8300
        %8302 = vrot.lane.b32.xlu0 %v5430, 63
        %v8303 = vpop.permute.xlu0 %8302
        %8304 = vrot.lane.b32.xlu0 %v5431, 63
        %v8305 = vpop.permute.xlu0 %8304
        %8306 = vrot.lane.b32.xlu0 %v5432, 63
        %v8307 = vpop.permute.xlu0 %8306
        %8308 = vrot.lane.b32.xlu0 %v5433, 63
        %v8309 = vpop.permute.xlu0 %8308
        %8310 = vrot.lane.b32.xlu0 %v5434, 63
        %v8311 = vpop.permute.xlu0 %8310
        %8312 = vrot.lane.b32.xlu0 %v5435, 63
        %v8313 = vpop.permute.xlu0 %8312
        %8314 = vrot.lane.b32.xlu0 %v5436, 63
        %v8315 = vpop.permute.xlu0 %8314
        %8316 = vrot.lane.b32.xlu0 %v5437, 63
        %v8317 = vpop.permute.xlu0 %8316
        %8318 = vrot.lane.b32.xlu0 %v5438, 63
        %v8319 = vpop.permute.xlu0 %8318
        %8320 = vrot.lane.b32.xlu0 %v5439, 63
        %v8321 = vpop.permute.xlu0 %8320
        %8322 = vrot.lane.b32.xlu0 %v5440, 63
        %v8323 = vpop.permute.xlu0 %8322
        %8324 = vrot.lane.b32.xlu0 %v5441, 63
        %v8325 = vpop.permute.xlu0 %8324
        %8326 = vrot.lane.b32.xlu0 %v5442, 63
        %v8327 = vpop.permute.xlu0 %8326
        %8328 = vrot.lane.b32.xlu0 %v5443, 63
        %v8329 = vpop.permute.xlu0 %8328
        %v8330 = vsel %vm2906, %v8291, %v8293
        %v8331 = vsel %vm2906, %v8293, %v8295
        %v8332 = vsel %vm2906, %v8295, %v8297
        %v8333 = vsel %vm2906, %v8297, %v8299
        %v8334 = vsel %vm2906, %v8301, %v8303
        %v8335 = vsel %vm2906, %v8303, %v8305
        %v8336 = vsel %vm2906, %v8305, %v8307
        %v8337 = vsel %vm2906, %v8307, %v8309
        %v8338 = vsel %vm2906, %v8311, %v8313
        %v8339 = vsel %vm2906, %v8313, %v8315
        %v8340 = vsel %vm2906, %v8315, %v8317
        %v8341 = vsel %vm2906, %v8317, %v8319
        %v8342 = vsel %vm2906, %v8321, %v8323
        %v8343 = vsel %vm2906, %v8323, %v8325
        %v8344 = vsel %vm2906, %v8325, %v8327
        %v8345 = vsel %vm2906, %v8327, %v8329
        %v8363 = vsel %vm1395, %v504, 0
        %v8366 = vsel %vm1395, %v505, 0
        %v8369 = vsel %vm1395, %v506, 0
        %v8372 = vsel %vm1395, %v507, 0
        %8374 = vmatprep.subr.mxu0 0.0
        %8375 = vmatpush1.msra.mxu0 0.0
        %8376 = vmatprep.subr.mxu0 0.0
        %8377 = vmatpush1.msra.mxu0 0.0
        %8378 = vmatprep.subr.mxu0 0.0
        %8379 = vmatpush1.msra.mxu0 0.0
        %8380 = vmatprep.subr.mxu0 0.0
        %8381 = vmatpush1.msra.mxu0 0.0
        %8382 = vmatprep.subr.mxu0 0.0
        %8383 = vmatpush1.msra.mxu0 0.0
        %8384 = vmatprep.subr.mxu0 0.0
        %8385 = vmatpush1.msra.mxu0 0.0
        %8386 = vmatprep.subr.mxu0 0.0
        %8387 = vmatpush1.msra.mxu0 0.0
        %8388 = vmatprep.subr.mxu0 0.0
        %8389 = vmatpush1.msra.mxu0 0.0
        %8390 = vmatprep.subr.mxu0 0.0
        %8391 = vmatpush1.msra.mxu0 0.0
        %8392 = vmatprep.subr.mxu0 0.0
        %8393 = vmatpush1.msra.mxu0 0.0
        %8394 = vmatprep.subr.mxu0 0.0
        %8395 = vmatpush1.msra.mxu0 0.0
        %8396 = vmatprep.subr.mxu0 0.0
        %8397 = vmatpush1.msra.mxu0 0.0
        %8398 = vmatprep.subr.mxu0 %v8343
        %8399 = vmatpush1.msra.mxu0 %v8342
        %8400 = vmatprep.subr.mxu0 %v8339
        %8401 = vmatpush1.msra.mxu0 %v8338
        %8402 = vmatprep.subr.mxu0 %v8335
        %8403 = vmatpush1.msra.mxu0 %v8334
        %8404 = vmatprep.subr.mxu0 %v8331
        %8405 = vmatpush1.msra.mxu0 %v8330
        %8406 = vmatprep.subr.mxu0 0.0
        %8407 = vmatpush2.msra.mxu0 0.0
        %8408 = vmatprep.subr.mxu0 0.0
        %8409 = vmatpush2.msra.mxu0 0.0
        %8410 = vmatprep.subr.mxu0 0.0
        %8411 = vmatpush2.msra.mxu0 0.0
        %8412 = vmatprep.subr.mxu0 0.0
        %8413 = vmatpush2.msra.mxu0 0.0
        %8414 = vmatprep.subr.mxu0 0.0
        %8415 = vmatpush2.msra.mxu0 0.0
        %8416 = vmatprep.subr.mxu0 0.0
        %8417 = vmatpush2.msra.mxu0 0.0
        %8418 = vmatprep.subr.mxu0 0.0
        %8419 = vmatpush2.msra.mxu0 0.0
        %8420 = vmatprep.subr.mxu0 0.0
        %8421 = vmatpush2.msra.mxu0 0.0
        %8422 = vmatprep.subr.mxu0 0.0
        %8423 = vmatpush2.msra.mxu0 0.0
        %8424 = vmatprep.subr.mxu0 0.0
        %8425 = vmatpush2.msra.mxu0 0.0
        %8426 = vmatprep.subr.mxu0 0.0
        %8427 = vmatpush2.msra.mxu0 0.0
        %8428 = vmatprep.subr.mxu0 0.0
        %8429 = vmatpush2.msra.mxu0 0.0
        %8430 = vmatprep.subr.mxu0 0.0
        %8431 = vmatpush2.msra.mxu0 0.0
        %8432 = vmatprep.subr.mxu0 0.0
        %8433 = vmatpush2.msra.mxu0 0.0
        %8434 = vmatprep.subr.mxu0 0.0
        %8435 = vmatpush2.msra.mxu0 0.0
        %8436 = vmatprep.subr.mxu0 0.0
        %8437 = vmatpush2.msra.mxu0 0.0
        %8438 = vmatprep.mubr.f32.mxu0 0.0
        %8439 = vmatmul.mubr.f32.gmra.mxu0 %v8363
        %v8440 = vpop.f32.mrf.mxu0
        %v8441 = vadd.f32 0.0, %v8440
        %v8442 = vpop.f32.mrf.mxu0
        %v8443 = vadd.f32 0.0, %v8442
        %8444 = vmatprep.mubr.f32.mxu0 0.0
        %8445 = vmatmul.mubr.f32.gmra.mxu0 %v8366
        %v8446 = vpop.f32.mrf.mxu0
        %v8447 = vadd.f32 0.0, %v8446
        %v8448 = vpop.f32.mrf.mxu0
        %v8449 = vadd.f32 0.0, %v8448
        %8450 = vmatprep.mubr.f32.mxu0 0.0
        %8451 = vmatmul.mubr.f32.gmra.mxu0 %v8369
        %v8452 = vpop.f32.mrf.mxu0
        %v8453 = vadd.f32 0.0, %v8452
        %v8454 = vpop.f32.mrf.mxu0
        %v8455 = vadd.f32 0.0, %v8454
        %8456 = vmatprep.mubr.f32.mxu0 0.0
        %8457 = vmatmul.mubr.f32.gmra.mxu0 %v8372
        %v8458 = vpop.f32.mrf.mxu0
        %v8459 = vadd.f32 0.0, %v8458
        %v8460 = vpop.f32.mrf.mxu0
        %v8461 = vadd.f32 0.0, %v8460
        %8462 = vdwg.mxu0
        %8463 = vmatprep.subr.mxu0 0.0
        %8464 = vmatpush1.msra.mxu0 0.0
        %8465 = vmatprep.subr.mxu0 0.0
        %8466 = vmatpush1.msra.mxu0 0.0
        %8467 = vmatprep.subr.mxu0 0.0
        %8468 = vmatpush1.msra.mxu0 0.0
        %8469 = vmatprep.subr.mxu0 0.0
        %8470 = vmatpush1.msra.mxu0 0.0
        %8471 = vmatprep.subr.mxu0 0.0
        %8472 = vmatpush1.msra.mxu0 0.0
        %8473 = vmatprep.subr.mxu0 0.0
        %8474 = vmatpush1.msra.mxu0 0.0
        %8475 = vmatprep.subr.mxu0 0.0
        %8476 = vmatpush1.msra.mxu0 0.0
        %8477 = vmatprep.subr.mxu0 0.0
        %8478 = vmatpush1.msra.mxu0 0.0
        %8479 = vmatprep.subr.mxu0 0.0
        %8480 = vmatpush1.msra.mxu0 0.0
        %8481 = vmatprep.subr.mxu0 0.0
        %8482 = vmatpush1.msra.mxu0 0.0
        %8483 = vmatprep.subr.mxu0 0.0
        %8484 = vmatpush1.msra.mxu0 0.0
        %8485 = vmatprep.subr.mxu0 0.0
        %8486 = vmatpush1.msra.mxu0 0.0
        %8487 = vmatprep.subr.mxu0 %v8345
        %8488 = vmatpush1.msra.mxu0 %v8344
        %8489 = vmatprep.subr.mxu0 %v8341
        %8490 = vmatpush1.msra.mxu0 %v8340
        %8491 = vmatprep.subr.mxu0 %v8337
        %8492 = vmatpush1.msra.mxu0 %v8336
        %8493 = vmatprep.subr.mxu0 %v8333
        %8494 = vmatpush1.msra.mxu0 %v8332
        %8495 = vmatprep.subr.mxu0 0.0
        %8496 = vmatpush2.msra.mxu0 0.0
        %8497 = vmatprep.subr.mxu0 0.0
        %8498 = vmatpush2.msra.mxu0 0.0
        %8499 = vmatprep.subr.mxu0 0.0
        %8500 = vmatpush2.msra.mxu0 0.0
        %8501 = vmatprep.subr.mxu0 0.0
        %8502 = vmatpush2.msra.mxu0 0.0
        %8503 = vmatprep.subr.mxu0 0.0
        %8504 = vmatpush2.msra.mxu0 0.0
        %8505 = vmatprep.subr.mxu0 0.0
        %8506 = vmatpush2.msra.mxu0 0.0
        %8507 = vmatprep.subr.mxu0 0.0
        %8508 = vmatpush2.msra.mxu0 0.0
        %8509 = vmatprep.subr.mxu0 0.0
        %8510 = vmatpush2.msra.mxu0 0.0
        %8511 = vmatprep.subr.mxu0 0.0
        %8512 = vmatpush2.msra.mxu0 0.0
        %8513 = vmatprep.subr.mxu0 0.0
        %8514 = vmatpush2.msra.mxu0 0.0
        %8515 = vmatprep.subr.mxu0 0.0
        %8516 = vmatpush2.msra.mxu0 0.0
        %8517 = vmatprep.subr.mxu0 0.0
        %8518 = vmatpush2.msra.mxu0 0.0
        %8519 = vmatprep.subr.mxu0 0.0
        %8520 = vmatpush2.msra.mxu0 0.0
        %8521 = vmatprep.subr.mxu0 0.0
        %8522 = vmatpush2.msra.mxu0 0.0
        %8523 = vmatprep.subr.mxu0 0.0
        %8524 = vmatpush2.msra.mxu0 0.0
        %8525 = vmatprep.subr.mxu0 0.0
        %8526 = vmatpush2.msra.mxu0 0.0
        %8527 = vmatprep.mubr.f32.mxu0 0.0
        %8528 = vmatmul.mubr.f32.gmra.mxu0 %v8363
        %v8529 = vpop.f32.mrf.mxu0
        %v8530 = vadd.f32 0.0, %v8529
        %v8531 = vpop.f32.mrf.mxu0
        %v8532 = vadd.f32 0.0, %v8531
        %8533 = vmatprep.mubr.f32.mxu0 0.0
        %8534 = vmatmul.mubr.f32.gmra.mxu0 %v8366
        %v8535 = vpop.f32.mrf.mxu0
        %v8536 = vadd.f32 0.0, %v8535
        %v8537 = vpop.f32.mrf.mxu0
        %v8538 = vadd.f32 0.0, %v8537
        %8539 = vmatprep.mubr.f32.mxu0 0.0
        %8540 = vmatmul.mubr.f32.gmra.mxu0 %v8369
        %v8541 = vpop.f32.mrf.mxu0
        %v8542 = vadd.f32 0.0, %v8541
        %v8543 = vpop.f32.mrf.mxu0
        %v8544 = vadd.f32 0.0, %v8543
        %8545 = vmatprep.mubr.f32.mxu0 0.0
        %8546 = vmatmul.mubr.f32.gmra.mxu0 %v8372
        %v8547 = vpop.f32.mrf.mxu0
        %v8548 = vadd.f32 0.0, %v8547
        %v8549 = vpop.f32.mrf.mxu0
        %v8550 = vadd.f32 0.0, %v8549
        %8551 = vdwg.mxu0
        %v8552 = vadd.f32 %v8274, %v8441
        %v8553 = vadd.f32 %v8275, %v8443
        %v8554 = vadd.f32 %v8276, %v8530
        %v8555 = vadd.f32 %v8277, %v8532
        %v8556 = vadd.f32 %v8278, %v8447
        %v8557 = vadd.f32 %v8279, %v8449
        %v8558 = vadd.f32 %v8280, %v8536
        %v8559 = vadd.f32 %v8281, %v8538
        %v8560 = vadd.f32 %v8282, %v8453
        %v8561 = vadd.f32 %v8283, %v8455
        %v8562 = vadd.f32 %v8284, %v8542
        %v8563 = vadd.f32 %v8285, %v8544
        %v8564 = vadd.f32 %v8286, %v8459
        %v8565 = vadd.f32 %v8287, %v8461
        %v8566 = vadd.f32 %v8288, %v8548
        %v8567 = vadd.f32 %v8289, %v8550
        %8568 = vrot.lane.b32.xlu0 %v5743, 57
        %v8569 = vpop.permute.xlu0 %8568
        %8570 = vrot.lane.b32.xlu0 %v5744, 57
        %v8571 = vpop.permute.xlu0 %8570
        %8572 = vrot.lane.b32.xlu0 %v5745, 57
        %v8573 = vpop.permute.xlu0 %8572
        %8574 = vrot.lane.b32.xlu0 %v5746, 57
        %v8575 = vpop.permute.xlu0 %8574
        %8576 = vrot.lane.b32.xlu0 %v5747, 57
        %v8577 = vpop.permute.xlu0 %8576
        %8578 = vrot.lane.b32.xlu0 %v5748, 57
        %v8579 = vpop.permute.xlu0 %8578
        %8580 = vrot.lane.b32.xlu0 %v5749, 57
        %v8581 = vpop.permute.xlu0 %8580
        %8582 = vrot.lane.b32.xlu0 %v5750, 57
        %v8583 = vpop.permute.xlu0 %8582
        %8584 = vrot.lane.b32.xlu0 %v5751, 57
        %v8585 = vpop.permute.xlu0 %8584
        %8586 = vrot.lane.b32.xlu0 %v5752, 57
        %v8587 = vpop.permute.xlu0 %8586
        %8588 = vrot.lane.b32.xlu0 %v5753, 57
        %v8589 = vpop.permute.xlu0 %8588
        %8590 = vrot.lane.b32.xlu0 %v5754, 57
        %v8591 = vpop.permute.xlu0 %8590
        %8592 = vrot.lane.b32.xlu0 %v5755, 57
        %v8593 = vpop.permute.xlu0 %8592
        %8594 = vrot.lane.b32.xlu0 %v5756, 57
        %v8595 = vpop.permute.xlu0 %8594
        %8596 = vrot.lane.b32.xlu0 %v5757, 57
        %v8597 = vpop.permute.xlu0 %8596
        %8598 = vrot.lane.b32.xlu0 %v5758, 57
        %v8599 = vpop.permute.xlu0 %8598
        %8600 = vrot.lane.b32.xlu0 %v5759, 57
        %v8601 = vpop.permute.xlu0 %8600
        %8602 = vrot.lane.b32.xlu0 %v5760, 57
        %v8603 = vpop.permute.xlu0 %8602
        %8604 = vrot.lane.b32.xlu0 %v5761, 57
        %v8605 = vpop.permute.xlu0 %8604
        %8606 = vrot.lane.b32.xlu0 %v5762, 57
        %v8607 = vpop.permute.xlu0 %8606
        %v8608 = vsel %vm3225, %v8569, %v8571
        %v8609 = vsel %vm3225, %v8571, %v8573
        %v8610 = vsel %vm3225, %v8573, %v8575
        %v8611 = vsel %vm3225, %v8575, %v8577
        %v8612 = vsel %vm3225, %v8579, %v8581
        %v8613 = vsel %vm3225, %v8581, %v8583
        %v8614 = vsel %vm3225, %v8583, %v8585
        %v8615 = vsel %vm3225, %v8585, %v8587
        %v8616 = vsel %vm3225, %v8589, %v8591
        %v8617 = vsel %vm3225, %v8591, %v8593
        %v8618 = vsel %vm3225, %v8593, %v8595
        %v8619 = vsel %vm3225, %v8595, %v8597
        %v8620 = vsel %vm3225, %v8599, %v8601
        %v8621 = vsel %vm3225, %v8601, %v8603
        %v8622 = vsel %vm3225, %v8603, %v8605
        %v8623 = vsel %vm3225, %v8605, %v8607
        %v8641 = vsel %vm1395, %v508, 0
        %v8644 = vsel %vm1395, %v509, 0
        %v8647 = vsel %vm1395, %v510, 0
        %v8650 = vsel %vm1395, %v511, 0
        %8652 = vmatprep.subr.mxu0 0.0
        %8653 = vmatpush1.msra.mxu0 0.0
        %8654 = vmatprep.subr.mxu0 0.0
        %8655 = vmatpush1.msra.mxu0 0.0
        %8656 = vmatprep.subr.mxu0 0.0
        %8657 = vmatpush1.msra.mxu0 0.0
        %8658 = vmatprep.subr.mxu0 0.0
        %8659 = vmatpush1.msra.mxu0 0.0
        %8660 = vmatprep.subr.mxu0 0.0
        %8661 = vmatpush1.msra.mxu0 0.0
        %8662 = vmatprep.subr.mxu0 0.0
        %8663 = vmatpush1.msra.mxu0 0.0
        %8664 = vmatprep.subr.mxu0 0.0
        %8665 = vmatpush1.msra.mxu0 0.0
        %8666 = vmatprep.subr.mxu0 0.0
        %8667 = vmatpush1.msra.mxu0 0.0
        %8668 = vmatprep.subr.mxu0 0.0
        %8669 = vmatpush1.msra.mxu0 0.0
        %8670 = vmatprep.subr.mxu0 0.0
        %8671 = vmatpush1.msra.mxu0 0.0
        %8672 = vmatprep.subr.mxu0 0.0
        %8673 = vmatpush1.msra.mxu0 0.0
        %8674 = vmatprep.subr.mxu0 0.0
        %8675 = vmatpush1.msra.mxu0 0.0
        %8676 = vmatprep.subr.mxu0 %v8621
        %8677 = vmatpush1.msra.mxu0 %v8620
        %8678 = vmatprep.subr.mxu0 %v8617
        %8679 = vmatpush1.msra.mxu0 %v8616
        %8680 = vmatprep.subr.mxu0 %v8613
        %8681 = vmatpush1.msra.mxu0 %v8612
        %8682 = vmatprep.subr.mxu0 %v8609
        %8683 = vmatpush1.msra.mxu0 %v8608
        %8684 = vmatprep.subr.mxu0 0.0
        %8685 = vmatpush2.msra.mxu0 0.0
        %8686 = vmatprep.subr.mxu0 0.0
        %8687 = vmatpush2.msra.mxu0 0.0
        %8688 = vmatprep.subr.mxu0 0.0
        %8689 = vmatpush2.msra.mxu0 0.0
        %8690 = vmatprep.subr.mxu0 0.0
        %8691 = vmatpush2.msra.mxu0 0.0
        %8692 = vmatprep.subr.mxu0 0.0
        %8693 = vmatpush2.msra.mxu0 0.0
        %8694 = vmatprep.subr.mxu0 0.0
        %8695 = vmatpush2.msra.mxu0 0.0
        %8696 = vmatprep.subr.mxu0 0.0
        %8697 = vmatpush2.msra.mxu0 0.0
        %8698 = vmatprep.subr.mxu0 0.0
        %8699 = vmatpush2.msra.mxu0 0.0
        %8700 = vmatprep.subr.mxu0 0.0
        %8701 = vmatpush2.msra.mxu0 0.0
        %8702 = vmatprep.subr.mxu0 0.0
        %8703 = vmatpush2.msra.mxu0 0.0
        %8704 = vmatprep.subr.mxu0 0.0
        %8705 = vmatpush2.msra.mxu0 0.0
        %8706 = vmatprep.subr.mxu0 0.0
        %8707 = vmatpush2.msra.mxu0 0.0
        %8708 = vmatprep.subr.mxu0 0.0
        %8709 = vmatpush2.msra.mxu0 0.0
        %8710 = vmatprep.subr.mxu0 0.0
        %8711 = vmatpush2.msra.mxu0 0.0
        %8712 = vmatprep.subr.mxu0 0.0
        %8713 = vmatpush2.msra.mxu0 0.0
        %8714 = vmatprep.subr.mxu0 0.0
        %8715 = vmatpush2.msra.mxu0 0.0
        %8716 = vmatprep.mubr.f32.mxu0 0.0
        %8717 = vmatmul.mubr.f32.gmra.mxu0 %v8641
        %v8718 = vpop.f32.mrf.mxu0
        %v8719 = vadd.f32 0.0, %v8718
        %v8720 = vpop.f32.mrf.mxu0
        %v8721 = vadd.f32 0.0, %v8720
        %8722 = vmatprep.mubr.f32.mxu0 0.0
        %8723 = vmatmul.mubr.f32.gmra.mxu0 %v8644
        %v8724 = vpop.f32.mrf.mxu0
        %v8725 = vadd.f32 0.0, %v8724
        %v8726 = vpop.f32.mrf.mxu0
        %v8727 = vadd.f32 0.0, %v8726
        %8728 = vmatprep.mubr.f32.mxu0 0.0
        %8729 = vmatmul.mubr.f32.gmra.mxu0 %v8647
        %v8730 = vpop.f32.mrf.mxu0
        %v8731 = vadd.f32 0.0, %v8730
        %v8732 = vpop.f32.mrf.mxu0
        %v8733 = vadd.f32 0.0, %v8732
        %8734 = vmatprep.mubr.f32.mxu0 0.0
        %8735 = vmatmul.mubr.f32.gmra.mxu0 %v8650
        %v8736 = vpop.f32.mrf.mxu0
        %v8737 = vadd.f32 0.0, %v8736
        %v8738 = vpop.f32.mrf.mxu0
        %v8739 = vadd.f32 0.0, %v8738
        %8740 = vdwg.mxu0
        %8741 = vmatprep.subr.mxu0 0.0
        %8742 = vmatpush1.msra.mxu0 0.0
        %8743 = vmatprep.subr.mxu0 0.0
        %8744 = vmatpush1.msra.mxu0 0.0
        %8745 = vmatprep.subr.mxu0 0.0
        %8746 = vmatpush1.msra.mxu0 0.0
        %8747 = vmatprep.subr.mxu0 0.0
        %8748 = vmatpush1.msra.mxu0 0.0
        %8749 = vmatprep.subr.mxu0 0.0
        %8750 = vmatpush1.msra.mxu0 0.0
        %8751 = vmatprep.subr.mxu0 0.0
        %8752 = vmatpush1.msra.mxu0 0.0
        %8753 = vmatprep.subr.mxu0 0.0
        %8754 = vmatpush1.msra.mxu0 0.0
        %8755 = vmatprep.subr.mxu0 0.0
        %8756 = vmatpush1.msra.mxu0 0.0
        %8757 = vmatprep.subr.mxu0 0.0
        %8758 = vmatpush1.msra.mxu0 0.0
        %8759 = vmatprep.subr.mxu0 0.0
        %8760 = vmatpush1.msra.mxu0 0.0
        %8761 = vmatprep.subr.mxu0 0.0
        %8762 = vmatpush1.msra.mxu0 0.0
        %8763 = vmatprep.subr.mxu0 0.0
        %8764 = vmatpush1.msra.mxu0 0.0
        %8765 = vmatprep.subr.mxu0 %v8623
        %8766 = vmatpush1.msra.mxu0 %v8622
        %8767 = vmatprep.subr.mxu0 %v8619
        %8768 = vmatpush1.msra.mxu0 %v8618
        %8769 = vmatprep.subr.mxu0 %v8615
        %8770 = vmatpush1.msra.mxu0 %v8614
        %8771 = vmatprep.subr.mxu0 %v8611
        %8772 = vmatpush1.msra.mxu0 %v8610
        %8773 = vmatprep.subr.mxu0 0.0
        %8774 = vmatpush2.msra.mxu0 0.0
        %8775 = vmatprep.subr.mxu0 0.0
        %8776 = vmatpush2.msra.mxu0 0.0
        %8777 = vmatprep.subr.mxu0 0.0
        %8778 = vmatpush2.msra.mxu0 0.0
        %8779 = vmatprep.subr.mxu0 0.0
        %8780 = vmatpush2.msra.mxu0 0.0
        %8781 = vmatprep.subr.mxu0 0.0
        %8782 = vmatpush2.msra.mxu0 0.0
        %8783 = vmatprep.subr.mxu0 0.0
        %8784 = vmatpush2.msra.mxu0 0.0
        %8785 = vmatprep.subr.mxu0 0.0
        %8786 = vmatpush2.msra.mxu0 0.0
        %8787 = vmatprep.subr.mxu0 0.0
        %8788 = vmatpush2.msra.mxu0 0.0
        %8789 = vmatprep.subr.mxu0 0.0
        %8790 = vmatpush2.msra.mxu0 0.0
        %8791 = vmatprep.subr.mxu0 0.0
        %8792 = vmatpush2.msra.mxu0 0.0
        %8793 = vmatprep.subr.mxu0 0.0
        %8794 = vmatpush2.msra.mxu0 0.0
        %8795 = vmatprep.subr.mxu0 0.0
        %8796 = vmatpush2.msra.mxu0 0.0
        %8797 = vmatprep.subr.mxu0 0.0
        %8798 = vmatpush2.msra.mxu0 0.0
        %8799 = vmatprep.subr.mxu0 0.0
        %8800 = vmatpush2.msra.mxu0 0.0
        %8801 = vmatprep.subr.mxu0 0.0
        %8802 = vmatpush2.msra.mxu0 0.0
        %8803 = vmatprep.subr.mxu0 0.0
        %8804 = vmatpush2.msra.mxu0 0.0
        %8805 = vmatprep.mubr.f32.mxu0 0.0
        %8806 = vmatmul.mubr.f32.gmra.mxu0 %v8641
        %v8807 = vpop.f32.mrf.mxu0
        %v8808 = vadd.f32 0.0, %v8807
        %v8809 = vpop.f32.mrf.mxu0
        %v8810 = vadd.f32 0.0, %v8809
        %8811 = vmatprep.mubr.f32.mxu0 0.0
        %8812 = vmatmul.mubr.f32.gmra.mxu0 %v8644
        %v8813 = vpop.f32.mrf.mxu0
        %v8814 = vadd.f32 0.0, %v8813
        %v8815 = vpop.f32.mrf.mxu0
        %v8816 = vadd.f32 0.0, %v8815
        %8817 = vmatprep.mubr.f32.mxu0 0.0
        %8818 = vmatmul.mubr.f32.gmra.mxu0 %v8647
        %v8819 = vpop.f32.mrf.mxu0
        %v8820 = vadd.f32 0.0, %v8819
        %v8821 = vpop.f32.mrf.mxu0
        %v8822 = vadd.f32 0.0, %v8821
        %8823 = vmatprep.mubr.f32.mxu0 0.0
        %8824 = vmatmul.mubr.f32.gmra.mxu0 %v8650
        %v8825 = vpop.f32.mrf.mxu0
        %v8826 = vadd.f32 0.0, %v8825
        %v8827 = vpop.f32.mrf.mxu0
        %v8828 = vadd.f32 0.0, %v8827
        %8829 = vdwg.mxu0
        %v8830 = vadd.f32 %v8552, %v8719
        %v8831 = vadd.f32 %v8553, %v8721
        %v8832 = vadd.f32 %v8554, %v8808
        %v8833 = vadd.f32 %v8555, %v8810
        %v8834 = vadd.f32 %v8556, %v8725
        %v8835 = vadd.f32 %v8557, %v8727
        %v8836 = vadd.f32 %v8558, %v8814
        %v8837 = vadd.f32 %v8559, %v8816
        %v8838 = vadd.f32 %v8560, %v8731
        %v8839 = vadd.f32 %v8561, %v8733
        %v8840 = vadd.f32 %v8562, %v8820
        %v8841 = vadd.f32 %v8563, %v8822
        %v8842 = vadd.f32 %v8564, %v8737
        %v8843 = vadd.f32 %v8565, %v8739
        %v8844 = vadd.f32 %v8566, %v8826
        %v8845 = vadd.f32 %v8567, %v8828
        %8846 = vrot.lane.b32.xlu0 %v6062, 56
        %v8847 = vpop.permute.xlu0 %8846
        %8848 = vrot.lane.b32.xlu0 %v6063, 56
        %v8849 = vpop.permute.xlu0 %8848
        %8850 = vrot.lane.b32.xlu0 %v6064, 56
        %v8851 = vpop.permute.xlu0 %8850
        %8852 = vrot.lane.b32.xlu0 %v6065, 56
        %v8853 = vpop.permute.xlu0 %8852
        %8854 = vrot.lane.b32.xlu0 %v6066, 56
        %v8855 = vpop.permute.xlu0 %8854
        %8856 = vrot.lane.b32.xlu0 %v6067, 56
        %v8857 = vpop.permute.xlu0 %8856
        %8858 = vrot.lane.b32.xlu0 %v6068, 56
        %v8859 = vpop.permute.xlu0 %8858
        %8860 = vrot.lane.b32.xlu0 %v6069, 56
        %v8861 = vpop.permute.xlu0 %8860
        %8862 = vrot.lane.b32.xlu0 %v6070, 56
        %v8863 = vpop.permute.xlu0 %8862
        %8864 = vrot.lane.b32.xlu0 %v6071, 56
        %v8865 = vpop.permute.xlu0 %8864
        %8866 = vrot.lane.b32.xlu0 %v6072, 56
        %v8867 = vpop.permute.xlu0 %8866
        %8868 = vrot.lane.b32.xlu0 %v6073, 56
        %v8869 = vpop.permute.xlu0 %8868
        %8870 = vrot.lane.b32.xlu0 %v6074, 56
        %v8871 = vpop.permute.xlu0 %8870
        %8872 = vrot.lane.b32.xlu0 %v6075, 56
        %v8873 = vpop.permute.xlu0 %8872
        %8874 = vrot.lane.b32.xlu0 %v6076, 56
        %v8875 = vpop.permute.xlu0 %8874
        %8876 = vrot.lane.b32.xlu0 %v6077, 56
        %v8877 = vpop.permute.xlu0 %8876
        %8878 = vrot.lane.b32.xlu0 %v6078, 56
        %v8879 = vpop.permute.xlu0 %8878
        %8880 = vrot.lane.b32.xlu0 %v6079, 56
        %v8881 = vpop.permute.xlu0 %8880
        %8882 = vrot.lane.b32.xlu0 %v6080, 56
        %v8883 = vpop.permute.xlu0 %8882
        %8884 = vrot.lane.b32.xlu0 %v6081, 56
        %v8885 = vpop.permute.xlu0 %8884
        %v8886 = vsel %vm3544, %v8847, %v8849
        %v8887 = vsel %vm3544, %v8849, %v8851
        %v8888 = vsel %vm3544, %v8851, %v8853
        %v8889 = vsel %vm3544, %v8853, %v8855
        %v8890 = vsel %vm3544, %v8857, %v8859
        %v8891 = vsel %vm3544, %v8859, %v8861
        %v8892 = vsel %vm3544, %v8861, %v8863
        %v8893 = vsel %vm3544, %v8863, %v8865
        %v8894 = vsel %vm3544, %v8867, %v8869
        %v8895 = vsel %vm3544, %v8869, %v8871
        %v8896 = vsel %vm3544, %v8871, %v8873
        %v8897 = vsel %vm3544, %v8873, %v8875
        %v8898 = vsel %vm3544, %v8877, %v8879
        %v8899 = vsel %vm3544, %v8879, %v8881
        %v8900 = vsel %vm3544, %v8881, %v8883
        %v8901 = vsel %vm3544, %v8883, %v8885
        %v8919 = vsel %vm1395, %v512, 0
        %v8922 = vsel %vm1395, %v513, 0
        %v8925 = vsel %vm1395, %v514, 0
        %v8928 = vsel %vm1395, %v515, 0
        %8930 = vmatprep.subr.mxu0 0.0
        %8931 = vmatpush1.msra.mxu0 0.0
        %8932 = vmatprep.subr.mxu0 0.0
        %8933 = vmatpush1.msra.mxu0 0.0
        %8934 = vmatprep.subr.mxu0 0.0
        %8935 = vmatpush1.msra.mxu0 0.0
        %8936 = vmatprep.subr.mxu0 0.0
        %8937 = vmatpush1.msra.mxu0 0.0
        %8938 = vmatprep.subr.mxu0 0.0
        %8939 = vmatpush1.msra.mxu0 0.0
        %8940 = vmatprep.subr.mxu0 0.0
        %8941 = vmatpush1.msra.mxu0 0.0
        %8942 = vmatprep.subr.mxu0 0.0
        %8943 = vmatpush1.msra.mxu0 0.0
        %8944 = vmatprep.subr.mxu0 0.0
        %8945 = vmatpush1.msra.mxu0 0.0
        %8946 = vmatprep.subr.mxu0 0.0
        %8947 = vmatpush1.msra.mxu0 0.0
        %8948 = vmatprep.subr.mxu0 0.0
        %8949 = vmatpush1.msra.mxu0 0.0
        %8950 = vmatprep.subr.mxu0 0.0
        %8951 = vmatpush1.msra.mxu0 0.0
        %8952 = vmatprep.subr.mxu0 0.0
        %8953 = vmatpush1.msra.mxu0 0.0
        %8954 = vmatprep.subr.mxu0 %v8899
        %8955 = vmatpush1.msra.mxu0 %v8898
        %8956 = vmatprep.subr.mxu0 %v8895
        %8957 = vmatpush1.msra.mxu0 %v8894
        %8958 = vmatprep.subr.mxu0 %v8891
        %8959 = vmatpush1.msra.mxu0 %v8890
        %8960 = vmatprep.subr.mxu0 %v8887
        %8961 = vmatpush1.msra.mxu0 %v8886
        %8962 = vmatprep.subr.mxu0 0.0
        %8963 = vmatpush2.msra.mxu0 0.0
        %8964 = vmatprep.subr.mxu0 0.0
        %8965 = vmatpush2.msra.mxu0 0.0
        %8966 = vmatprep.subr.mxu0 0.0
        %8967 = vmatpush2.msra.mxu0 0.0
        %8968 = vmatprep.subr.mxu0 0.0
        %8969 = vmatpush2.msra.mxu0 0.0
        %8970 = vmatprep.subr.mxu0 0.0
        %8971 = vmatpush2.msra.mxu0 0.0
        %8972 = vmatprep.subr.mxu0 0.0
        %8973 = vmatpush2.msra.mxu0 0.0
        %8974 = vmatprep.subr.mxu0 0.0
        %8975 = vmatpush2.msra.mxu0 0.0
        %8976 = vmatprep.subr.mxu0 0.0
        %8977 = vmatpush2.msra.mxu0 0.0
        %8978 = vmatprep.subr.mxu0 0.0
        %8979 = vmatpush2.msra.mxu0 0.0
        %8980 = vmatprep.subr.mxu0 0.0
        %8981 = vmatpush2.msra.mxu0 0.0
        %8982 = vmatprep.subr.mxu0 0.0
        %8983 = vmatpush2.msra.mxu0 0.0
        %8984 = vmatprep.subr.mxu0 0.0
        %8985 = vmatpush2.msra.mxu0 0.0
        %8986 = vmatprep.subr.mxu0 0.0
        %8987 = vmatpush2.msra.mxu0 0.0
        %8988 = vmatprep.subr.mxu0 0.0
        %8989 = vmatpush2.msra.mxu0 0.0
        %8990 = vmatprep.subr.mxu0 0.0
        %8991 = vmatpush2.msra.mxu0 0.0
        %8992 = vmatprep.subr.mxu0 0.0
        %8993 = vmatpush2.msra.mxu0 0.0
        %8994 = vmatprep.mubr.f32.mxu0 0.0
        %8995 = vmatmul.mubr.f32.gmra.mxu0 %v8919
        %v8996 = vpop.f32.mrf.mxu0
        %v8997 = vadd.f32 0.0, %v8996
        %v8998 = vpop.f32.mrf.mxu0
        %v8999 = vadd.f32 0.0, %v8998
        %9000 = vmatprep.mubr.f32.mxu0 0.0
        %9001 = vmatmul.mubr.f32.gmra.mxu0 %v8922
        %v9002 = vpop.f32.mrf.mxu0
        %v9003 = vadd.f32 0.0, %v9002
        %v9004 = vpop.f32.mrf.mxu0
        %v9005 = vadd.f32 0.0, %v9004
        %9006 = vmatprep.mubr.f32.mxu0 0.0
        %9007 = vmatmul.mubr.f32.gmra.mxu0 %v8925
        %v9008 = vpop.f32.mrf.mxu0
        %v9009 = vadd.f32 0.0, %v9008
        %v9010 = vpop.f32.mrf.mxu0
        %v9011 = vadd.f32 0.0, %v9010
        %9012 = vmatprep.mubr.f32.mxu0 0.0
        %9013 = vmatmul.mubr.f32.gmra.mxu0 %v8928
        %v9014 = vpop.f32.mrf.mxu0
        %v9015 = vadd.f32 0.0, %v9014
        %v9016 = vpop.f32.mrf.mxu0
        %v9017 = vadd.f32 0.0, %v9016
        %9018 = vdwg.mxu0
        %9019 = vmatprep.subr.mxu0 0.0
        %9020 = vmatpush1.msra.mxu0 0.0
        %9021 = vmatprep.subr.mxu0 0.0
        %9022 = vmatpush1.msra.mxu0 0.0
        %9023 = vmatprep.subr.mxu0 0.0
        %9024 = vmatpush1.msra.mxu0 0.0
        %9025 = vmatprep.subr.mxu0 0.0
        %9026 = vmatpush1.msra.mxu0 0.0
        %9027 = vmatprep.subr.mxu0 0.0
        %9028 = vmatpush1.msra.mxu0 0.0
        %9029 = vmatprep.subr.mxu0 0.0
        %9030 = vmatpush1.msra.mxu0 0.0
        %9031 = vmatprep.subr.mxu0 0.0
        %9032 = vmatpush1.msra.mxu0 0.0
        %9033 = vmatprep.subr.mxu0 0.0
        %9034 = vmatpush1.msra.mxu0 0.0
        %9035 = vmatprep.subr.mxu0 0.0
        %9036 = vmatpush1.msra.mxu0 0.0
        %9037 = vmatprep.subr.mxu0 0.0
        %9038 = vmatpush1.msra.mxu0 0.0
        %9039 = vmatprep.subr.mxu0 0.0
        %9040 = vmatpush1.msra.mxu0 0.0
        %9041 = vmatprep.subr.mxu0 0.0
        %9042 = vmatpush1.msra.mxu0 0.0
        %9043 = vmatprep.subr.mxu0 %v8901
        %9044 = vmatpush1.msra.mxu0 %v8900
        %9045 = vmatprep.subr.mxu0 %v8897
        %9046 = vmatpush1.msra.mxu0 %v8896
        %9047 = vmatprep.subr.mxu0 %v8893
        %9048 = vmatpush1.msra.mxu0 %v8892
        %9049 = vmatprep.subr.mxu0 %v8889
        %9050 = vmatpush1.msra.mxu0 %v8888
        %9051 = vmatprep.subr.mxu0 0.0
        %9052 = vmatpush2.msra.mxu0 0.0
        %9053 = vmatprep.subr.mxu0 0.0
        %9054 = vmatpush2.msra.mxu0 0.0
        %9055 = vmatprep.subr.mxu0 0.0
        %9056 = vmatpush2.msra.mxu0 0.0
        %9057 = vmatprep.subr.mxu0 0.0
        %9058 = vmatpush2.msra.mxu0 0.0
        %9059 = vmatprep.subr.mxu0 0.0
        %9060 = vmatpush2.msra.mxu0 0.0
        %9061 = vmatprep.subr.mxu0 0.0
        %9062 = vmatpush2.msra.mxu0 0.0
        %9063 = vmatprep.subr.mxu0 0.0
        %9064 = vmatpush2.msra.mxu0 0.0
        %9065 = vmatprep.subr.mxu0 0.0
        %9066 = vmatpush2.msra.mxu0 0.0
        %9067 = vmatprep.subr.mxu0 0.0
        %9068 = vmatpush2.msra.mxu0 0.0
        %9069 = vmatprep.subr.mxu0 0.0
        %9070 = vmatpush2.msra.mxu0 0.0
        %9071 = vmatprep.subr.mxu0 0.0
        %9072 = vmatpush2.msra.mxu0 0.0
        %9073 = vmatprep.subr.mxu0 0.0
        %9074 = vmatpush2.msra.mxu0 0.0
        %9075 = vmatprep.subr.mxu0 0.0
        %9076 = vmatpush2.msra.mxu0 0.0
        %9077 = vmatprep.subr.mxu0 0.0
        %9078 = vmatpush2.msra.mxu0 0.0
        %9079 = vmatprep.subr.mxu0 0.0
        %9080 = vmatpush2.msra.mxu0 0.0
        %9081 = vmatprep.subr.mxu0 0.0
        %9082 = vmatpush2.msra.mxu0 0.0
        %9083 = vmatprep.mubr.f32.mxu0 0.0
        %9084 = vmatmul.mubr.f32.gmra.mxu0 %v8919
        %v9085 = vpop.f32.mrf.mxu0
        %v9086 = vadd.f32 0.0, %v9085
        %v9087 = vpop.f32.mrf.mxu0
        %v9088 = vadd.f32 0.0, %v9087
        %9089 = vmatprep.mubr.f32.mxu0 0.0
        %9090 = vmatmul.mubr.f32.gmra.mxu0 %v8922
        %v9091 = vpop.f32.mrf.mxu0
        %v9092 = vadd.f32 0.0, %v9091
        %v9093 = vpop.f32.mrf.mxu0
        %v9094 = vadd.f32 0.0, %v9093
        %9095 = vmatprep.mubr.f32.mxu0 0.0
        %9096 = vmatmul.mubr.f32.gmra.mxu0 %v8925
        %v9097 = vpop.f32.mrf.mxu0
        %v9098 = vadd.f32 0.0, %v9097
        %v9099 = vpop.f32.mrf.mxu0
        %v9100 = vadd.f32 0.0, %v9099
        %9101 = vmatprep.mubr.f32.mxu0 0.0
        %9102 = vmatmul.mubr.f32.gmra.mxu0 %v8928
        %v9103 = vpop.f32.mrf.mxu0
        %v9104 = vadd.f32 0.0, %v9103
        %v9105 = vpop.f32.mrf.mxu0
        %v9106 = vadd.f32 0.0, %v9105
        %9107 = vdwg.mxu0
        %v9108 = vadd.f32 %v8830, %v8997
        %v9109 = vadd.f32 %v8831, %v8999
        %v9110 = vadd.f32 %v8832, %v9086
        %v9111 = vadd.f32 %v8833, %v9088
        %v9112 = vadd.f32 %v8834, %v9003
        %v9113 = vadd.f32 %v8835, %v9005
        %v9114 = vadd.f32 %v8836, %v9092
        %v9115 = vadd.f32 %v8837, %v9094
        %v9116 = vadd.f32 %v8838, %v9009
        %v9117 = vadd.f32 %v8839, %v9011
        %v9118 = vadd.f32 %v8840, %v9098
        %v9119 = vadd.f32 %v8841, %v9100
        %v9120 = vadd.f32 %v8842, %v9015
        %v9121 = vadd.f32 %v8843, %v9017
        %v9122 = vadd.f32 %v8844, %v9104
        %v9123 = vadd.f32 %v8845, %v9106
        %9124 = vrot.lane.b32.xlu0 %v6381, 55
        %v9125 = vpop.permute.xlu0 %9124
        %9126 = vrot.lane.b32.xlu0 %v6382, 55
        %v9127 = vpop.permute.xlu0 %9126
        %9128 = vrot.lane.b32.xlu0 %v6383, 55
        %v9129 = vpop.permute.xlu0 %9128
        %9130 = vrot.lane.b32.xlu0 %v6384, 55
        %v9131 = vpop.permute.xlu0 %9130
        %9132 = vrot.lane.b32.xlu0 %v6385, 55
        %v9133 = vpop.permute.xlu0 %9132
        %9134 = vrot.lane.b32.xlu0 %v6386, 55
        %v9135 = vpop.permute.xlu0 %9134
        %9136 = vrot.lane.b32.xlu0 %v6387, 55
        %v9137 = vpop.permute.xlu0 %9136
        %9138 = vrot.lane.b32.xlu0 %v6388, 55
        %v9139 = vpop.permute.xlu0 %9138
        %9140 = vrot.lane.b32.xlu0 %v6389, 55
        %v9141 = vpop.permute.xlu0 %9140
        %9142 = vrot.lane.b32.xlu0 %v6390, 55
        %v9143 = vpop.permute.xlu0 %9142
        %9144 = vrot.lane.b32.xlu0 %v6391, 55
        %v9145 = vpop.permute.xlu0 %9144
        %9146 = vrot.lane.b32.xlu0 %v6392, 55
        %v9147 = vpop.permute.xlu0 %9146
        %9148 = vrot.lane.b32.xlu0 %v6393, 55
        %v9149 = vpop.permute.xlu0 %9148
        %9150 = vrot.lane.b32.xlu0 %v6394, 55
        %v9151 = vpop.permute.xlu0 %9150
        %9152 = vrot.lane.b32.xlu0 %v6395, 55
        %v9153 = vpop.permute.xlu0 %9152
        %9154 = vrot.lane.b32.xlu0 %v6396, 55
        %v9155 = vpop.permute.xlu0 %9154
        %9156 = vrot.lane.b32.xlu0 %v6397, 55
        %v9157 = vpop.permute.xlu0 %9156
        %9158 = vrot.lane.b32.xlu0 %v6398, 55
        %v9159 = vpop.permute.xlu0 %9158
        %9160 = vrot.lane.b32.xlu0 %v6399, 55
        %v9161 = vpop.permute.xlu0 %9160
        %9162 = vrot.lane.b32.xlu0 %v6400, 55
        %v9163 = vpop.permute.xlu0 %9162
        %v9164 = vsel %vm3863, %v9125, %v9127
        %v9165 = vsel %vm3863, %v9127, %v9129
        %v9166 = vsel %vm3863, %v9129, %v9131
        %v9167 = vsel %vm3863, %v9131, %v9133
        %v9168 = vsel %vm3863, %v9135, %v9137
        %v9169 = vsel %vm3863, %v9137, %v9139
        %v9170 = vsel %vm3863, %v9139, %v9141
        %v9171 = vsel %vm3863, %v9141, %v9143
        %v9172 = vsel %vm3863, %v9145, %v9147
        %v9173 = vsel %vm3863, %v9147, %v9149
        %v9174 = vsel %vm3863, %v9149, %v9151
        %v9175 = vsel %vm3863, %v9151, %v9153
        %v9176 = vsel %vm3863, %v9155, %v9157
        %v9177 = vsel %vm3863, %v9157, %v9159
        %v9178 = vsel %vm3863, %v9159, %v9161
        %v9179 = vsel %vm3863, %v9161, %v9163
        %v9197 = vsel %vm1395, %v516, 0
        %v9200 = vsel %vm1395, %v517, 0
        %v9203 = vsel %vm1395, %v518, 0
        %v9206 = vsel %vm1395, %v519, 0
        %9208 = vmatprep.subr.mxu0 0.0
        %9209 = vmatpush1.msra.mxu0 0.0
        %9210 = vmatprep.subr.mxu0 0.0
        %9211 = vmatpush1.msra.mxu0 0.0
        %9212 = vmatprep.subr.mxu0 0.0
        %9213 = vmatpush1.msra.mxu0 0.0
        %9214 = vmatprep.subr.mxu0 0.0
        %9215 = vmatpush1.msra.mxu0 0.0
        %9216 = vmatprep.subr.mxu0 0.0
        %9217 = vmatpush1.msra.mxu0 0.0
        %9218 = vmatprep.subr.mxu0 0.0
        %9219 = vmatpush1.msra.mxu0 0.0
        %9220 = vmatprep.subr.mxu0 0.0
        %9221 = vmatpush1.msra.mxu0 0.0
        %9222 = vmatprep.subr.mxu0 0.0
        %9223 = vmatpush1.msra.mxu0 0.0
        %9224 = vmatprep.subr.mxu0 0.0
        %9225 = vmatpush1.msra.mxu0 0.0
        %9226 = vmatprep.subr.mxu0 0.0
        %9227 = vmatpush1.msra.mxu0 0.0
        %9228 = vmatprep.subr.mxu0 0.0
        %9229 = vmatpush1.msra.mxu0 0.0
        %9230 = vmatprep.subr.mxu0 0.0
        %9231 = vmatpush1.msra.mxu0 0.0
        %9232 = vmatprep.subr.mxu0 %v9177
        %9233 = vmatpush1.msra.mxu0 %v9176
        %9234 = vmatprep.subr.mxu0 %v9173
        %9235 = vmatpush1.msra.mxu0 %v9172
        %9236 = vmatprep.subr.mxu0 %v9169
        %9237 = vmatpush1.msra.mxu0 %v9168
        %9238 = vmatprep.subr.mxu0 %v9165
        %9239 = vmatpush1.msra.mxu0 %v9164
        %9240 = vmatprep.subr.mxu0 0.0
        %9241 = vmatpush2.msra.mxu0 0.0
        %9242 = vmatprep.subr.mxu0 0.0
        %9243 = vmatpush2.msra.mxu0 0.0
        %9244 = vmatprep.subr.mxu0 0.0
        %9245 = vmatpush2.msra.mxu0 0.0
        %9246 = vmatprep.subr.mxu0 0.0
        %9247 = vmatpush2.msra.mxu0 0.0
        %9248 = vmatprep.subr.mxu0 0.0
        %9249 = vmatpush2.msra.mxu0 0.0
        %9250 = vmatprep.subr.mxu0 0.0
        %9251 = vmatpush2.msra.mxu0 0.0
        %9252 = vmatprep.subr.mxu0 0.0
        %9253 = vmatpush2.msra.mxu0 0.0
        %9254 = vmatprep.subr.mxu0 0.0
        %9255 = vmatpush2.msra.mxu0 0.0
        %9256 = vmatprep.subr.mxu0 0.0
        %9257 = vmatpush2.msra.mxu0 0.0
        %9258 = vmatprep.subr.mxu0 0.0
        %9259 = vmatpush2.msra.mxu0 0.0
        %9260 = vmatprep.subr.mxu0 0.0
        %9261 = vmatpush2.msra.mxu0 0.0
        %9262 = vmatprep.subr.mxu0 0.0
        %9263 = vmatpush2.msra.mxu0 0.0
        %9264 = vmatprep.subr.mxu0 0.0
        %9265 = vmatpush2.msra.mxu0 0.0
        %9266 = vmatprep.subr.mxu0 0.0
        %9267 = vmatpush2.msra.mxu0 0.0
        %9268 = vmatprep.subr.mxu0 0.0
        %9269 = vmatpush2.msra.mxu0 0.0
        %9270 = vmatprep.subr.mxu0 0.0
        %9271 = vmatpush2.msra.mxu0 0.0
        %9272 = vmatprep.mubr.f32.mxu0 0.0
        %9273 = vmatmul.mubr.f32.gmra.mxu0 %v9197
        %v9274 = vpop.f32.mrf.mxu0
        %v9275 = vadd.f32 0.0, %v9274
        %v9276 = vpop.f32.mrf.mxu0
        %v9277 = vadd.f32 0.0, %v9276
        %9278 = vmatprep.mubr.f32.mxu0 0.0
        %9279 = vmatmul.mubr.f32.gmra.mxu0 %v9200
        %v9280 = vpop.f32.mrf.mxu0
        %v9281 = vadd.f32 0.0, %v9280
        %v9282 = vpop.f32.mrf.mxu0
        %v9283 = vadd.f32 0.0, %v9282
        %9284 = vmatprep.mubr.f32.mxu0 0.0
        %9285 = vmatmul.mubr.f32.gmra.mxu0 %v9203
        %v9286 = vpop.f32.mrf.mxu0
        %v9287 = vadd.f32 0.0, %v9286
        %v9288 = vpop.f32.mrf.mxu0
        %v9289 = vadd.f32 0.0, %v9288
        %9290 = vmatprep.mubr.f32.mxu0 0.0
        %9291 = vmatmul.mubr.f32.gmra.mxu0 %v9206
        %v9292 = vpop.f32.mrf.mxu0
        %v9293 = vadd.f32 0.0, %v9292
        %v9294 = vpop.f32.mrf.mxu0
        %v9295 = vadd.f32 0.0, %v9294
        %9296 = vdwg.mxu0
        %9297 = vmatprep.subr.mxu0 0.0
        %9298 = vmatpush1.msra.mxu0 0.0
        %9299 = vmatprep.subr.mxu0 0.0
        %9300 = vmatpush1.msra.mxu0 0.0
        %9301 = vmatprep.subr.mxu0 0.0
        %9302 = vmatpush1.msra.mxu0 0.0
        %9303 = vmatprep.subr.mxu0 0.0
        %9304 = vmatpush1.msra.mxu0 0.0
        %9305 = vmatprep.subr.mxu0 0.0
        %9306 = vmatpush1.msra.mxu0 0.0
        %9307 = vmatprep.subr.mxu0 0.0
        %9308 = vmatpush1.msra.mxu0 0.0
        %9309 = vmatprep.subr.mxu0 0.0
        %9310 = vmatpush1.msra.mxu0 0.0
        %9311 = vmatprep.subr.mxu0 0.0
        %9312 = vmatpush1.msra.mxu0 0.0
        %9313 = vmatprep.subr.mxu0 0.0
        %9314 = vmatpush1.msra.mxu0 0.0
        %9315 = vmatprep.subr.mxu0 0.0
        %9316 = vmatpush1.msra.mxu0 0.0
        %9317 = vmatprep.subr.mxu0 0.0
        %9318 = vmatpush1.msra.mxu0 0.0
        %9319 = vmatprep.subr.mxu0 0.0
        %9320 = vmatpush1.msra.mxu0 0.0
        %9321 = vmatprep.subr.mxu0 %v9179
        %9322 = vmatpush1.msra.mxu0 %v9178
        %9323 = vmatprep.subr.mxu0 %v9175
        %9324 = vmatpush1.msra.mxu0 %v9174
        %9325 = vmatprep.subr.mxu0 %v9171
        %9326 = vmatpush1.msra.mxu0 %v9170
        %9327 = vmatprep.subr.mxu0 %v9167
        %9328 = vmatpush1.msra.mxu0 %v9166
        %9329 = vmatprep.subr.mxu0 0.0
        %9330 = vmatpush2.msra.mxu0 0.0
        %9331 = vmatprep.subr.mxu0 0.0
        %9332 = vmatpush2.msra.mxu0 0.0
        %9333 = vmatprep.subr.mxu0 0.0
        %9334 = vmatpush2.msra.mxu0 0.0
        %9335 = vmatprep.subr.mxu0 0.0
        %9336 = vmatpush2.msra.mxu0 0.0
        %9337 = vmatprep.subr.mxu0 0.0
        %9338 = vmatpush2.msra.mxu0 0.0
        %9339 = vmatprep.subr.mxu0 0.0
        %9340 = vmatpush2.msra.mxu0 0.0
        %9341 = vmatprep.subr.mxu0 0.0
        %9342 = vmatpush2.msra.mxu0 0.0
        %9343 = vmatprep.subr.mxu0 0.0
        %9344 = vmatpush2.msra.mxu0 0.0
        %9345 = vmatprep.subr.mxu0 0.0
        %9346 = vmatpush2.msra.mxu0 0.0
        %9347 = vmatprep.subr.mxu0 0.0
        %9348 = vmatpush2.msra.mxu0 0.0
        %9349 = vmatprep.subr.mxu0 0.0
        %9350 = vmatpush2.msra.mxu0 0.0
        %9351 = vmatprep.subr.mxu0 0.0
        %9352 = vmatpush2.msra.mxu0 0.0
        %9353 = vmatprep.subr.mxu0 0.0
        %9354 = vmatpush2.msra.mxu0 0.0
        %9355 = vmatprep.subr.mxu0 0.0
        %9356 = vmatpush2.msra.mxu0 0.0
        %9357 = vmatprep.subr.mxu0 0.0
        %9358 = vmatpush2.msra.mxu0 0.0
        %9359 = vmatprep.subr.mxu0 0.0
        %9360 = vmatpush2.msra.mxu0 0.0
        %9361 = vmatprep.mubr.f32.mxu0 0.0
        %9362 = vmatmul.mubr.f32.gmra.mxu0 %v9197
        %v9363 = vpop.f32.mrf.mxu0
        %v9364 = vadd.f32 0.0, %v9363
        %v9365 = vpop.f32.mrf.mxu0
        %v9366 = vadd.f32 0.0, %v9365
        %9367 = vmatprep.mubr.f32.mxu0 0.0
        %9368 = vmatmul.mubr.f32.gmra.mxu0 %v9200
        %v9369 = vpop.f32.mrf.mxu0
        %v9370 = vadd.f32 0.0, %v9369
        %v9371 = vpop.f32.mrf.mxu0
        %v9372 = vadd.f32 0.0, %v9371
        %9373 = vmatprep.mubr.f32.mxu0 0.0
        %9374 = vmatmul.mubr.f32.gmra.mxu0 %v9203
        %v9375 = vpop.f32.mrf.mxu0
        %v9376 = vadd.f32 0.0, %v9375
        %v9377 = vpop.f32.mrf.mxu0
        %v9378 = vadd.f32 0.0, %v9377
        %9379 = vmatprep.mubr.f32.mxu0 0.0
        %9380 = vmatmul.mubr.f32.gmra.mxu0 %v9206
        %v9381 = vpop.f32.mrf.mxu0
        %v9382 = vadd.f32 0.0, %v9381
        %v9383 = vpop.f32.mrf.mxu0
        %v9384 = vadd.f32 0.0, %v9383
        %9385 = vdwg.mxu0
        %v9386 = vadd.f32 %v9108, %v9275
        %v9387 = vadd.f32 %v9109, %v9277
        %v9388 = vadd.f32 %v9110, %v9364
        %v9389 = vadd.f32 %v9111, %v9366
        %v9390 = vadd.f32 %v9112, %v9281
        %v9391 = vadd.f32 %v9113, %v9283
        %v9392 = vadd.f32 %v9114, %v9370
        %v9393 = vadd.f32 %v9115, %v9372
        %v9394 = vadd.f32 %v9116, %v9287
        %v9395 = vadd.f32 %v9117, %v9289
        %v9396 = vadd.f32 %v9118, %v9376
        %v9397 = vadd.f32 %v9119, %v9378
        %v9398 = vadd.f32 %v9120, %v9293
        %v9399 = vadd.f32 %v9121, %v9295
        %v9400 = vadd.f32 %v9122, %v9382
        %v9401 = vadd.f32 %v9123, %v9384
        %9403 = vset.pattern.permute.xlu0 0
        %9404 = vperm.xlu0 %9403, %v520
        %v9405 = vpop.permute.xlu0 %9404
        %9408 = vset.pattern.permute.xlu0 0
        %9409 = vperm.xlu0 %9408, %v521
        %v9410 = vpop.permute.xlu0 %9409
        %9413 = vset.pattern.permute.xlu0 0
        %9414 = vperm.xlu0 %9413, %v522
        %v9415 = vpop.permute.xlu0 %9414
        %9418 = vset.pattern.permute.xlu0 0
        %9419 = vperm.xlu0 %9418, %v523
        %v9420 = vpop.permute.xlu0 %9419
        %v9422 = vadd.f32 %v9386, %v9405
        %v9423 = vadd.f32 %v9387, %v9405
        %v9424 = vadd.f32 %v9388, %v9405
        %v9425 = vadd.f32 %v9389, %v9405
        %v9426 = vadd.f32 %v9390, %v9410
        %v9427 = vadd.f32 %v9391, %v9410
        %v9428 = vadd.f32 %v9392, %v9410
        %v9429 = vadd.f32 %v9393, %v9410
        %v9430 = vadd.f32 %v9394, %v9415
        %v9431 = vadd.f32 %v9395, %v9415
        %v9432 = vadd.f32 %v9396, %v9415
        %v9433 = vadd.f32 %v9397, %v9415
        %v9434 = vadd.f32 %v9398, %v9420
        %v9435 = vadd.f32 %v9399, %v9420
        %v9436 = vadd.f32 %v9400, %v9420
        %v9437 = vadd.f32 %v9401, %v9420
        %v9438 = vadd.f32 %v9422, %v9423
        %v9439 = vadd.f32 %v9438, %v9424
        %v9440 = vadd.f32 %v9439, %v9425
        %9441 = vadd.xlane.f32.xlu0 %v9440
        %v9442 = vpop.xlane.xlu0 %9441
        %v9443 = vadd.f32 %v9426, %v9427
        %v9444 = vadd.f32 %v9443, %v9428
        %v9445 = vadd.f32 %v9444, %v9429
        %9446 = vadd.xlane.f32.xlu0 %v9445
        %v9447 = vpop.xlane.xlu0 %9446
        %v9448 = vadd.f32 %v9430, %v9431
        %v9449 = vadd.f32 %v9448, %v9432
        %v9450 = vadd.f32 %v9449, %v9433
        %9451 = vadd.xlane.f32.xlu0 %v9450
        %v9452 = vpop.xlane.xlu0 %9451
        %v9453 = vadd.f32 %v9434, %v9435
        %v9454 = vadd.f32 %v9453, %v9436
        %v9455 = vadd.f32 %v9454, %v9437
        %9456 = vadd.xlane.f32.xlu0 %v9455
        %v9457 = vpop.xlane.xlu0 %9456
        %v9458 = vmul.f32 %v9422, %v9422
        %v9459 = vmul.f32 %v9423, %v9423
        %v9460 = vmul.f32 %v9424, %v9424
        %v9461 = vmul.f32 %v9425, %v9425
        %v9462 = vmul.f32 %v9426, %v9426
        %v9463 = vmul.f32 %v9427, %v9427
        %v9464 = vmul.f32 %v9428, %v9428
        %v9465 = vmul.f32 %v9429, %v9429
        %v9466 = vmul.f32 %v9430, %v9430
        %v9467 = vmul.f32 %v9431, %v9431
        %v9468 = vmul.f32 %v9432, %v9432
        %v9469 = vmul.f32 %v9433, %v9433
        %v9470 = vmul.f32 %v9434, %v9434
        %v9471 = vmul.f32 %v9435, %v9435
        %v9472 = vmul.f32 %v9436, %v9436
        %v9473 = vmul.f32 %v9437, %v9437
        %v9474 = vadd.f32 %v9458, %v9459
        %v9475 = vadd.f32 %v9474, %v9460
        %v9476 = vadd.f32 %v9475, %v9461
        %9477 = vadd.xlane.f32.xlu0 %v9476
        %v9478 = vpop.xlane.xlu0 %9477
        %v9479 = vadd.f32 %v9462, %v9463
        %v9480 = vadd.f32 %v9479, %v9464
        %v9481 = vadd.f32 %v9480, %v9465
        %9482 = vadd.xlane.f32.xlu0 %v9481
        %v9483 = vpop.xlane.xlu0 %9482
        %v9484 = vadd.f32 %v9466, %v9467
        %v9485 = vadd.f32 %v9484, %v9468
        %v9486 = vadd.f32 %v9485, %v9469
        %9487 = vadd.xlane.f32.xlu0 %v9486
        %v9488 = vpop.xlane.xlu0 %9487
        %v9489 = vadd.f32 %v9470, %v9471
        %v9490 = vadd.f32 %v9489, %v9472
        %v9491 = vadd.f32 %v9490, %v9473
        %9492 = vadd.xlane.f32.xlu0 %v9491
        %v9493 = vpop.xlane.xlu0 %9492
        %v9495 = vsel %vm1395, %v524, 0
        %v9498 = vsel %vm1395, %v525, 0
        %v9501 = vsel %vm1395, %v526, 0
        %v9504 = vsel %vm1395, %v527, 0
        %9506 = vmatprep.subr.mxu0 0.0
        %9507 = vmatpush1.msra.mxu0 0.0
        %9508 = vmatprep.subr.mxu0 0.0
        %9509 = vmatpush1.msra.mxu0 0.0
        %9510 = vmatprep.subr.mxu0 0.0
        %9511 = vmatpush1.msra.mxu0 0.0
        %9512 = vmatprep.subr.mxu0 0.0
        %9513 = vmatpush1.msra.mxu0 0.0
        %9514 = vmatprep.subr.mxu0 0.0
        %9515 = vmatpush1.msra.mxu0 0.0
        %9516 = vmatprep.subr.mxu0 0.0
        %9517 = vmatpush1.msra.mxu0 0.0
        %9518 = vmatprep.subr.mxu0 0.0
        %9519 = vmatpush1.msra.mxu0 0.0
        %9520 = vmatprep.subr.mxu0 0.0
        %9521 = vmatpush1.msra.mxu0 0.0
        %9522 = vmatprep.subr.mxu0 0.0
        %9523 = vmatpush1.msra.mxu0 0.0
        %9524 = vmatprep.subr.mxu0 0.0
        %9525 = vmatpush1.msra.mxu0 0.0
        %9526 = vmatprep.subr.mxu0 0.0
        %9527 = vmatpush1.msra.mxu0 0.0
        %9528 = vmatprep.subr.mxu0 0.0
        %9529 = vmatpush1.msra.mxu0 0.0
        %9530 = vmatprep.subr.mxu0 0.0
        %9531 = vmatpush1.msra.mxu0 %v9457
        %9532 = vmatprep.subr.mxu0 0.0
        %9533 = vmatpush1.msra.mxu0 %v9452
        %9534 = vmatprep.subr.mxu0 0.0
        %9535 = vmatpush1.msra.mxu0 %v9447
        %9536 = vmatprep.subr.mxu0 0.0
        %9537 = vmatpush1.msra.mxu0 %v9442
        %9538 = vmatprep.subr.mxu0 0.0
        %9539 = vmatpush2.msra.mxu0 0.0
        %9540 = vmatprep.subr.mxu0 0.0
        %9541 = vmatpush2.msra.mxu0 0.0
        %9542 = vmatprep.subr.mxu0 0.0
        %9543 = vmatpush2.msra.mxu0 0.0
        %9544 = vmatprep.subr.mxu0 0.0
        %9545 = vmatpush2.msra.mxu0 0.0
        %9546 = vmatprep.subr.mxu0 0.0
        %9547 = vmatpush2.msra.mxu0 0.0
        %9548 = vmatprep.subr.mxu0 0.0
        %9549 = vmatpush2.msra.mxu0 0.0
        %9550 = vmatprep.subr.mxu0 0.0
        %9551 = vmatpush2.msra.mxu0 0.0
        %9552 = vmatprep.subr.mxu0 0.0
        %9553 = vmatpush2.msra.mxu0 0.0
        %9554 = vmatprep.subr.mxu0 0.0
        %9555 = vmatpush2.msra.mxu0 0.0
        %9556 = vmatprep.subr.mxu0 0.0
        %9557 = vmatpush2.msra.mxu0 0.0
        %9558 = vmatprep.subr.mxu0 0.0
        %9559 = vmatpush2.msra.mxu0 0.0
        %9560 = vmatprep.subr.mxu0 0.0
        %9561 = vmatpush2.msra.mxu0 0.0
        %9562 = vmatprep.subr.mxu0 0.0
        %9563 = vmatpush2.msra.mxu0 0.0
        %9564 = vmatprep.subr.mxu0 0.0
        %9565 = vmatpush2.msra.mxu0 0.0
        %9566 = vmatprep.subr.mxu0 0.0
        %9567 = vmatpush2.msra.mxu0 0.0
        %9568 = vmatprep.subr.mxu0 0.0
        %9569 = vmatpush2.msra.mxu0 0.0
        %9570 = vmatprep.mubr.f32.mxu0 0.0
        %9571 = vmatmul.mubr.f32.gmra.mxu0 %v9495
        %v9572 = vpop.f32.mrf.mxu0
        %v9573 = vadd.f32 0.0, %v9572
        %v9574 = vpop.f32.mrf.mxu0
        %9575 = vmatprep.mubr.f32.mxu0 0.0
        %9576 = vmatmul.mubr.f32.gmra.mxu0 %v9498
        %v9577 = vpop.f32.mrf.mxu0
        %v9578 = vadd.f32 0.0, %v9577
        %v9579 = vpop.f32.mrf.mxu0
        %9580 = vmatprep.mubr.f32.mxu0 0.0
        %9581 = vmatmul.mubr.f32.gmra.mxu0 %v9501
        %v9582 = vpop.f32.mrf.mxu0
        %v9583 = vadd.f32 0.0, %v9582
        %v9584 = vpop.f32.mrf.mxu0
        %9585 = vmatprep.mubr.f32.mxu0 0.0
        %9586 = vmatmul.mubr.f32.gmra.mxu0 %v9504
        %v9587 = vpop.f32.mrf.mxu0
        %v9588 = vadd.f32 0.0, %v9587
        %v9589 = vpop.f32.mrf.mxu0
        %9590 = vdwg.mxu0
        %v9591 = vmul.f32 %v9573, 0.0009765625
        %v9592 = vmul.f32 %v9578, 0.0009765625
        %v9593 = vmul.f32 %v9583, 0.0009765625
        %v9594 = vmul.f32 %v9588, 0.0009765625
        %9595 = vmatprep.subr.mxu0 0.0
        %9596 = vmatpush1.msra.mxu0 0.0
        %9597 = vmatprep.subr.mxu0 0.0
        %9598 = vmatpush1.msra.mxu0 0.0
        %9599 = vmatprep.subr.mxu0 0.0
        %9600 = vmatpush1.msra.mxu0 0.0
        %9601 = vmatprep.subr.mxu0 0.0
        %9602 = vmatpush1.msra.mxu0 0.0
        %9603 = vmatprep.subr.mxu0 0.0
        %9604 = vmatpush1.msra.mxu0 0.0
        %9605 = vmatprep.subr.mxu0 0.0
        %9606 = vmatpush1.msra.mxu0 0.0
        %9607 = vmatprep.subr.mxu0 0.0
        %9608 = vmatpush1.msra.mxu0 0.0
        %9609 = vmatprep.subr.mxu0 0.0
        %9610 = vmatpush1.msra.mxu0 0.0
        %9611 = vmatprep.subr.mxu0 0.0
        %9612 = vmatpush1.msra.mxu0 0.0
        %9613 = vmatprep.subr.mxu0 0.0
        %9614 = vmatpush1.msra.mxu0 0.0
        %9615 = vmatprep.subr.mxu0 0.0
        %9616 = vmatpush1.msra.mxu0 0.0
        %9617 = vmatprep.subr.mxu0 0.0
        %9618 = vmatpush1.msra.mxu0 0.0
        %9619 = vmatprep.subr.mxu0 0.0
        %9620 = vmatpush1.msra.mxu0 %v9493
        %9621 = vmatprep.subr.mxu0 0.0
        %9622 = vmatpush1.msra.mxu0 %v9488
        %9623 = vmatprep.subr.mxu0 0.0
        %9624 = vmatpush1.msra.mxu0 %v9483
        %9625 = vmatprep.subr.mxu0 0.0
        %9626 = vmatpush1.msra.mxu0 %v9478
        %9627 = vmatprep.subr.mxu0 0.0
        %9628 = vmatpush2.msra.mxu0 0.0
        %9629 = vmatprep.subr.mxu0 0.0
        %9630 = vmatpush2.msra.mxu0 0.0
        %9631 = vmatprep.subr.mxu0 0.0
        %9632 = vmatpush2.msra.mxu0 0.0
        %9633 = vmatprep.subr.mxu0 0.0
        %9634 = vmatpush2.msra.mxu0 0.0
        %9635 = vmatprep.subr.mxu0 0.0
        %9636 = vmatpush2.msra.mxu0 0.0
        %9637 = vmatprep.subr.mxu0 0.0
        %9638 = vmatpush2.msra.mxu0 0.0
        %9639 = vmatprep.subr.mxu0 0.0
        %9640 = vmatpush2.msra.mxu0 0.0
        %9641 = vmatprep.subr.mxu0 0.0
        %9642 = vmatpush2.msra.mxu0 0.0
        %9643 = vmatprep.subr.mxu0 0.0
        %9644 = vmatpush2.msra.mxu0 0.0
        %9645 = vmatprep.subr.mxu0 0.0
        %9646 = vmatpush2.msra.mxu0 0.0
        %9647 = vmatprep.subr.mxu0 0.0
        %9648 = vmatpush2.msra.mxu0 0.0
        %9649 = vmatprep.subr.mxu0 0.0
        %9650 = vmatpush2.msra.mxu0 0.0
        %9651 = vmatprep.subr.mxu0 0.0
        %9652 = vmatpush2.msra.mxu0 0.0
        %9653 = vmatprep.subr.mxu0 0.0
        %9654 = vmatpush2.msra.mxu0 0.0
        %9655 = vmatprep.subr.mxu0 0.0
        %9656 = vmatpush2.msra.mxu0 0.0
        %9657 = vmatprep.subr.mxu0 0.0
        %9658 = vmatpush2.msra.mxu0 0.0
        %9659 = vmatprep.mubr.f32.mxu0 0.0
        %9660 = vmatmul.mubr.f32.gmra.mxu0 %v9495
        %v9661 = vpop.f32.mrf.mxu0
        %v9662 = vadd.f32 0.0, %v9661
        %v9663 = vpop.f32.mrf.mxu0
        %9664 = vmatprep.mubr.f32.mxu0 0.0
        %9665 = vmatmul.mubr.f32.gmra.mxu0 %v9498
        %v9666 = vpop.f32.mrf.mxu0
        %v9667 = vadd.f32 0.0, %v9666
        %v9668 = vpop.f32.mrf.mxu0
        %9669 = vmatprep.mubr.f32.mxu0 0.0
        %9670 = vmatmul.mubr.f32.gmra.mxu0 %v9501
        %v9671 = vpop.f32.mrf.mxu0
        %v9672 = vadd.f32 0.0, %v9671
        %v9673 = vpop.f32.mrf.mxu0
        %9674 = vmatprep.mubr.f32.mxu0 0.0
        %9675 = vmatmul.mubr.f32.gmra.mxu0 %v9504
        %v9676 = vpop.f32.mrf.mxu0
        %v9677 = vadd.f32 0.0, %v9676
        %v9678 = vpop.f32.mrf.mxu0
        %9679 = vdwg.mxu0
        %v9680 = vmul.f32 %v9662, 0.0009765625
        %v9681 = vmul.f32 %v9667, 0.0009765625
        %v9682 = vmul.f32 %v9672, 0.0009765625
        %v9683 = vmul.f32 %v9677, 0.0009765625
        %v9684 = vmul.f32 %v9591, %v9591
        %v9685 = vmul.f32 %v9592, %v9592
        %v9686 = vmul.f32 %v9593, %v9593
        %v9687 = vmul.f32 %v9594, %v9594
        %v9688 = vsub.f32 %v9680, %v9684
        %v9689 = vsub.f32 %v9681, %v9685
        %v9690 = vsub.f32 %v9682, %v9686
        %v9691 = vsub.f32 %v9683, %v9687
        %v9692 = vmax.f32 %v9688, 0.0
        %v9693 = vmax.f32 %v9689, 0.0
        %v9694 = vmax.f32 %v9690, 0.0
        %v9695 = vmax.f32 %v9691, 0.0
        %v9696 = vadd.f32 %v9692, 1e-05
        %v9697 = vadd.f32 %v9693, 1e-05
        %v9698 = vadd.f32 %v9694, 1e-05
        %v9699 = vadd.f32 %v9695, 1e-05
        %v9700 = vrsqrt.pop %v9696
        %v9701 = vrsqrt.pop %v9697
        %v9702 = vrsqrt.pop %v9698
        %v9703 = vrsqrt.pop %v9699
        %v9704 = vmul.f32 %v9700, %v528
        %v9705 = vmul.f32 %v9701, %v529
        %v9706 = vmul.f32 %v9702, %v530
        %v9707 = vmul.f32 %v9703, %v531
        %v9708 = vmul.f32 %v9591, %v9704
        %v9709 = vmul.f32 %v9592, %v9705
        %v9710 = vmul.f32 %v9593, %v9706
        %v9711 = vmul.f32 %v9594, %v9707
        %v9712 = vsub.f32 %v532, %v9708
        %v9713 = vsub.f32 %v533, %v9709
        %v9714 = vsub.f32 %v534, %v9710
        %v9715 = vsub.f32 %v535, %v9711
        %9717 = vset.pattern.permute.xlu0 0
        %9718 = vperm.xlu0 %9717, %v9704
        %v9719 = vpop.permute.xlu0 %9718
        %9722 = vset.pattern.permute.xlu0 0
        %9723 = vperm.xlu0 %9722, %v9705
        %v9724 = vpop.permute.xlu0 %9723
        %9727 = vset.pattern.permute.xlu0 0
        %9728 = vperm.xlu0 %9727, %v9706
        %v9729 = vpop.permute.xlu0 %9728
        %9732 = vset.pattern.permute.xlu0 0
        %9733 = vperm.xlu0 %9732, %v9707
        %v9734 = vpop.permute.xlu0 %9733
        %v9736 = vmul.f32 %v9422, %v9719
        %v9737 = vmul.f32 %v9423, %v9719
        %v9738 = vmul.f32 %v9424, %v9719
        %v9739 = vmul.f32 %v9425, %v9719
        %v9740 = vmul.f32 %v9426, %v9724
        %v9741 = vmul.f32 %v9427, %v9724
        %v9742 = vmul.f32 %v9428, %v9724
        %v9743 = vmul.f32 %v9429, %v9724
        %v9744 = vmul.f32 %v9430, %v9729
        %v9745 = vmul.f32 %v9431, %v9729
        %v9746 = vmul.f32 %v9432, %v9729
        %v9747 = vmul.f32 %v9433, %v9729
        %v9748 = vmul.f32 %v9434, %v9734
        %v9749 = vmul.f32 %v9435, %v9734
        %v9750 = vmul.f32 %v9436, %v9734
        %v9751 = vmul.f32 %v9437, %v9734
        %9753 = vset.pattern.permute.xlu0 0
        %9754 = vperm.xlu0 %9753, %v9712
        %v9755 = vpop.permute.xlu0 %9754
        %9758 = vset.pattern.permute.xlu0 0
        %9759 = vperm.xlu0 %9758, %v9713
        %v9760 = vpop.permute.xlu0 %9759
        %9763 = vset.pattern.permute.xlu0 0
        %9764 = vperm.xlu0 %9763, %v9714
        %v9765 = vpop.permute.xlu0 %9764
        %9768 = vset.pattern.permute.xlu0 0
        %9769 = vperm.xlu0 %9768, %v9715
        %v9770 = vpop.permute.xlu0 %9769
        %v9772 = vadd.f32 %v9736, %v9755
        %v9773 = vadd.f32 %v9737, %v9755
        %v9774 = vadd.f32 %v9738, %v9755
        %v9775 = vadd.f32 %v9739, %v9755
        %v9776 = vadd.f32 %v9740, %v9760
        %v9777 = vadd.f32 %v9741, %v9760
        %v9778 = vadd.f32 %v9742, %v9760
        %v9779 = vadd.f32 %v9743, %v9760
        %v9780 = vadd.f32 %v9744, %v9765
        %v9781 = vadd.f32 %v9745, %v9765
        %v9782 = vadd.f32 %v9746, %v9765
        %v9783 = vadd.f32 %v9747, %v9765
        %v9784 = vadd.f32 %v9748, %v9770
        %v9785 = vadd.f32 %v9749, %v9770
        %v9786 = vadd.f32 %v9750, %v9770
        %v9787 = vadd.f32 %v9751, %v9770
        %v9788 = vmax.f32 %v9772, 0.0
        %v9789 = vmax.f32 %v9773, 0.0
        %v9790 = vmax.f32 %v9774, 0.0
        %v9791 = vmax.f32 %v9775, 0.0
        %v9792 = vmax.f32 %v9776, 0.0
        %v9793 = vmax.f32 %v9777, 0.0
        %v9794 = vmax.f32 %v9778, 0.0
        %v9795 = vmax.f32 %v9779, 0.0
        %v9796 = vmax.f32 %v9780, 0.0
        %v9797 = vmax.f32 %v9781, 0.0
        %v9798 = vmax.f32 %v9782, 0.0
        %v9799 = vmax.f32 %v9783, 0.0
        %v9800 = vmax.f32 %v9784, 0.0
        %v9801 = vmax.f32 %v9785, 0.0
        %v9802 = vmax.f32 %v9786, 0.0
        %v9803 = vmax.f32 %v9787, 0.0
        %9805 = vset.pattern.permute.xlu0 0
        %9806 = vperm.xlu0 %9805, %v538
        %v9807 = vpop.permute.xlu0 %9806
        %9810 = vset.pattern.permute.xlu0 0
        %9811 = vperm.xlu0 %9810, %v539
        %v9812 = vpop.permute.xlu0 %9811
        %v9815 = vsel %vm1395, %v536, 0
        %v9818 = vsel %vm1395, %v537, 0
        %9820 = vmatprep.subr.mxu0 0.0
        %9821 = vmatpush1.msra.mxu0 0.0
        %9822 = vmatprep.subr.mxu0 0.0
        %9823 = vmatpush1.msra.mxu0 0.0
        %9824 = vmatprep.subr.mxu0 0.0
        %9825 = vmatpush1.msra.mxu0 0.0
        %9826 = vmatprep.subr.mxu0 0.0
        %9827 = vmatpush1.msra.mxu0 0.0
        %9828 = vmatprep.subr.mxu0 0.0
        %9829 = vmatpush1.msra.mxu0 0.0
        %9830 = vmatprep.subr.mxu0 0.0
        %9831 = vmatpush1.msra.mxu0 0.0
        %9832 = vmatprep.subr.mxu0 0.0
        %9833 = vmatpush1.msra.mxu0 0.0
        %9834 = vmatprep.subr.mxu0 0.0
        %9835 = vmatpush1.msra.mxu0 0.0
        %9836 = vmatprep.subr.mxu0 0.0
        %9837 = vmatpush1.msra.mxu0 0.0
        %9838 = vmatprep.subr.mxu0 0.0
        %9839 = vmatpush1.msra.mxu0 0.0
        %9840 = vmatprep.subr.mxu0 0.0
        %9841 = vmatpush1.msra.mxu0 0.0
        %9842 = vmatprep.subr.mxu0 0.0
        %9843 = vmatpush1.msra.mxu0 0.0
        %9844 = vmatprep.subr.mxu0 %v9801
        %9845 = vmatpush1.msra.mxu0 %v9800
        %9846 = vmatprep.subr.mxu0 %v9797
        %9847 = vmatpush1.msra.mxu0 %v9796
        %9848 = vmatprep.subr.mxu0 %v9793
        %9849 = vmatpush1.msra.mxu0 %v9792
        %9850 = vmatprep.subr.mxu0 %v9789
        %9851 = vmatpush1.msra.mxu0 %v9788
        %9852 = vmatprep.subr.mxu0 0.0
        %9853 = vmatpush2.msra.mxu0 0.0
        %9854 = vmatprep.subr.mxu0 0.0
        %9855 = vmatpush2.msra.mxu0 0.0
        %9856 = vmatprep.subr.mxu0 0.0
        %9857 = vmatpush2.msra.mxu0 0.0
        %9858 = vmatprep.subr.mxu0 0.0
        %9859 = vmatpush2.msra.mxu0 0.0
        %9860 = vmatprep.subr.mxu0 0.0
        %9861 = vmatpush2.msra.mxu0 0.0
        %9862 = vmatprep.subr.mxu0 0.0
        %9863 = vmatpush2.msra.mxu0 0.0
        %9864 = vmatprep.subr.mxu0 0.0
        %9865 = vmatpush2.msra.mxu0 0.0
        %9866 = vmatprep.subr.mxu0 0.0
        %9867 = vmatpush2.msra.mxu0 0.0
        %9868 = vmatprep.subr.mxu0 0.0
        %9869 = vmatpush2.msra.mxu0 0.0
        %9870 = vmatprep.subr.mxu0 0.0
        %9871 = vmatpush2.msra.mxu0 0.0
        %9872 = vmatprep.subr.mxu0 0.0
        %9873 = vmatpush2.msra.mxu0 0.0
        %9874 = vmatprep.subr.mxu0 0.0
        %9875 = vmatpush2.msra.mxu0 0.0
        %9876 = vmatprep.subr.mxu0 0.0
        %9877 = vmatpush2.msra.mxu0 0.0
        %9878 = vmatprep.subr.mxu0 0.0
        %9879 = vmatpush2.msra.mxu0 0.0
        %9880 = vmatprep.subr.mxu0 0.0
        %9881 = vmatpush2.msra.mxu0 0.0
        %9882 = vmatprep.subr.mxu0 0.0
        %9883 = vmatpush2.msra.mxu0 0.0
        %9884 = vmatprep.mubr.f32.mxu0 0.0
        %9885 = vmatmul.mubr.f32.gmra.mxu0 %v9815
        %v9886 = vpop.f32.mrf.mxu0
        %v9887 = vadd.f32 %v9807, %v9886
        %v9888 = vpop.f32.mrf.mxu0
        %v9889 = vadd.f32 %v9807, %v9888
        %9890 = vmatprep.mubr.f32.mxu0 0.0
        %9891 = vmatmul.mubr.f32.gmra.mxu0 %v9818
        %v9892 = vpop.f32.mrf.mxu0
        %v9893 = vadd.f32 %v9812, %v9892
        %v9894 = vpop.f32.mrf.mxu0
        %v9895 = vadd.f32 %v9812, %v9894
        %9896 = vdwg.mxu0
        %9897 = vmatprep.subr.mxu0 0.0
        %9898 = vmatpush1.msra.mxu0 0.0
        %9899 = vmatprep.subr.mxu0 0.0
        %9900 = vmatpush1.msra.mxu0 0.0
        %9901 = vmatprep.subr.mxu0 0.0
        %9902 = vmatpush1.msra.mxu0 0.0
        %9903 = vmatprep.subr.mxu0 0.0
        %9904 = vmatpush1.msra.mxu0 0.0
        %9905 = vmatprep.subr.mxu0 0.0
        %9906 = vmatpush1.msra.mxu0 0.0
        %9907 = vmatprep.subr.mxu0 0.0
        %9908 = vmatpush1.msra.mxu0 0.0
        %9909 = vmatprep.subr.mxu0 0.0
        %9910 = vmatpush1.msra.mxu0 0.0
        %9911 = vmatprep.subr.mxu0 0.0
        %9912 = vmatpush1.msra.mxu0 0.0
        %9913 = vmatprep.subr.mxu0 0.0
        %9914 = vmatpush1.msra.mxu0 0.0
        %9915 = vmatprep.subr.mxu0 0.0
        %9916 = vmatpush1.msra.mxu0 0.0
        %9917 = vmatprep.subr.mxu0 0.0
        %9918 = vmatpush1.msra.mxu0 0.0
        %9919 = vmatprep.subr.mxu0 0.0
        %9920 = vmatpush1.msra.mxu0 0.0
        %9921 = vmatprep.subr.mxu0 %v9803
        %9922 = vmatpush1.msra.mxu0 %v9802
        %9923 = vmatprep.subr.mxu0 %v9799
        %9924 = vmatpush1.msra.mxu0 %v9798
        %9925 = vmatprep.subr.mxu0 %v9795
        %9926 = vmatpush1.msra.mxu0 %v9794
        %9927 = vmatprep.subr.mxu0 %v9791
        %9928 = vmatpush1.msra.mxu0 %v9790
        %9929 = vmatprep.subr.mxu0 0.0
        %9930 = vmatpush2.msra.mxu0 0.0
        %9931 = vmatprep.subr.mxu0 0.0
        %9932 = vmatpush2.msra.mxu0 0.0
        %9933 = vmatprep.subr.mxu0 0.0
        %9934 = vmatpush2.msra.mxu0 0.0
        %9935 = vmatprep.subr.mxu0 0.0
        %9936 = vmatpush2.msra.mxu0 0.0
        %9937 = vmatprep.subr.mxu0 0.0
        %9938 = vmatpush2.msra.mxu0 0.0
        %9939 = vmatprep.subr.mxu0 0.0
        %9940 = vmatpush2.msra.mxu0 0.0
        %9941 = vmatprep.subr.mxu0 0.0
        %9942 = vmatpush2.msra.mxu0 0.0
        %9943 = vmatprep.subr.mxu0 0.0
        %9944 = vmatpush2.msra.mxu0 0.0
        %9945 = vmatprep.subr.mxu0 0.0
        %9946 = vmatpush2.msra.mxu0 0.0
        %9947 = vmatprep.subr.mxu0 0.0
        %9948 = vmatpush2.msra.mxu0 0.0
        %9949 = vmatprep.subr.mxu0 0.0
        %9950 = vmatpush2.msra.mxu0 0.0
        %9951 = vmatprep.subr.mxu0 0.0
        %9952 = vmatpush2.msra.mxu0 0.0
        %9953 = vmatprep.subr.mxu0 0.0
        %9954 = vmatpush2.msra.mxu0 0.0
        %9955 = vmatprep.subr.mxu0 0.0
        %9956 = vmatpush2.msra.mxu0 0.0
        %9957 = vmatprep.subr.mxu0 0.0
        %9958 = vmatpush2.msra.mxu0 0.0
        %9959 = vmatprep.subr.mxu0 0.0
        %9960 = vmatpush2.msra.mxu0 0.0
        %9961 = vmatprep.mubr.f32.mxu0 0.0
        %9962 = vmatmul.mubr.f32.gmra.mxu0 %v9815
        %v9963 = vpop.f32.mrf.mxu0
        %v9964 = vadd.f32 %v9807, %v9963
        %v9965 = vpop.f32.mrf.mxu0
        %v9966 = vadd.f32 %v9807, %v9965
        %9967 = vmatprep.mubr.f32.mxu0 0.0
        %9968 = vmatmul.mubr.f32.gmra.mxu0 %v9818
        %v9969 = vpop.f32.mrf.mxu0
        %v9970 = vadd.f32 %v9812, %v9969
        %v9971 = vpop.f32.mrf.mxu0
        %v9972 = vadd.f32 %v9812, %v9971
        %9973 = vdwg.mxu0
        %v9974 = vmax.f32 %v9887, 0.0
        %v9975 = vmax.f32 %v9889, 0.0
        %v9976 = vmax.f32 %v9964, 0.0
        %v9977 = vmax.f32 %v9966, 0.0
        %v9978 = vmax.f32 %v9893, 0.0
        %v9979 = vmax.f32 %v9895, 0.0
        %v9980 = vmax.f32 %v9970, 0.0
        %v9981 = vmax.f32 %v9972, 0.0
        %9982 = vst [vmem:[%s394] sm:$0xff] %v9974
        %9983 = vst [vmem:[%s394 + $0x8] sm:$0xff] %v9975
        %9984 = vst [vmem:[%s394 + $0x10] sm:$0xff] %v9976
        %9985 = vst [vmem:[%s394 + $0x18] sm:$0xff] %v9977
        %9986 = vst [vmem:[%s394 + $0x20] sm:$0xff] %v9978
        %9987 = vst [vmem:[%s394 + $0x28] sm:$0xff] %v9979
        %9988 = vst [vmem:[%s394 + $0x30] sm:$0xff] %v9980
        %9989 = vst [vmem:[%s394 + $0x38] sm:$0xff] %v9981
        %s9990 = sand.u32 %s270, 1
        %s9991 = scalar_lea.sflag [#allocation5], %s9990
        %s9992 = sand.u32 %s270, 1
        %s9993 = smul.addr %s9992, 64
        %s9994 = scalar_lea.vmem [#allocation6], %s9993
        // Predicated region
        $region69: #{tpu_custom_call.1} parent=63 // pred_check
          %p9995 = pneg %p280
        $region70: #{tpu_custom_call.1} parent=63 // pred_check_branch
          %9997 = sbr.rel (%p9995) target = $region72
        $region71: #{tpu_custom_call.1} parent=63 // pred_region
          %s9999 = ssub.s32 1024, 1024
          %10000 = vsyncadd %s9991, %s9999
          %s10001 = smul.addr %s26, 8
          %s10002 = smul.addr %s10001, 128
          %s10003 = scalar_lea.hbm %s11, %s10002
          %s10004 = sshll.u32 %s9994, 4
          %s10005 = int_to_ptr.vmem [resolvable:$true] %s10004
          %10010 = dma.vmem_to_hbm [thread:$0]  %s10005, 1024, %s10003, %s9991, 512, 512, 32
        $region72: #{tpu_custom_call.1} parent=63 // pred_fallthru
          _
      $region64: #{tpu_custom_call.1} parent=5 // pred_fallthru
        _
      %p10011 = scmp.le.s32.totalorder 2, %s21
      // Predicated region
      $region73: #{tpu_custom_call.1} parent=5 // pred_check
        %p10012 = pneg %p10011
      $region74: #{tpu_custom_call.1} parent=5 // pred_check_branch
        %10014 = sbr.rel (%p10012) target = $region76
      $region75: #{tpu_custom_call.1} parent=5 // pred_region
        %s10015 = ssub.s32 %s21, 2
        // Predicated region
        $region77: #{tpu_custom_call.1} parent=75 // pred_check
          %p10016 = pneg %p286
        $region78: #{tpu_custom_call.1} parent=75 // pred_check_branch
          %10018 = sbr.rel (%p10016) target = $region80
        $region79: #{tpu_custom_call.1} parent=75 // pred_region
          %s10019 = sand.u32 %s271, 1
          %s10020 = scalar_lea.sflag [#allocation5], %s10019
          %s10021 = sand.u32 %s271, 1
          %s10022 = smul.addr %s10021, 64
          %s10023 = scalar_lea.vmem [#allocation6], %s10022
          %10024 = dma.done %s10020, 1024
        $region80: #{tpu_custom_call.1} parent=75 // pred_fallthru
          _
      $region76: #{tpu_custom_call.1} parent=5 // pred_fallthru
        _
    $region6: #{tpu_custom_call.1} parent=1 // loop_footer
      %s25 = sadd.s32 1, %s21
    $region7: #{tpu_custom_call.1} parent=1 // loop_footer_branch
      %20 = sbr.rel target = $region3
    $region8: #{tpu_custom_call.1} parent=1 // loop_exit
      _
    %10025 = vsyncpa [#allocation4], 1
    %s10026 = scalar_lea.sflag [#allocation4], 1
    %10027 = vsyncpa %s10026, 1
    %10028 = vsyncpa [#allocation5], 1
    %s10029 = scalar_lea.sflag [#allocation5], 1
    %10030 = vsyncpa %s10029, 1

</llo_original>
